<compile_context>
chip_gen: v5e
topology: v5e:2x2
jax: 0.10.0
libtpu: 0.0.40
codegen_flags: <defaults>
</compile_context>

<pallas_src>
from functools import partial

import jax
import jax.numpy as jnp
from jax.experimental import pallas as pl
from jax.experimental.pallas import tpu as pltpu


def _rup(x, m):
    return ((x + m - 1) // m) * m


# ----------------------------- Pallas kernels ------------------------------ #

def _conv3x3_flat(x, w_ref, b_ref, *, Wp, mask):
    """3x3 'same' conv on a channel-first, flattened, zero-padded activation.

    x     : (Cin_p, Npad)       zeros at padding ring / channel pad / tail
    w_ref : (Cout_p, 9*Cin_p)   bf16, column = tap_k * Cin_p + cin, tap_k = dy*3+dx
    b_ref : (Cout_p, 1)         f32
    mask  : (1, Npad)           f32, 1.0 at interior pixels
    returns (Cout_p, Npad) f32 with zeros outside the interior.
    """
    cin, npad = x.shape
    xb = x.astype(jnp.bfloat16)
    margin = _rup(Wp + 1, 128)                     # lane-aligned concat offsets
    zpad = jnp.zeros((cin, margin), jnp.bfloat16)
    xe = jnp.concatenate([zpad, xb, zpad], axis=1)  # (cin, npad + 2*margin)

    taps = []
    for dy in range(3):
        for dx in range(3):
            s = (dy - 1) * Wp + (dx - 1)           # flat shift of the padded image
            taps.append(xe[:, margin + s: margin + s + npad])
    patches = jnp.concatenate(taps, axis=0)        # (9*cin, npad) bf16  (im2col)

    out = jnp.dot(w_ref[...], patches, preferred_element_type=jnp.float32)
    return (out + b_ref[...]) * mask


def _lrelu(v):
    return jnp.where(v >= 0, v, jnp.float32(0.2) * v)


def _pa_up_stage_kernel(*args, Wp, has_last):
    """One PA_UP stage: upconv(3x3) -> PA gate -> lrelu -> HRconv(3x3) -> lrelu
    and, for the final stage, conv_last(3x3)."""
    if has_last:
        (x_ref, mask_ref, wu_ref, bu_ref, wpa_ref, bpa_ref,
         wh_ref, bh_ref, wl_ref, bl_ref, o_ref) = args
    else:
        (x_ref, mask_ref, wu_ref, bu_ref, wpa_ref, bpa_ref,
         wh_ref, bh_ref, o_ref) = args
        wl_ref = bl_ref = None

    mask = mask_ref[...]                           # (1, Npad) f32
    x = x_ref[...]                                 # (Cin_p, Npad) bf16

    # upconv (3x3)
    f = _conv3x3_flat(x, wu_ref, bu_ref, Wp=Wp, mask=mask)

    # PA: y = sigmoid(conv1x1(f)); f = f * y; then LeakyReLU(0.2)
    g = jnp.dot(wpa_ref[...], f.astype(jnp.bfloat16),
                preferred_element_type=jnp.float32) + bpa_ref[...]
    g = 1.0 / (1.0 + jnp.exp(-g))
    f = _lrelu(f * g)

    # HRconv (3x3) + LeakyReLU(0.2)
    f = _lrelu(_conv3x3_flat(f, wh_ref, bh_ref, Wp=Wp, mask=mask))

    if has_last:
        f = _conv3x3_flat(f, wl_ref, bl_ref, Wp=Wp, mask=mask)

    o_ref[...] = f.astype(o_ref.dtype)


def _run_stage(x_flat, mask, weights, *, Wp, cout, has_last):
    N, C, npad = x_flat.shape
    kernel = partial(_pa_up_stage_kernel, Wp=Wp, has_last=has_last)

    def _const(a):
        return pl.BlockSpec(a.shape, lambda n: (0, 0))   # all consts are 2-D

    return pl.pallas_call(
        kernel,
        out_shape=jax.ShapeDtypeStruct((N, cout, npad), jnp.bfloat16),
        grid=(N,),
        in_specs=([pl.BlockSpec((None, C, npad), lambda n: (n, 0, 0)),
                   _const(mask)] + [_const(w) for w in weights]),
        out_specs=pl.BlockSpec((None, cout, npad), lambda n: (n, 0, 0)),
        compiler_params=pltpu.CompilerParams(
            dimension_semantics=("parallel",),
            vmem_limit_bytes=32 * 1024 * 1024),
    )(x_flat, mask, *weights)


# ------------------------- weight packing / layout glue -------------------- #

def _prep_conv3x3(w_hwio, cin_p, cout_p):
    """(3,3,Cin,Cout) HWIO -> (Cout_p, 9*Cin_p) bf16, column = tap*Cin_p + cin."""
    kh, kw, cin, cout = w_hwio.shape
    w = jnp.transpose(w_hwio.reshape(kh * kw, cin, cout), (2, 0, 1))   # (cout, 9, cin)
    w = jnp.pad(w, ((0, cout_p - cout), (0, 0), (0, cin_p - cin)))
    return w.reshape(cout_p, kh * kw * cin_p).astype(jnp.bfloat16)


def _prep_conv1x1(w_io, c_p):
    """(Cin, Cout) -> (Cout_p, Cin_p) bf16."""
    cin, cout = w_io.shape
    w = jnp.pad(w_io.T, ((0, c_p - cout), (0, c_p - cin)))
    return w.astype(jnp.bfloat16)


def _prep_bias(b, c_p):
    return jnp.pad(b, (0, c_p - b.shape[0])).astype(jnp.float32).reshape(c_p, 1)


def _nearest_up2(x):
    return jnp.repeat(jnp.repeat(x, 2, axis=2), 2, axis=3)


def _pack_flat(x, c_p):
    """(N, C, Hs, Ws) -> bf16 (N, c_p, Npad) zero-padded flattened layout + interior mask."""
    n, c, hs, ws = x.shape
    hp, wp = hs + 2, ws + 2
    npad = _rup(hp * wp, 128)
    xp = jnp.pad(x, ((0, 0), (0, c_p - c), (1, 1), (1, 1)))
    xf = xp.reshape(n, c_p, hp * wp)
    xf = jnp.pad(xf, ((0, 0), (0, 0), (0, npad - hp * wp)))

    idx = jnp.arange(npad)
    row, col = idx // wp, idx % wp
    mask = ((row >= 1) & (row <= hs) & (col >= 1) & (col <= ws)
            & (idx < hp * wp)).astype(jnp.float32).reshape(1, npad)
    return xf.astype(jnp.bfloat16), mask


def _unpack_flat(y, c, hs, ws):
    n = y.shape[0]
    hp, wp = hs + 2, ws + 2
    y = y[:, :c, :hp * wp].reshape(n, c, hp, wp)
    return y[:, :, 1:1 + hs, 1:1 + ws]


# ------------------------------- forward ----------------------------------- #

def pa_up_forward(x, params, *, nf, unf, out_nc):
    nf_p, unf_p = _rup(nf, 8), _rup(unf, 8)
    n, _, h, w = x.shape

    wA = [_prep_conv3x3(params["w_up1"], nf_p, unf_p), _prep_bias(params["b_up1"], unf_p),
          _prep_conv1x1(params["w_pa1"], unf_p),       _prep_bias(params["b_pa1"], unf_p),
          _prep_conv3x3(params["w_hr1"], unf_p, unf_p), _prep_bias(params["b_hr1"], unf_p)]
    wB = [_prep_conv3x3(params["w_up2"], unf_p, unf_p), _prep_bias(params["b_up2"], unf_p),
          _prep_conv1x1(params["w_pa2"], unf_p),       _prep_bias(params["b_pa2"], unf_p),
          _prep_conv3x3(params["w_hr2"], unf_p, unf_p), _prep_bias(params["b_hr2"], unf_p),
          _prep_conv3x3(params["w_last"], unf_p, out_nc), _prep_bias(params["b_last"], out_nc)]

    # stage 1: nearest 2x -> upconv1 -> PA1 -> lrelu -> HRconv1 -> lrelu
    hs, ws = 2 * h, 2 * w
    xa_flat, mask_a = _pack_flat(_nearest_up2(x), nf_p)
    ya = _run_stage(xa_flat, mask_a, wA, Wp=ws + 2, cout=unf_p, has_last=False)

    # stage 2: nearest 2x -> upconv2 -> PA2 -> lrelu -> HRconv2 -> lrelu -> conv_last
    fa = _unpack_flat(ya, unf, hs, ws)
    hs, ws = 4 * h, 4 * w
    xb_flat, mask_b = _pack_flat(_nearest_up2(fa), unf_p)
    yb = _run_stage(xb_flat, mask_b, wB, Wp=ws + 2, cout=out_nc, has_last=True)

    return _unpack_flat(yb, out_nc, hs, ws).astype(jnp.float32)


# ------------------------ pure-JAX f32 reference ---------------------------- #

def _forward_ref(x, params):
    hi = jax.lax.Precision.HIGHEST

    def conv(v, w, b):
        y = jax.lax.conv_general_dilated(
            v, w, (1, 1), "SAME",
            dimension_numbers=("NCHW", "HWIO", "NCHW"), precision=hi)
        return y + b[None, :, None, None]

    def lrelu(v):
        return jnp.where(v >= 0, v, 0.2 * v)

    def up2(v):
        return jnp.repeat(jnp.repeat(v, 2, axis=2), 2, axis=3)

    f = conv(up2(x), params["w_up1"], params["b_up1"])
    f = lrelu(f * jax.nn.sigmoid(conv(f, params["w_pa1"][None, None], params["b_pa1"])))
    f = lrelu(conv(f, params["w_hr1"], params["b_hr1"]))
    f = conv(up2(f), params["w_up2"], params["b_up2"])
    f = lrelu(f * jax.nn.sigmoid(conv(f, params["w_pa2"][None, None], params["b_pa2"])))
    f = lrelu(conv(f, params["w_hr2"], params["b_hr2"]))
    f = conv(f, params["w_last"], params["b_last"])
    return f


# --------------------------------- main ------------------------------------ #

if __name__ == "__main__":
    N, nf, unf, out_nc, H, W = 2, 4, 8, 3, 16, 16

    key = jax.random.PRNGKey(0)
    keys = jax.random.split(key, 16)

    def winit(k, shape):
        return (0.1 * jax.random.normal(k, shape)).astype(jnp.float32)

    params = {
        "w_up1": winit(keys[0], (3, 3, nf, unf)),        "b_up1": winit(keys[1], (unf,)),
        "w_pa1": winit(keys[2], (unf, unf)),             "b_pa1": winit(keys[3], (unf,)),
        "w_hr1": winit(keys[4], (3, 3, unf, unf)),       "b_hr1": winit(keys[5], (unf,)),
        "w_up2": winit(keys[6], (3, 3, unf, unf)),       "b_up2": winit(keys[7], (unf,)),
        "w_pa2": winit(keys[8], (unf, unf)),             "b_pa2": winit(keys[9], (unf,)),
        "w_hr2": winit(keys[10], (3, 3, unf, unf)),      "b_hr2": winit(keys[11], (unf,)),
        "w_last": winit(keys[12], (3, 3, unf, out_nc)),  "b_last": winit(keys[13], (out_nc,)),
    }
    x = jax.random.normal(keys[14], (N, nf, H, W), dtype=jnp.float32)

    fwd = jax.jit(partial(pa_up_forward, nf=nf, unf=unf, out_nc=out_nc))
    out = jax.block_until_ready(fwd(x, params))
    assert out.shape == (N, out_nc, 4 * H, 4 * W), out.shape

    ref = jax.block_until_ready(_forward_ref(x, params))
    max_err = float(jnp.max(jnp.abs(out - ref)))
    # bf16 matmul operands / bf16 inter-stage activations -> widened tolerance.
    assert jnp.allclose(out, ref, atol=5e-2, rtol=5e-2), max_err

    print("KERNEL_OK")
</pallas_src>

<mosaic_0001>
module attributes {stable_mosaic.version = 11 : i64} {
  func.func @_pa_up_stage_kernel(%arg0: i32, %arg1: memref<1x8x1280xbf16, #tpu.memory_space<vmem>>, %arg2: memref<1x1280xf32, #tpu.memory_space<vmem>>, %arg3: memref<8x72xbf16, #tpu.memory_space<vmem>>, %arg4: memref<8x1xf32, #tpu.memory_space<vmem>>, %arg5: memref<8x8xbf16, #tpu.memory_space<vmem>>, %arg6: memref<8x1xf32, #tpu.memory_space<vmem>>, %arg7: memref<8x72xbf16, #tpu.memory_space<vmem>>, %arg8: memref<8x1xf32, #tpu.memory_space<vmem>>, %arg9: memref<1x8x1280xbf16, #tpu.memory_space<vmem>>) attributes {dimension_semantics = [#tpu.dimension_semantics<parallel>], iteration_bounds = array<i64: 2>, scalar_prefetch = 0 : i64, scratch_operands = 0 : i64, tpu.core_type = #tpu.core_type<tc>, window_params = [{transform_indices = @transform_0, window_bounds = array<i64: 1, 8, 1280>}, {pipeline_mode = #tpu.pipeline_mode<synchronous>, transform_indices = @transform_1, window_bounds = array<i64: 1, 1280>}, {pipeline_mode = #tpu.pipeline_mode<synchronous>, transform_indices = @transform_2, window_bounds = array<i64: 8, 72>}, {pipeline_mode = #tpu.pipeline_mode<synchronous>, transform_indices = @transform_3, window_bounds = array<i64: 8, 1>}, {pipeline_mode = #tpu.pipeline_mode<synchronous>, transform_indices = @transform_4, window_bounds = array<i64: 8, 8>}, {pipeline_mode = #tpu.pipeline_mode<synchronous>, transform_indices = @transform_5, window_bounds = array<i64: 8, 1>}, {pipeline_mode = #tpu.pipeline_mode<synchronous>, transform_indices = @transform_6, window_bounds = array<i64: 8, 72>}, {pipeline_mode = #tpu.pipeline_mode<synchronous>, transform_indices = @transform_7, window_bounds = array<i64: 8, 1>}, {transform_indices = @transform_8, window_bounds = array<i64: 1, 8, 1280>}]} {
    %c0 = arith.constant 0 : index
    %c0_0 = arith.constant 0 : index
    %0 = vector.load %arg2[%c0, %c0_0] : memref<1x1280xf32, #tpu.memory_space<vmem>>, vector<1x1280xf32>
    %c0_1 = arith.constant 0 : index
    %c0_2 = arith.constant 0 : index
    %c0_3 = arith.constant 0 : index
    %1 = vector.load %arg1[%c0_1, %c0_2, %c0_3] : memref<1x8x1280xbf16, #tpu.memory_space<vmem>>, vector<1x8x1280xbf16>
    %2 = vector.shape_cast %1 : vector<1x8x1280xbf16> to vector<8x1280xbf16>
    %cst = arith.constant 0.000000e+00 : bf16
    %3 = vector.broadcast %cst : bf16 to vector<8x128xbf16>
    %4 = tpu.concatenate %3, %2, %3 in 1 : vector<8x128xbf16>, vector<8x1280xbf16>, vector<8x128xbf16> -> vector<8x1536xbf16>
    %5 = vector.extract_strided_slice %4 {offsets = [0, 93], sizes = [8, 1280], strides = [1, 1]} : vector<8x1536xbf16> to vector<8x1280xbf16>
    %6 = vector.extract_strided_slice %4 {offsets = [0, 94], sizes = [8, 1280], strides = [1, 1]} : vector<8x1536xbf16> to vector<8x1280xbf16>
    %7 = vector.extract_strided_slice %4 {offsets = [0, 95], sizes = [8, 1280], strides = [1, 1]} : vector<8x1536xbf16> to vector<8x1280xbf16>
    %8 = vector.extract_strided_slice %4 {offsets = [0, 127], sizes = [8, 1280], strides = [1, 1]} : vector<8x1536xbf16> to vector<8x1280xbf16>
    %9 = vector.extract_strided_slice %4 {offsets = [0, 128], sizes = [8, 1280], strides = [1, 1]} : vector<8x1536xbf16> to vector<8x1280xbf16>
    %10 = vector.extract_strided_slice %4 {offsets = [0, 129], sizes = [8, 1280], strides = [1, 1]} : vector<8x1536xbf16> to vector<8x1280xbf16>
    %11 = vector.extract_strided_slice %4 {offsets = [0, 161], sizes = [8, 1280], strides = [1, 1]} : vector<8x1536xbf16> to vector<8x1280xbf16>
    %12 = vector.extract_strided_slice %4 {offsets = [0, 162], sizes = [8, 1280], strides = [1, 1]} : vector<8x1536xbf16> to vector<8x1280xbf16>
    %13 = vector.extract_strided_slice %4 {offsets = [0, 163], sizes = [8, 1280], strides = [1, 1]} : vector<8x1536xbf16> to vector<8x1280xbf16>
    %14 = tpu.concatenate %5, %6, %7, %8, %9, %10, %11, %12, %13 in 0 : vector<8x1280xbf16>, vector<8x1280xbf16>, vector<8x1280xbf16>, vector<8x1280xbf16>, vector<8x1280xbf16>, vector<8x1280xbf16>, vector<8x1280xbf16>, vector<8x1280xbf16>, vector<8x1280xbf16> -> vector<72x1280xbf16>
    %c0_4 = arith.constant 0 : index
    %c0_5 = arith.constant 0 : index
    %15 = vector.load %arg3[%c0_4, %c0_5] : memref<8x72xbf16, #tpu.memory_space<vmem>>, vector<8x72xbf16>
    %cst_6 = arith.constant dense<0.000000e+00> : vector<8x1280xf32>
    %16 = tpu.matmul %15, %14, %cst_6 {dimension_numbers = #tpu.dot_dimension_numbers<[1], [0], [0], [1], [0, 0, 1, 1], [], []>} : vector<8x72xbf16>, vector<72x1280xbf16>, vector<8x1280xf32> -> vector<8x1280xf32>
    %c0_7 = arith.constant 0 : index
    %c0_8 = arith.constant 0 : index
    %17 = vector.load %arg4[%c0_7, %c0_8] : memref<8x1xf32, #tpu.memory_space<vmem>>, vector<8x1xf32>
    %18 = vector.broadcast %17 : vector<8x1xf32> to vector<8x1280xf32>
    %19 = arith.addf %16, %18 : vector<8x1280xf32>
    %20 = vector.broadcast %0 : vector<1x1280xf32> to vector<8x1280xf32>
    %21 = arith.mulf %19, %20 : vector<8x1280xf32>
    %c0_9 = arith.constant 0 : index
    %c0_10 = arith.constant 0 : index
    %22 = vector.load %arg5[%c0_9, %c0_10] : memref<8x8xbf16, #tpu.memory_space<vmem>>, vector<8x8xbf16>
    %23 = arith.truncf %21 : vector<8x1280xf32> to vector<8x1280xbf16>
    %cst_11 = arith.constant dense<0.000000e+00> : vector<8x1280xf32>
    %24 = tpu.matmul %22, %23, %cst_11 {dimension_numbers = #tpu.dot_dimension_numbers<[1], [0], [0], [1], [0, 0, 1, 1], [], []>} : vector<8x8xbf16>, vector<8x1280xbf16>, vector<8x1280xf32> -> vector<8x1280xf32>
    %c0_12 = arith.constant 0 : index
    %c0_13 = arith.constant 0 : index
    %25 = vector.load %arg6[%c0_12, %c0_13] : memref<8x1xf32, #tpu.memory_space<vmem>>, vector<8x1xf32>
    %26 = vector.broadcast %25 : vector<8x1xf32> to vector<8x1280xf32>
    %27 = arith.addf %24, %26 : vector<8x1280xf32>
    %cst_14 = arith.constant 0.000000e+00 : f32
    %28 = vector.broadcast %cst_14 : f32 to vector<8x1280xf32>
    %29 = arith.subf %28, %27 : vector<8x1280xf32>
    %30 = math.exp %29 : vector<8x1280xf32>
    %cst_15 = arith.constant 1.000000e+00 : f32
    %31 = vector.broadcast %cst_15 : f32 to vector<8x1280xf32>
    %32 = arith.addf %31, %30 : vector<8x1280xf32>
    %cst_16 = arith.constant 1.000000e+00 : f32
    %33 = vector.broadcast %cst_16 : f32 to vector<8x1280xf32>
    %34 = arith.divf %33, %32 : vector<8x1280xf32>
    %35 = arith.mulf %21, %34 : vector<8x1280xf32>
    %cst_17 = arith.constant 0.000000e+00 : f32
    %36 = vector.broadcast %cst_17 : f32 to vector<8x1280xf32>
    %37 = arith.cmpf oge, %35, %36 : vector<8x1280xf32>
    %cst_18 = arith.constant 2.000000e-01 : f32
    %38 = vector.broadcast %cst_18 : f32 to vector<8x1280xf32>
    %39 = arith.mulf %38, %35 : vector<8x1280xf32>
    %40 = arith.select %37, %35, %39 : vector<8x1280xi1>, vector<8x1280xf32>
    %41 = arith.truncf %40 : vector<8x1280xf32> to vector<8x1280xbf16>
    %cst_19 = arith.constant 0.000000e+00 : bf16
    %42 = vector.broadcast %cst_19 : bf16 to vector<8x128xbf16>
    %43 = tpu.concatenate %42, %41, %42 in 1 : vector<8x128xbf16>, vector<8x1280xbf16>, vector<8x128xbf16> -> vector<8x1536xbf16>
    %44 = vector.extract_strided_slice %43 {offsets = [0, 93], sizes = [8, 1280], strides = [1, 1]} : vector<8x1536xbf16> to vector<8x1280xbf16>
    %45 = vector.extract_strided_slice %43 {offsets = [0, 94], sizes = [8, 1280], strides = [1, 1]} : vector<8x1536xbf16> to vector<8x1280xbf16>
    %46 = vector.extract_strided_slice %43 {offsets = [0, 95], sizes = [8, 1280], strides = [1, 1]} : vector<8x1536xbf16> to vector<8x1280xbf16>
    %47 = vector.extract_strided_slice %43 {offsets = [0, 127], sizes = [8, 1280], strides = [1, 1]} : vector<8x1536xbf16> to vector<8x1280xbf16>
    %48 = vector.extract_strided_slice %43 {offsets = [0, 128], sizes = [8, 1280], strides = [1, 1]} : vector<8x1536xbf16> to vector<8x1280xbf16>
    %49 = vector.extract_strided_slice %43 {offsets = [0, 129], sizes = [8, 1280], strides = [1, 1]} : vector<8x1536xbf16> to vector<8x1280xbf16>
    %50 = vector.extract_strided_slice %43 {offsets = [0, 161], sizes = [8, 1280], strides = [1, 1]} : vector<8x1536xbf16> to vector<8x1280xbf16>
    %51 = vector.extract_strided_slice %43 {offsets = [0, 162], sizes = [8, 1280], strides = [1, 1]} : vector<8x1536xbf16> to vector<8x1280xbf16>
    %52 = vector.extract_strided_slice %43 {offsets = [0, 163], sizes = [8, 1280], strides = [1, 1]} : vector<8x1536xbf16> to vector<8x1280xbf16>
    %53 = tpu.concatenate %44, %45, %46, %47, %48, %49, %50, %51, %52 in 0 : vector<8x1280xbf16>, vector<8x1280xbf16>, vector<8x1280xbf16>, vector<8x1280xbf16>, vector<8x1280xbf16>, vector<8x1280xbf16>, vector<8x1280xbf16>, vector<8x1280xbf16>, vector<8x1280xbf16> -> vector<72x1280xbf16>
    %c0_20 = arith.constant 0 : index
    %c0_21 = arith.constant 0 : index
    %54 = vector.load %arg7[%c0_20, %c0_21] : memref<8x72xbf16, #tpu.memory_space<vmem>>, vector<8x72xbf16>
    %cst_22 = arith.constant dense<0.000000e+00> : vector<8x1280xf32>
    %55 = tpu.matmul %54, %53, %cst_22 {dimension_numbers = #tpu.dot_dimension_numbers<[1], [0], [0], [1], [0, 0, 1, 1], [], []>} : vector<8x72xbf16>, vector<72x1280xbf16>, vector<8x1280xf32> -> vector<8x1280xf32>
    %c0_23 = arith.constant 0 : index
    %c0_24 = arith.constant 0 : index
    %56 = vector.load %arg8[%c0_23, %c0_24] : memref<8x1xf32, #tpu.memory_space<vmem>>, vector<8x1xf32>
    %57 = vector.broadcast %56 : vector<8x1xf32> to vector<8x1280xf32>
    %58 = arith.addf %55, %57 : vector<8x1280xf32>
    %59 = vector.broadcast %0 : vector<1x1280xf32> to vector<8x1280xf32>
    %60 = arith.mulf %58, %59 : vector<8x1280xf32>
    %cst_25 = arith.constant 0.000000e+00 : f32
    %61 = vector.broadcast %cst_25 : f32 to vector<8x1280xf32>
    %62 = arith.cmpf oge, %60, %61 : vector<8x1280xf32>
    %cst_26 = arith.constant 2.000000e-01 : f32
    %63 = vector.broadcast %cst_26 : f32 to vector<8x1280xf32>
    %64 = arith.mulf %63, %60 : vector<8x1280xf32>
    %65 = arith.select %62, %60, %64 : vector<8x1280xi1>, vector<8x1280xf32>
    %66 = arith.truncf %65 : vector<8x1280xf32> to vector<8x1280xbf16>
    %c0_27 = arith.constant 0 : index
    %c0_28 = arith.constant 0 : index
    %c0_29 = arith.constant 0 : index
    %67 = vector.load %arg9[%c0_27, %c0_28, %c0_29] : memref<1x8x1280xbf16, #tpu.memory_space<vmem>>, vector<1x8x1280xbf16>
    %68 = vector.shape_cast %67 : vector<1x8x1280xbf16> to vector<8x1280xbf16>
    %69 = vector.shape_cast %66 : vector<8x1280xbf16> to vector<1x8x1280xbf16>
    tpu.vector_store %arg9[%c0_27, %c0_28, %c0_29], %69 {strides = array<i32>} : memref<1x8x1280xbf16, #tpu.memory_space<vmem>>, vector<1x8x1280xbf16>,
    return
  }
  func.func @transform_0(%arg0: i32) -> (i32, i32, i32) {
    %c0_i32 = arith.constant 0 : i32
    %c0_i32_0 = arith.constant 0 : i32
    %c0_i32_1 = arith.constant 0 : i32
    return %arg0, %c0_i32, %c0_i32_0 : i32, i32, i32
  }
  func.func @transform_1(%arg0: i32) -> (i32, i32) {
    %c0_i32 = arith.constant 0 : i32
    %c0_i32_0 = arith.constant 0 : i32
    %c0_i32_1 = arith.constant 0 : i32
    return %c0_i32, %c0_i32_0 : i32, i32
  }
  func.func @transform_2(%arg0: i32) -> (i32, i32) {
    %c0_i32 = arith.constant 0 : i32
    %c0_i32_0 = arith.constant 0 : i32
    %c0_i32_1 = arith.constant 0 : i32
    return %c0_i32, %c0_i32_0 : i32, i32
  }
  func.func @transform_3(%arg0: i32) -> (i32, i32) {
    %c0_i32 = arith.constant 0 : i32
    %c0_i32_0 = arith.constant 0 : i32
    %c0_i32_1 = arith.constant 0 : i32
    return %c0_i32, %c0_i32_0 : i32, i32
  }
  func.func @transform_4(%arg0: i32) -> (i32, i32) {
    %c0_i32 = arith.constant 0 : i32
    %c0_i32_0 = arith.constant 0 : i32
    %c0_i32_1 = arith.constant 0 : i32
    return %c0_i32, %c0_i32_0 : i32, i32
  }
  func.func @transform_5(%arg0: i32) -> (i32, i32) {
    %c0_i32 = arith.constant 0 : i32
    %c0_i32_0 = arith.constant 0 : i32
    %c0_i32_1 = arith.constant 0 : i32
    return %c0_i32, %c0_i32_0 : i32, i32
  }
  func.func @transform_6(%arg0: i32) -> (i32, i32) {
    %c0_i32 = arith.constant 0 : i32
    %c0_i32_0 = arith.constant 0 : i32
    %c0_i32_1 = arith.constant 0 : i32
    return %c0_i32, %c0_i32_0 : i32, i32
  }
  func.func @transform_7(%arg0: i32) -> (i32, i32) {
    %c0_i32 = arith.constant 0 : i32
    %c0_i32_0 = arith.constant 0 : i32
    %c0_i32_1 = arith.constant 0 : i32
    return %c0_i32, %c0_i32_0 : i32, i32
  }
  func.func @transform_8(%arg0: i32) -> (i32, i32, i32) {
    %c0_i32 = arith.constant 0 : i32
    %c0_i32_0 = arith.constant 0 : i32
    %c0_i32_1 = arith.constant 0 : i32
    return %arg0, %c0_i32, %c0_i32_0 : i32, i32, i32
  }
}

module attributes {stable_mosaic.version = 11 : i64} {
  func.func @_pa_up_stage_kernel(%arg0: i32, %arg1: memref<1x8x4480xbf16, #tpu.memory_space<vmem>>, %arg2: memref<1x4480xf32, #tpu.memory_space<vmem>>, %arg3: memref<8x72xbf16, #tpu.memory_space<vmem>>, %arg4: memref<8x1xf32, #tpu.memory_space<vmem>>, %arg5: memref<8x8xbf16, #tpu.memory_space<vmem>>, %arg6: memref<8x1xf32, #tpu.memory_space<vmem>>, %arg7: memref<8x72xbf16, #tpu.memory_space<vmem>>, %arg8: memref<8x1xf32, #tpu.memory_space<vmem>>, %arg9: memref<3x72xbf16, #tpu.memory_space<vmem>>, %arg10: memref<3x1xf32, #tpu.memory_space<vmem>>, %arg11: memref<1x3x4480xbf16, #tpu.memory_space<vmem>>) attributes {dimension_semantics = [#tpu.dimension_semantics<parallel>], iteration_bounds = array<i64: 2>, scalar_prefetch = 0 : i64, scratch_operands = 0 : i64, tpu.core_type = #tpu.core_type<tc>, window_params = [{transform_indices = @transform_0, window_bounds = array<i64: 1, 8, 4480>}, {pipeline_mode = #tpu.pipeline_mode<synchronous>, transform_indices = @transform_1, window_bounds = array<i64: 1, 4480>}, {pipeline_mode = #tpu.pipeline_mode<synchronous>, transform_indices = @transform_2, window_bounds = array<i64: 8, 72>}, {pipeline_mode = #tpu.pipeline_mode<synchronous>, transform_indices = @transform_3, window_bounds = array<i64: 8, 1>}, {pipeline_mode = #tpu.pipeline_mode<synchronous>, transform_indices = @transform_4, window_bounds = array<i64: 8, 8>}, {pipeline_mode = #tpu.pipeline_mode<synchronous>, transform_indices = @transform_5, window_bounds = array<i64: 8, 1>}, {pipeline_mode = #tpu.pipeline_mode<synchronous>, transform_indices = @transform_6, window_bounds = array<i64: 8, 72>}, {pipeline_mode = #tpu.pipeline_mode<synchronous>, transform_indices = @transform_7, window_bounds = array<i64: 8, 1>}, {pipeline_mode = #tpu.pipeline_mode<synchronous>, transform_indices = @transform_8, window_bounds = array<i64: 3, 72>}, {pipeline_mode = #tpu.pipeline_mode<synchronous>, transform_indices = @transform_9, window_bounds = array<i64: 3, 1>}, {transform_indices = @transform_10, window_bounds = array<i64: 1, 3, 4480>}]} {
    %c0 = arith.constant 0 : index
    %c0_0 = arith.constant 0 : index
    %0 = vector.load %arg2[%c0, %c0_0] : memref<1x4480xf32, #tpu.memory_space<vmem>>, vector<1x4480xf32>
    %c0_1 = arith.constant 0 : index
    %c0_2 = arith.constant 0 : index
    %c0_3 = arith.constant 0 : index
    %1 = vector.load %arg1[%c0_1, %c0_2, %c0_3] : memref<1x8x4480xbf16, #tpu.memory_space<vmem>>, vector<1x8x4480xbf16>
    %2 = vector.shape_cast %1 : vector<1x8x4480xbf16> to vector<8x4480xbf16>
    %cst = arith.constant 0.000000e+00 : bf16
    %3 = vector.broadcast %cst : bf16 to vector<8x128xbf16>
    %4 = tpu.concatenate %3, %2, %3 in 1 : vector<8x128xbf16>, vector<8x4480xbf16>, vector<8x128xbf16> -> vector<8x4736xbf16>
    %5 = vector.extract_strided_slice %4 {offsets = [0, 61], sizes = [8, 4480], strides = [1, 1]} : vector<8x4736xbf16> to vector<8x4480xbf16>
    %6 = vector.extract_strided_slice %4 {offsets = [0, 62], sizes = [8, 4480], strides = [1, 1]} : vector<8x4736xbf16> to vector<8x4480xbf16>
    %7 = vector.extract_strided_slice %4 {offsets = [0, 63], sizes = [8, 4480], strides = [1, 1]} : vector<8x4736xbf16> to vector<8x4480xbf16>
    %8 = vector.extract_strided_slice %4 {offsets = [0, 127], sizes = [8, 4480], strides = [1, 1]} : vector<8x4736xbf16> to vector<8x4480xbf16>
    %9 = vector.extract_strided_slice %4 {offsets = [0, 128], sizes = [8, 4480], strides = [1, 1]} : vector<8x4736xbf16> to vector<8x4480xbf16>
    %10 = vector.extract_strided_slice %4 {offsets = [0, 129], sizes = [8, 4480], strides = [1, 1]} : vector<8x4736xbf16> to vector<8x4480xbf16>
    %11 = vector.extract_strided_slice %4 {offsets = [0, 193], sizes = [8, 4480], strides = [1, 1]} : vector<8x4736xbf16> to vector<8x4480xbf16>
    %12 = vector.extract_strided_slice %4 {offsets = [0, 194], sizes = [8, 4480], strides = [1, 1]} : vector<8x4736xbf16> to vector<8x4480xbf16>
    %13 = vector.extract_strided_slice %4 {offsets = [0, 195], sizes = [8, 4480], strides = [1, 1]} : vector<8x4736xbf16> to vector<8x4480xbf16>
    %14 = tpu.concatenate %5, %6, %7, %8, %9, %10, %11, %12, %13 in 0 : vector<8x4480xbf16>, vector<8x4480xbf16>, vector<8x4480xbf16>, vector<8x4480xbf16>, vector<8x4480xbf16>, vector<8x4480xbf16>, vector<8x4480xbf16>, vector<8x4480xbf16>, vector<8x4480xbf16> -> vector<72x4480xbf16>
    %c0_4 = arith.constant 0 : index
    %c0_5 = arith.constant 0 : index
    %15 = vector.load %arg3[%c0_4, %c0_5] : memref<8x72xbf16, #tpu.memory_space<vmem>>, vector<8x72xbf16>
    %cst_6 = arith.constant dense<0.000000e+00> : vector<8x4480xf32>
    %16 = tpu.matmul %15, %14, %cst_6 {dimension_numbers = #tpu.dot_dimension_numbers<[1], [0], [0], [1], [0, 0, 1, 1], [], []>} : vector<8x72xbf16>, vector<72x4480xbf16>, vector<8x4480xf32> -> vector<8x4480xf32>
    %c0_7 = arith.constant 0 : index
    %c0_8 = arith.constant 0 : index
    %17 = vector.load %arg4[%c0_7, %c0_8] : memref<8x1xf32, #tpu.memory_space<vmem>>, vector<8x1xf32>
    %18 = vector.broadcast %17 : vector<8x1xf32> to vector<8x4480xf32>
    %19 = arith.addf %16, %18 : vector<8x4480xf32>
    %20 = vector.broadcast %0 : vector<1x4480xf32> to vector<8x4480xf32>
    %21 = arith.mulf %19, %20 : vector<8x4480xf32>
    %c0_9 = arith.constant 0 : index
    %c0_10 = arith.constant 0 : index
    %22 = vector.load %arg5[%c0_9, %c0_10] : memref<8x8xbf16, #tpu.memory_space<vmem>>, vector<8x8xbf16>
    %23 = arith.truncf %21 : vector<8x4480xf32> to vector<8x4480xbf16>
    %cst_11 = arith.constant dense<0.000000e+00> : vector<8x4480xf32>
    %24 = tpu.matmul %22, %23, %cst_11 {dimension_numbers = #tpu.dot_dimension_numbers<[1], [0], [0], [1], [0, 0, 1, 1], [], []>} : vector<8x8xbf16>, vector<8x4480xbf16>, vector<8x4480xf32> -> vector<8x4480xf32>
    %c0_12 = arith.constant 0 : index
    %c0_13 = arith.constant 0 : index
    %25 = vector.load %arg6[%c0_12, %c0_13] : memref<8x1xf32, #tpu.memory_space<vmem>>, vector<8x1xf32>
    %26 = vector.broadcast %25 : vector<8x1xf32> to vector<8x4480xf32>
    %27 = arith.addf %24, %26 : vector<8x4480xf32>
    %cst_14 = arith.constant 0.000000e+00 : f32
    %28 = vector.broadcast %cst_14 : f32 to vector<8x4480xf32>
    %29 = arith.subf %28, %27 : vector<8x4480xf32>
    %30 = math.exp %29 : vector<8x4480xf32>
    %cst_15 = arith.constant 1.000000e+00 : f32
    %31 = vector.broadcast %cst_15 : f32 to vector<8x4480xf32>
    %32 = arith.addf %31, %30 : vector<8x4480xf32>
    %cst_16 = arith.constant 1.000000e+00 : f32
    %33 = vector.broadcast %cst_16 : f32 to vector<8x4480xf32>
    %34 = arith.divf %33, %32 : vector<8x4480xf32>
    %35 = arith.mulf %21, %34 : vector<8x4480xf32>
    %cst_17 = arith.constant 0.000000e+00 : f32
    %36 = vector.broadcast %cst_17 : f32 to vector<8x4480xf32>
    %37 = arith.cmpf oge, %35, %36 : vector<8x4480xf32>
    %cst_18 = arith.constant 2.000000e-01 : f32
    %38 = vector.broadcast %cst_18 : f32 to vector<8x4480xf32>
    %39 = arith.mulf %38, %35 : vector<8x4480xf32>
    %40 = arith.select %37, %35, %39 : vector<8x4480xi1>, vector<8x4480xf32>
    %41 = arith.truncf %40 : vector<8x4480xf32> to vector<8x4480xbf16>
    %cst_19 = arith.constant 0.000000e+00 : bf16
    %42 = vector.broadcast %cst_19 : bf16 to vector<8x128xbf16>
    %43 = tpu.concatenate %42, %41, %42 in 1 : vector<8x128xbf16>, vector<8x4480xbf16>, vector<8x128xbf16> -> vector<8x4736xbf16>
    %44 = vector.extract_strided_slice %43 {offsets = [0, 61], sizes = [8, 4480], strides = [1, 1]} : vector<8x4736xbf16> to vector<8x4480xbf16>
    %45 = vector.extract_strided_slice %43 {offsets = [0, 62], sizes = [8, 4480], strides = [1, 1]} : vector<8x4736xbf16> to vector<8x4480xbf16>
    %46 = vector.extract_strided_slice %43 {offsets = [0, 63], sizes = [8, 4480], strides = [1, 1]} : vector<8x4736xbf16> to vector<8x4480xbf16>
    %47 = vector.extract_strided_slice %43 {offsets = [0, 127], sizes = [8, 4480], strides = [1, 1]} : vector<8x4736xbf16> to vector<8x4480xbf16>
    %48 = vector.extract_strided_slice %43 {offsets = [0, 128], sizes = [8, 4480], strides = [1, 1]} : vector<8x4736xbf16> to vector<8x4480xbf16>
    %49 = vector.extract_strided_slice %43 {offsets = [0, 129], sizes = [8, 4480], strides = [1, 1]} : vector<8x4736xbf16> to vector<8x4480xbf16>
    %50 = vector.extract_strided_slice %43 {offsets = [0, 193], sizes = [8, 4480], strides = [1, 1]} : vector<8x4736xbf16> to vector<8x4480xbf16>
    %51 = vector.extract_strided_slice %43 {offsets = [0, 194], sizes = [8, 4480], strides = [1, 1]} : vector<8x4736xbf16> to vector<8x4480xbf16>
    %52 = vector.extract_strided_slice %43 {offsets = [0, 195], sizes = [8, 4480], strides = [1, 1]} : vector<8x4736xbf16> to vector<8x4480xbf16>
    %53 = tpu.concatenate %44, %45, %46, %47, %48, %49, %50, %51, %52 in 0 : vector<8x4480xbf16>, vector<8x4480xbf16>, vector<8x4480xbf16>, vector<8x4480xbf16>, vector<8x4480xbf16>, vector<8x4480xbf16>, vector<8x4480xbf16>, vector<8x4480xbf16>, vector<8x4480xbf16> -> vector<72x4480xbf16>
    %c0_20 = arith.constant 0 : index
    %c0_21 = arith.constant 0 : index
    %54 = vector.load %arg7[%c0_20, %c0_21] : memref<8x72xbf16, #tpu.memory_space<vmem>>, vector<8x72xbf16>
    %cst_22 = arith.constant dense<0.000000e+00> : vector<8x4480xf32>
    %55 = tpu.matmul %54, %53, %cst_22 {dimension_numbers = #tpu.dot_dimension_numbers<[1], [0], [0], [1], [0, 0, 1, 1], [], []>} : vector<8x72xbf16>, vector<72x4480xbf16>, vector<8x4480xf32> -> vector<8x4480xf32>
    %c0_23 = arith.constant 0 : index
    %c0_24 = arith.constant 0 : index
    %56 = vector.load %arg8[%c0_23, %c0_24] : memref<8x1xf32, #tpu.memory_space<vmem>>, vector<8x1xf32>
    %57 = vector.broadcast %56 : vector<8x1xf32> to vector<8x4480xf32>
    %58 = arith.addf %55, %57 : vector<8x4480xf32>
    %59 = vector.broadcast %0 : vector<1x4480xf32> to vector<8x4480xf32>
    %60 = arith.mulf %58, %59 : vector<8x4480xf32>
    %cst_25 = arith.constant 0.000000e+00 : f32
    %61 = vector.broadcast %cst_25 : f32 to vector<8x4480xf32>
    %62 = arith.cmpf oge, %60, %61 : vector<8x4480xf32>
    %cst_26 = arith.constant 2.000000e-01 : f32
    %63 = vector.broadcast %cst_26 : f32 to vector<8x4480xf32>
    %64 = arith.mulf %63, %60 : vector<8x4480xf32>
    %65 = arith.select %62, %60, %64 : vector<8x4480xi1>, vector<8x4480xf32>
    %66 = arith.truncf %65 : vector<8x4480xf32> to vector<8x4480xbf16>
    %cst_27 = arith.constant 0.000000e+00 : bf16
    %67 = vector.broadcast %cst_27 : bf16 to vector<8x128xbf16>
    %68 = tpu.concatenate %67, %66, %67 in 1 : vector<8x128xbf16>, vector<8x4480xbf16>, vector<8x128xbf16> -> vector<8x4736xbf16>
    %69 = vector.extract_strided_slice %68 {offsets = [0, 61], sizes = [8, 4480], strides = [1, 1]} : vector<8x4736xbf16> to vector<8x4480xbf16>
    %70 = vector.extract_strided_slice %68 {offsets = [0, 62], sizes = [8, 4480], strides = [1, 1]} : vector<8x4736xbf16> to vector<8x4480xbf16>
    %71 = vector.extract_strided_slice %68 {offsets = [0, 63], sizes = [8, 4480], strides = [1, 1]} : vector<8x4736xbf16> to vector<8x4480xbf16>
    %72 = vector.extract_strided_slice %68 {offsets = [0, 127], sizes = [8, 4480], strides = [1, 1]} : vector<8x4736xbf16> to vector<8x4480xbf16>
    %73 = vector.extract_strided_slice %68 {offsets = [0, 128], sizes = [8, 4480], strides = [1, 1]} : vector<8x4736xbf16> to vector<8x4480xbf16>
    %74 = vector.extract_strided_slice %68 {offsets = [0, 129], sizes = [8, 4480], strides = [1, 1]} : vector<8x4736xbf16> to vector<8x4480xbf16>
    %75 = vector.extract_strided_slice %68 {offsets = [0, 193], sizes = [8, 4480], strides = [1, 1]} : vector<8x4736xbf16> to vector<8x4480xbf16>
    %76 = vector.extract_strided_slice %68 {offsets = [0, 194], sizes = [8, 4480], strides = [1, 1]} : vector<8x4736xbf16> to vector<8x4480xbf16>
    %77 = vector.extract_strided_slice %68 {offsets = [0, 195], sizes = [8, 4480], strides = [1, 1]} : vector<8x4736xbf16> to vector<8x4480xbf16>
    %78 = tpu.concatenate %69, %70, %71, %72, %73, %74, %75, %76, %77 in 0 : vector<8x4480xbf16>, vector<8x4480xbf16>, vector<8x4480xbf16>, vector<8x4480xbf16>, vector<8x4480xbf16>, vector<8x4480xbf16>, vector<8x4480xbf16>, vector<8x4480xbf16>, vector<8x4480xbf16> -> vector<72x4480xbf16>
    %c0_28 = arith.constant 0 : index
    %c0_29 = arith.constant 0 : index
    %79 = vector.load %arg9[%c0_28, %c0_29] : memref<3x72xbf16, #tpu.memory_space<vmem>>, vector<3x72xbf16>
    %cst_30 = arith.constant dense<0.000000e+00> : vector<3x4480xf32>
    %80 = tpu.matmul %79, %78, %cst_30 {dimension_numbers = #tpu.dot_dimension_numbers<[1], [0], [0], [1], [0, 0, 1, 1], [], []>} : vector<3x72xbf16>, vector<72x4480xbf16>, vector<3x4480xf32> -> vector<3x4480xf32>
    %c0_31 = arith.constant 0 : index
    %c0_32 = arith.constant 0 : index
    %81 = vector.load %arg10[%c0_31, %c0_32] : memref<3x1xf32, #tpu.memory_space<vmem>>, vector<3x1xf32>
    %82 = vector.broadcast %81 : vector<3x1xf32> to vector<3x4480xf32>
    %83 = arith.addf %80, %82 : vector<3x4480xf32>
    %84 = vector.broadcast %0 : vector<1x4480xf32> to vector<3x4480xf32>
    %85 = arith.mulf %83, %84 : vector<3x4480xf32>
    %86 = arith.truncf %85 : vector<3x4480xf32> to vector<3x4480xbf16>
    %c0_33 = arith.constant 0 : index
    %c0_34 = arith.constant 0 : index
    %c0_35 = arith.constant 0 : index
    %87 = vector.load %arg11[%c0_33, %c0_34, %c0_35] : memref<1x3x4480xbf16, #tpu.memory_space<vmem>>, vector<1x3x4480xbf16>
    %88 = vector.shape_cast %87 : vector<1x3x4480xbf16> to vector<3x4480xbf16>
    %89 = vector.shape_cast %86 : vector<3x4480xbf16> to vector<1x3x4480xbf16>
    tpu.vector_store %arg11[%c0_33, %c0_34, %c0_35], %89 {strides = array<i32>} : memref<1x3x4480xbf16, #tpu.memory_space<vmem>>, vector<1x3x4480xbf16>,
    return
  }
  func.func @transform_0(%arg0: i32) -> (i32, i32, i32) {
    %c0_i32 = arith.constant 0 : i32
    %c0_i32_0 = arith.constant 0 : i32
    %c0_i32_1 = arith.constant 0 : i32
    return %arg0, %c0_i32, %c0_i32_0 : i32, i32, i32
  }
  func.func @transform_1(%arg0: i32) -> (i32, i32) {
    %c0_i32 = arith.constant 0 : i32
    %c0_i32_0 = arith.constant 0 : i32
    %c0_i32_1 = arith.constant 0 : i32
    return %c0_i32, %c0_i32_0 : i32, i32
  }
  func.func @transform_2(%arg0: i32) -> (i32, i32) {
    %c0_i32 = arith.constant 0 : i32
    %c0_i32_0 = arith.constant 0 : i32
    %c0_i32_1 = arith.constant 0 : i32
    return %c0_i32, %c0_i32_0 : i32, i32
  }
  func.func @transform_3(%arg0: i32) -> (i32, i32) {
    %c0_i32 = arith.constant 0 : i32
    %c0_i32_0 = arith.constant 0 : i32
    %c0_i32_1 = arith.constant 0 : i32
    return %c0_i32, %c0_i32_0 : i32, i32
  }
  func.func @transform_4(%arg0: i32) -> (i32, i32) {
    %c0_i32 = arith.constant 0 : i32
    %c0_i32_0 = arith.constant 0 : i32
    %c0_i32_1 = arith.constant 0 : i32
    return %c0_i32, %c0_i32_0 : i32, i32
  }
  func.func @transform_5(%arg0: i32) -> (i32, i32) {
    %c0_i32 = arith.constant 0 : i32
    %c0_i32_0 = arith.constant 0 : i32
    %c0_i32_1 = arith.constant 0 : i32
    return %c0_i32, %c0_i32_0 : i32, i32
  }
  func.func @transform_6(%arg0: i32) -> (i32, i32) {
    %c0_i32 = arith.constant 0 : i32
    %c0_i32_0 = arith.constant 0 : i32
    %c0_i32_1 = arith.constant 0 : i32
    return %c0_i32, %c0_i32_0 : i32, i32
  }
  func.func @transform_7(%arg0: i32) -> (i32, i32) {
    %c0_i32 = arith.constant 0 : i32
    %c0_i32_0 = arith.constant 0 : i32
    %c0_i32_1 = arith.constant 0 : i32
    return %c0_i32, %c0_i32_0 : i32, i32
  }
  func.func @transform_8(%arg0: i32) -> (i32, i32) {
    %c0_i32 = arith.constant 0 : i32
    %c0_i32_0 = arith.constant 0 : i32
    %c0_i32_1 = arith.constant 0 : i32
    return %c0_i32, %c0_i32_0 : i32, i32
  }
  func.func @transform_9(%arg0: i32) -> (i32, i32) {
    %c0_i32 = arith.constant 0 : i32
    %c0_i32_0 = arith.constant 0 : i32
    %c0_i32_1 = arith.constant 0 : i32
    return %c0_i32, %c0_i32_0 : i32, i32
  }
  func.func @transform_10(%arg0: i32) -> (i32, i32, i32) {
    %c0_i32 = arith.constant 0 : i32
    %c0_i32_0 = arith.constant 0 : i32
    %c0_i32_1 = arith.constant 0 : i32
    return %arg0, %c0_i32, %c0_i32_0 : i32, i32, i32
  }
}

</mosaic_0001>

<llo_original>
// kernel: pa_up_forward.2
$region0: #{pa_up_forward.2}
  #allocation0 [shape = 'u32[]', space=smem, size = 0x4, offset = 0x4, fixed_abs, tag = 'smem constant byte address 0x4 - core index']
  #allocation1 [shape = 'u32[72,128]{1,0:T(1,128)}', space=vmem, size = 0x9000, scoped, tag = 'internal scratch']
  %s0 = inlined_call_operand.vmem [shape: bf16[2,8,1280], index: 0, kind: input, shape index: {}]
  %s1 = inlined_call_operand.vmem [shape: f32[1,1280], index: 1, kind: input, shape index: {}]
  %s2 = inlined_call_operand.vmem [shape: bf16[8,72], index: 2, kind: input, shape index: {}]
  %s3 = inlined_call_operand.vmem [shape: f32[8,1], index: 3, kind: input, shape index: {}]
  %s4 = inlined_call_operand.vmem [shape: bf16[8,8], index: 4, kind: input, shape index: {}]
  %s5 = inlined_call_operand.vmem [shape: f32[8,1], index: 5, kind: input, shape index: {}]
  %s6 = inlined_call_operand.vmem [shape: bf16[8,72], index: 6, kind: input, shape index: {}]
  %s7 = inlined_call_operand.vmem [shape: f32[8,1], index: 7, kind: input, shape index: {}]
  %s8 = inlined_call_operand.vmem [shape: bf16[2,8,1280], index: 8, kind: output, shape index: {}]
  %s9 = sld [smem:[#allocation0]]
  $region65: #{pa_up_forward.2} parent=0
    _
  %s11 = ssub.s32 1, %s9
  %s12 = scalar_select 0, %s11, %s9
  loop: start=0, step=1, limit=4
  $region2: #{pa_up_forward.2} parent=0 // loop_pre_header
    _
  $region3: #{pa_up_forward.2} parent=0 // loop_header
    %s14 = sphi 0, %s18
    %p15 = scmp.ge.s32.totalorder %s14, 4
    %s24 = sphi 0, %s26
    %s27 = sphi 0, %s24
    %s28 = sphi 0, %s27
    %s44 = sphi 0, %s28
    %s48 = sphi 0, %s48
    %s50 = sphi 0, %s48
    %s51 = sphi 0, %s50
    %s65 = sphi 0, %s51
    %s69 = sphi 0, %s69
    %s71 = sphi 0, %s69
    %s72 = sphi 0, %s71
    %s86 = sphi 0, %s72
    %s90 = sphi 0, %s90
    %s92 = sphi 0, %s90
    %s93 = sphi 0, %s92
    %s107 = sphi 0, %s93
    %s111 = sphi 0, %s111
    %s113 = sphi 0, %s111
    %s114 = sphi 0, %s113
    %s128 = sphi 0, %s114
    %s132 = sphi 0, %s132
    %s134 = sphi 0, %s132
    %s135 = sphi 0, %s134
    %s149 = sphi 0, %s135
    %s153 = sphi 0, %s153
    %s155 = sphi 0, %s153
    %s156 = sphi 0, %s155
    %s170 = sphi 0, %s156
    %s174 = sphi 0, %s174
    %s176 = sphi 0, %s174
    %s177 = sphi 0, %s176
    %s191 = sphi 0, %s177
    %s197 = sphi 0, %s199
    %s200 = sphi 0, %s197
    %s201 = sphi 0, %s200
    %s217 = sphi 0, %s201
  $region4: #{pa_up_forward.2} parent=0 // loop_header_branch
    %17 = sbr.rel (%p15) target = $region8
  $region5: #{pa_up_forward.2} parent=0 // loop_body
    %s19 = ssub.s32 %s14, 1
    %s20 = ssub.s32 %s14, 2
    %s21 = sadd.s32 %s14, 1
    %s22 = ssub.s32 %s14, %s21
    %p23 = scmp.eq.s32.totalorder %s22, 0
    %s25 = sadd.s32 %s24, 1
    %s26 = scalar_select %p23, %s24, %s25
    %p29 = pneg %p23
    %p30 = scmp.eq.s32.totalorder %s14, 1
    %p31 = por %p29, %p30
    %p32 = scmp.ne.s32.totalorder %s24, %s27
    %p33 = scmp.eq.s32.totalorder %s14, 0
    %p34 = por %p32, %p33
    %p35 = scmp.ne.s32.totalorder %s24, %s27
    %p36 = scmp.eq.s32.totalorder %s19, 1
    %p37 = por %p35, %p36
    %p38 = scmp.ne.s32.totalorder %s27, %s28
    %p39 = scmp.eq.s32.totalorder %s19, 0
    %p40 = por %p38, %p39
    %p41 = scmp.ne.s32.totalorder %s27, %s28
    %p42 = scmp.eq.s32.totalorder %s20, 1
    %p43 = por %p41, %p42
    %p45 = scmp.ne.s32.totalorder %s28, %s44
    %p46 = scmp.eq.s32.totalorder %s20, 0
    %p47 = por %p45, %p46
    %s49 = sadd.s32 %s48, 1
    %p52 = scmp.eq.s32.totalorder %s14, 1
    %p53 = scmp.ne.s32.totalorder %s48, %s50
    %p54 = scmp.eq.s32.totalorder %s14, 0
    %p55 = por %p53, %p54
    %p56 = scmp.ne.s32.totalorder %s48, %s50
    %p57 = scmp.eq.s32.totalorder %s19, 1
    %p58 = por %p56, %p57
    %p59 = scmp.ne.s32.totalorder %s50, %s51
    %p60 = scmp.eq.s32.totalorder %s19, 0
    %p61 = por %p59, %p60
    %p62 = scmp.ne.s32.totalorder %s50, %s51
    %p63 = scmp.eq.s32.totalorder %s20, 1
    %p64 = por %p62, %p63
    %p66 = scmp.ne.s32.totalorder %s51, %s65
    %p67 = scmp.eq.s32.totalorder %s20, 0
    %p68 = por %p66, %p67
    %s70 = sadd.s32 %s69, 1
    %p73 = scmp.eq.s32.totalorder %s14, 1
    %p74 = scmp.ne.s32.totalorder %s69, %s71
    %p75 = scmp.eq.s32.totalorder %s14, 0
    %p76 = por %p74, %p75
    %p77 = scmp.ne.s32.totalorder %s69, %s71
    %p78 = scmp.eq.s32.totalorder %s19, 1
    %p79 = por %p77, %p78
    %p80 = scmp.ne.s32.totalorder %s71, %s72
    %p81 = scmp.eq.s32.totalorder %s19, 0
    %p82 = por %p80, %p81
    %p83 = scmp.ne.s32.totalorder %s71, %s72
    %p84 = scmp.eq.s32.totalorder %s20, 1
    %p85 = por %p83, %p84
    %p87 = scmp.ne.s32.totalorder %s72, %s86
    %p88 = scmp.eq.s32.totalorder %s20, 0
    %p89 = por %p87, %p88
    %s91 = sadd.s32 %s90, 1
    %p94 = scmp.eq.s32.totalorder %s14, 1
    %p95 = scmp.ne.s32.totalorder %s90, %s92
    %p96 = scmp.eq.s32.totalorder %s14, 0
    %p97 = por %p95, %p96
    %p98 = scmp.ne.s32.totalorder %s90, %s92
    %p99 = scmp.eq.s32.totalorder %s19, 1
    %p100 = por %p98, %p99
    %p101 = scmp.ne.s32.totalorder %s92, %s93
    %p102 = scmp.eq.s32.totalorder %s19, 0
    %p103 = por %p101, %p102
    %p104 = scmp.ne.s32.totalorder %s92, %s93
    %p105 = scmp.eq.s32.totalorder %s20, 1
    %p106 = por %p104, %p105
    %p108 = scmp.ne.s32.totalorder %s93, %s107
    %p109 = scmp.eq.s32.totalorder %s20, 0
    %p110 = por %p108, %p109
    %s112 = sadd.s32 %s111, 1
    %p115 = scmp.eq.s32.totalorder %s14, 1
    %p116 = scmp.ne.s32.totalorder %s111, %s113
    %p117 = scmp.eq.s32.totalorder %s14, 0
    %p118 = por %p116, %p117
    %p119 = scmp.ne.s32.totalorder %s111, %s113
    %p120 = scmp.eq.s32.totalorder %s19, 1
    %p121 = por %p119, %p120
    %p122 = scmp.ne.s32.totalorder %s113, %s114
    %p123 = scmp.eq.s32.totalorder %s19, 0
    %p124 = por %p122, %p123
    %p125 = scmp.ne.s32.totalorder %s113, %s114
    %p126 = scmp.eq.s32.totalorder %s20, 1
    %p127 = por %p125, %p126
    %p129 = scmp.ne.s32.totalorder %s114, %s128
    %p130 = scmp.eq.s32.totalorder %s20, 0
    %p131 = por %p129, %p130
    %s133 = sadd.s32 %s132, 1
    %p136 = scmp.eq.s32.totalorder %s14, 1
    %p137 = scmp.ne.s32.totalorder %s132, %s134
    %p138 = scmp.eq.s32.totalorder %s14, 0
    %p139 = por %p137, %p138
    %p140 = scmp.ne.s32.totalorder %s132, %s134
    %p141 = scmp.eq.s32.totalorder %s19, 1
    %p142 = por %p140, %p141
    %p143 = scmp.ne.s32.totalorder %s134, %s135
    %p144 = scmp.eq.s32.totalorder %s19, 0
    %p145 = por %p143, %p144
    %p146 = scmp.ne.s32.totalorder %s134, %s135
    %p147 = scmp.eq.s32.totalorder %s20, 1
    %p148 = por %p146, %p147
    %p150 = scmp.ne.s32.totalorder %s135, %s149
    %p151 = scmp.eq.s32.totalorder %s20, 0
    %p152 = por %p150, %p151
    %s154 = sadd.s32 %s153, 1
    %p157 = scmp.eq.s32.totalorder %s14, 1
    %p158 = scmp.ne.s32.totalorder %s153, %s155
    %p159 = scmp.eq.s32.totalorder %s14, 0
    %p160 = por %p158, %p159
    %p161 = scmp.ne.s32.totalorder %s153, %s155
    %p162 = scmp.eq.s32.totalorder %s19, 1
    %p163 = por %p161, %p162
    %p164 = scmp.ne.s32.totalorder %s155, %s156
    %p165 = scmp.eq.s32.totalorder %s19, 0
    %p166 = por %p164, %p165
    %p167 = scmp.ne.s32.totalorder %s155, %s156
    %p168 = scmp.eq.s32.totalorder %s20, 1
    %p169 = por %p167, %p168
    %p171 = scmp.ne.s32.totalorder %s156, %s170
    %p172 = scmp.eq.s32.totalorder %s20, 0
    %p173 = por %p171, %p172
    %s175 = sadd.s32 %s174, 1
    %p178 = scmp.eq.s32.totalorder %s14, 1
    %p179 = scmp.ne.s32.totalorder %s174, %s176
    %p180 = scmp.eq.s32.totalorder %s14, 0
    %p181 = por %p179, %p180
    %p182 = scmp.ne.s32.totalorder %s174, %s176
    %p183 = scmp.eq.s32.totalorder %s19, 1
    %p184 = por %p182, %p183
    %p185 = scmp.ne.s32.totalorder %s176, %s177
    %p186 = scmp.eq.s32.totalorder %s19, 0
    %p187 = por %p185, %p186
    %p188 = scmp.ne.s32.totalorder %s176, %s177
    %p189 = scmp.eq.s32.totalorder %s20, 1
    %p190 = por %p188, %p189
    %p192 = scmp.ne.s32.totalorder %s177, %s191
    %p193 = scmp.eq.s32.totalorder %s20, 0
    %p194 = por %p192, %p193
    %s195 = ssub.s32 %s14, %s21
    %p196 = scmp.eq.s32.totalorder %s195, 0
    %s198 = sadd.s32 %s197, 1
    %s199 = scalar_select %p196, %s197, %s198
    %p202 = pneg %p196
    %p203 = scmp.eq.s32.totalorder %s14, 1
    %p204 = por %p202, %p203
    %p205 = scmp.ne.s32.totalorder %s197, %s200
    %p206 = scmp.eq.s32.totalorder %s14, 0
    %p207 = por %p205, %p206
    %p208 = scmp.ne.s32.totalorder %s197, %s200
    %p209 = scmp.eq.s32.totalorder %s19, 1
    %p210 = por %p208, %p209
    %p211 = scmp.ne.s32.totalorder %s200, %s201
    %p212 = scmp.eq.s32.totalorder %s19, 0
    %p213 = por %p211, %p212
    %p214 = scmp.ne.s32.totalorder %s200, %s201
    %p215 = scmp.eq.s32.totalorder %s20, 1
    %p216 = por %p214, %p215
    %p218 = scmp.ne.s32.totalorder %s201, %s217
    %p219 = scmp.eq.s32.totalorder %s20, 0
    %p220 = por %p218, %p219
    %p221 = scmp.le.s32.totalorder 1, %s14
    %p222 = scmp.lt.s32.totalorder %s14, 3
    %p223 = pnand %p221, %p222
    %p224 = pneg %p223
    // Predicated region
    $region9: #{pa_up_forward.2} parent=5 // pred_check
      _
    $region10: #{pa_up_forward.2} parent=5 // pred_check_branch
      %226 = sbr.rel (%p223) target = $region12
    $region11: #{pa_up_forward.2} parent=5 // pred_region
      %s227 = ssub.s32 %s14, 1
      // Predicated region
      $region13: #{pa_up_forward.2} parent=11 // pred_check
        %p228 = pneg %p61
      $region14: #{pa_up_forward.2} parent=11 // pred_check_branch
        %230 = sbr.rel (%p228) target = $region16
      $region15: #{pa_up_forward.2} parent=11 // pred_region
        _
      $region16: #{pa_up_forward.2} parent=11 // pred_fallthru
        _
      // Predicated region
      $region17: #{pa_up_forward.2} parent=11 // pred_check
        %p231 = pneg %p82
      $region18: #{pa_up_forward.2} parent=11 // pred_check_branch
        %233 = sbr.rel (%p231) target = $region20
      $region19: #{pa_up_forward.2} parent=11 // pred_region
        _
      $region20: #{pa_up_forward.2} parent=11 // pred_fallthru
        _
      // Predicated region
      $region21: #{pa_up_forward.2} parent=11 // pred_check
        %p234 = pneg %p103
      $region22: #{pa_up_forward.2} parent=11 // pred_check_branch
        %236 = sbr.rel (%p234) target = $region24
      $region23: #{pa_up_forward.2} parent=11 // pred_region
        _
      $region24: #{pa_up_forward.2} parent=11 // pred_fallthru
        _
      // Predicated region
      $region25: #{pa_up_forward.2} parent=11 // pred_check
        %p237 = pneg %p124
      $region26: #{pa_up_forward.2} parent=11 // pred_check_branch
        %239 = sbr.rel (%p237) target = $region28
      $region27: #{pa_up_forward.2} parent=11 // pred_region
        _
      $region28: #{pa_up_forward.2} parent=11 // pred_fallthru
        _
      // Predicated region
      $region29: #{pa_up_forward.2} parent=11 // pred_check
        %p240 = pneg %p145
      $region30: #{pa_up_forward.2} parent=11 // pred_check_branch
        %242 = sbr.rel (%p240) target = $region32
      $region31: #{pa_up_forward.2} parent=11 // pred_region
        _
      $region32: #{pa_up_forward.2} parent=11 // pred_fallthru
        _
      // Predicated region
      $region33: #{pa_up_forward.2} parent=11 // pred_check
        %p243 = pneg %p166
      $region34: #{pa_up_forward.2} parent=11 // pred_check_branch
        %245 = sbr.rel (%p243) target = $region36
      $region35: #{pa_up_forward.2} parent=11 // pred_region
        _
      $region36: #{pa_up_forward.2} parent=11 // pred_fallthru
        _
      // Predicated region
      $region37: #{pa_up_forward.2} parent=11 // pred_check
        %p246 = pneg %p187
      $region38: #{pa_up_forward.2} parent=11 // pred_check_branch
        %248 = sbr.rel (%p246) target = $region40
      $region39: #{pa_up_forward.2} parent=11 // pred_region
        _
      $region40: #{pa_up_forward.2} parent=11 // pred_fallthru
        _
    $region12: #{pa_up_forward.2} parent=5 // pred_fallthru
      _
    %p249 = scmp.lt.s32.totalorder %s14, 2
    // Predicated region
    $region41: #{pa_up_forward.2} parent=5 // pred_check
      %p250 = pneg %p249
    $region42: #{pa_up_forward.2} parent=5 // pred_check_branch
      %252 = sbr.rel (%p250) target = $region44
    $region43: #{pa_up_forward.2} parent=5 // pred_region
      // Predicated region
      $region45: #{pa_up_forward.2} parent=43 // pred_check
        %p253 = pneg %p34
      $region46: #{pa_up_forward.2} parent=43 // pred_check_branch
        %255 = sbr.rel (%p253) target = $region48
      $region47: #{pa_up_forward.2} parent=43 // pred_region
        %p256 = scmp.lt.s32.totalorder %s14, 1
        %s257 = scalar_select %p256, %s14, 1
        %s258 = smul.addr %s257, 10
        %s259 = smul.addr %s258, 4
        %s260 = scalar_lea.vmem %s0, %s259
      $region48: #{pa_up_forward.2} parent=43 // pred_fallthru
        _
    $region44: #{pa_up_forward.2} parent=5 // pred_fallthru
      _
    %p261 = scmp.le.s32.totalorder 1, %s14
    %p262 = scmp.lt.s32.totalorder %s14, 3
    %p263 = pnand %p261, %p262
    %p264 = pneg %p263
    // Predicated region
    $region49: #{pa_up_forward.2} parent=5 // pred_check
      _
    $region50: #{pa_up_forward.2} parent=5 // pred_check_branch
      %266 = sbr.rel (%p263) target = $region52
    $region51: #{pa_up_forward.2} parent=5 // pred_region
      %s267 = ssub.s32 %s14, 1
      %p268 = scmp.lt.s32.totalorder %s19, 1
      %s269 = scalar_select %p268, %s19, 1
      %s270 = smul.addr %s269, 10
      %s271 = smul.addr %s270, 4
      %s272 = scalar_lea.vmem %s0, %s271
      %p273 = pneg %p40
      %p274 = pneg %p37
      %p275 = pneg %p61
      %p276 = pneg %p58
      %p277 = pneg %p82
      %p278 = pneg %p79
      %p279 = pneg %p103
      %p280 = pneg %p100
      %p281 = pneg %p124
      %p282 = pneg %p121
      %p283 = pneg %p145
      %p284 = pneg %p142
      %p285 = pneg %p166
      %p286 = pneg %p163
      %p287 = pneg %p187
      %p288 = pneg %p184
      %p289 = pneg %p213
      %p290 = pneg %p210
      %p291 = scmp.lt.s32.totalorder %s19, 1
      %s292 = scalar_select %p291, %s19, 1
      %s293 = smul.addr %s292, 10
      %s294 = smul.addr %s293, 4
      %s295 = scalar_lea.vmem %s8, %s294
      %p296 = scmp.lt.s32.totalorder %s19, 1
      %s297 = scalar_select %p296, %s19, 1
      %s298 = smul.addr %s297, 10
      %s299 = smul.addr %s298, 4
      %s300 = scalar_lea.vmem %s0, %s299
      %p301 = scmp.lt.s32.totalorder %s19, 1
      %s302 = scalar_select %p301, %s19, 1
      %s303 = smul.addr %s302, 10
      %s304 = smul.addr %s303, 4
      %s305 = scalar_lea.vmem %s8, %s304
      %v307 = vld [vmem:[%s1] sm:$0xff]
      %v308 = vld [vmem:[%s1 + $0x8] sm:$0x3]
      %v309 = vld [vmem:[%s300] sm:$0xff]
      %v310 = vld [vmem:[%s300 + $0x8] sm:$0xff]
      %v311 = vld [vmem:[%s300 + $0x10] sm:$0xff]
      %v312 = vld [vmem:[%s300 + $0x18] sm:$0xff]
      %v313 = vld [vmem:[%s300 + $0x20] sm:$0xff]
      %v319 = vunpack.c.l.b16 %v309
      %v320 = vunpack.c.h.b16 %v309
      %v321 = vunpack.c.l.b16 %v310
      %v322 = vunpack.c.h.b16 %v310
      %v323 = vunpack.c.l.b16 %v311
      %v324 = vunpack.c.h.b16 %v311
      %v325 = vunpack.c.l.b16 %v312
      %v326 = vunpack.c.h.b16 %v312
      %v327 = vunpack.c.l.b16 %v313
      %v328 = vunpack.c.h.b16 %v313
      %v329 = vpack.c.b16 %v319, %v319
      %v330 = vpack.c.b16 %v320, %v320
      %v331 = vpack.c.b16 %v321, %v321
      %v332 = vpack.c.b16 %v322, %v322
      %v333 = vpack.c.b16 %v323, %v323
      %v334 = vpack.c.b16 %v324, %v324
      %v335 = vpack.c.b16 %v325, %v325
      %v336 = vpack.c.b16 %v326, %v326
      %v337 = vpack.c.b16 %v327, %v327
      %v338 = vpack.c.b16 %v328, %v328
      %v340 = vrot.slane 0, 4
      %v341 = vrot.slane %v329, 4
      %v342 = vrot.slane %v330, 4
      %v343 = vrot.slane %v331, 4
      %v344 = vrot.slane %v332, 4
      %v345 = vrot.slane %v333, 4
      %v346 = vrot.slane %v334, 4
      %v347 = vrot.slane %v335, 4
      %v348 = vrot.slane %v336, 4
      %v349 = vrot.slane %v337, 4
      %v350 = vrot.slane %v338, 4
      %351 = vrot.lane.b32.xlu0 %v340, 127
      %v352 = vpop.permute.xlu0 %351
      %353 = vrot.lane.b32.xlu0 %v341, 127
      %v354 = vpop.permute.xlu0 %353
      %355 = vrot.lane.b32.xlu0 %v342, 127
      %v356 = vpop.permute.xlu0 %355
      %357 = vrot.lane.b32.xlu0 %v343, 127
      %v358 = vpop.permute.xlu0 %357
      %359 = vrot.lane.b32.xlu0 %v344, 127
      %v360 = vpop.permute.xlu0 %359
      %361 = vrot.lane.b32.xlu0 %v345, 127
      %v362 = vpop.permute.xlu0 %361
      %363 = vrot.lane.b32.xlu0 %v346, 127
      %v364 = vpop.permute.xlu0 %363
      %365 = vrot.lane.b32.xlu0 %v347, 127
      %v366 = vpop.permute.xlu0 %365
      %367 = vrot.lane.b32.xlu0 %v348, 127
      %v368 = vpop.permute.xlu0 %367
      %369 = vrot.lane.b32.xlu0 %v349, 127
      %v370 = vpop.permute.xlu0 %369
      %371 = vrot.lane.b32.xlu0 %v350, 127
      %v372 = vpop.permute.xlu0 %371
      %vm373 = vcmask 1039360
      %v374 = vsel %vm373, %v352, %v354
      %v375 = vsel %vm373, %v354, %v356
      %v376 = vsel %vm373, %v356, %v358
      %v377 = vsel %vm373, %v358, %v360
      %v378 = vsel %vm373, %v360, %v362
      %v379 = vsel %vm373, %v362, %v364
      %v380 = vsel %vm373, %v364, %v366
      %v381 = vsel %vm373, %v366, %v368
      %v382 = vsel %vm373, %v368, %v370
      %v383 = vsel %vm373, %v370, %v372
      %384 = vrot.lane.b32.xlu0 0, 126
      %v385 = vpop.permute.xlu0 %384
      %386 = vrot.lane.b32.xlu0 %v329, 126
      %v387 = vpop.permute.xlu0 %386
      %388 = vrot.lane.b32.xlu0 %v330, 126
      %v389 = vpop.permute.xlu0 %388
      %390 = vrot.lane.b32.xlu0 %v331, 126
      %v391 = vpop.permute.xlu0 %390
      %392 = vrot.lane.b32.xlu0 %v332, 126
      %v393 = vpop.permute.xlu0 %392
      %394 = vrot.lane.b32.xlu0 %v333, 126
      %v395 = vpop.permute.xlu0 %394
      %396 = vrot.lane.b32.xlu0 %v334, 126
      %v397 = vpop.permute.xlu0 %396
      %398 = vrot.lane.b32.xlu0 %v335, 126
      %v399 = vpop.permute.xlu0 %398
      %400 = vrot.lane.b32.xlu0 %v336, 126
      %v401 = vpop.permute.xlu0 %400
      %402 = vrot.lane.b32.xlu0 %v337, 126
      %v403 = vpop.permute.xlu0 %402
      %404 = vrot.lane.b32.xlu0 %v338, 126
      %v405 = vpop.permute.xlu0 %404
      %vm406 = vcmask 1031168
      %v407 = vsel %vm406, %v385, %v387
      %v408 = vsel %vm406, %v387, %v389
      %v409 = vsel %vm406, %v389, %v391
      %v410 = vsel %vm406, %v391, %v393
      %v411 = vsel %vm406, %v393, %v395
      %v412 = vsel %vm406, %v395, %v397
      %v413 = vsel %vm406, %v397, %v399
      %v414 = vsel %vm406, %v399, %v401
      %v415 = vsel %vm406, %v401, %v403
      %v416 = vsel %vm406, %v403, %v405
      %417 = vrot.lane.b32.xlu0 %v340, 94
      %v418 = vpop.permute.xlu0 %417
      %419 = vrot.lane.b32.xlu0 %v341, 94
      %v420 = vpop.permute.xlu0 %419
      %421 = vrot.lane.b32.xlu0 %v342, 94
      %v422 = vpop.permute.xlu0 %421
      %423 = vrot.lane.b32.xlu0 %v343, 94
      %v424 = vpop.permute.xlu0 %423
      %425 = vrot.lane.b32.xlu0 %v344, 94
      %v426 = vpop.permute.xlu0 %425
      %427 = vrot.lane.b32.xlu0 %v345, 94
      %v428 = vpop.permute.xlu0 %427
      %429 = vrot.lane.b32.xlu0 %v346, 94
      %v430 = vpop.permute.xlu0 %429
      %431 = vrot.lane.b32.xlu0 %v347, 94
      %v432 = vpop.permute.xlu0 %431
      %433 = vrot.lane.b32.xlu0 %v348, 94
      %v434 = vpop.permute.xlu0 %433
      %435 = vrot.lane.b32.xlu0 %v349, 94
      %v436 = vpop.permute.xlu0 %435
      %437 = vrot.lane.b32.xlu0 %v350, 94
      %v438 = vpop.permute.xlu0 %437
      %vm439 = vcmask 769024
      %v440 = vsel %vm439, %v418, %v420
      %v441 = vsel %vm439, %v420, %v422
      %v442 = vsel %vm439, %v422, %v424
      %v443 = vsel %vm439, %v424, %v426
      %v444 = vsel %vm439, %v426, %v428
      %v445 = vsel %vm439, %v428, %v430
      %v446 = vsel %vm439, %v430, %v432
      %v447 = vsel %vm439, %v432, %v434
      %v448 = vsel %vm439, %v434, %v436
      %v449 = vsel %vm439, %v436, %v438
      %450 = vrot.lane.b32.xlu0 %v329, 93
      %v451 = vpop.permute.xlu0 %450
      %452 = vrot.lane.b32.xlu0 %v330, 93
      %v453 = vpop.permute.xlu0 %452
      %454 = vrot.lane.b32.xlu0 %v331, 93
      %v455 = vpop.permute.xlu0 %454
      %456 = vrot.lane.b32.xlu0 %v332, 93
      %v457 = vpop.permute.xlu0 %456
      %458 = vrot.lane.b32.xlu0 %v333, 93
      %v459 = vpop.permute.xlu0 %458
      %460 = vrot.lane.b32.xlu0 %v334, 93
      %v461 = vpop.permute.xlu0 %460
      %462 = vrot.lane.b32.xlu0 %v335, 93
      %v463 = vpop.permute.xlu0 %462
      %464 = vrot.lane.b32.xlu0 %v336, 93
      %v465 = vpop.permute.xlu0 %464
      %466 = vrot.lane.b32.xlu0 %v337, 93
      %v467 = vpop.permute.xlu0 %466
      %468 = vrot.lane.b32.xlu0 %v338, 93
      %v469 = vpop.permute.xlu0 %468
      %vm470 = vcmask 760832
      %v471 = vsel %vm470, %v451, %v453
      %v472 = vsel %vm470, %v453, %v455
      %v473 = vsel %vm470, %v455, %v457
      %v474 = vsel %vm470, %v457, %v459
      %v475 = vsel %vm470, %v459, %v461
      %v476 = vsel %vm470, %v461, %v463
      %v477 = vsel %vm470, %v463, %v465
      %v478 = vsel %vm470, %v465, %v467
      %v479 = vsel %vm470, %v467, %v469
      %480 = vrot.lane.b32.xlu0 %v341, 92
      %v481 = vpop.permute.xlu0 %480
      %482 = vrot.lane.b32.xlu0 %v342, 92
      %v483 = vpop.permute.xlu0 %482
      %484 = vrot.lane.b32.xlu0 %v343, 92
      %v485 = vpop.permute.xlu0 %484
      %486 = vrot.lane.b32.xlu0 %v344, 92
      %v487 = vpop.permute.xlu0 %486
      %488 = vrot.lane.b32.xlu0 %v345, 92
      %v489 = vpop.permute.xlu0 %488
      %490 = vrot.lane.b32.xlu0 %v346, 92
      %v491 = vpop.permute.xlu0 %490
      %492 = vrot.lane.b32.xlu0 %v347, 92
      %v493 = vpop.permute.xlu0 %492
      %494 = vrot.lane.b32.xlu0 %v348, 92
      %v495 = vpop.permute.xlu0 %494
      %496 = vrot.lane.b32.xlu0 %v349, 92
      %v497 = vpop.permute.xlu0 %496
      %498 = vrot.lane.b32.xlu0 %v350, 92
      %v499 = vpop.permute.xlu0 %498
      %500 = vrot.lane.b32.xlu0 %v340, 92
      %v501 = vpop.permute.xlu0 %500
      %vm502 = vcmask 752640
      %v503 = vsel %vm502, %v481, %v483
      %v504 = vsel %vm502, %v483, %v485
      %v505 = vsel %vm502, %v485, %v487
      %v506 = vsel %vm502, %v487, %v489
      %v507 = vsel %vm502, %v489, %v491
      %v508 = vsel %vm502, %v491, %v493
      %v509 = vsel %vm502, %v493, %v495
      %v510 = vsel %vm502, %v495, %v497
      %v511 = vsel %vm502, %v497, %v499
      %v512 = vsel %vm502, %v499, %v501
      %513 = vrot.lane.b32.xlu0 %v329, 60
      %v514 = vpop.permute.xlu0 %513
      %515 = vrot.lane.b32.xlu0 %v330, 60
      %v516 = vpop.permute.xlu0 %515
      %517 = vrot.lane.b32.xlu0 %v331, 60
      %v518 = vpop.permute.xlu0 %517
      %519 = vrot.lane.b32.xlu0 %v332, 60
      %v520 = vpop.permute.xlu0 %519
      %521 = vrot.lane.b32.xlu0 %v333, 60
      %v522 = vpop.permute.xlu0 %521
      %523 = vrot.lane.b32.xlu0 %v334, 60
      %v524 = vpop.permute.xlu0 %523
      %525 = vrot.lane.b32.xlu0 %v335, 60
      %v526 = vpop.permute.xlu0 %525
      %527 = vrot.lane.b32.xlu0 %v336, 60
      %v528 = vpop.permute.xlu0 %527
      %529 = vrot.lane.b32.xlu0 %v337, 60
      %v530 = vpop.permute.xlu0 %529
      %531 = vrot.lane.b32.xlu0 %v338, 60
      %v532 = vpop.permute.xlu0 %531
      %533 = vrot.lane.b32.xlu0 0, 60
      %v534 = vpop.permute.xlu0 %533
      %vm535 = vcmask 490496
      %v536 = vsel %vm535, %v514, %v516
      %v537 = vsel %vm535, %v516, %v518
      %v538 = vsel %vm535, %v518, %v520
      %v539 = vsel %vm535, %v520, %v522
      %v540 = vsel %vm535, %v522, %v524
      %v541 = vsel %vm535, %v524, %v526
      %v542 = vsel %vm535, %v526, %v528
      %v543 = vsel %vm535, %v528, %v530
      %v544 = vsel %vm535, %v530, %v532
      %v545 = vsel %vm535, %v532, %v534
      %546 = vrot.lane.b32.xlu0 %v341, 59
      %v547 = vpop.permute.xlu0 %546
      %548 = vrot.lane.b32.xlu0 %v342, 59
      %v549 = vpop.permute.xlu0 %548
      %550 = vrot.lane.b32.xlu0 %v343, 59
      %v551 = vpop.permute.xlu0 %550
      %552 = vrot.lane.b32.xlu0 %v344, 59
      %v553 = vpop.permute.xlu0 %552
      %554 = vrot.lane.b32.xlu0 %v345, 59
      %v555 = vpop.permute.xlu0 %554
      %556 = vrot.lane.b32.xlu0 %v346, 59
      %v557 = vpop.permute.xlu0 %556
      %558 = vrot.lane.b32.xlu0 %v347, 59
      %v559 = vpop.permute.xlu0 %558
      %560 = vrot.lane.b32.xlu0 %v348, 59
      %v561 = vpop.permute.xlu0 %560
      %562 = vrot.lane.b32.xlu0 %v349, 59
      %v563 = vpop.permute.xlu0 %562
      %564 = vrot.lane.b32.xlu0 %v350, 59
      %v565 = vpop.permute.xlu0 %564
      %566 = vrot.lane.b32.xlu0 %v340, 59
      %v567 = vpop.permute.xlu0 %566
      %vm568 = vcmask 482304
      %v569 = vsel %vm568, %v547, %v549
      %v570 = vsel %vm568, %v549, %v551
      %v571 = vsel %vm568, %v551, %v553
      %v572 = vsel %vm568, %v553, %v555
      %v573 = vsel %vm568, %v555, %v557
      %v574 = vsel %vm568, %v557, %v559
      %v575 = vsel %vm568, %v559, %v561
      %v576 = vsel %vm568, %v561, %v563
      %v577 = vsel %vm568, %v563, %v565
      %v578 = vsel %vm568, %v565, %v567
      %579 = vrot.lane.b32.xlu0 %v329, 58
      %v580 = vpop.permute.xlu0 %579
      %581 = vrot.lane.b32.xlu0 %v330, 58
      %v582 = vpop.permute.xlu0 %581
      %583 = vrot.lane.b32.xlu0 %v331, 58
      %v584 = vpop.permute.xlu0 %583
      %585 = vrot.lane.b32.xlu0 %v332, 58
      %v586 = vpop.permute.xlu0 %585
      %587 = vrot.lane.b32.xlu0 %v333, 58
      %v588 = vpop.permute.xlu0 %587
      %589 = vrot.lane.b32.xlu0 %v334, 58
      %v590 = vpop.permute.xlu0 %589
      %591 = vrot.lane.b32.xlu0 %v335, 58
      %v592 = vpop.permute.xlu0 %591
      %593 = vrot.lane.b32.xlu0 %v336, 58
      %v594 = vpop.permute.xlu0 %593
      %595 = vrot.lane.b32.xlu0 %v337, 58
      %v596 = vpop.permute.xlu0 %595
      %597 = vrot.lane.b32.xlu0 %v338, 58
      %v598 = vpop.permute.xlu0 %597
      %599 = vrot.lane.b32.xlu0 0, 58
      %v600 = vpop.permute.xlu0 %599
      %vm601 = vcmask 474112
      %v602 = vsel %vm601, %v580, %v582
      %v603 = vsel %vm601, %v582, %v584
      %v604 = vsel %vm601, %v584, %v586
      %v605 = vsel %vm601, %v586, %v588
      %v606 = vsel %vm601, %v588, %v590
      %v607 = vsel %vm601, %v590, %v592
      %v608 = vsel %vm601, %v592, %v594
      %v609 = vsel %vm601, %v594, %v596
      %v610 = vsel %vm601, %v596, %v598
      %v611 = vsel %vm601, %v598, %v600
      %vm612 = vcmask 1043456
      %v615 = vsel %vm612, 0, %v374
      %v618 = vsel %vm612, %v329, %v375
      %v621 = vsel %vm612, %v330, %v376
      %v624 = vsel %vm612, %v331, %v377
      %v627 = vsel %vm612, %v332, %v378
      %v630 = vsel %vm612, %v333, %v379
      %v633 = vsel %vm612, %v334, %v380
      %v636 = vsel %vm612, %v335, %v381
      %v639 = vsel %vm612, %v336, %v382
      %v642 = vsel %vm612, %v337, %v383
      %v645 = vsel %vm612, %v338, %v372
      %v648 = vsel %vm612, %v407, %v440
      %v651 = vsel %vm612, %v408, %v441
      %v654 = vsel %vm612, %v409, %v442
      %v657 = vsel %vm612, %v410, %v443
      %v660 = vsel %vm612, %v411, %v444
      %v663 = vsel %vm612, %v412, %v445
      %v666 = vsel %vm612, %v413, %v446
      %v669 = vsel %vm612, %v414, %v447
      %v672 = vsel %vm612, %v415, %v448
      %v675 = vsel %vm612, %v416, %v449
      %v678 = vsel %vm612, %v405, %v438
      %v681 = vsel %vm612, %v451, %v481
      %v684 = vsel %vm612, %v471, %v503
      %v687 = vsel %vm612, %v472, %v504
      %v690 = vsel %vm612, %v473, %v505
      %v693 = vsel %vm612, %v474, %v506
      %v696 = vsel %vm612, %v475, %v507
      %v699 = vsel %vm612, %v476, %v508
      %v702 = vsel %vm612, %v477, %v509
      %v705 = vsel %vm612, %v478, %v510
      %v708 = vsel %vm612, %v479, %v511
      %v711 = vsel %vm612, %v469, %v512
      %v714 = vsel %vm612, %v514, %v547
      %v717 = vsel %vm612, %v536, %v569
      %v720 = vsel %vm612, %v537, %v570
      %v723 = vsel %vm612, %v538, %v571
      %v726 = vsel %vm612, %v539, %v572
      %v729 = vsel %vm612, %v540, %v573
      %v732 = vsel %vm612, %v541, %v574
      %v735 = vsel %vm612, %v542, %v575
      %v738 = vsel %vm612, %v543, %v576
      %v741 = vsel %vm612, %v544, %v577
      %v744 = vsel %vm612, %v545, %v578
      %v745 = vld [vmem:[%s2] sm:$0xf]
      %v746 = vld [vmem:[%s3] sm:$0xff]
      %748 = vset.pattern.permute.xlu0 0
      %749 = vperm.xlu0 %748, %v746
      %v750 = vpop.permute.xlu0 %749
      %796 = vrot.lane.b32.xlu0 %v615, 35
      %v797 = vpop.permute.xlu0 %796
      %798 = vrot.lane.b32.xlu0 %v618, 35
      %v799 = vpop.permute.xlu0 %798
      %800 = vrot.lane.b32.xlu0 %v621, 35
      %v801 = vpop.permute.xlu0 %800
      %802 = vrot.lane.b32.xlu0 %v624, 35
      %v803 = vpop.permute.xlu0 %802
      %804 = vrot.lane.b32.xlu0 %v627, 35
      %v805 = vpop.permute.xlu0 %804
      %806 = vrot.lane.b32.xlu0 %v630, 35
      %v807 = vpop.permute.xlu0 %806
      %808 = vrot.lane.b32.xlu0 %v633, 35
      %v809 = vpop.permute.xlu0 %808
      %810 = vrot.lane.b32.xlu0 %v636, 35
      %v811 = vpop.permute.xlu0 %810
      %812 = vrot.lane.b32.xlu0 %v639, 35
      %v813 = vpop.permute.xlu0 %812
      %814 = vrot.lane.b32.xlu0 %v642, 35
      %v815 = vpop.permute.xlu0 %814
      %816 = vrot.lane.b32.xlu0 %v645, 35
      %v817 = vpop.permute.xlu0 %816
      %818 = vrot.lane.b32.xlu0 %v648, 35
      %v819 = vpop.permute.xlu0 %818
      %820 = vrot.lane.b32.xlu0 %v651, 35
      %v821 = vpop.permute.xlu0 %820
      %822 = vrot.lane.b32.xlu0 %v654, 35
      %v823 = vpop.permute.xlu0 %822
      %824 = vrot.lane.b32.xlu0 %v657, 35
      %v825 = vpop.permute.xlu0 %824
      %826 = vrot.lane.b32.xlu0 %v660, 35
      %v827 = vpop.permute.xlu0 %826
      %828 = vrot.lane.b32.xlu0 %v663, 35
      %v829 = vpop.permute.xlu0 %828
      %830 = vrot.lane.b32.xlu0 %v666, 35
      %v831 = vpop.permute.xlu0 %830
      %832 = vrot.lane.b32.xlu0 %v669, 35
      %v833 = vpop.permute.xlu0 %832
      %834 = vrot.lane.b32.xlu0 %v672, 35
      %v835 = vpop.permute.xlu0 %834
      %836 = vrot.lane.b32.xlu0 %v675, 35
      %v837 = vpop.permute.xlu0 %836
      %838 = vrot.lane.b32.xlu0 %v678, 35
      %v839 = vpop.permute.xlu0 %838
      %840 = vrot.lane.b32.xlu0 %v681, 35
      %v841 = vpop.permute.xlu0 %840
      %842 = vrot.lane.b32.xlu0 %v684, 35
      %v843 = vpop.permute.xlu0 %842
      %844 = vrot.lane.b32.xlu0 %v687, 35
      %v845 = vpop.permute.xlu0 %844
      %846 = vrot.lane.b32.xlu0 %v690, 35
      %v847 = vpop.permute.xlu0 %846
      %848 = vrot.lane.b32.xlu0 %v693, 35
      %v849 = vpop.permute.xlu0 %848
      %850 = vrot.lane.b32.xlu0 %v696, 35
      %v851 = vpop.permute.xlu0 %850
      %852 = vrot.lane.b32.xlu0 %v699, 35
      %v853 = vpop.permute.xlu0 %852
      %854 = vrot.lane.b32.xlu0 %v702, 35
      %v855 = vpop.permute.xlu0 %854
      %856 = vrot.lane.b32.xlu0 %v705, 35
      %v857 = vpop.permute.xlu0 %856
      %858 = vrot.lane.b32.xlu0 %v708, 35
      %v859 = vpop.permute.xlu0 %858
      %860 = vrot.lane.b32.xlu0 %v711, 35
      %v861 = vpop.permute.xlu0 %860
      %862 = vrot.lane.b32.xlu0 %v714, 35
      %v863 = vpop.permute.xlu0 %862
      %864 = vrot.lane.b32.xlu0 %v717, 35
      %v865 = vpop.permute.xlu0 %864
      %866 = vrot.lane.b32.xlu0 %v720, 35
      %v867 = vpop.permute.xlu0 %866
      %868 = vrot.lane.b32.xlu0 %v723, 35
      %v869 = vpop.permute.xlu0 %868
      %870 = vrot.lane.b32.xlu0 %v726, 35
      %v871 = vpop.permute.xlu0 %870
      %872 = vrot.lane.b32.xlu0 %v729, 35
      %v873 = vpop.permute.xlu0 %872
      %874 = vrot.lane.b32.xlu0 %v732, 35
      %v875 = vpop.permute.xlu0 %874
      %876 = vrot.lane.b32.xlu0 %v735, 35
      %v877 = vpop.permute.xlu0 %876
      %878 = vrot.lane.b32.xlu0 %v738, 35
      %v879 = vpop.permute.xlu0 %878
      %880 = vrot.lane.b32.xlu0 %v741, 35
      %v881 = vpop.permute.xlu0 %880
      %882 = vrot.lane.b32.xlu0 %v744, 35
      %v883 = vpop.permute.xlu0 %882
      %884 = vrot.lane.b32.xlu0 %v580, 35
      %v885 = vpop.permute.xlu0 %884
      %886 = vrot.lane.b32.xlu0 %v602, 35
      %v887 = vpop.permute.xlu0 %886
      %888 = vrot.lane.b32.xlu0 %v603, 35
      %v889 = vpop.permute.xlu0 %888
      %890 = vrot.lane.b32.xlu0 %v604, 35
      %v891 = vpop.permute.xlu0 %890
      %892 = vrot.lane.b32.xlu0 %v605, 35
      %v893 = vpop.permute.xlu0 %892
      %894 = vrot.lane.b32.xlu0 %v606, 35
      %v895 = vpop.permute.xlu0 %894
      %896 = vrot.lane.b32.xlu0 %v607, 35
      %v897 = vpop.permute.xlu0 %896
      %898 = vrot.lane.b32.xlu0 %v608, 35
      %v899 = vpop.permute.xlu0 %898
      %900 = vrot.lane.b32.xlu0 %v609, 35
      %v901 = vpop.permute.xlu0 %900
      %902 = vrot.lane.b32.xlu0 %v610, 35
      %v903 = vpop.permute.xlu0 %902
      %904 = vrot.lane.b32.xlu0 %v611, 35
      %v905 = vpop.permute.xlu0 %904
      %vm906 = vcmask 285696
      %v907 = vsel %vm906, %v797, %v799
      %v908 = vsel %vm906, %v799, %v801
      %v909 = vsel %vm906, %v801, %v803
      %v910 = vsel %vm906, %v803, %v805
      %v911 = vsel %vm906, %v805, %v807
      %v912 = vsel %vm906, %v807, %v809
      %v913 = vsel %vm906, %v809, %v811
      %v914 = vsel %vm906, %v811, %v813
      %v915 = vsel %vm906, %v813, %v815
      %v916 = vsel %vm906, %v815, %v817
      %v917 = vsel %vm906, %v819, %v821
      %v918 = vsel %vm906, %v821, %v823
      %v919 = vsel %vm906, %v823, %v825
      %v920 = vsel %vm906, %v825, %v827
      %v921 = vsel %vm906, %v827, %v829
      %v922 = vsel %vm906, %v829, %v831
      %v923 = vsel %vm906, %v831, %v833
      %v924 = vsel %vm906, %v833, %v835
      %v925 = vsel %vm906, %v835, %v837
      %v926 = vsel %vm906, %v837, %v839
      %v927 = vsel %vm906, %v841, %v843
      %v928 = vsel %vm906, %v843, %v845
      %v929 = vsel %vm906, %v845, %v847
      %v930 = vsel %vm906, %v847, %v849
      %v931 = vsel %vm906, %v849, %v851
      %v932 = vsel %vm906, %v851, %v853
      %v933 = vsel %vm906, %v853, %v855
      %v934 = vsel %vm906, %v855, %v857
      %v935 = vsel %vm906, %v857, %v859
      %v936 = vsel %vm906, %v859, %v861
      %v937 = vsel %vm906, %v863, %v865
      %v938 = vsel %vm906, %v865, %v867
      %v939 = vsel %vm906, %v867, %v869
      %v940 = vsel %vm906, %v869, %v871
      %v941 = vsel %vm906, %v871, %v873
      %v942 = vsel %vm906, %v873, %v875
      %v943 = vsel %vm906, %v875, %v877
      %v944 = vsel %vm906, %v877, %v879
      %v945 = vsel %vm906, %v879, %v881
      %v946 = vsel %vm906, %v881, %v883
      %v947 = vsel %vm906, %v885, %v887
      %v948 = vsel %vm906, %v887, %v889
      %v949 = vsel %vm906, %v889, %v891
      %v950 = vsel %vm906, %v891, %v893
      %v951 = vsel %vm906, %v893, %v895
      %v952 = vsel %vm906, %v895, %v897
      %v953 = vsel %vm906, %v897, %v899
      %v954 = vsel %vm906, %v899, %v901
      %v955 = vsel %vm906, %v901, %v903
      %v956 = vsel %vm906, %v903, %v905
      %vm997 = vcmask 588800
      %v999 = vsel %vm997, %v745, 0
      %v1002 = vsel %vm612, %v947, 0
      %v1005 = vsel %vm612, %v948, 0
      %v1008 = vsel %vm612, %v949, 0
      %v1011 = vsel %vm612, %v950, 0
      %v1014 = vsel %vm612, %v951, 0
      %v1017 = vsel %vm612, %v952, 0
      %v1020 = vsel %vm612, %v953, 0
      %v1023 = vsel %vm612, %v954, 0
      %v1026 = vsel %vm612, %v955, 0
      %v1029 = vsel %vm612, %v956, 0
      %1031 = vmatpush.bf16.msra.mxu0 0
      %1032 = vmatpush.bf16.msra.mxu0 0
      %1033 = vmatpush.bf16.msra.mxu0 0
      %1034 = vmatpush.bf16.msra.mxu0 %v1002
      %1035 = vmatpush.bf16.msra.mxu0 %v937
      %1036 = vmatpush.bf16.msra.mxu0 %v927
      %1037 = vmatpush.bf16.msra.mxu0 %v917
      %1038 = vmatpush.bf16.msra.mxu0 %v907
      %1039 = vmatmul.bf16.gmra.mxu0 %v999
      %v1040 = vpop.f32.mrf.mxu0
      %v1041 = vadd.f32 %v750, %v1040
      %v1042 = vpop.f32.mrf.mxu0
      %1043 = vdwg.mxu0
      %1044 = vmatpush.bf16.msra.mxu0 0
      %1045 = vmatpush.bf16.msra.mxu0 0
      %1046 = vmatpush.bf16.msra.mxu0 0
      %1047 = vmatpush.bf16.msra.mxu0 %v1005
      %1048 = vmatpush.bf16.msra.mxu0 %v938
      %1049 = vmatpush.bf16.msra.mxu0 %v928
      %1050 = vmatpush.bf16.msra.mxu0 %v918
      %1051 = vmatpush.bf16.msra.mxu0 %v908
      %1052 = vmatmul.bf16.gmra.mxu0 %v999
      %v1053 = vpop.f32.mrf.mxu0
      %v1054 = vadd.f32 %v750, %v1053
      %v1055 = vpop.f32.mrf.mxu0
      %1056 = vdwg.mxu0
      %1057 = vmatpush.bf16.msra.mxu0 0
      %1058 = vmatpush.bf16.msra.mxu0 0
      %1059 = vmatpush.bf16.msra.mxu0 0
      %1060 = vmatpush.bf16.msra.mxu0 %v1008
      %1061 = vmatpush.bf16.msra.mxu0 %v939
      %1062 = vmatpush.bf16.msra.mxu0 %v929
      %1063 = vmatpush.bf16.msra.mxu0 %v919
      %1064 = vmatpush.bf16.msra.mxu0 %v909
      %1065 = vmatmul.bf16.gmra.mxu0 %v999
      %v1066 = vpop.f32.mrf.mxu0
      %v1067 = vadd.f32 %v750, %v1066
      %v1068 = vpop.f32.mrf.mxu0
      %1069 = vdwg.mxu0
      %1070 = vmatpush.bf16.msra.mxu0 0
      %1071 = vmatpush.bf16.msra.mxu0 0
      %1072 = vmatpush.bf16.msra.mxu0 0
      %1073 = vmatpush.bf16.msra.mxu0 %v1011
      %1074 = vmatpush.bf16.msra.mxu0 %v940
      %1075 = vmatpush.bf16.msra.mxu0 %v930
      %1076 = vmatpush.bf16.msra.mxu0 %v920
      %1077 = vmatpush.bf16.msra.mxu0 %v910
      %1078 = vmatmul.bf16.gmra.mxu0 %v999
      %v1079 = vpop.f32.mrf.mxu0
      %v1080 = vadd.f32 %v750, %v1079
      %v1081 = vpop.f32.mrf.mxu0
      %1082 = vdwg.mxu0
      %1083 = vmatpush.bf16.msra.mxu0 0
      %1084 = vmatpush.bf16.msra.mxu0 0
      %1085 = vmatpush.bf16.msra.mxu0 0
      %1086 = vmatpush.bf16.msra.mxu0 %v1014
      %1087 = vmatpush.bf16.msra.mxu0 %v941
      %1088 = vmatpush.bf16.msra.mxu0 %v931
      %1089 = vmatpush.bf16.msra.mxu0 %v921
      %1090 = vmatpush.bf16.msra.mxu0 %v911
      %1091 = vmatmul.bf16.gmra.mxu0 %v999
      %v1092 = vpop.f32.mrf.mxu0
      %v1093 = vadd.f32 %v750, %v1092
      %v1094 = vpop.f32.mrf.mxu0
      %1095 = vdwg.mxu0
      %1096 = vmatpush.bf16.msra.mxu0 0
      %1097 = vmatpush.bf16.msra.mxu0 0
      %1098 = vmatpush.bf16.msra.mxu0 0
      %1099 = vmatpush.bf16.msra.mxu0 %v1017
      %1100 = vmatpush.bf16.msra.mxu0 %v942
      %1101 = vmatpush.bf16.msra.mxu0 %v932
      %1102 = vmatpush.bf16.msra.mxu0 %v922
      %1103 = vmatpush.bf16.msra.mxu0 %v912
      %1104 = vmatmul.bf16.gmra.mxu0 %v999
      %v1105 = vpop.f32.mrf.mxu0
      %v1106 = vadd.f32 %v750, %v1105
      %v1107 = vpop.f32.mrf.mxu0
      %1108 = vdwg.mxu0
      %1109 = vmatpush.bf16.msra.mxu0 0
      %1110 = vmatpush.bf16.msra.mxu0 0
      %1111 = vmatpush.bf16.msra.mxu0 0
      %1112 = vmatpush.bf16.msra.mxu0 %v1020
      %1113 = vmatpush.bf16.msra.mxu0 %v943
      %1114 = vmatpush.bf16.msra.mxu0 %v933
      %1115 = vmatpush.bf16.msra.mxu0 %v923
      %1116 = vmatpush.bf16.msra.mxu0 %v913
      %1117 = vmatmul.bf16.gmra.mxu0 %v999
      %v1118 = vpop.f32.mrf.mxu0
      %v1119 = vadd.f32 %v750, %v1118
      %v1120 = vpop.f32.mrf.mxu0
      %1121 = vdwg.mxu0
      %1122 = vmatpush.bf16.msra.mxu0 0
      %1123 = vmatpush.bf16.msra.mxu0 0
      %1124 = vmatpush.bf16.msra.mxu0 0
      %1125 = vmatpush.bf16.msra.mxu0 %v1023
      %1126 = vmatpush.bf16.msra.mxu0 %v944
      %1127 = vmatpush.bf16.msra.mxu0 %v934
      %1128 = vmatpush.bf16.msra.mxu0 %v924
      %1129 = vmatpush.bf16.msra.mxu0 %v914
      %1130 = vmatmul.bf16.gmra.mxu0 %v999
      %v1131 = vpop.f32.mrf.mxu0
      %v1132 = vadd.f32 %v750, %v1131
      %v1133 = vpop.f32.mrf.mxu0
      %1134 = vdwg.mxu0
      %1135 = vmatpush.bf16.msra.mxu0 0
      %1136 = vmatpush.bf16.msra.mxu0 0
      %1137 = vmatpush.bf16.msra.mxu0 0
      %1138 = vmatpush.bf16.msra.mxu0 %v1026
      %1139 = vmatpush.bf16.msra.mxu0 %v945
      %1140 = vmatpush.bf16.msra.mxu0 %v935
      %1141 = vmatpush.bf16.msra.mxu0 %v925
      %1142 = vmatpush.bf16.msra.mxu0 %v915
      %1143 = vmatmul.bf16.gmra.mxu0 %v999
      %v1144 = vpop.f32.mrf.mxu0
      %v1145 = vadd.f32 %v750, %v1144
      %v1146 = vpop.f32.mrf.mxu0
      %1147 = vdwg.mxu0
      %1148 = vmatpush.bf16.msra.mxu0 0
      %1149 = vmatpush.bf16.msra.mxu0 0
      %1150 = vmatpush.bf16.msra.mxu0 0
      %1151 = vmatpush.bf16.msra.mxu0 %v1029
      %1152 = vmatpush.bf16.msra.mxu0 %v946
      %1153 = vmatpush.bf16.msra.mxu0 %v936
      %1154 = vmatpush.bf16.msra.mxu0 %v926
      %1155 = vmatpush.bf16.msra.mxu0 %v916
      %1156 = vmatmul.bf16.gmra.mxu0 %v999
      %v1157 = vpop.f32.mrf.mxu0
      %v1158 = vadd.f32 %v750, %v1157
      %v1159 = vpop.f32.mrf.mxu0
      %1160 = vdwg.mxu0
      %v1163 = vperm.slane %v307, 0
      %v1164 = vperm.slane %v307, 1
      %v1165 = vperm.slane %v307, 2
      %v1166 = vperm.slane %v307, 3
      %v1167 = vperm.slane %v307, 4
      %v1168 = vperm.slane %v307, 5
      %v1169 = vperm.slane %v307, 6
      %v1170 = vperm.slane %v307, 7
      %v1171 = vperm.slane %v308, 0
      %v1172 = vperm.slane %v308, 1
      %v1183 = vmul.f32 %v1041, %v1163
      %v1184 = vmul.f32 %v1054, %v1164
      %v1185 = vmul.f32 %v1067, %v1165
      %v1186 = vmul.f32 %v1080, %v1166
      %v1187 = vmul.f32 %v1093, %v1167
      %v1188 = vmul.f32 %v1106, %v1168
      %v1189 = vmul.f32 %v1119, %v1169
      %v1190 = vmul.f32 %v1132, %v1170
      %v1191 = vmul.f32 %v1145, %v1171
      %v1192 = vmul.f32 %v1158, %v1172
      %v1193 = vld [vmem:[%s4] sm:$0xf]
      %v1194 = vpack.c.bf16 %v1183, %v1183
      %v1195 = vpack.c.bf16 %v1184, %v1184
      %v1196 = vpack.c.bf16 %v1185, %v1185
      %v1197 = vpack.c.bf16 %v1186, %v1186
      %v1198 = vpack.c.bf16 %v1187, %v1187
      %v1199 = vpack.c.bf16 %v1188, %v1188
      %v1200 = vpack.c.bf16 %v1189, %v1189
      %v1201 = vpack.c.bf16 %v1190, %v1190
      %v1202 = vpack.c.bf16 %v1191, %v1191
      %v1203 = vpack.c.bf16 %v1192, %v1192
      %v1204 = vld [vmem:[%s5] sm:$0xff]
      %1206 = vset.pattern.permute.xlu0 0
      %1207 = vperm.xlu0 %1206, %v1204
      %v1208 = vpop.permute.xlu0 %1207
      %vm1210 = vcmask 64512
      %v1212 = vsel %vm1210, %v1193, 0
      %v1215 = vsel %vm612, %v1194, 0
      %v1218 = vsel %vm612, %v1195, 0
      %v1221 = vsel %vm612, %v1196, 0
      %v1224 = vsel %vm612, %v1197, 0
      %v1227 = vsel %vm612, %v1198, 0
      %v1230 = vsel %vm612, %v1199, 0
      %v1233 = vsel %vm612, %v1200, 0
      %v1236 = vsel %vm612, %v1201, 0
      %v1239 = vsel %vm612, %v1202, 0
      %v1242 = vsel %vm612, %v1203, 0
      %1244 = vmatpush.bf16.msra.mxu0 0
      %1245 = vmatpush.bf16.msra.mxu0 0
      %1246 = vmatpush.bf16.msra.mxu0 0
      %1247 = vmatpush.bf16.msra.mxu0 0
      %1248 = vmatpush.bf16.msra.mxu0 0
      %1249 = vmatpush.bf16.msra.mxu0 0
      %1250 = vmatpush.bf16.msra.mxu0 0
      %1251 = vmatpush.bf16.msra.mxu0 %v1215
      %1252 = vmatmul.bf16.gmra.mxu0 %v1212
      %v1253 = vpop.f32.mrf.mxu0
      %v1254 = vadd.f32 %v1208, %v1253
      %v1255 = vpop.f32.mrf.mxu0
      %1256 = vdwg.mxu0
      %1257 = vmatpush.bf16.msra.mxu0 0
      %1258 = vmatpush.bf16.msra.mxu0 0
      %1259 = vmatpush.bf16.msra.mxu0 0
      %1260 = vmatpush.bf16.msra.mxu0 0
      %1261 = vmatpush.bf16.msra.mxu0 0
      %1262 = vmatpush.bf16.msra.mxu0 0
      %1263 = vmatpush.bf16.msra.mxu0 0
      %1264 = vmatpush.bf16.msra.mxu0 %v1218
      %1265 = vmatmul.bf16.gmra.mxu0 %v1212
      %v1266 = vpop.f32.mrf.mxu0
      %v1267 = vadd.f32 %v1208, %v1266
      %v1268 = vpop.f32.mrf.mxu0
      %1269 = vdwg.mxu0
      %1270 = vmatpush.bf16.msra.mxu0 0
      %1271 = vmatpush.bf16.msra.mxu0 0
      %1272 = vmatpush.bf16.msra.mxu0 0
      %1273 = vmatpush.bf16.msra.mxu0 0
      %1274 = vmatpush.bf16.msra.mxu0 0
      %1275 = vmatpush.bf16.msra.mxu0 0
      %1276 = vmatpush.bf16.msra.mxu0 0
      %1277 = vmatpush.bf16.msra.mxu0 %v1221
      %1278 = vmatmul.bf16.gmra.mxu0 %v1212
      %v1279 = vpop.f32.mrf.mxu0
      %v1280 = vadd.f32 %v1208, %v1279
      %v1281 = vpop.f32.mrf.mxu0
      %1282 = vdwg.mxu0
      %1283 = vmatpush.bf16.msra.mxu0 0
      %1284 = vmatpush.bf16.msra.mxu0 0
      %1285 = vmatpush.bf16.msra.mxu0 0
      %1286 = vmatpush.bf16.msra.mxu0 0
      %1287 = vmatpush.bf16.msra.mxu0 0
      %1288 = vmatpush.bf16.msra.mxu0 0
      %1289 = vmatpush.bf16.msra.mxu0 0
      %1290 = vmatpush.bf16.msra.mxu0 %v1224
      %1291 = vmatmul.bf16.gmra.mxu0 %v1212
      %v1292 = vpop.f32.mrf.mxu0
      %v1293 = vadd.f32 %v1208, %v1292
      %v1294 = vpop.f32.mrf.mxu0
      %1295 = vdwg.mxu0
      %1296 = vmatpush.bf16.msra.mxu0 0
      %1297 = vmatpush.bf16.msra.mxu0 0
      %1298 = vmatpush.bf16.msra.mxu0 0
      %1299 = vmatpush.bf16.msra.mxu0 0
      %1300 = vmatpush.bf16.msra.mxu0 0
      %1301 = vmatpush.bf16.msra.mxu0 0
      %1302 = vmatpush.bf16.msra.mxu0 0
      %1303 = vmatpush.bf16.msra.mxu0 %v1227
      %1304 = vmatmul.bf16.gmra.mxu0 %v1212
      %v1305 = vpop.f32.mrf.mxu0
      %v1306 = vadd.f32 %v1208, %v1305
      %v1307 = vpop.f32.mrf.mxu0
      %1308 = vdwg.mxu0
      %1309 = vmatpush.bf16.msra.mxu0 0
      %1310 = vmatpush.bf16.msra.mxu0 0
      %1311 = vmatpush.bf16.msra.mxu0 0
      %1312 = vmatpush.bf16.msra.mxu0 0
      %1313 = vmatpush.bf16.msra.mxu0 0
      %1314 = vmatpush.bf16.msra.mxu0 0
      %1315 = vmatpush.bf16.msra.mxu0 0
      %1316 = vmatpush.bf16.msra.mxu0 %v1230
      %1317 = vmatmul.bf16.gmra.mxu0 %v1212
      %v1318 = vpop.f32.mrf.mxu0
      %v1319 = vadd.f32 %v1208, %v1318
      %v1320 = vpop.f32.mrf.mxu0
      %1321 = vdwg.mxu0
      %1322 = vmatpush.bf16.msra.mxu0 0
      %1323 = vmatpush.bf16.msra.mxu0 0
      %1324 = vmatpush.bf16.msra.mxu0 0
      %1325 = vmatpush.bf16.msra.mxu0 0
      %1326 = vmatpush.bf16.msra.mxu0 0
      %1327 = vmatpush.bf16.msra.mxu0 0
      %1328 = vmatpush.bf16.msra.mxu0 0
      %1329 = vmatpush.bf16.msra.mxu0 %v1233
      %1330 = vmatmul.bf16.gmra.mxu0 %v1212
      %v1331 = vpop.f32.mrf.mxu0
      %v1332 = vadd.f32 %v1208, %v1331
      %v1333 = vpop.f32.mrf.mxu0
      %1334 = vdwg.mxu0
      %1335 = vmatpush.bf16.msra.mxu0 0
      %1336 = vmatpush.bf16.msra.mxu0 0
      %1337 = vmatpush.bf16.msra.mxu0 0
      %1338 = vmatpush.bf16.msra.mxu0 0
      %1339 = vmatpush.bf16.msra.mxu0 0
      %1340 = vmatpush.bf16.msra.mxu0 0
      %1341 = vmatpush.bf16.msra.mxu0 0
      %1342 = vmatpush.bf16.msra.mxu0 %v1236
      %1343 = vmatmul.bf16.gmra.mxu0 %v1212
      %v1344 = vpop.f32.mrf.mxu0
      %v1345 = vadd.f32 %v1208, %v1344
      %v1346 = vpop.f32.mrf.mxu0
      %1347 = vdwg.mxu0
      %1348 = vmatpush.bf16.msra.mxu0 0
      %1349 = vmatpush.bf16.msra.mxu0 0
      %1350 = vmatpush.bf16.msra.mxu0 0
      %1351 = vmatpush.bf16.msra.mxu0 0
      %1352 = vmatpush.bf16.msra.mxu0 0
      %1353 = vmatpush.bf16.msra.mxu0 0
      %1354 = vmatpush.bf16.msra.mxu0 0
      %1355 = vmatpush.bf16.msra.mxu0 %v1239
      %1356 = vmatmul.bf16.gmra.mxu0 %v1212
      %v1357 = vpop.f32.mrf.mxu0
      %v1358 = vadd.f32 %v1208, %v1357
      %v1359 = vpop.f32.mrf.mxu0
      %1360 = vdwg.mxu0
      %1361 = vmatpush.bf16.msra.mxu0 0
      %1362 = vmatpush.bf16.msra.mxu0 0
      %1363 = vmatpush.bf16.msra.mxu0 0
      %1364 = vmatpush.bf16.msra.mxu0 0
      %1365 = vmatpush.bf16.msra.mxu0 0
      %1366 = vmatpush.bf16.msra.mxu0 0
      %1367 = vmatpush.bf16.msra.mxu0 0
      %1368 = vmatpush.bf16.msra.mxu0 %v1242
      %1369 = vmatmul.bf16.gmra.mxu0 %v1212
      %v1370 = vpop.f32.mrf.mxu0
      %v1371 = vadd.f32 %v1208, %v1370
      %v1372 = vpop.f32.mrf.mxu0
      %1373 = vdwg.mxu0
      %v1374 = vsub.f32 0.0, %v1254
      %v1375 = vsub.f32 0.0, %v1267
      %v1376 = vsub.f32 0.0, %v1280
      %v1377 = vsub.f32 0.0, %v1293
      %v1378 = vsub.f32 0.0, %v1306
      %v1379 = vsub.f32 0.0, %v1319
      %v1380 = vsub.f32 0.0, %v1332
      %v1381 = vsub.f32 0.0, %v1345
      %v1382 = vsub.f32 0.0, %v1358
      %v1383 = vsub.f32 0.0, %v1371
      %v1384 = vmul.f32 %v1374, 1.442695
      %v1385 = vpow.pop %v1384
      %v1386 = vmul.f32 %v1375, 1.442695
      %v1387 = vpow.pop %v1386
      %v1388 = vmul.f32 %v1376, 1.442695
      %v1389 = vpow.pop %v1388
      %v1390 = vmul.f32 %v1377, 1.442695
      %v1391 = vpow.pop %v1390
      %v1392 = vmul.f32 %v1378, 1.442695
      %v1393 = vpow.pop %v1392
      %v1394 = vmul.f32 %v1379, 1.442695
      %v1395 = vpow.pop %v1394
      %v1396 = vmul.f32 %v1380, 1.442695
      %v1397 = vpow.pop %v1396
      %v1398 = vmul.f32 %v1381, 1.442695
      %v1399 = vpow.pop %v1398
      %v1400 = vmul.f32 %v1382, 1.442695
      %v1401 = vpow.pop %v1400
      %v1402 = vmul.f32 %v1383, 1.442695
      %v1403 = vpow.pop %v1402
      %v1404 = vadd.f32 %v1385, 1.0
      %v1405 = vadd.f32 %v1387, 1.0
      %v1406 = vadd.f32 %v1389, 1.0
      %v1407 = vadd.f32 %v1391, 1.0
      %v1408 = vadd.f32 %v1393, 1.0
      %v1409 = vadd.f32 %v1395, 1.0
      %v1410 = vadd.f32 %v1397, 1.0
      %v1411 = vadd.f32 %v1399, 1.0
      %v1412 = vadd.f32 %v1401, 1.0
      %v1413 = vadd.f32 %v1403, 1.0
      %v1414 = vrcp.pop %v1404
      %v1415 = vmul.f32 %v1404, %v1414
      %v1416 = vsub.f32 1.0, %v1415
      %v1417 = vmul.f32 %v1414, %v1416
      %v1418 = vadd.f32 %v1414, %v1417
      %vm1419 = vweird.f32 %v1404
      %vm1420 = vweird.f32 %v1414
      %vm1421 = vmor %vm1419, %vm1420
      %v1422 = vsel %vm1421, %v1414, %v1418
      %v1423 = vand.u32 2147483647, %v1404
      %vm1424 = vcmp.eq.f32.partialorder %v1423, 8.507059e+37
      %v1425 = vand.u32 %v1404, 2147483648
      %v1426 = vor.u32 1.1754944e-38, %v1425
      %v1427 = vsel %vm1424, %v1426, %v1422
      %v1428 = vmul.f32 1.0, %v1427
      %v1429 = vrcp.pop %v1405
      %v1430 = vmul.f32 %v1405, %v1429
      %v1431 = vsub.f32 1.0, %v1430
      %v1432 = vmul.f32 %v1429, %v1431
      %v1433 = vadd.f32 %v1429, %v1432
      %vm1434 = vweird.f32 %v1405
      %vm1435 = vweird.f32 %v1429
      %vm1436 = vmor %vm1434, %vm1435
      %v1437 = vsel %vm1436, %v1429, %v1433
      %v1438 = vand.u32 2147483647, %v1405
      %vm1439 = vcmp.eq.f32.partialorder %v1438, 8.507059e+37
      %v1440 = vand.u32 %v1405, 2147483648
      %v1441 = vor.u32 1.1754944e-38, %v1440
      %v1442 = vsel %vm1439, %v1441, %v1437
      %v1443 = vmul.f32 1.0, %v1442
      %v1444 = vrcp.pop %v1406
      %v1445 = vmul.f32 %v1406, %v1444
      %v1446 = vsub.f32 1.0, %v1445
      %v1447 = vmul.f32 %v1444, %v1446
      %v1448 = vadd.f32 %v1444, %v1447
      %vm1449 = vweird.f32 %v1406
      %vm1450 = vweird.f32 %v1444
      %vm1451 = vmor %vm1449, %vm1450
      %v1452 = vsel %vm1451, %v1444, %v1448
      %v1453 = vand.u32 2147483647, %v1406
      %vm1454 = vcmp.eq.f32.partialorder %v1453, 8.507059e+37
      %v1455 = vand.u32 %v1406, 2147483648
      %v1456 = vor.u32 1.1754944e-38, %v1455
      %v1457 = vsel %vm1454, %v1456, %v1452
      %v1458 = vmul.f32 1.0, %v1457
      %v1459 = vrcp.pop %v1407
      %v1460 = vmul.f32 %v1407, %v1459
      %v1461 = vsub.f32 1.0, %v1460
      %v1462 = vmul.f32 %v1459, %v1461
      %v1463 = vadd.f32 %v1459, %v1462
      %vm1464 = vweird.f32 %v1407
      %vm1465 = vweird.f32 %v1459
      %vm1466 = vmor %vm1464, %vm1465
      %v1467 = vsel %vm1466, %v1459, %v1463
      %v1468 = vand.u32 2147483647, %v1407
      %vm1469 = vcmp.eq.f32.partialorder %v1468, 8.507059e+37
      %v1470 = vand.u32 %v1407, 2147483648
      %v1471 = vor.u32 1.1754944e-38, %v1470
      %v1472 = vsel %vm1469, %v1471, %v1467
      %v1473 = vmul.f32 1.0, %v1472
      %v1474 = vrcp.pop %v1408
      %v1475 = vmul.f32 %v1408, %v1474
      %v1476 = vsub.f32 1.0, %v1475
      %v1477 = vmul.f32 %v1474, %v1476
      %v1478 = vadd.f32 %v1474, %v1477
      %vm1479 = vweird.f32 %v1408
      %vm1480 = vweird.f32 %v1474
      %vm1481 = vmor %vm1479, %vm1480
      %v1482 = vsel %vm1481, %v1474, %v1478
      %v1483 = vand.u32 2147483647, %v1408
      %vm1484 = vcmp.eq.f32.partialorder %v1483, 8.507059e+37
      %v1485 = vand.u32 %v1408, 2147483648
      %v1486 = vor.u32 1.1754944e-38, %v1485
      %v1487 = vsel %vm1484, %v1486, %v1482
      %v1488 = vmul.f32 1.0, %v1487
      %v1489 = vrcp.pop %v1409
      %v1490 = vmul.f32 %v1409, %v1489
      %v1491 = vsub.f32 1.0, %v1490
      %v1492 = vmul.f32 %v1489, %v1491
      %v1493 = vadd.f32 %v1489, %v1492
      %vm1494 = vweird.f32 %v1409
      %vm1495 = vweird.f32 %v1489
      %vm1496 = vmor %vm1494, %vm1495
      %v1497 = vsel %vm1496, %v1489, %v1493
      %v1498 = vand.u32 2147483647, %v1409
      %vm1499 = vcmp.eq.f32.partialorder %v1498, 8.507059e+37
      %v1500 = vand.u32 %v1409, 2147483648
      %v1501 = vor.u32 1.1754944e-38, %v1500
      %v1502 = vsel %vm1499, %v1501, %v1497
      %v1503 = vmul.f32 1.0, %v1502
      %v1504 = vrcp.pop %v1410
      %v1505 = vmul.f32 %v1410, %v1504
      %v1506 = vsub.f32 1.0, %v1505
      %v1507 = vmul.f32 %v1504, %v1506
      %v1508 = vadd.f32 %v1504, %v1507
      %vm1509 = vweird.f32 %v1410
      %vm1510 = vweird.f32 %v1504
      %vm1511 = vmor %vm1509, %vm1510
      %v1512 = vsel %vm1511, %v1504, %v1508
      %v1513 = vand.u32 2147483647, %v1410
      %vm1514 = vcmp.eq.f32.partialorder %v1513, 8.507059e+37
      %v1515 = vand.u32 %v1410, 2147483648
      %v1516 = vor.u32 1.1754944e-38, %v1515
      %v1517 = vsel %vm1514, %v1516, %v1512
      %v1518 = vmul.f32 1.0, %v1517
      %v1519 = vrcp.pop %v1411
      %v1520 = vmul.f32 %v1411, %v1519
      %v1521 = vsub.f32 1.0, %v1520
      %v1522 = vmul.f32 %v1519, %v1521
      %v1523 = vadd.f32 %v1519, %v1522
      %vm1524 = vweird.f32 %v1411
      %vm1525 = vweird.f32 %v1519
      %vm1526 = vmor %vm1524, %vm1525
      %v1527 = vsel %vm1526, %v1519, %v1523
      %v1528 = vand.u32 2147483647, %v1411
      %vm1529 = vcmp.eq.f32.partialorder %v1528, 8.507059e+37
      %v1530 = vand.u32 %v1411, 2147483648
      %v1531 = vor.u32 1.1754944e-38, %v1530
      %v1532 = vsel %vm1529, %v1531, %v1527
      %v1533 = vmul.f32 1.0, %v1532
      %v1534 = vrcp.pop %v1412
      %v1535 = vmul.f32 %v1412, %v1534
      %v1536 = vsub.f32 1.0, %v1535
      %v1537 = vmul.f32 %v1534, %v1536
      %v1538 = vadd.f32 %v1534, %v1537
      %vm1539 = vweird.f32 %v1412
      %vm1540 = vweird.f32 %v1534
      %vm1541 = vmor %vm1539, %vm1540
      %v1542 = vsel %vm1541, %v1534, %v1538
      %v1543 = vand.u32 2147483647, %v1412
      %vm1544 = vcmp.eq.f32.partialorder %v1543, 8.507059e+37
      %v1545 = vand.u32 %v1412, 2147483648
      %v1546 = vor.u32 1.1754944e-38, %v1545
      %v1547 = vsel %vm1544, %v1546, %v1542
      %v1548 = vmul.f32 1.0, %v1547
      %v1549 = vrcp.pop %v1413
      %v1550 = vmul.f32 %v1413, %v1549
      %v1551 = vsub.f32 1.0, %v1550
      %v1552 = vmul.f32 %v1549, %v1551
      %v1553 = vadd.f32 %v1549, %v1552
      %vm1554 = vweird.f32 %v1413
      %vm1555 = vweird.f32 %v1549
      %vm1556 = vmor %vm1554, %vm1555
      %v1557 = vsel %vm1556, %v1549, %v1553
      %v1558 = vand.u32 2147483647, %v1413
      %vm1559 = vcmp.eq.f32.partialorder %v1558, 8.507059e+37
      %v1560 = vand.u32 %v1413, 2147483648
      %v1561 = vor.u32 1.1754944e-38, %v1560
      %v1562 = vsel %vm1559, %v1561, %v1557
      %v1563 = vmul.f32 1.0, %v1562
      %v1564 = vmul.f32 %v1183, %v1428
      %v1565 = vmul.f32 %v1184, %v1443
      %v1566 = vmul.f32 %v1185, %v1458
      %v1567 = vmul.f32 %v1186, %v1473
      %v1568 = vmul.f32 %v1187, %v1488
      %v1569 = vmul.f32 %v1188, %v1503
      %v1570 = vmul.f32 %v1189, %v1518
      %v1571 = vmul.f32 %v1190, %v1533
      %v1572 = vmul.f32 %v1191, %v1548
      %v1573 = vmul.f32 %v1192, %v1563
      %vm1574 = vcmp.ge.f32.partialorder %v1564, 0.0
      %vm1575 = vcmp.ge.f32.partialorder %v1565, 0.0
      %vm1576 = vcmp.ge.f32.partialorder %v1566, 0.0
      %vm1577 = vcmp.ge.f32.partialorder %v1567, 0.0
      %vm1578 = vcmp.ge.f32.partialorder %v1568, 0.0
      %vm1579 = vcmp.ge.f32.partialorder %v1569, 0.0
      %vm1580 = vcmp.ge.f32.partialorder %v1570, 0.0
      %vm1581 = vcmp.ge.f32.partialorder %v1571, 0.0
      %vm1582 = vcmp.ge.f32.partialorder %v1572, 0.0
      %vm1583 = vcmp.ge.f32.partialorder %v1573, 0.0
      %v1584 = vmul.f32 %v1564, 0.2
      %v1585 = vmul.f32 %v1565, 0.2
      %v1586 = vmul.f32 %v1566, 0.2
      %v1587 = vmul.f32 %v1567, 0.2
      %v1588 = vmul.f32 %v1568, 0.2
      %v1589 = vmul.f32 %v1569, 0.2
      %v1590 = vmul.f32 %v1570, 0.2
      %v1591 = vmul.f32 %v1571, 0.2
      %v1592 = vmul.f32 %v1572, 0.2
      %v1593 = vmul.f32 %v1573, 0.2
      %v1594 = vsel %vm1574, %v1564, %v1584
      %v1595 = vsel %vm1575, %v1565, %v1585
      %v1596 = vsel %vm1576, %v1566, %v1586
      %v1597 = vsel %vm1577, %v1567, %v1587
      %v1598 = vsel %vm1578, %v1568, %v1588
      %v1599 = vsel %vm1579, %v1569, %v1589
      %v1600 = vsel %vm1580, %v1570, %v1590
      %v1601 = vsel %vm1581, %v1571, %v1591
      %v1602 = vsel %vm1582, %v1572, %v1592
      %v1603 = vsel %vm1583, %v1573, %v1593
      %v1604 = vpack.c.bf16 %v1595, %v1594
      %v1605 = vpack.c.bf16 %v1597, %v1596
      %v1606 = vpack.c.bf16 %v1599, %v1598
      %v1607 = vpack.c.bf16 %v1601, %v1600
      %v1608 = vpack.c.bf16 %v1603, %v1602
      %v1614 = vunpack.c.l.b16 %v1604
      %v1615 = vunpack.c.h.b16 %v1604
      %v1616 = vunpack.c.l.b16 %v1605
      %v1617 = vunpack.c.h.b16 %v1605
      %v1618 = vunpack.c.l.b16 %v1606
      %v1619 = vunpack.c.h.b16 %v1606
      %v1620 = vunpack.c.l.b16 %v1607
      %v1621 = vunpack.c.h.b16 %v1607
      %v1622 = vunpack.c.l.b16 %v1608
      %v1623 = vunpack.c.h.b16 %v1608
      %v1624 = vpack.c.b16 %v1614, %v1614
      %v1625 = vpack.c.b16 %v1615, %v1615
      %v1626 = vpack.c.b16 %v1616, %v1616
      %v1627 = vpack.c.b16 %v1617, %v1617
      %v1628 = vpack.c.b16 %v1618, %v1618
      %v1629 = vpack.c.b16 %v1619, %v1619
      %v1630 = vpack.c.b16 %v1620, %v1620
      %v1631 = vpack.c.b16 %v1621, %v1621
      %v1632 = vpack.c.b16 %v1622, %v1622
      %v1633 = vpack.c.b16 %v1623, %v1623
      %v1634 = vrot.slane %v1624, 4
      %v1635 = vrot.slane %v1625, 4
      %v1636 = vrot.slane %v1626, 4
      %v1637 = vrot.slane %v1627, 4
      %v1638 = vrot.slane %v1628, 4
      %v1639 = vrot.slane %v1629, 4
      %v1640 = vrot.slane %v1630, 4
      %v1641 = vrot.slane %v1631, 4
      %v1642 = vrot.slane %v1632, 4
      %v1643 = vrot.slane %v1633, 4
      %1644 = vrot.lane.b32.xlu0 %v1634, 127
      %v1645 = vpop.permute.xlu0 %1644
      %1646 = vrot.lane.b32.xlu0 %v1635, 127
      %v1647 = vpop.permute.xlu0 %1646
      %1648 = vrot.lane.b32.xlu0 %v1636, 127
      %v1649 = vpop.permute.xlu0 %1648
      %1650 = vrot.lane.b32.xlu0 %v1637, 127
      %v1651 = vpop.permute.xlu0 %1650
      %1652 = vrot.lane.b32.xlu0 %v1638, 127
      %v1653 = vpop.permute.xlu0 %1652
      %1654 = vrot.lane.b32.xlu0 %v1639, 127
      %v1655 = vpop.permute.xlu0 %1654
      %1656 = vrot.lane.b32.xlu0 %v1640, 127
      %v1657 = vpop.permute.xlu0 %1656
      %1658 = vrot.lane.b32.xlu0 %v1641, 127
      %v1659 = vpop.permute.xlu0 %1658
      %1660 = vrot.lane.b32.xlu0 %v1642, 127
      %v1661 = vpop.permute.xlu0 %1660
      %1662 = vrot.lane.b32.xlu0 %v1643, 127
      %v1663 = vpop.permute.xlu0 %1662
      %v1664 = vsel %vm373, %v352, %v1645
      %v1665 = vsel %vm373, %v1645, %v1647
      %v1666 = vsel %vm373, %v1647, %v1649
      %v1667 = vsel %vm373, %v1649, %v1651
      %v1668 = vsel %vm373, %v1651, %v1653
      %v1669 = vsel %vm373, %v1653, %v1655
      %v1670 = vsel %vm373, %v1655, %v1657
      %v1671 = vsel %vm373, %v1657, %v1659
      %v1672 = vsel %vm373, %v1659, %v1661
      %v1673 = vsel %vm373, %v1661, %v1663
      %1674 = vrot.lane.b32.xlu0 %v1624, 126
      %v1675 = vpop.permute.xlu0 %1674
      %1676 = vrot.lane.b32.xlu0 %v1625, 126
      %v1677 = vpop.permute.xlu0 %1676
      %1678 = vrot.lane.b32.xlu0 %v1626, 126
      %v1679 = vpop.permute.xlu0 %1678
      %1680 = vrot.lane.b32.xlu0 %v1627, 126
      %v1681 = vpop.permute.xlu0 %1680
      %1682 = vrot.lane.b32.xlu0 %v1628, 126
      %v1683 = vpop.permute.xlu0 %1682
      %1684 = vrot.lane.b32.xlu0 %v1629, 126
      %v1685 = vpop.permute.xlu0 %1684
      %1686 = vrot.lane.b32.xlu0 %v1630, 126
      %v1687 = vpop.permute.xlu0 %1686
      %1688 = vrot.lane.b32.xlu0 %v1631, 126
      %v1689 = vpop.permute.xlu0 %1688
      %1690 = vrot.lane.b32.xlu0 %v1632, 126
      %v1691 = vpop.permute.xlu0 %1690
      %1692 = vrot.lane.b32.xlu0 %v1633, 126
      %v1693 = vpop.permute.xlu0 %1692
      %v1694 = vsel %vm406, %v385, %v1675
      %v1695 = vsel %vm406, %v1675, %v1677
      %v1696 = vsel %vm406, %v1677, %v1679
      %v1697 = vsel %vm406, %v1679, %v1681
      %v1698 = vsel %vm406, %v1681, %v1683
      %v1699 = vsel %vm406, %v1683, %v1685
      %v1700 = vsel %vm406, %v1685, %v1687
      %v1701 = vsel %vm406, %v1687, %v1689
      %v1702 = vsel %vm406, %v1689, %v1691
      %v1703 = vsel %vm406, %v1691, %v1693
      %1704 = vrot.lane.b32.xlu0 %v1634, 94
      %v1705 = vpop.permute.xlu0 %1704
      %1706 = vrot.lane.b32.xlu0 %v1635, 94
      %v1707 = vpop.permute.xlu0 %1706
      %1708 = vrot.lane.b32.xlu0 %v1636, 94
      %v1709 = vpop.permute.xlu0 %1708
      %1710 = vrot.lane.b32.xlu0 %v1637, 94
      %v1711 = vpop.permute.xlu0 %1710
      %1712 = vrot.lane.b32.xlu0 %v1638, 94
      %v1713 = vpop.permute.xlu0 %1712
      %1714 = vrot.lane.b32.xlu0 %v1639, 94
      %v1715 = vpop.permute.xlu0 %1714
      %1716 = vrot.lane.b32.xlu0 %v1640, 94
      %v1717 = vpop.permute.xlu0 %1716
      %1718 = vrot.lane.b32.xlu0 %v1641, 94
      %v1719 = vpop.permute.xlu0 %1718
      %1720 = vrot.lane.b32.xlu0 %v1642, 94
      %v1721 = vpop.permute.xlu0 %1720
      %1722 = vrot.lane.b32.xlu0 %v1643, 94
      %v1723 = vpop.permute.xlu0 %1722
      %v1724 = vsel %vm439, %v418, %v1705
      %v1725 = vsel %vm439, %v1705, %v1707
      %v1726 = vsel %vm439, %v1707, %v1709
      %v1727 = vsel %vm439, %v1709, %v1711
      %v1728 = vsel %vm439, %v1711, %v1713
      %v1729 = vsel %vm439, %v1713, %v1715
      %v1730 = vsel %vm439, %v1715, %v1717
      %v1731 = vsel %vm439, %v1717, %v1719
      %v1732 = vsel %vm439, %v1719, %v1721
      %v1733 = vsel %vm439, %v1721, %v1723
      %1734 = vrot.lane.b32.xlu0 %v1624, 93
      %v1735 = vpop.permute.xlu0 %1734
      %1736 = vrot.lane.b32.xlu0 %v1625, 93
      %v1737 = vpop.permute.xlu0 %1736
      %1738 = vrot.lane.b32.xlu0 %v1626, 93
      %v1739 = vpop.permute.xlu0 %1738
      %1740 = vrot.lane.b32.xlu0 %v1627, 93
      %v1741 = vpop.permute.xlu0 %1740
      %1742 = vrot.lane.b32.xlu0 %v1628, 93
      %v1743 = vpop.permute.xlu0 %1742
      %1744 = vrot.lane.b32.xlu0 %v1629, 93
      %v1745 = vpop.permute.xlu0 %1744
      %1746 = vrot.lane.b32.xlu0 %v1630, 93
      %v1747 = vpop.permute.xlu0 %1746
      %1748 = vrot.lane.b32.xlu0 %v1631, 93
      %v1749 = vpop.permute.xlu0 %1748
      %1750 = vrot.lane.b32.xlu0 %v1632, 93
      %v1751 = vpop.permute.xlu0 %1750
      %1752 = vrot.lane.b32.xlu0 %v1633, 93
      %v1753 = vpop.permute.xlu0 %1752
      %v1754 = vsel %vm470, %v1735, %v1737
      %v1755 = vsel %vm470, %v1737, %v1739
      %v1756 = vsel %vm470, %v1739, %v1741
      %v1757 = vsel %vm470, %v1741, %v1743
      %v1758 = vsel %vm470, %v1743, %v1745
      %v1759 = vsel %vm470, %v1745, %v1747
      %v1760 = vsel %vm470, %v1747, %v1749
      %v1761 = vsel %vm470, %v1749, %v1751
      %v1762 = vsel %vm470, %v1751, %v1753
      %1763 = vrot.lane.b32.xlu0 %v1634, 92
      %v1764 = vpop.permute.xlu0 %1763
      %1765 = vrot.lane.b32.xlu0 %v1635, 92
      %v1766 = vpop.permute.xlu0 %1765
      %1767 = vrot.lane.b32.xlu0 %v1636, 92
      %v1768 = vpop.permute.xlu0 %1767
      %1769 = vrot.lane.b32.xlu0 %v1637, 92
      %v1770 = vpop.permute.xlu0 %1769
      %1771 = vrot.lane.b32.xlu0 %v1638, 92
      %v1772 = vpop.permute.xlu0 %1771
      %1773 = vrot.lane.b32.xlu0 %v1639, 92
      %v1774 = vpop.permute.xlu0 %1773
      %1775 = vrot.lane.b32.xlu0 %v1640, 92
      %v1776 = vpop.permute.xlu0 %1775
      %1777 = vrot.lane.b32.xlu0 %v1641, 92
      %v1778 = vpop.permute.xlu0 %1777
      %1779 = vrot.lane.b32.xlu0 %v1642, 92
      %v1780 = vpop.permute.xlu0 %1779
      %1781 = vrot.lane.b32.xlu0 %v1643, 92
      %v1782 = vpop.permute.xlu0 %1781
      %v1783 = vsel %vm502, %v1764, %v1766
      %v1784 = vsel %vm502, %v1766, %v1768
      %v1785 = vsel %vm502, %v1768, %v1770
      %v1786 = vsel %vm502, %v1770, %v1772
      %v1787 = vsel %vm502, %v1772, %v1774
      %v1788 = vsel %vm502, %v1774, %v1776
      %v1789 = vsel %vm502, %v1776, %v1778
      %v1790 = vsel %vm502, %v1778, %v1780
      %v1791 = vsel %vm502, %v1780, %v1782
      %v1792 = vsel %vm502, %v1782, %v501
      %1793 = vrot.lane.b32.xlu0 %v1624, 60
      %v1794 = vpop.permute.xlu0 %1793
      %1795 = vrot.lane.b32.xlu0 %v1625, 60
      %v1796 = vpop.permute.xlu0 %1795
      %1797 = vrot.lane.b32.xlu0 %v1626, 60
      %v1798 = vpop.permute.xlu0 %1797
      %1799 = vrot.lane.b32.xlu0 %v1627, 60
      %v1800 = vpop.permute.xlu0 %1799
      %1801 = vrot.lane.b32.xlu0 %v1628, 60
      %v1802 = vpop.permute.xlu0 %1801
      %1803 = vrot.lane.b32.xlu0 %v1629, 60
      %v1804 = vpop.permute.xlu0 %1803
      %1805 = vrot.lane.b32.xlu0 %v1630, 60
      %v1806 = vpop.permute.xlu0 %1805
      %1807 = vrot.lane.b32.xlu0 %v1631, 60
      %v1808 = vpop.permute.xlu0 %1807
      %1809 = vrot.lane.b32.xlu0 %v1632, 60
      %v1810 = vpop.permute.xlu0 %1809
      %1811 = vrot.lane.b32.xlu0 %v1633, 60
      %v1812 = vpop.permute.xlu0 %1811
      %v1813 = vsel %vm535, %v1794, %v1796
      %v1814 = vsel %vm535, %v1796, %v1798
      %v1815 = vsel %vm535, %v1798, %v1800
      %v1816 = vsel %vm535, %v1800, %v1802
      %v1817 = vsel %vm535, %v1802, %v1804
      %v1818 = vsel %vm535, %v1804, %v1806
      %v1819 = vsel %vm535, %v1806, %v1808
      %v1820 = vsel %vm535, %v1808, %v1810
      %v1821 = vsel %vm535, %v1810, %v1812
      %v1822 = vsel %vm535, %v1812, %v534
      %1823 = vrot.lane.b32.xlu0 %v1634, 59
      %v1824 = vpop.permute.xlu0 %1823
      %1825 = vrot.lane.b32.xlu0 %v1635, 59
      %v1826 = vpop.permute.xlu0 %1825
      %1827 = vrot.lane.b32.xlu0 %v1636, 59
      %v1828 = vpop.permute.xlu0 %1827
      %1829 = vrot.lane.b32.xlu0 %v1637, 59
      %v1830 = vpop.permute.xlu0 %1829
      %1831 = vrot.lane.b32.xlu0 %v1638, 59
      %v1832 = vpop.permute.xlu0 %1831
      %1833 = vrot.lane.b32.xlu0 %v1639, 59
      %v1834 = vpop.permute.xlu0 %1833
      %1835 = vrot.lane.b32.xlu0 %v1640, 59
      %v1836 = vpop.permute.xlu0 %1835
      %1837 = vrot.lane.b32.xlu0 %v1641, 59
      %v1838 = vpop.permute.xlu0 %1837
      %1839 = vrot.lane.b32.xlu0 %v1642, 59
      %v1840 = vpop.permute.xlu0 %1839
      %1841 = vrot.lane.b32.xlu0 %v1643, 59
      %v1842 = vpop.permute.xlu0 %1841
      %v1843 = vsel %vm568, %v1824, %v1826
      %v1844 = vsel %vm568, %v1826, %v1828
      %v1845 = vsel %vm568, %v1828, %v1830
      %v1846 = vsel %vm568, %v1830, %v1832
      %v1847 = vsel %vm568, %v1832, %v1834
      %v1848 = vsel %vm568, %v1834, %v1836
      %v1849 = vsel %vm568, %v1836, %v1838
      %v1850 = vsel %vm568, %v1838, %v1840
      %v1851 = vsel %vm568, %v1840, %v1842
      %v1852 = vsel %vm568, %v1842, %v567
      %1853 = vrot.lane.b32.xlu0 %v1624, 58
      %v1854 = vpop.permute.xlu0 %1853
      %1855 = vrot.lane.b32.xlu0 %v1625, 58
      %v1856 = vpop.permute.xlu0 %1855
      %1857 = vrot.lane.b32.xlu0 %v1626, 58
      %v1858 = vpop.permute.xlu0 %1857
      %1859 = vrot.lane.b32.xlu0 %v1627, 58
      %v1860 = vpop.permute.xlu0 %1859
      %1861 = vrot.lane.b32.xlu0 %v1628, 58
      %v1862 = vpop.permute.xlu0 %1861
      %1863 = vrot.lane.b32.xlu0 %v1629, 58
      %v1864 = vpop.permute.xlu0 %1863
      %1865 = vrot.lane.b32.xlu0 %v1630, 58
      %v1866 = vpop.permute.xlu0 %1865
      %1867 = vrot.lane.b32.xlu0 %v1631, 58
      %v1868 = vpop.permute.xlu0 %1867
      %1869 = vrot.lane.b32.xlu0 %v1632, 58
      %v1870 = vpop.permute.xlu0 %1869
      %1871 = vrot.lane.b32.xlu0 %v1633, 58
      %v1872 = vpop.permute.xlu0 %1871
      %v1873 = vsel %vm601, %v1854, %v1856
      %v1874 = vsel %vm601, %v1856, %v1858
      %v1875 = vsel %vm601, %v1858, %v1860
      %v1876 = vsel %vm601, %v1860, %v1862
      %v1877 = vsel %vm601, %v1862, %v1864
      %v1878 = vsel %vm601, %v1864, %v1866
      %v1879 = vsel %vm601, %v1866, %v1868
      %v1880 = vsel %vm601, %v1868, %v1870
      %v1881 = vsel %vm601, %v1870, %v1872
      %v1882 = vsel %vm601, %v1872, %v600
      %v1884 = vsel %vm612, 0, %v1664
      %v1887 = vsel %vm612, %v1624, %v1665
      %v1890 = vsel %vm612, %v1625, %v1666
      %v1893 = vsel %vm612, %v1626, %v1667
      %v1896 = vsel %vm612, %v1627, %v1668
      %v1899 = vsel %vm612, %v1628, %v1669
      %v1902 = vsel %vm612, %v1629, %v1670
      %v1905 = vsel %vm612, %v1630, %v1671
      %v1908 = vsel %vm612, %v1631, %v1672
      %v1911 = vsel %vm612, %v1632, %v1673
      %v1914 = vsel %vm612, %v1633, %v1663
      %v1917 = vsel %vm612, %v1694, %v1724
      %v1920 = vsel %vm612, %v1695, %v1725
      %v1923 = vsel %vm612, %v1696, %v1726
      %v1926 = vsel %vm612, %v1697, %v1727
      %v1929 = vsel %vm612, %v1698, %v1728
      %v1932 = vsel %vm612, %v1699, %v1729
      %v1935 = vsel %vm612, %v1700, %v1730
      %v1938 = vsel %vm612, %v1701, %v1731
      %v1941 = vsel %vm612, %v1702, %v1732
      %v1944 = vsel %vm612, %v1703, %v1733
      %v1947 = vsel %vm612, %v1693, %v1723
      %v1950 = vsel %vm612, %v1735, %v1764
      %v1953 = vsel %vm612, %v1754, %v1783
      %v1956 = vsel %vm612, %v1755, %v1784
      %v1959 = vsel %vm612, %v1756, %v1785
      %v1962 = vsel %vm612, %v1757, %v1786
      %v1965 = vsel %vm612, %v1758, %v1787
      %v1968 = vsel %vm612, %v1759, %v1788
      %v1971 = vsel %vm612, %v1760, %v1789
      %v1974 = vsel %vm612, %v1761, %v1790
      %v1977 = vsel %vm612, %v1762, %v1791
      %v1980 = vsel %vm612, %v1753, %v1792
      %v1983 = vsel %vm612, %v1794, %v1824
      %v1986 = vsel %vm612, %v1813, %v1843
      %v1989 = vsel %vm612, %v1814, %v1844
      %v1992 = vsel %vm612, %v1815, %v1845
      %v1995 = vsel %vm612, %v1816, %v1846
      %v1998 = vsel %vm612, %v1817, %v1847
      %v2001 = vsel %vm612, %v1818, %v1848
      %v2004 = vsel %vm612, %v1819, %v1849
      %v2007 = vsel %vm612, %v1820, %v1850
      %v2010 = vsel %vm612, %v1821, %v1851
      %v2013 = vsel %vm612, %v1822, %v1852
      %v2014 = vld [vmem:[%s6] sm:$0xf]
      %v2015 = vld [vmem:[%s7] sm:$0xff]
      %2017 = vset.pattern.permute.xlu0 0
      %2018 = vperm.xlu0 %2017, %v2015
      %v2019 = vpop.permute.xlu0 %2018
      %2065 = vrot.lane.b32.xlu0 %v1884, 35
      %v2066 = vpop.permute.xlu0 %2065
      %2067 = vrot.lane.b32.xlu0 %v1887, 35
      %v2068 = vpop.permute.xlu0 %2067
      %2069 = vrot.lane.b32.xlu0 %v1890, 35
      %v2070 = vpop.permute.xlu0 %2069
      %2071 = vrot.lane.b32.xlu0 %v1893, 35
      %v2072 = vpop.permute.xlu0 %2071
      %2073 = vrot.lane.b32.xlu0 %v1896, 35
      %v2074 = vpop.permute.xlu0 %2073
      %2075 = vrot.lane.b32.xlu0 %v1899, 35
      %v2076 = vpop.permute.xlu0 %2075
      %2077 = vrot.lane.b32.xlu0 %v1902, 35
      %v2078 = vpop.permute.xlu0 %2077
      %2079 = vrot.lane.b32.xlu0 %v1905, 35
      %v2080 = vpop.permute.xlu0 %2079
      %2081 = vrot.lane.b32.xlu0 %v1908, 35
      %v2082 = vpop.permute.xlu0 %2081
      %2083 = vrot.lane.b32.xlu0 %v1911, 35
      %v2084 = vpop.permute.xlu0 %2083
      %2085 = vrot.lane.b32.xlu0 %v1914, 35
      %v2086 = vpop.permute.xlu0 %2085
      %2087 = vrot.lane.b32.xlu0 %v1917, 35
      %v2088 = vpop.permute.xlu0 %2087
      %2089 = vrot.lane.b32.xlu0 %v1920, 35
      %v2090 = vpop.permute.xlu0 %2089
      %2091 = vrot.lane.b32.xlu0 %v1923, 35
      %v2092 = vpop.permute.xlu0 %2091
      %2093 = vrot.lane.b32.xlu0 %v1926, 35
      %v2094 = vpop.permute.xlu0 %2093
      %2095 = vrot.lane.b32.xlu0 %v1929, 35
      %v2096 = vpop.permute.xlu0 %2095
      %2097 = vrot.lane.b32.xlu0 %v1932, 35
      %v2098 = vpop.permute.xlu0 %2097
      %2099 = vrot.lane.b32.xlu0 %v1935, 35
      %v2100 = vpop.permute.xlu0 %2099
      %2101 = vrot.lane.b32.xlu0 %v1938, 35
      %v2102 = vpop.permute.xlu0 %2101
      %2103 = vrot.lane.b32.xlu0 %v1941, 35
      %v2104 = vpop.permute.xlu0 %2103
      %2105 = vrot.lane.b32.xlu0 %v1944, 35
      %v2106 = vpop.permute.xlu0 %2105
      %2107 = vrot.lane.b32.xlu0 %v1947, 35
      %v2108 = vpop.permute.xlu0 %2107
      %2109 = vrot.lane.b32.xlu0 %v1950, 35
      %v2110 = vpop.permute.xlu0 %2109
      %2111 = vrot.lane.b32.xlu0 %v1953, 35
      %v2112 = vpop.permute.xlu0 %2111
      %2113 = vrot.lane.b32.xlu0 %v1956, 35
      %v2114 = vpop.permute.xlu0 %2113
      %2115 = vrot.lane.b32.xlu0 %v1959, 35
      %v2116 = vpop.permute.xlu0 %2115
      %2117 = vrot.lane.b32.xlu0 %v1962, 35
      %v2118 = vpop.permute.xlu0 %2117
      %2119 = vrot.lane.b32.xlu0 %v1965, 35
      %v2120 = vpop.permute.xlu0 %2119
      %2121 = vrot.lane.b32.xlu0 %v1968, 35
      %v2122 = vpop.permute.xlu0 %2121
      %2123 = vrot.lane.b32.xlu0 %v1971, 35
      %v2124 = vpop.permute.xlu0 %2123
      %2125 = vrot.lane.b32.xlu0 %v1974, 35
      %v2126 = vpop.permute.xlu0 %2125
      %2127 = vrot.lane.b32.xlu0 %v1977, 35
      %v2128 = vpop.permute.xlu0 %2127
      %2129 = vrot.lane.b32.xlu0 %v1980, 35
      %v2130 = vpop.permute.xlu0 %2129
      %2131 = vrot.lane.b32.xlu0 %v1983, 35
      %v2132 = vpop.permute.xlu0 %2131
      %2133 = vrot.lane.b32.xlu0 %v1986, 35
      %v2134 = vpop.permute.xlu0 %2133
      %2135 = vrot.lane.b32.xlu0 %v1989, 35
      %v2136 = vpop.permute.xlu0 %2135
      %2137 = vrot.lane.b32.xlu0 %v1992, 35
      %v2138 = vpop.permute.xlu0 %2137
      %2139 = vrot.lane.b32.xlu0 %v1995, 35
      %v2140 = vpop.permute.xlu0 %2139
      %2141 = vrot.lane.b32.xlu0 %v1998, 35
      %v2142 = vpop.permute.xlu0 %2141
      %2143 = vrot.lane.b32.xlu0 %v2001, 35
      %v2144 = vpop.permute.xlu0 %2143
      %2145 = vrot.lane.b32.xlu0 %v2004, 35
      %v2146 = vpop.permute.xlu0 %2145
      %2147 = vrot.lane.b32.xlu0 %v2007, 35
      %v2148 = vpop.permute.xlu0 %2147
      %2149 = vrot.lane.b32.xlu0 %v2010, 35
      %v2150 = vpop.permute.xlu0 %2149
      %2151 = vrot.lane.b32.xlu0 %v2013, 35
      %v2152 = vpop.permute.xlu0 %2151
      %2153 = vrot.lane.b32.xlu0 %v1854, 35
      %v2154 = vpop.permute.xlu0 %2153
      %2155 = vrot.lane.b32.xlu0 %v1873, 35
      %v2156 = vpop.permute.xlu0 %2155
      %2157 = vrot.lane.b32.xlu0 %v1874, 35
      %v2158 = vpop.permute.xlu0 %2157
      %2159 = vrot.lane.b32.xlu0 %v1875, 35
      %v2160 = vpop.permute.xlu0 %2159
      %2161 = vrot.lane.b32.xlu0 %v1876, 35
      %v2162 = vpop.permute.xlu0 %2161
      %2163 = vrot.lane.b32.xlu0 %v1877, 35
      %v2164 = vpop.permute.xlu0 %2163
      %2165 = vrot.lane.b32.xlu0 %v1878, 35
      %v2166 = vpop.permute.xlu0 %2165
      %2167 = vrot.lane.b32.xlu0 %v1879, 35
      %v2168 = vpop.permute.xlu0 %2167
      %2169 = vrot.lane.b32.xlu0 %v1880, 35
      %v2170 = vpop.permute.xlu0 %2169
      %2171 = vrot.lane.b32.xlu0 %v1881, 35
      %v2172 = vpop.permute.xlu0 %2171
      %2173 = vrot.lane.b32.xlu0 %v1882, 35
      %v2174 = vpop.permute.xlu0 %2173
      %v2175 = vsel %vm906, %v2066, %v2068
      %v2176 = vsel %vm906, %v2068, %v2070
      %v2177 = vsel %vm906, %v2070, %v2072
      %v2178 = vsel %vm906, %v2072, %v2074
      %v2179 = vsel %vm906, %v2074, %v2076
      %v2180 = vsel %vm906, %v2076, %v2078
      %v2181 = vsel %vm906, %v2078, %v2080
      %v2182 = vsel %vm906, %v2080, %v2082
      %v2183 = vsel %vm906, %v2082, %v2084
      %v2184 = vsel %vm906, %v2084, %v2086
      %v2185 = vsel %vm906, %v2088, %v2090
      %v2186 = vsel %vm906, %v2090, %v2092
      %v2187 = vsel %vm906, %v2092, %v2094
      %v2188 = vsel %vm906, %v2094, %v2096
      %v2189 = vsel %vm906, %v2096, %v2098
      %v2190 = vsel %vm906, %v2098, %v2100
      %v2191 = vsel %vm906, %v2100, %v2102
      %v2192 = vsel %vm906, %v2102, %v2104
      %v2193 = vsel %vm906, %v2104, %v2106
      %v2194 = vsel %vm906, %v2106, %v2108
      %v2195 = vsel %vm906, %v2110, %v2112
      %v2196 = vsel %vm906, %v2112, %v2114
      %v2197 = vsel %vm906, %v2114, %v2116
      %v2198 = vsel %vm906, %v2116, %v2118
      %v2199 = vsel %vm906, %v2118, %v2120
      %v2200 = vsel %vm906, %v2120, %v2122
      %v2201 = vsel %vm906, %v2122, %v2124
      %v2202 = vsel %vm906, %v2124, %v2126
      %v2203 = vsel %vm906, %v2126, %v2128
      %v2204 = vsel %vm906, %v2128, %v2130
      %v2205 = vsel %vm906, %v2132, %v2134
      %v2206 = vsel %vm906, %v2134, %v2136
      %v2207 = vsel %vm906, %v2136, %v2138
      %v2208 = vsel %vm906, %v2138, %v2140
      %v2209 = vsel %vm906, %v2140, %v2142
      %v2210 = vsel %vm906, %v2142, %v2144
      %v2211 = vsel %vm906, %v2144, %v2146
      %v2212 = vsel %vm906, %v2146, %v2148
      %v2213 = vsel %vm906, %v2148, %v2150
      %v2214 = vsel %vm906, %v2150, %v2152
      %v2215 = vsel %vm906, %v2154, %v2156
      %v2216 = vsel %vm906, %v2156, %v2158
      %v2217 = vsel %vm906, %v2158, %v2160
      %v2218 = vsel %vm906, %v2160, %v2162
      %v2219 = vsel %vm906, %v2162, %v2164
      %v2220 = vsel %vm906, %v2164, %v2166
      %v2221 = vsel %vm906, %v2166, %v2168
      %v2222 = vsel %vm906, %v2168, %v2170
      %v2223 = vsel %vm906, %v2170, %v2172
      %v2224 = vsel %vm906, %v2172, %v2174
      %v2266 = vsel %vm997, %v2014, 0
      %v2269 = vsel %vm612, %v2215, 0
      %v2272 = vsel %vm612, %v2216, 0
      %v2275 = vsel %vm612, %v2217, 0
      %v2278 = vsel %vm612, %v2218, 0
      %v2281 = vsel %vm612, %v2219, 0
      %v2284 = vsel %vm612, %v2220, 0
      %v2287 = vsel %vm612, %v2221, 0
      %v2290 = vsel %vm612, %v2222, 0
      %v2293 = vsel %vm612, %v2223, 0
      %v2296 = vsel %vm612, %v2224, 0
      %2298 = vmatpush.bf16.msra.mxu0 0
      %2299 = vmatpush.bf16.msra.mxu0 0
      %2300 = vmatpush.bf16.msra.mxu0 0
      %2301 = vmatpush.bf16.msra.mxu0 %v2269
      %2302 = vmatpush.bf16.msra.mxu0 %v2205
      %2303 = vmatpush.bf16.msra.mxu0 %v2195
      %2304 = vmatpush.bf16.msra.mxu0 %v2185
      %2305 = vmatpush.bf16.msra.mxu0 %v2175
      %2306 = vmatmul.bf16.gmra.mxu0 %v2266
      %v2307 = vpop.f32.mrf.mxu0
      %v2308 = vadd.f32 %v2019, %v2307
      %v2309 = vpop.f32.mrf.mxu0
      %2310 = vdwg.mxu0
      %2311 = vmatpush.bf16.msra.mxu0 0
      %2312 = vmatpush.bf16.msra.mxu0 0
      %2313 = vmatpush.bf16.msra.mxu0 0
      %2314 = vmatpush.bf16.msra.mxu0 %v2272
      %2315 = vmatpush.bf16.msra.mxu0 %v2206
      %2316 = vmatpush.bf16.msra.mxu0 %v2196
      %2317 = vmatpush.bf16.msra.mxu0 %v2186
      %2318 = vmatpush.bf16.msra.mxu0 %v2176
      %2319 = vmatmul.bf16.gmra.mxu0 %v2266
      %v2320 = vpop.f32.mrf.mxu0
      %v2321 = vadd.f32 %v2019, %v2320
      %v2322 = vpop.f32.mrf.mxu0
      %2323 = vdwg.mxu0
      %2324 = vmatpush.bf16.msra.mxu0 0
      %2325 = vmatpush.bf16.msra.mxu0 0
      %2326 = vmatpush.bf16.msra.mxu0 0
      %2327 = vmatpush.bf16.msra.mxu0 %v2275
      %2328 = vmatpush.bf16.msra.mxu0 %v2207
      %2329 = vmatpush.bf16.msra.mxu0 %v2197
      %2330 = vmatpush.bf16.msra.mxu0 %v2187
      %2331 = vmatpush.bf16.msra.mxu0 %v2177
      %2332 = vmatmul.bf16.gmra.mxu0 %v2266
      %v2333 = vpop.f32.mrf.mxu0
      %v2334 = vadd.f32 %v2019, %v2333
      %v2335 = vpop.f32.mrf.mxu0
      %2336 = vdwg.mxu0
      %2337 = vmatpush.bf16.msra.mxu0 0
      %2338 = vmatpush.bf16.msra.mxu0 0
      %2339 = vmatpush.bf16.msra.mxu0 0
      %2340 = vmatpush.bf16.msra.mxu0 %v2278
      %2341 = vmatpush.bf16.msra.mxu0 %v2208
      %2342 = vmatpush.bf16.msra.mxu0 %v2198
      %2343 = vmatpush.bf16.msra.mxu0 %v2188
      %2344 = vmatpush.bf16.msra.mxu0 %v2178
      %2345 = vmatmul.bf16.gmra.mxu0 %v2266
      %v2346 = vpop.f32.mrf.mxu0
      %v2347 = vadd.f32 %v2019, %v2346
      %v2348 = vpop.f32.mrf.mxu0
      %2349 = vdwg.mxu0
      %2350 = vmatpush.bf16.msra.mxu0 0
      %2351 = vmatpush.bf16.msra.mxu0 0
      %2352 = vmatpush.bf16.msra.mxu0 0
      %2353 = vmatpush.bf16.msra.mxu0 %v2281
      %2354 = vmatpush.bf16.msra.mxu0 %v2209
      %2355 = vmatpush.bf16.msra.mxu0 %v2199
      %2356 = vmatpush.bf16.msra.mxu0 %v2189
      %2357 = vmatpush.bf16.msra.mxu0 %v2179
      %2358 = vmatmul.bf16.gmra.mxu0 %v2266
      %v2359 = vpop.f32.mrf.mxu0
      %v2360 = vadd.f32 %v2019, %v2359
      %v2361 = vpop.f32.mrf.mxu0
      %2362 = vdwg.mxu0
      %2363 = vmatpush.bf16.msra.mxu0 0
      %2364 = vmatpush.bf16.msra.mxu0 0
      %2365 = vmatpush.bf16.msra.mxu0 0
      %2366 = vmatpush.bf16.msra.mxu0 %v2284
      %2367 = vmatpush.bf16.msra.mxu0 %v2210
      %2368 = vmatpush.bf16.msra.mxu0 %v2200
      %2369 = vmatpush.bf16.msra.mxu0 %v2190
      %2370 = vmatpush.bf16.msra.mxu0 %v2180
      %2371 = vmatmul.bf16.gmra.mxu0 %v2266
      %v2372 = vpop.f32.mrf.mxu0
      %v2373 = vadd.f32 %v2019, %v2372
      %v2374 = vpop.f32.mrf.mxu0
      %2375 = vdwg.mxu0
      %2376 = vmatpush.bf16.msra.mxu0 0
      %2377 = vmatpush.bf16.msra.mxu0 0
      %2378 = vmatpush.bf16.msra.mxu0 0
      %2379 = vmatpush.bf16.msra.mxu0 %v2287
      %2380 = vmatpush.bf16.msra.mxu0 %v2211
      %2381 = vmatpush.bf16.msra.mxu0 %v2201
      %2382 = vmatpush.bf16.msra.mxu0 %v2191
      %2383 = vmatpush.bf16.msra.mxu0 %v2181
      %2384 = vmatmul.bf16.gmra.mxu0 %v2266
      %v2385 = vpop.f32.mrf.mxu0
      %v2386 = vadd.f32 %v2019, %v2385
      %v2387 = vpop.f32.mrf.mxu0
      %2388 = vdwg.mxu0
      %2389 = vmatpush.bf16.msra.mxu0 0
      %2390 = vmatpush.bf16.msra.mxu0 0
      %2391 = vmatpush.bf16.msra.mxu0 0
      %2392 = vmatpush.bf16.msra.mxu0 %v2290
      %2393 = vmatpush.bf16.msra.mxu0 %v2212
      %2394 = vmatpush.bf16.msra.mxu0 %v2202
      %2395 = vmatpush.bf16.msra.mxu0 %v2192
      %2396 = vmatpush.bf16.msra.mxu0 %v2182
      %2397 = vmatmul.bf16.gmra.mxu0 %v2266
      %v2398 = vpop.f32.mrf.mxu0
      %v2399 = vadd.f32 %v2019, %v2398
      %v2400 = vpop.f32.mrf.mxu0
      %2401 = vdwg.mxu0
      %2402 = vmatpush.bf16.msra.mxu0 0
      %2403 = vmatpush.bf16.msra.mxu0 0
      %2404 = vmatpush.bf16.msra.mxu0 0
      %2405 = vmatpush.bf16.msra.mxu0 %v2293
      %2406 = vmatpush.bf16.msra.mxu0 %v2213
      %2407 = vmatpush.bf16.msra.mxu0 %v2203
      %2408 = vmatpush.bf16.msra.mxu0 %v2193
      %2409 = vmatpush.bf16.msra.mxu0 %v2183
      %2410 = vmatmul.bf16.gmra.mxu0 %v2266
      %v2411 = vpop.f32.mrf.mxu0
      %v2412 = vadd.f32 %v2019, %v2411
      %v2413 = vpop.f32.mrf.mxu0
      %2414 = vdwg.mxu0
      %2415 = vmatpush.bf16.msra.mxu0 0
      %2416 = vmatpush.bf16.msra.mxu0 0
      %2417 = vmatpush.bf16.msra.mxu0 0
      %2418 = vmatpush.bf16.msra.mxu0 %v2296
      %2419 = vmatpush.bf16.msra.mxu0 %v2214
      %2420 = vmatpush.bf16.msra.mxu0 %v2204
      %2421 = vmatpush.bf16.msra.mxu0 %v2194
      %2422 = vmatpush.bf16.msra.mxu0 %v2184
      %2423 = vmatmul.bf16.gmra.mxu0 %v2266
      %v2424 = vpop.f32.mrf.mxu0
      %v2425 = vadd.f32 %v2019, %v2424
      %v2426 = vpop.f32.mrf.mxu0
      %2427 = vdwg.mxu0
      %v2428 = vmul.f32 %v2308, %v1163
      %v2429 = vmul.f32 %v2321, %v1164
      %v2430 = vmul.f32 %v2334, %v1165
      %v2431 = vmul.f32 %v2347, %v1166
      %v2432 = vmul.f32 %v2360, %v1167
      %v2433 = vmul.f32 %v2373, %v1168
      %v2434 = vmul.f32 %v2386, %v1169
      %v2435 = vmul.f32 %v2399, %v1170
      %v2436 = vmul.f32 %v2412, %v1171
      %v2437 = vmul.f32 %v2425, %v1172
      %vm2438 = vcmp.ge.f32.partialorder %v2428, 0.0
      %vm2439 = vcmp.ge.f32.partialorder %v2429, 0.0
      %vm2440 = vcmp.ge.f32.partialorder %v2430, 0.0
      %vm2441 = vcmp.ge.f32.partialorder %v2431, 0.0
      %vm2442 = vcmp.ge.f32.partialorder %v2432, 0.0
      %vm2443 = vcmp.ge.f32.partialorder %v2433, 0.0
      %vm2444 = vcmp.ge.f32.partialorder %v2434, 0.0
      %vm2445 = vcmp.ge.f32.partialorder %v2435, 0.0
      %vm2446 = vcmp.ge.f32.partialorder %v2436, 0.0
      %vm2447 = vcmp.ge.f32.partialorder %v2437, 0.0
      %v2448 = vmul.f32 %v2428, 0.2
      %v2449 = vmul.f32 %v2429, 0.2
      %v2450 = vmul.f32 %v2430, 0.2
      %v2451 = vmul.f32 %v2431, 0.2
      %v2452 = vmul.f32 %v2432, 0.2
      %v2453 = vmul.f32 %v2433, 0.2
      %v2454 = vmul.f32 %v2434, 0.2
      %v2455 = vmul.f32 %v2435, 0.2
      %v2456 = vmul.f32 %v2436, 0.2
      %v2457 = vmul.f32 %v2437, 0.2
      %v2458 = vsel %vm2438, %v2428, %v2448
      %v2459 = vsel %vm2439, %v2429, %v2449
      %v2460 = vsel %vm2440, %v2430, %v2450
      %v2461 = vsel %vm2441, %v2431, %v2451
      %v2462 = vsel %vm2442, %v2432, %v2452
      %v2463 = vsel %vm2443, %v2433, %v2453
      %v2464 = vsel %vm2444, %v2434, %v2454
      %v2465 = vsel %vm2445, %v2435, %v2455
      %v2466 = vsel %vm2446, %v2436, %v2456
      %v2467 = vsel %vm2447, %v2437, %v2457
      %v2468 = vpack.c.bf16 %v2459, %v2458
      %v2469 = vpack.c.bf16 %v2461, %v2460
      %v2470 = vpack.c.bf16 %v2463, %v2462
      %v2471 = vpack.c.bf16 %v2465, %v2464
      %v2472 = vpack.c.bf16 %v2467, %v2466
      %2473 = vst [vmem:[%s305] sm:$0xff] %v2468
      %2474 = vst [vmem:[%s305 + $0x8] sm:$0xff] %v2469
      %2475 = vst [vmem:[%s305 + $0x10] sm:$0xff] %v2470
      %2476 = vst [vmem:[%s305 + $0x18] sm:$0xff] %v2471
      %2477 = vst [vmem:[%s305 + $0x20] sm:$0xff] %v2472
      %p2478 = scmp.lt.s32.totalorder %s19, 1
      %s2479 = scalar_select %p2478, %s19, 1
      %s2480 = smul.addr %s2479, 10
      %s2481 = smul.addr %s2480, 4
      %s2482 = scalar_lea.vmem %s8, %s2481
      // Predicated region
      $region53: #{pa_up_forward.2} parent=51 // pred_check
        %p2483 = pneg %p210
      $region54: #{pa_up_forward.2} parent=51 // pred_check_branch
        %2485 = sbr.rel (%p2483) target = $region56
      $region55: #{pa_up_forward.2} parent=51 // pred_region
        _
      $region56: #{pa_up_forward.2} parent=51 // pred_fallthru
        _
    $region52: #{pa_up_forward.2} parent=5 // pred_fallthru
      _
    %p2486 = scmp.le.s32.totalorder 2, %s14
    // Predicated region
    $region57: #{pa_up_forward.2} parent=5 // pred_check
      %p2487 = pneg %p2486
    $region58: #{pa_up_forward.2} parent=5 // pred_check_branch
      %2489 = sbr.rel (%p2487) target = $region60
    $region59: #{pa_up_forward.2} parent=5 // pred_region
      %s2490 = ssub.s32 %s14, 2
      // Predicated region
      $region61: #{pa_up_forward.2} parent=59 // pred_check
        %p2491 = pneg %p216
      $region62: #{pa_up_forward.2} parent=59 // pred_check_branch
        %2493 = sbr.rel (%p2491) target = $region64
      $region63: #{pa_up_forward.2} parent=59 // pred_region
        %p2494 = scmp.lt.s32.totalorder %s20, 1
        %s2495 = scalar_select %p2494, %s20, 1
        %s2496 = smul.addr %s2495, 10
        %s2497 = smul.addr %s2496, 4
        %s2498 = scalar_lea.vmem %s8, %s2497
      $region64: #{pa_up_forward.2} parent=59 // pred_fallthru
        _
    $region60: #{pa_up_forward.2} parent=5 // pred_fallthru
      _
  $region6: #{pa_up_forward.2} parent=0 // loop_footer
    %s18 = sadd.s32 1, %s14
  $region7: #{pa_up_forward.2} parent=0 // loop_footer_branch
    %13 = sbr.rel target = $region3
  $region8: #{pa_up_forward.2} parent=0 // loop_exit
    _

// kernel: pa_up_forward.3
$region0: #{pa_up_forward.3}
  #allocation0 [shape = 'u32[]', space=smem, size = 0x4, offset = 0x4, fixed_abs, tag = 'smem constant byte address 0x4 - core index']
  #allocation1 [shape = 'u32[72,128]{1,0:T(1,128)}', space=vmem, size = 0x9000, scoped, tag = 'internal scratch']
  %s0 = inlined_call_operand.vmem [shape: bf16[2,8,4480], index: 0, kind: input, shape index: {}]
  %s1 = inlined_call_operand.vmem [shape: f32[1,4480], index: 1, kind: input, shape index: {}]
  %s2 = inlined_call_operand.vmem [shape: bf16[8,72], index: 2, kind: input, shape index: {}]
  %s3 = inlined_call_operand.vmem [shape: f32[8,1], index: 3, kind: input, shape index: {}]
  %s4 = inlined_call_operand.vmem [shape: bf16[8,8], index: 4, kind: input, shape index: {}]
  %s5 = inlined_call_operand.vmem [shape: f32[8,1], index: 5, kind: input, shape index: {}]
  %s6 = inlined_call_operand.vmem [shape: bf16[8,72], index: 6, kind: input, shape index: {}]
  %s7 = inlined_call_operand.vmem [shape: f32[8,1], index: 7, kind: input, shape index: {}]
  %s8 = inlined_call_operand.vmem [shape: bf16[3,72], index: 8, kind: input, shape index: {}]
  %s9 = inlined_call_operand.vmem [shape: f32[3,1], index: 9, kind: input, shape index: {}]
  %s10 = inlined_call_operand.vmem [shape: bf16[2,3,4480], index: 10, kind: output, shape index: {}]
  %s11 = sld [smem:[#allocation0]]
  $region73: #{pa_up_forward.3} parent=0
    _
  %s13 = ssub.s32 1, %s11
  %s14 = scalar_select 0, %s13, %s11
  loop: start=0, step=1, limit=4
  $region2: #{pa_up_forward.3} parent=0 // loop_pre_header
    _
  $region3: #{pa_up_forward.3} parent=0 // loop_header
    %s16 = sphi 0, %s20
    %p17 = scmp.ge.s32.totalorder %s16, 4
    %s26 = sphi 0, %s28
    %s29 = sphi 0, %s26
    %s30 = sphi 0, %s29
    %s46 = sphi 0, %s30
    %s50 = sphi 0, %s50
    %s52 = sphi 0, %s50
    %s53 = sphi 0, %s52
    %s67 = sphi 0, %s53
    %s71 = sphi 0, %s71
    %s73 = sphi 0, %s71
    %s74 = sphi 0, %s73
    %s88 = sphi 0, %s74
    %s92 = sphi 0, %s92
    %s94 = sphi 0, %s92
    %s95 = sphi 0, %s94
    %s109 = sphi 0, %s95
    %s113 = sphi 0, %s113
    %s115 = sphi 0, %s113
    %s116 = sphi 0, %s115
    %s130 = sphi 0, %s116
    %s134 = sphi 0, %s134
    %s136 = sphi 0, %s134
    %s137 = sphi 0, %s136
    %s151 = sphi 0, %s137
    %s155 = sphi 0, %s155
    %s157 = sphi 0, %s155
    %s158 = sphi 0, %s157
    %s172 = sphi 0, %s158
    %s176 = sphi 0, %s176
    %s178 = sphi 0, %s176
    %s179 = sphi 0, %s178
    %s193 = sphi 0, %s179
    %s197 = sphi 0, %s197
    %s199 = sphi 0, %s197
    %s200 = sphi 0, %s199
    %s214 = sphi 0, %s200
    %s218 = sphi 0, %s218
    %s220 = sphi 0, %s218
    %s221 = sphi 0, %s220
    %s235 = sphi 0, %s221
    %s241 = sphi 0, %s243
    %s244 = sphi 0, %s241
    %s245 = sphi 0, %s244
    %s261 = sphi 0, %s245
  $region4: #{pa_up_forward.3} parent=0 // loop_header_branch
    %19 = sbr.rel (%p17) target = $region8
  $region5: #{pa_up_forward.3} parent=0 // loop_body
    %s21 = ssub.s32 %s16, 1
    %s22 = ssub.s32 %s16, 2
    %s23 = sadd.s32 %s16, 1
    %s24 = ssub.s32 %s16, %s23
    %p25 = scmp.eq.s32.totalorder %s24, 0
    %s27 = sadd.s32 %s26, 1
    %s28 = scalar_select %p25, %s26, %s27
    %p31 = pneg %p25
    %p32 = scmp.eq.s32.totalorder %s16, 1
    %p33 = por %p31, %p32
    %p34 = scmp.ne.s32.totalorder %s26, %s29
    %p35 = scmp.eq.s32.totalorder %s16, 0
    %p36 = por %p34, %p35
    %p37 = scmp.ne.s32.totalorder %s26, %s29
    %p38 = scmp.eq.s32.totalorder %s21, 1
    %p39 = por %p37, %p38
    %p40 = scmp.ne.s32.totalorder %s29, %s30
    %p41 = scmp.eq.s32.totalorder %s21, 0
    %p42 = por %p40, %p41
    %p43 = scmp.ne.s32.totalorder %s29, %s30
    %p44 = scmp.eq.s32.totalorder %s22, 1
    %p45 = por %p43, %p44
    %p47 = scmp.ne.s32.totalorder %s30, %s46
    %p48 = scmp.eq.s32.totalorder %s22, 0
    %p49 = por %p47, %p48
    %s51 = sadd.s32 %s50, 1
    %p54 = scmp.eq.s32.totalorder %s16, 1
    %p55 = scmp.ne.s32.totalorder %s50, %s52
    %p56 = scmp.eq.s32.totalorder %s16, 0
    %p57 = por %p55, %p56
    %p58 = scmp.ne.s32.totalorder %s50, %s52
    %p59 = scmp.eq.s32.totalorder %s21, 1
    %p60 = por %p58, %p59
    %p61 = scmp.ne.s32.totalorder %s52, %s53
    %p62 = scmp.eq.s32.totalorder %s21, 0
    %p63 = por %p61, %p62
    %p64 = scmp.ne.s32.totalorder %s52, %s53
    %p65 = scmp.eq.s32.totalorder %s22, 1
    %p66 = por %p64, %p65
    %p68 = scmp.ne.s32.totalorder %s53, %s67
    %p69 = scmp.eq.s32.totalorder %s22, 0
    %p70 = por %p68, %p69
    %s72 = sadd.s32 %s71, 1
    %p75 = scmp.eq.s32.totalorder %s16, 1
    %p76 = scmp.ne.s32.totalorder %s71, %s73
    %p77 = scmp.eq.s32.totalorder %s16, 0
    %p78 = por %p76, %p77
    %p79 = scmp.ne.s32.totalorder %s71, %s73
    %p80 = scmp.eq.s32.totalorder %s21, 1
    %p81 = por %p79, %p80
    %p82 = scmp.ne.s32.totalorder %s73, %s74
    %p83 = scmp.eq.s32.totalorder %s21, 0
    %p84 = por %p82, %p83
    %p85 = scmp.ne.s32.totalorder %s73, %s74
    %p86 = scmp.eq.s32.totalorder %s22, 1
    %p87 = por %p85, %p86
    %p89 = scmp.ne.s32.totalorder %s74, %s88
    %p90 = scmp.eq.s32.totalorder %s22, 0
    %p91 = por %p89, %p90
    %s93 = sadd.s32 %s92, 1
    %p96 = scmp.eq.s32.totalorder %s16, 1
    %p97 = scmp.ne.s32.totalorder %s92, %s94
    %p98 = scmp.eq.s32.totalorder %s16, 0
    %p99 = por %p97, %p98
    %p100 = scmp.ne.s32.totalorder %s92, %s94
    %p101 = scmp.eq.s32.totalorder %s21, 1
    %p102 = por %p100, %p101
    %p103 = scmp.ne.s32.totalorder %s94, %s95
    %p104 = scmp.eq.s32.totalorder %s21, 0
    %p105 = por %p103, %p104
    %p106 = scmp.ne.s32.totalorder %s94, %s95
    %p107 = scmp.eq.s32.totalorder %s22, 1
    %p108 = por %p106, %p107
    %p110 = scmp.ne.s32.totalorder %s95, %s109
    %p111 = scmp.eq.s32.totalorder %s22, 0
    %p112 = por %p110, %p111
    %s114 = sadd.s32 %s113, 1
    %p117 = scmp.eq.s32.totalorder %s16, 1
    %p118 = scmp.ne.s32.totalorder %s113, %s115
    %p119 = scmp.eq.s32.totalorder %s16, 0
    %p120 = por %p118, %p119
    %p121 = scmp.ne.s32.totalorder %s113, %s115
    %p122 = scmp.eq.s32.totalorder %s21, 1
    %p123 = por %p121, %p122
    %p124 = scmp.ne.s32.totalorder %s115, %s116
    %p125 = scmp.eq.s32.totalorder %s21, 0
    %p126 = por %p124, %p125
    %p127 = scmp.ne.s32.totalorder %s115, %s116
    %p128 = scmp.eq.s32.totalorder %s22, 1
    %p129 = por %p127, %p128
    %p131 = scmp.ne.s32.totalorder %s116, %s130
    %p132 = scmp.eq.s32.totalorder %s22, 0
    %p133 = por %p131, %p132
    %s135 = sadd.s32 %s134, 1
    %p138 = scmp.eq.s32.totalorder %s16, 1
    %p139 = scmp.ne.s32.totalorder %s134, %s136
    %p140 = scmp.eq.s32.totalorder %s16, 0
    %p141 = por %p139, %p140
    %p142 = scmp.ne.s32.totalorder %s134, %s136
    %p143 = scmp.eq.s32.totalorder %s21, 1
    %p144 = por %p142, %p143
    %p145 = scmp.ne.s32.totalorder %s136, %s137
    %p146 = scmp.eq.s32.totalorder %s21, 0
    %p147 = por %p145, %p146
    %p148 = scmp.ne.s32.totalorder %s136, %s137
    %p149 = scmp.eq.s32.totalorder %s22, 1
    %p150 = por %p148, %p149
    %p152 = scmp.ne.s32.totalorder %s137, %s151
    %p153 = scmp.eq.s32.totalorder %s22, 0
    %p154 = por %p152, %p153
    %s156 = sadd.s32 %s155, 1
    %p159 = scmp.eq.s32.totalorder %s16, 1
    %p160 = scmp.ne.s32.totalorder %s155, %s157
    %p161 = scmp.eq.s32.totalorder %s16, 0
    %p162 = por %p160, %p161
    %p163 = scmp.ne.s32.totalorder %s155, %s157
    %p164 = scmp.eq.s32.totalorder %s21, 1
    %p165 = por %p163, %p164
    %p166 = scmp.ne.s32.totalorder %s157, %s158
    %p167 = scmp.eq.s32.totalorder %s21, 0
    %p168 = por %p166, %p167
    %p169 = scmp.ne.s32.totalorder %s157, %s158
    %p170 = scmp.eq.s32.totalorder %s22, 1
    %p171 = por %p169, %p170
    %p173 = scmp.ne.s32.totalorder %s158, %s172
    %p174 = scmp.eq.s32.totalorder %s22, 0
    %p175 = por %p173, %p174
    %s177 = sadd.s32 %s176, 1
    %p180 = scmp.eq.s32.totalorder %s16, 1
    %p181 = scmp.ne.s32.totalorder %s176, %s178
    %p182 = scmp.eq.s32.totalorder %s16, 0
    %p183 = por %p181, %p182
    %p184 = scmp.ne.s32.totalorder %s176, %s178
    %p185 = scmp.eq.s32.totalorder %s21, 1
    %p186 = por %p184, %p185
    %p187 = scmp.ne.s32.totalorder %s178, %s179
    %p188 = scmp.eq.s32.totalorder %s21, 0
    %p189 = por %p187, %p188
    %p190 = scmp.ne.s32.totalorder %s178, %s179
    %p191 = scmp.eq.s32.totalorder %s22, 1
    %p192 = por %p190, %p191
    %p194 = scmp.ne.s32.totalorder %s179, %s193
    %p195 = scmp.eq.s32.totalorder %s22, 0
    %p196 = por %p194, %p195
    %s198 = sadd.s32 %s197, 1
    %p201 = scmp.eq.s32.totalorder %s16, 1
    %p202 = scmp.ne.s32.totalorder %s197, %s199
    %p203 = scmp.eq.s32.totalorder %s16, 0
    %p204 = por %p202, %p203
    %p205 = scmp.ne.s32.totalorder %s197, %s199
    %p206 = scmp.eq.s32.totalorder %s21, 1
    %p207 = por %p205, %p206
    %p208 = scmp.ne.s32.totalorder %s199, %s200
    %p209 = scmp.eq.s32.totalorder %s21, 0
    %p210 = por %p208, %p209
    %p211 = scmp.ne.s32.totalorder %s199, %s200
    %p212 = scmp.eq.s32.totalorder %s22, 1
    %p213 = por %p211, %p212
    %p215 = scmp.ne.s32.totalorder %s200, %s214
    %p216 = scmp.eq.s32.totalorder %s22, 0
    %p217 = por %p215, %p216
    %s219 = sadd.s32 %s218, 1
    %p222 = scmp.eq.s32.totalorder %s16, 1
    %p223 = scmp.ne.s32.totalorder %s218, %s220
    %p224 = scmp.eq.s32.totalorder %s16, 0
    %p225 = por %p223, %p224
    %p226 = scmp.ne.s32.totalorder %s218, %s220
    %p227 = scmp.eq.s32.totalorder %s21, 1
    %p228 = por %p226, %p227
    %p229 = scmp.ne.s32.totalorder %s220, %s221
    %p230 = scmp.eq.s32.totalorder %s21, 0
    %p231 = por %p229, %p230
    %p232 = scmp.ne.s32.totalorder %s220, %s221
    %p233 = scmp.eq.s32.totalorder %s22, 1
    %p234 = por %p232, %p233
    %p236 = scmp.ne.s32.totalorder %s221, %s235
    %p237 = scmp.eq.s32.totalorder %s22, 0
    %p238 = por %p236, %p237
    %s239 = ssub.s32 %s16, %s23
    %p240 = scmp.eq.s32.totalorder %s239, 0
    %s242 = sadd.s32 %s241, 1
    %s243 = scalar_select %p240, %s241, %s242
    %p246 = pneg %p240
    %p247 = scmp.eq.s32.totalorder %s16, 1
    %p248 = por %p246, %p247
    %p249 = scmp.ne.s32.totalorder %s241, %s244
    %p250 = scmp.eq.s32.totalorder %s16, 0
    %p251 = por %p249, %p250
    %p252 = scmp.ne.s32.totalorder %s241, %s244
    %p253 = scmp.eq.s32.totalorder %s21, 1
    %p254 = por %p252, %p253
    %p255 = scmp.ne.s32.totalorder %s244, %s245
    %p256 = scmp.eq.s32.totalorder %s21, 0
    %p257 = por %p255, %p256
    %p258 = scmp.ne.s32.totalorder %s244, %s245
    %p259 = scmp.eq.s32.totalorder %s22, 1
    %p260 = por %p258, %p259
    %p262 = scmp.ne.s32.totalorder %s245, %s261
    %p263 = scmp.eq.s32.totalorder %s22, 0
    %p264 = por %p262, %p263
    %p265 = scmp.le.s32.totalorder 1, %s16
    %p266 = scmp.lt.s32.totalorder %s16, 3
    %p267 = pnand %p265, %p266
    %p268 = pneg %p267
    // Predicated region
    $region9: #{pa_up_forward.3} parent=5 // pred_check
      _
    $region10: #{pa_up_forward.3} parent=5 // pred_check_branch
      %270 = sbr.rel (%p267) target = $region12
    $region11: #{pa_up_forward.3} parent=5 // pred_region
      %s271 = ssub.s32 %s16, 1
      // Predicated region
      $region13: #{pa_up_forward.3} parent=11 // pred_check
        %p272 = pneg %p63
      $region14: #{pa_up_forward.3} parent=11 // pred_check_branch
        %274 = sbr.rel (%p272) target = $region16
      $region15: #{pa_up_forward.3} parent=11 // pred_region
        _
      $region16: #{pa_up_forward.3} parent=11 // pred_fallthru
        _
      // Predicated region
      $region17: #{pa_up_forward.3} parent=11 // pred_check
        %p275 = pneg %p84
      $region18: #{pa_up_forward.3} parent=11 // pred_check_branch
        %277 = sbr.rel (%p275) target = $region20
      $region19: #{pa_up_forward.3} parent=11 // pred_region
        _
      $region20: #{pa_up_forward.3} parent=11 // pred_fallthru
        _
      // Predicated region
      $region21: #{pa_up_forward.3} parent=11 // pred_check
        %p278 = pneg %p105
      $region22: #{pa_up_forward.3} parent=11 // pred_check_branch
        %280 = sbr.rel (%p278) target = $region24
      $region23: #{pa_up_forward.3} parent=11 // pred_region
        _
      $region24: #{pa_up_forward.3} parent=11 // pred_fallthru
        _
      // Predicated region
      $region25: #{pa_up_forward.3} parent=11 // pred_check
        %p281 = pneg %p126
      $region26: #{pa_up_forward.3} parent=11 // pred_check_branch
        %283 = sbr.rel (%p281) target = $region28
      $region27: #{pa_up_forward.3} parent=11 // pred_region
        _
      $region28: #{pa_up_forward.3} parent=11 // pred_fallthru
        _
      // Predicated region
      $region29: #{pa_up_forward.3} parent=11 // pred_check
        %p284 = pneg %p147
      $region30: #{pa_up_forward.3} parent=11 // pred_check_branch
        %286 = sbr.rel (%p284) target = $region32
      $region31: #{pa_up_forward.3} parent=11 // pred_region
        _
      $region32: #{pa_up_forward.3} parent=11 // pred_fallthru
        _
      // Predicated region
      $region33: #{pa_up_forward.3} parent=11 // pred_check
        %p287 = pneg %p168
      $region34: #{pa_up_forward.3} parent=11 // pred_check_branch
        %289 = sbr.rel (%p287) target = $region36
      $region35: #{pa_up_forward.3} parent=11 // pred_region
        _
      $region36: #{pa_up_forward.3} parent=11 // pred_fallthru
        _
      // Predicated region
      $region37: #{pa_up_forward.3} parent=11 // pred_check
        %p290 = pneg %p189
      $region38: #{pa_up_forward.3} parent=11 // pred_check_branch
        %292 = sbr.rel (%p290) target = $region40
      $region39: #{pa_up_forward.3} parent=11 // pred_region
        _
      $region40: #{pa_up_forward.3} parent=11 // pred_fallthru
        _
      // Predicated region
      $region41: #{pa_up_forward.3} parent=11 // pred_check
        %p293 = pneg %p210
      $region42: #{pa_up_forward.3} parent=11 // pred_check_branch
        %295 = sbr.rel (%p293) target = $region44
      $region43: #{pa_up_forward.3} parent=11 // pred_region
        _
      $region44: #{pa_up_forward.3} parent=11 // pred_fallthru
        _
      // Predicated region
      $region45: #{pa_up_forward.3} parent=11 // pred_check
        %p296 = pneg %p231
      $region46: #{pa_up_forward.3} parent=11 // pred_check_branch
        %298 = sbr.rel (%p296) target = $region48
      $region47: #{pa_up_forward.3} parent=11 // pred_region
        _
      $region48: #{pa_up_forward.3} parent=11 // pred_fallthru
        _
    $region12: #{pa_up_forward.3} parent=5 // pred_fallthru
      _
    %p299 = scmp.lt.s32.totalorder %s16, 2
    // Predicated region
    $region49: #{pa_up_forward.3} parent=5 // pred_check
      %p300 = pneg %p299
    $region50: #{pa_up_forward.3} parent=5 // pred_check_branch
      %302 = sbr.rel (%p300) target = $region52
    $region51: #{pa_up_forward.3} parent=5 // pred_region
      // Predicated region
      $region53: #{pa_up_forward.3} parent=51 // pred_check
        %p303 = pneg %p36
      $region54: #{pa_up_forward.3} parent=51 // pred_check_branch
        %305 = sbr.rel (%p303) target = $region56
      $region55: #{pa_up_forward.3} parent=51 // pred_region
        %p306 = scmp.lt.s32.totalorder %s16, 1
        %s307 = scalar_select %p306, %s16, 1
        %s308 = smul.addr %s307, 35
        %s309 = smul.addr %s308, 4
        %s310 = scalar_lea.vmem %s0, %s309
      $region56: #{pa_up_forward.3} parent=51 // pred_fallthru
        _
    $region52: #{pa_up_forward.3} parent=5 // pred_fallthru
      _
    %p311 = scmp.le.s32.totalorder 1, %s16
    %p312 = scmp.lt.s32.totalorder %s16, 3
    %p313 = pnand %p311, %p312
    %p314 = pneg %p313
    // Predicated region
    $region57: #{pa_up_forward.3} parent=5 // pred_check
      _
    $region58: #{pa_up_forward.3} parent=5 // pred_check_branch
      %316 = sbr.rel (%p313) target = $region60
    $region59: #{pa_up_forward.3} parent=5 // pred_region
      %s317 = ssub.s32 %s16, 1
      %p318 = scmp.lt.s32.totalorder %s21, 1
      %s319 = scalar_select %p318, %s21, 1
      %s320 = smul.addr %s319, 35
      %s321 = smul.addr %s320, 4
      %s322 = scalar_lea.vmem %s0, %s321
      %p323 = pneg %p42
      %p324 = pneg %p39
      %p325 = pneg %p63
      %p326 = pneg %p60
      %p327 = pneg %p84
      %p328 = pneg %p81
      %p329 = pneg %p105
      %p330 = pneg %p102
      %p331 = pneg %p126
      %p332 = pneg %p123
      %p333 = pneg %p147
      %p334 = pneg %p144
      %p335 = pneg %p168
      %p336 = pneg %p165
      %p337 = pneg %p189
      %p338 = pneg %p186
      %p339 = pneg %p210
      %p340 = pneg %p207
      %p341 = pneg %p231
      %p342 = pneg %p228
      %p343 = pneg %p257
      %p344 = pneg %p254
      %p345 = scmp.lt.s32.totalorder %s21, 1
      %s346 = scalar_select %p345, %s21, 1
      %s347 = smul.addr %s346, 35
      %s348 = smul.addr %s347, 2
      %s349 = scalar_lea.vmem %s10, %s348
      %p350 = scmp.lt.s32.totalorder %s21, 1
      %s351 = scalar_select %p350, %s21, 1
      %s352 = smul.addr %s351, 35
      %s353 = smul.addr %s352, 4
      %s354 = scalar_lea.vmem %s0, %s353
      %p355 = scmp.lt.s32.totalorder %s21, 1
      %s356 = scalar_select %p355, %s21, 1
      %s357 = smul.addr %s356, 35
      %s358 = smul.addr %s357, 2
      %s359 = scalar_lea.vmem %s10, %s358
      %v361 = vld [vmem:[%s1] sm:$0xff]
      %v362 = vld [vmem:[%s1 + $0x8] sm:$0xff]
      %v363 = vld [vmem:[%s1 + $0x10] sm:$0xff]
      %v364 = vld [vmem:[%s1 + $0x18] sm:$0xff]
      %v365 = vld [vmem:[%s1 + $0x20] sm:$0x7]
      %v366 = vld [vmem:[%s354] sm:$0xff]
      %v367 = vld [vmem:[%s354 + $0x8] sm:$0xff]
      %v368 = vld [vmem:[%s354 + $0x10] sm:$0xff]
      %v369 = vld [vmem:[%s354 + $0x18] sm:$0xff]
      %v370 = vld [vmem:[%s354 + $0x20] sm:$0xff]
      %v371 = vld [vmem:[%s354 + $0x28] sm:$0xff]
      %v372 = vld [vmem:[%s354 + $0x30] sm:$0xff]
      %v373 = vld [vmem:[%s354 + $0x38] sm:$0xff]
      %v374 = vld [vmem:[%s354 + $0x40] sm:$0xff]
      %v375 = vld [vmem:[%s354 + $0x48] sm:$0xff]
      %v376 = vld [vmem:[%s354 + $0x50] sm:$0xff]
      %v377 = vld [vmem:[%s354 + $0x58] sm:$0xff]
      %v378 = vld [vmem:[%s354 + $0x60] sm:$0xff]
      %v379 = vld [vmem:[%s354 + $0x68] sm:$0xff]
      %v380 = vld [vmem:[%s354 + $0x70] sm:$0xff]
      %v381 = vld [vmem:[%s354 + $0x78] sm:$0xff]
      %v382 = vld [vmem:[%s354 + $0x80] sm:$0xff]
      %v383 = vld [vmem:[%s354 + $0x88] sm:$0xf]
      %v402 = vunpack.c.l.b16 %v366
      %v403 = vunpack.c.h.b16 %v366
      %v404 = vunpack.c.l.b16 %v367
      %v405 = vunpack.c.h.b16 %v367
      %v406 = vunpack.c.l.b16 %v368
      %v407 = vunpack.c.h.b16 %v368
      %v408 = vunpack.c.l.b16 %v369
      %v409 = vunpack.c.h.b16 %v369
      %v410 = vunpack.c.l.b16 %v370
      %v411 = vunpack.c.h.b16 %v370
      %v412 = vunpack.c.l.b16 %v371
      %v413 = vunpack.c.h.b16 %v371
      %v414 = vunpack.c.l.b16 %v372
      %v415 = vunpack.c.h.b16 %v372
      %v416 = vunpack.c.l.b16 %v373
      %v417 = vunpack.c.h.b16 %v373
      %v418 = vunpack.c.l.b16 %v374
      %v419 = vunpack.c.h.b16 %v374
      %v420 = vunpack.c.l.b16 %v375
      %v421 = vunpack.c.h.b16 %v375
      %v422 = vunpack.c.l.b16 %v376
      %v423 = vunpack.c.h.b16 %v376
      %v424 = vunpack.c.l.b16 %v377
      %v425 = vunpack.c.h.b16 %v377
      %v426 = vunpack.c.l.b16 %v378
      %v427 = vunpack.c.h.b16 %v378
      %v428 = vunpack.c.l.b16 %v379
      %v429 = vunpack.c.h.b16 %v379
      %v430 = vunpack.c.l.b16 %v380
      %v431 = vunpack.c.h.b16 %v380
      %v432 = vunpack.c.l.b16 %v381
      %v433 = vunpack.c.h.b16 %v381
      %v434 = vunpack.c.l.b16 %v382
      %v435 = vunpack.c.h.b16 %v382
      %v436 = vunpack.c.l.b16 %v383
      %v437 = vpack.c.b16 %v402, %v402
      %v438 = vpack.c.b16 %v403, %v403
      %v439 = vpack.c.b16 %v404, %v404
      %v440 = vpack.c.b16 %v405, %v405
      %v441 = vpack.c.b16 %v406, %v406
      %v442 = vpack.c.b16 %v407, %v407
      %v443 = vpack.c.b16 %v408, %v408
      %v444 = vpack.c.b16 %v409, %v409
      %v445 = vpack.c.b16 %v410, %v410
      %v446 = vpack.c.b16 %v411, %v411
      %v447 = vpack.c.b16 %v412, %v412
      %v448 = vpack.c.b16 %v413, %v413
      %v449 = vpack.c.b16 %v414, %v414
      %v450 = vpack.c.b16 %v415, %v415
      %v451 = vpack.c.b16 %v416, %v416
      %v452 = vpack.c.b16 %v417, %v417
      %v453 = vpack.c.b16 %v418, %v418
      %v454 = vpack.c.b16 %v419, %v419
      %v455 = vpack.c.b16 %v420, %v420
      %v456 = vpack.c.b16 %v421, %v421
      %v457 = vpack.c.b16 %v422, %v422
      %v458 = vpack.c.b16 %v423, %v423
      %v459 = vpack.c.b16 %v424, %v424
      %v460 = vpack.c.b16 %v425, %v425
      %v461 = vpack.c.b16 %v426, %v426
      %v462 = vpack.c.b16 %v427, %v427
      %v463 = vpack.c.b16 %v428, %v428
      %v464 = vpack.c.b16 %v429, %v429
      %v465 = vpack.c.b16 %v430, %v430
      %v466 = vpack.c.b16 %v431, %v431
      %v467 = vpack.c.b16 %v432, %v432
      %v468 = vpack.c.b16 %v433, %v433
      %v469 = vpack.c.b16 %v434, %v434
      %v470 = vpack.c.b16 %v435, %v435
      %v471 = vpack.c.b16 %v436, %v436
      %v473 = vrot.slane 0, 4
      %v474 = vrot.slane %v437, 4
      %v475 = vrot.slane %v438, 4
      %v476 = vrot.slane %v439, 4
      %v477 = vrot.slane %v440, 4
      %v478 = vrot.slane %v441, 4
      %v479 = vrot.slane %v442, 4
      %v480 = vrot.slane %v443, 4
      %v481 = vrot.slane %v444, 4
      %v482 = vrot.slane %v445, 4
      %v483 = vrot.slane %v446, 4
      %v484 = vrot.slane %v447, 4
      %v485 = vrot.slane %v448, 4
      %v486 = vrot.slane %v449, 4
      %v487 = vrot.slane %v450, 4
      %v488 = vrot.slane %v451, 4
      %v489 = vrot.slane %v452, 4
      %v490 = vrot.slane %v453, 4
      %v491 = vrot.slane %v454, 4
      %v492 = vrot.slane %v455, 4
      %v493 = vrot.slane %v456, 4
      %v494 = vrot.slane %v457, 4
      %v495 = vrot.slane %v458, 4
      %v496 = vrot.slane %v459, 4
      %v497 = vrot.slane %v460, 4
      %v498 = vrot.slane %v461, 4
      %v499 = vrot.slane %v462, 4
      %v500 = vrot.slane %v463, 4
      %v501 = vrot.slane %v464, 4
      %v502 = vrot.slane %v465, 4
      %v503 = vrot.slane %v466, 4
      %v504 = vrot.slane %v467, 4
      %v505 = vrot.slane %v468, 4
      %v506 = vrot.slane %v469, 4
      %v507 = vrot.slane %v470, 4
      %v508 = vrot.slane %v471, 4
      %509 = vrot.lane.b32.xlu0 %v473, 127
      %v510 = vpop.permute.xlu0 %509
      %511 = vrot.lane.b32.xlu0 %v474, 127
      %v512 = vpop.permute.xlu0 %511
      %513 = vrot.lane.b32.xlu0 %v475, 127
      %v514 = vpop.permute.xlu0 %513
      %515 = vrot.lane.b32.xlu0 %v476, 127
      %v516 = vpop.permute.xlu0 %515
      %517 = vrot.lane.b32.xlu0 %v477, 127
      %v518 = vpop.permute.xlu0 %517
      %519 = vrot.lane.b32.xlu0 %v478, 127
      %v520 = vpop.permute.xlu0 %519
      %521 = vrot.lane.b32.xlu0 %v479, 127
      %v522 = vpop.permute.xlu0 %521
      %523 = vrot.lane.b32.xlu0 %v480, 127
      %v524 = vpop.permute.xlu0 %523
      %525 = vrot.lane.b32.xlu0 %v481, 127
      %v526 = vpop.permute.xlu0 %525
      %527 = vrot.lane.b32.xlu0 %v482, 127
      %v528 = vpop.permute.xlu0 %527
      %529 = vrot.lane.b32.xlu0 %v483, 127
      %v530 = vpop.permute.xlu0 %529
      %531 = vrot.lane.b32.xlu0 %v484, 127
      %v532 = vpop.permute.xlu0 %531
      %533 = vrot.lane.b32.xlu0 %v485, 127
      %v534 = vpop.permute.xlu0 %533
      %535 = vrot.lane.b32.xlu0 %v486, 127
      %v536 = vpop.permute.xlu0 %535
      %537 = vrot.lane.b32.xlu0 %v487, 127
      %v538 = vpop.permute.xlu0 %537
      %539 = vrot.lane.b32.xlu0 %v488, 127
      %v540 = vpop.permute.xlu0 %539
      %541 = vrot.lane.b32.xlu0 %v489, 127
      %v542 = vpop.permute.xlu0 %541
      %543 = vrot.lane.b32.xlu0 %v490, 127
      %v544 = vpop.permute.xlu0 %543
      %545 = vrot.lane.b32.xlu0 %v491, 127
      %v546 = vpop.permute.xlu0 %545
      %547 = vrot.lane.b32.xlu0 %v492, 127
      %v548 = vpop.permute.xlu0 %547
      %549 = vrot.lane.b32.xlu0 %v493, 127
      %v550 = vpop.permute.xlu0 %549
      %551 = vrot.lane.b32.xlu0 %v494, 127
      %v552 = vpop.permute.xlu0 %551
      %553 = vrot.lane.b32.xlu0 %v495, 127
      %v554 = vpop.permute.xlu0 %553
      %555 = vrot.lane.b32.xlu0 %v496, 127
      %v556 = vpop.permute.xlu0 %555
      %557 = vrot.lane.b32.xlu0 %v497, 127
      %v558 = vpop.permute.xlu0 %557
      %559 = vrot.lane.b32.xlu0 %v498, 127
      %v560 = vpop.permute.xlu0 %559
      %561 = vrot.lane.b32.xlu0 %v499, 127
      %v562 = vpop.permute.xlu0 %561
      %563 = vrot.lane.b32.xlu0 %v500, 127
      %v564 = vpop.permute.xlu0 %563
      %565 = vrot.lane.b32.xlu0 %v501, 127
      %v566 = vpop.permute.xlu0 %565
      %567 = vrot.lane.b32.xlu0 %v502, 127
      %v568 = vpop.permute.xlu0 %567
      %569 = vrot.lane.b32.xlu0 %v503, 127
      %v570 = vpop.permute.xlu0 %569
      %571 = vrot.lane.b32.xlu0 %v504, 127
      %v572 = vpop.permute.xlu0 %571
      %573 = vrot.lane.b32.xlu0 %v505, 127
      %v574 = vpop.permute.xlu0 %573
      %575 = vrot.lane.b32.xlu0 %v506, 127
      %v576 = vpop.permute.xlu0 %575
      %577 = vrot.lane.b32.xlu0 %v507, 127
      %v578 = vpop.permute.xlu0 %577
      %579 = vrot.lane.b32.xlu0 %v508, 127
      %v580 = vpop.permute.xlu0 %579
      %vm581 = vcmask 1039360
      %v582 = vsel %vm581, %v510, %v512
      %v583 = vsel %vm581, %v512, %v514
      %v584 = vsel %vm581, %v514, %v516
      %v585 = vsel %vm581, %v516, %v518
      %v586 = vsel %vm581, %v518, %v520
      %v587 = vsel %vm581, %v520, %v522
      %v588 = vsel %vm581, %v522, %v524
      %v589 = vsel %vm581, %v524, %v526
      %v590 = vsel %vm581, %v526, %v528
      %v591 = vsel %vm581, %v528, %v530
      %v592 = vsel %vm581, %v530, %v532
      %v593 = vsel %vm581, %v532, %v534
      %v594 = vsel %vm581, %v534, %v536
      %v595 = vsel %vm581, %v536, %v538
      %v596 = vsel %vm581, %v538, %v540
      %v597 = vsel %vm581, %v540, %v542
      %v598 = vsel %vm581, %v542, %v544
      %v599 = vsel %vm581, %v544, %v546
      %v600 = vsel %vm581, %v546, %v548
      %v601 = vsel %vm581, %v548, %v550
      %v602 = vsel %vm581, %v550, %v552
      %v603 = vsel %vm581, %v552, %v554
      %v604 = vsel %vm581, %v554, %v556
      %v605 = vsel %vm581, %v556, %v558
      %v606 = vsel %vm581, %v558, %v560
      %v607 = vsel %vm581, %v560, %v562
      %v608 = vsel %vm581, %v562, %v564
      %v609 = vsel %vm581, %v564, %v566
      %v610 = vsel %vm581, %v566, %v568
      %v611 = vsel %vm581, %v568, %v570
      %v612 = vsel %vm581, %v570, %v572
      %v613 = vsel %vm581, %v572, %v574
      %v614 = vsel %vm581, %v574, %v576
      %v615 = vsel %vm581, %v576, %v578
      %v616 = vsel %vm581, %v578, %v580
      %617 = vrot.lane.b32.xlu0 0, 126
      %v618 = vpop.permute.xlu0 %617
      %619 = vrot.lane.b32.xlu0 %v437, 126
      %v620 = vpop.permute.xlu0 %619
      %621 = vrot.lane.b32.xlu0 %v438, 126
      %v622 = vpop.permute.xlu0 %621
      %623 = vrot.lane.b32.xlu0 %v439, 126
      %v624 = vpop.permute.xlu0 %623
      %625 = vrot.lane.b32.xlu0 %v440, 126
      %v626 = vpop.permute.xlu0 %625
      %627 = vrot.lane.b32.xlu0 %v441, 126
      %v628 = vpop.permute.xlu0 %627
      %629 = vrot.lane.b32.xlu0 %v442, 126
      %v630 = vpop.permute.xlu0 %629
      %631 = vrot.lane.b32.xlu0 %v443, 126
      %v632 = vpop.permute.xlu0 %631
      %633 = vrot.lane.b32.xlu0 %v444, 126
      %v634 = vpop.permute.xlu0 %633
      %635 = vrot.lane.b32.xlu0 %v445, 126
      %v636 = vpop.permute.xlu0 %635
      %637 = vrot.lane.b32.xlu0 %v446, 126
      %v638 = vpop.permute.xlu0 %637
      %639 = vrot.lane.b32.xlu0 %v447, 126
      %v640 = vpop.permute.xlu0 %639
      %641 = vrot.lane.b32.xlu0 %v448, 126
      %v642 = vpop.permute.xlu0 %641
      %643 = vrot.lane.b32.xlu0 %v449, 126
      %v644 = vpop.permute.xlu0 %643
      %645 = vrot.lane.b32.xlu0 %v450, 126
      %v646 = vpop.permute.xlu0 %645
      %647 = vrot.lane.b32.xlu0 %v451, 126
      %v648 = vpop.permute.xlu0 %647
      %649 = vrot.lane.b32.xlu0 %v452, 126
      %v650 = vpop.permute.xlu0 %649
      %651 = vrot.lane.b32.xlu0 %v453, 126
      %v652 = vpop.permute.xlu0 %651
      %653 = vrot.lane.b32.xlu0 %v454, 126
      %v654 = vpop.permute.xlu0 %653
      %655 = vrot.lane.b32.xlu0 %v455, 126
      %v656 = vpop.permute.xlu0 %655
      %657 = vrot.lane.b32.xlu0 %v456, 126
      %v658 = vpop.permute.xlu0 %657
      %659 = vrot.lane.b32.xlu0 %v457, 126
      %v660 = vpop.permute.xlu0 %659
      %661 = vrot.lane.b32.xlu0 %v458, 126
      %v662 = vpop.permute.xlu0 %661
      %663 = vrot.lane.b32.xlu0 %v459, 126
      %v664 = vpop.permute.xlu0 %663
      %665 = vrot.lane.b32.xlu0 %v460, 126
      %v666 = vpop.permute.xlu0 %665
      %667 = vrot.lane.b32.xlu0 %v461, 126
      %v668 = vpop.permute.xlu0 %667
      %669 = vrot.lane.b32.xlu0 %v462, 126
      %v670 = vpop.permute.xlu0 %669
      %671 = vrot.lane.b32.xlu0 %v463, 126
      %v672 = vpop.permute.xlu0 %671
      %673 = vrot.lane.b32.xlu0 %v464, 126
      %v674 = vpop.permute.xlu0 %673
      %675 = vrot.lane.b32.xlu0 %v465, 126
      %v676 = vpop.permute.xlu0 %675
      %677 = vrot.lane.b32.xlu0 %v466, 126
      %v678 = vpop.permute.xlu0 %677
      %679 = vrot.lane.b32.xlu0 %v467, 126
      %v680 = vpop.permute.xlu0 %679
      %681 = vrot.lane.b32.xlu0 %v468, 126
      %v682 = vpop.permute.xlu0 %681
      %683 = vrot.lane.b32.xlu0 %v469, 126
      %v684 = vpop.permute.xlu0 %683
      %685 = vrot.lane.b32.xlu0 %v470, 126
      %v686 = vpop.permute.xlu0 %685
      %687 = vrot.lane.b32.xlu0 %v471, 126
      %v688 = vpop.permute.xlu0 %687
      %vm689 = vcmask 1031168
      %v690 = vsel %vm689, %v618, %v620
      %v691 = vsel %vm689, %v620, %v622
      %v692 = vsel %vm689, %v622, %v624
      %v693 = vsel %vm689, %v624, %v626
      %v694 = vsel %vm689, %v626, %v628
      %v695 = vsel %vm689, %v628, %v630
      %v696 = vsel %vm689, %v630, %v632
      %v697 = vsel %vm689, %v632, %v634
      %v698 = vsel %vm689, %v634, %v636
      %v699 = vsel %vm689, %v636, %v638
      %v700 = vsel %vm689, %v638, %v640
      %v701 = vsel %vm689, %v640, %v642
      %v702 = vsel %vm689, %v642, %v644
      %v703 = vsel %vm689, %v644, %v646
      %v704 = vsel %vm689, %v646, %v648
      %v705 = vsel %vm689, %v648, %v650
      %v706 = vsel %vm689, %v650, %v652
      %v707 = vsel %vm689, %v652, %v654
      %v708 = vsel %vm689, %v654, %v656
      %v709 = vsel %vm689, %v656, %v658
      %v710 = vsel %vm689, %v658, %v660
      %v711 = vsel %vm689, %v660, %v662
      %v712 = vsel %vm689, %v662, %v664
      %v713 = vsel %vm689, %v664, %v666
      %v714 = vsel %vm689, %v666, %v668
      %v715 = vsel %vm689, %v668, %v670
      %v716 = vsel %vm689, %v670, %v672
      %v717 = vsel %vm689, %v672, %v674
      %v718 = vsel %vm689, %v674, %v676
      %v719 = vsel %vm689, %v676, %v678
      %v720 = vsel %vm689, %v678, %v680
      %v721 = vsel %vm689, %v680, %v682
      %v722 = vsel %vm689, %v682, %v684
      %v723 = vsel %vm689, %v684, %v686
      %v724 = vsel %vm689, %v686, %v688
      %725 = vrot.lane.b32.xlu0 %v473, 62
      %v726 = vpop.permute.xlu0 %725
      %727 = vrot.lane.b32.xlu0 %v474, 62
      %v728 = vpop.permute.xlu0 %727
      %729 = vrot.lane.b32.xlu0 %v475, 62
      %v730 = vpop.permute.xlu0 %729
      %731 = vrot.lane.b32.xlu0 %v476, 62
      %v732 = vpop.permute.xlu0 %731
      %733 = vrot.lane.b32.xlu0 %v477, 62
      %v734 = vpop.permute.xlu0 %733
      %735 = vrot.lane.b32.xlu0 %v478, 62
      %v736 = vpop.permute.xlu0 %735
      %737 = vrot.lane.b32.xlu0 %v479, 62
      %v738 = vpop.permute.xlu0 %737
      %739 = vrot.lane.b32.xlu0 %v480, 62
      %v740 = vpop.permute.xlu0 %739
      %741 = vrot.lane.b32.xlu0 %v481, 62
      %v742 = vpop.permute.xlu0 %741
      %743 = vrot.lane.b32.xlu0 %v482, 62
      %v744 = vpop.permute.xlu0 %743
      %745 = vrot.lane.b32.xlu0 %v483, 62
      %v746 = vpop.permute.xlu0 %745
      %747 = vrot.lane.b32.xlu0 %v484, 62
      %v748 = vpop.permute.xlu0 %747
      %749 = vrot.lane.b32.xlu0 %v485, 62
      %v750 = vpop.permute.xlu0 %749
      %751 = vrot.lane.b32.xlu0 %v486, 62
      %v752 = vpop.permute.xlu0 %751
      %753 = vrot.lane.b32.xlu0 %v487, 62
      %v754 = vpop.permute.xlu0 %753
      %755 = vrot.lane.b32.xlu0 %v488, 62
      %v756 = vpop.permute.xlu0 %755
      %757 = vrot.lane.b32.xlu0 %v489, 62
      %v758 = vpop.permute.xlu0 %757
      %759 = vrot.lane.b32.xlu0 %v490, 62
      %v760 = vpop.permute.xlu0 %759
      %761 = vrot.lane.b32.xlu0 %v491, 62
      %v762 = vpop.permute.xlu0 %761
      %763 = vrot.lane.b32.xlu0 %v492, 62
      %v764 = vpop.permute.xlu0 %763
      %765 = vrot.lane.b32.xlu0 %v493, 62
      %v766 = vpop.permute.xlu0 %765
      %767 = vrot.lane.b32.xlu0 %v494, 62
      %v768 = vpop.permute.xlu0 %767
      %769 = vrot.lane.b32.xlu0 %v495, 62
      %v770 = vpop.permute.xlu0 %769
      %771 = vrot.lane.b32.xlu0 %v496, 62
      %v772 = vpop.permute.xlu0 %771
      %773 = vrot.lane.b32.xlu0 %v497, 62
      %v774 = vpop.permute.xlu0 %773
      %775 = vrot.lane.b32.xlu0 %v498, 62
      %v776 = vpop.permute.xlu0 %775
      %777 = vrot.lane.b32.xlu0 %v499, 62
      %v778 = vpop.permute.xlu0 %777
      %779 = vrot.lane.b32.xlu0 %v500, 62
      %v780 = vpop.permute.xlu0 %779
      %781 = vrot.lane.b32.xlu0 %v501, 62
      %v782 = vpop.permute.xlu0 %781
      %783 = vrot.lane.b32.xlu0 %v502, 62
      %v784 = vpop.permute.xlu0 %783
      %785 = vrot.lane.b32.xlu0 %v503, 62
      %v786 = vpop.permute.xlu0 %785
      %787 = vrot.lane.b32.xlu0 %v504, 62
      %v788 = vpop.permute.xlu0 %787
      %789 = vrot.lane.b32.xlu0 %v505, 62
      %v790 = vpop.permute.xlu0 %789
      %791 = vrot.lane.b32.xlu0 %v506, 62
      %v792 = vpop.permute.xlu0 %791
      %793 = vrot.lane.b32.xlu0 %v507, 62
      %v794 = vpop.permute.xlu0 %793
      %795 = vrot.lane.b32.xlu0 %v508, 62
      %v796 = vpop.permute.xlu0 %795
      %vm797 = vcmask 506880
      %v798 = vsel %vm797, %v726, %v728
      %v799 = vsel %vm797, %v728, %v730
      %v800 = vsel %vm797, %v730, %v732
      %v801 = vsel %vm797, %v732, %v734
      %v802 = vsel %vm797, %v734, %v736
      %v803 = vsel %vm797, %v736, %v738
      %v804 = vsel %vm797, %v738, %v740
      %v805 = vsel %vm797, %v740, %v742
      %v806 = vsel %vm797, %v742, %v744
      %v807 = vsel %vm797, %v744, %v746
      %v808 = vsel %vm797, %v746, %v748
      %v809 = vsel %vm797, %v748, %v750
      %v810 = vsel %vm797, %v750, %v752
      %v811 = vsel %vm797, %v752, %v754
      %v812 = vsel %vm797, %v754, %v756
      %v813 = vsel %vm797, %v756, %v758
      %v814 = vsel %vm797, %v758, %v760
      %v815 = vsel %vm797, %v760, %v762
      %v816 = vsel %vm797, %v762, %v764
      %v817 = vsel %vm797, %v764, %v766
      %v818 = vsel %vm797, %v766, %v768
      %v819 = vsel %vm797, %v768, %v770
      %v820 = vsel %vm797, %v770, %v772
      %v821 = vsel %vm797, %v772, %v774
      %v822 = vsel %vm797, %v774, %v776
      %v823 = vsel %vm797, %v776, %v778
      %v824 = vsel %vm797, %v778, %v780
      %v825 = vsel %vm797, %v780, %v782
      %v826 = vsel %vm797, %v782, %v784
      %v827 = vsel %vm797, %v784, %v786
      %v828 = vsel %vm797, %v786, %v788
      %v829 = vsel %vm797, %v788, %v790
      %v830 = vsel %vm797, %v790, %v792
      %v831 = vsel %vm797, %v792, %v794
      %v832 = vsel %vm797, %v794, %v796
      %833 = vrot.lane.b32.xlu0 %v437, 61
      %v834 = vpop.permute.xlu0 %833
      %835 = vrot.lane.b32.xlu0 %v438, 61
      %v836 = vpop.permute.xlu0 %835
      %837 = vrot.lane.b32.xlu0 %v439, 61
      %v838 = vpop.permute.xlu0 %837
      %839 = vrot.lane.b32.xlu0 %v440, 61
      %v840 = vpop.permute.xlu0 %839
      %841 = vrot.lane.b32.xlu0 %v441, 61
      %v842 = vpop.permute.xlu0 %841
      %843 = vrot.lane.b32.xlu0 %v442, 61
      %v844 = vpop.permute.xlu0 %843
      %845 = vrot.lane.b32.xlu0 %v443, 61
      %v846 = vpop.permute.xlu0 %845
      %847 = vrot.lane.b32.xlu0 %v444, 61
      %v848 = vpop.permute.xlu0 %847
      %849 = vrot.lane.b32.xlu0 %v445, 61
      %v850 = vpop.permute.xlu0 %849
      %851 = vrot.lane.b32.xlu0 %v446, 61
      %v852 = vpop.permute.xlu0 %851
      %853 = vrot.lane.b32.xlu0 %v447, 61
      %v854 = vpop.permute.xlu0 %853
      %855 = vrot.lane.b32.xlu0 %v448, 61
      %v856 = vpop.permute.xlu0 %855
      %857 = vrot.lane.b32.xlu0 %v449, 61
      %v858 = vpop.permute.xlu0 %857
      %859 = vrot.lane.b32.xlu0 %v450, 61
      %v860 = vpop.permute.xlu0 %859
      %861 = vrot.lane.b32.xlu0 %v451, 61
      %v862 = vpop.permute.xlu0 %861
      %863 = vrot.lane.b32.xlu0 %v452, 61
      %v864 = vpop.permute.xlu0 %863
      %865 = vrot.lane.b32.xlu0 %v453, 61
      %v866 = vpop.permute.xlu0 %865
      %867 = vrot.lane.b32.xlu0 %v454, 61
      %v868 = vpop.permute.xlu0 %867
      %869 = vrot.lane.b32.xlu0 %v455, 61
      %v870 = vpop.permute.xlu0 %869
      %871 = vrot.lane.b32.xlu0 %v456, 61
      %v872 = vpop.permute.xlu0 %871
      %873 = vrot.lane.b32.xlu0 %v457, 61
      %v874 = vpop.permute.xlu0 %873
      %875 = vrot.lane.b32.xlu0 %v458, 61
      %v876 = vpop.permute.xlu0 %875
      %877 = vrot.lane.b32.xlu0 %v459, 61
      %v878 = vpop.permute.xlu0 %877
      %879 = vrot.lane.b32.xlu0 %v460, 61
      %v880 = vpop.permute.xlu0 %879
      %881 = vrot.lane.b32.xlu0 %v461, 61
      %v882 = vpop.permute.xlu0 %881
      %883 = vrot.lane.b32.xlu0 %v462, 61
      %v884 = vpop.permute.xlu0 %883
      %885 = vrot.lane.b32.xlu0 %v463, 61
      %v886 = vpop.permute.xlu0 %885
      %887 = vrot.lane.b32.xlu0 %v464, 61
      %v888 = vpop.permute.xlu0 %887
      %889 = vrot.lane.b32.xlu0 %v465, 61
      %v890 = vpop.permute.xlu0 %889
      %891 = vrot.lane.b32.xlu0 %v466, 61
      %v892 = vpop.permute.xlu0 %891
      %893 = vrot.lane.b32.xlu0 %v467, 61
      %v894 = vpop.permute.xlu0 %893
      %895 = vrot.lane.b32.xlu0 %v468, 61
      %v896 = vpop.permute.xlu0 %895
      %897 = vrot.lane.b32.xlu0 %v469, 61
      %v898 = vpop.permute.xlu0 %897
      %899 = vrot.lane.b32.xlu0 %v470, 61
      %v900 = vpop.permute.xlu0 %899
      %901 = vrot.lane.b32.xlu0 %v471, 61
      %v902 = vpop.permute.xlu0 %901
      %vm903 = vcmask 498688
      %v904 = vsel %vm903, %v834, %v836
      %v905 = vsel %vm903, %v836, %v838
      %v906 = vsel %vm903, %v838, %v840
      %v907 = vsel %vm903, %v840, %v842
      %v908 = vsel %vm903, %v842, %v844
      %v909 = vsel %vm903, %v844, %v846
      %v910 = vsel %vm903, %v846, %v848
      %v911 = vsel %vm903, %v848, %v850
      %v912 = vsel %vm903, %v850, %v852
      %v913 = vsel %vm903, %v852, %v854
      %v914 = vsel %vm903, %v854, %v856
      %v915 = vsel %vm903, %v856, %v858
      %v916 = vsel %vm903, %v858, %v860
      %v917 = vsel %vm903, %v860, %v862
      %v918 = vsel %vm903, %v862, %v864
      %v919 = vsel %vm903, %v864, %v866
      %v920 = vsel %vm903, %v866, %v868
      %v921 = vsel %vm903, %v868, %v870
      %v922 = vsel %vm903, %v870, %v872
      %v923 = vsel %vm903, %v872, %v874
      %v924 = vsel %vm903, %v874, %v876
      %v925 = vsel %vm903, %v876, %v878
      %v926 = vsel %vm903, %v878, %v880
      %v927 = vsel %vm903, %v880, %v882
      %v928 = vsel %vm903, %v882, %v884
      %v929 = vsel %vm903, %v884, %v886
      %v930 = vsel %vm903, %v886, %v888
      %v931 = vsel %vm903, %v888, %v890
      %v932 = vsel %vm903, %v890, %v892
      %v933 = vsel %vm903, %v892, %v894
      %v934 = vsel %vm903, %v894, %v896
      %v935 = vsel %vm903, %v896, %v898
      %v936 = vsel %vm903, %v898, %v900
      %v937 = vsel %vm903, %v900, %v902
      %938 = vrot.lane.b32.xlu0 %v474, 60
      %v939 = vpop.permute.xlu0 %938
      %940 = vrot.lane.b32.xlu0 %v475, 60
      %v941 = vpop.permute.xlu0 %940
      %942 = vrot.lane.b32.xlu0 %v476, 60
      %v943 = vpop.permute.xlu0 %942
      %944 = vrot.lane.b32.xlu0 %v477, 60
      %v945 = vpop.permute.xlu0 %944
      %946 = vrot.lane.b32.xlu0 %v478, 60
      %v947 = vpop.permute.xlu0 %946
      %948 = vrot.lane.b32.xlu0 %v479, 60
      %v949 = vpop.permute.xlu0 %948
      %950 = vrot.lane.b32.xlu0 %v480, 60
      %v951 = vpop.permute.xlu0 %950
      %952 = vrot.lane.b32.xlu0 %v481, 60
      %v953 = vpop.permute.xlu0 %952
      %954 = vrot.lane.b32.xlu0 %v482, 60
      %v955 = vpop.permute.xlu0 %954
      %956 = vrot.lane.b32.xlu0 %v483, 60
      %v957 = vpop.permute.xlu0 %956
      %958 = vrot.lane.b32.xlu0 %v484, 60
      %v959 = vpop.permute.xlu0 %958
      %960 = vrot.lane.b32.xlu0 %v485, 60
      %v961 = vpop.permute.xlu0 %960
      %962 = vrot.lane.b32.xlu0 %v486, 60
      %v963 = vpop.permute.xlu0 %962
      %964 = vrot.lane.b32.xlu0 %v487, 60
      %v965 = vpop.permute.xlu0 %964
      %966 = vrot.lane.b32.xlu0 %v488, 60
      %v967 = vpop.permute.xlu0 %966
      %968 = vrot.lane.b32.xlu0 %v489, 60
      %v969 = vpop.permute.xlu0 %968
      %970 = vrot.lane.b32.xlu0 %v490, 60
      %v971 = vpop.permute.xlu0 %970
      %972 = vrot.lane.b32.xlu0 %v491, 60
      %v973 = vpop.permute.xlu0 %972
      %974 = vrot.lane.b32.xlu0 %v492, 60
      %v975 = vpop.permute.xlu0 %974
      %976 = vrot.lane.b32.xlu0 %v493, 60
      %v977 = vpop.permute.xlu0 %976
      %978 = vrot.lane.b32.xlu0 %v494, 60
      %v979 = vpop.permute.xlu0 %978
      %980 = vrot.lane.b32.xlu0 %v495, 60
      %v981 = vpop.permute.xlu0 %980
      %982 = vrot.lane.b32.xlu0 %v496, 60
      %v983 = vpop.permute.xlu0 %982
      %984 = vrot.lane.b32.xlu0 %v497, 60
      %v985 = vpop.permute.xlu0 %984
      %986 = vrot.lane.b32.xlu0 %v498, 60
      %v987 = vpop.permute.xlu0 %986
      %988 = vrot.lane.b32.xlu0 %v499, 60
      %v989 = vpop.permute.xlu0 %988
      %990 = vrot.lane.b32.xlu0 %v500, 60
      %v991 = vpop.permute.xlu0 %990
      %992 = vrot.lane.b32.xlu0 %v501, 60
      %v993 = vpop.permute.xlu0 %992
      %994 = vrot.lane.b32.xlu0 %v502, 60
      %v995 = vpop.permute.xlu0 %994
      %996 = vrot.lane.b32.xlu0 %v503, 60
      %v997 = vpop.permute.xlu0 %996
      %998 = vrot.lane.b32.xlu0 %v504, 60
      %v999 = vpop.permute.xlu0 %998
      %1000 = vrot.lane.b32.xlu0 %v505, 60
      %v1001 = vpop.permute.xlu0 %1000
      %1002 = vrot.lane.b32.xlu0 %v506, 60
      %v1003 = vpop.permute.xlu0 %1002
      %1004 = vrot.lane.b32.xlu0 %v507, 60
      %v1005 = vpop.permute.xlu0 %1004
      %1006 = vrot.lane.b32.xlu0 %v508, 60
      %v1007 = vpop.permute.xlu0 %1006
      %1008 = vrot.lane.b32.xlu0 %v473, 60
      %v1009 = vpop.permute.xlu0 %1008
      %vm1010 = vcmask 490496
      %v1011 = vsel %vm1010, %v939, %v941
      %v1012 = vsel %vm1010, %v941, %v943
      %v1013 = vsel %vm1010, %v943, %v945
      %v1014 = vsel %vm1010, %v945, %v947
      %v1015 = vsel %vm1010, %v947, %v949
      %v1016 = vsel %vm1010, %v949, %v951
      %v1017 = vsel %vm1010, %v951, %v953
      %v1018 = vsel %vm1010, %v953, %v955
      %v1019 = vsel %vm1010, %v955, %v957
      %v1020 = vsel %vm1010, %v957, %v959
      %v1021 = vsel %vm1010, %v959, %v961
      %v1022 = vsel %vm1010, %v961, %v963
      %v1023 = vsel %vm1010, %v963, %v965
      %v1024 = vsel %vm1010, %v965, %v967
      %v1025 = vsel %vm1010, %v967, %v969
      %v1026 = vsel %vm1010, %v969, %v971
      %v1027 = vsel %vm1010, %v971, %v973
      %v1028 = vsel %vm1010, %v973, %v975
      %v1029 = vsel %vm1010, %v975, %v977
      %v1030 = vsel %vm1010, %v977, %v979
      %v1031 = vsel %vm1010, %v979, %v981
      %v1032 = vsel %vm1010, %v981, %v983
      %v1033 = vsel %vm1010, %v983, %v985
      %v1034 = vsel %vm1010, %v985, %v987
      %v1035 = vsel %vm1010, %v987, %v989
      %v1036 = vsel %vm1010, %v989, %v991
      %v1037 = vsel %vm1010, %v991, %v993
      %v1038 = vsel %vm1010, %v993, %v995
      %v1039 = vsel %vm1010, %v995, %v997
      %v1040 = vsel %vm1010, %v997, %v999
      %v1041 = vsel %vm1010, %v999, %v1001
      %v1042 = vsel %vm1010, %v1001, %v1003
      %v1043 = vsel %vm1010, %v1003, %v1005
      %v1044 = vsel %vm1010, %v1005, %v1007
      %v1045 = vsel %vm1010, %v1007, %v1009
      %1046 = vrot.lane.b32.xlu0 %v437, 124
      %v1047 = vpop.permute.xlu0 %1046
      %1048 = vrot.lane.b32.xlu0 %v438, 124
      %v1049 = vpop.permute.xlu0 %1048
      %1050 = vrot.lane.b32.xlu0 %v439, 124
      %v1051 = vpop.permute.xlu0 %1050
      %1052 = vrot.lane.b32.xlu0 %v440, 124
      %v1053 = vpop.permute.xlu0 %1052
      %1054 = vrot.lane.b32.xlu0 %v441, 124
      %v1055 = vpop.permute.xlu0 %1054
      %1056 = vrot.lane.b32.xlu0 %v442, 124
      %v1057 = vpop.permute.xlu0 %1056
      %1058 = vrot.lane.b32.xlu0 %v443, 124
      %v1059 = vpop.permute.xlu0 %1058
      %1060 = vrot.lane.b32.xlu0 %v444, 124
      %v1061 = vpop.permute.xlu0 %1060
      %1062 = vrot.lane.b32.xlu0 %v445, 124
      %v1063 = vpop.permute.xlu0 %1062
      %1064 = vrot.lane.b32.xlu0 %v446, 124
      %v1065 = vpop.permute.xlu0 %1064
      %1066 = vrot.lane.b32.xlu0 %v447, 124
      %v1067 = vpop.permute.xlu0 %1066
      %1068 = vrot.lane.b32.xlu0 %v448, 124
      %v1069 = vpop.permute.xlu0 %1068
      %1070 = vrot.lane.b32.xlu0 %v449, 124
      %v1071 = vpop.permute.xlu0 %1070
      %1072 = vrot.lane.b32.xlu0 %v450, 124
      %v1073 = vpop.permute.xlu0 %1072
      %1074 = vrot.lane.b32.xlu0 %v451, 124
      %v1075 = vpop.permute.xlu0 %1074
      %1076 = vrot.lane.b32.xlu0 %v452, 124
      %v1077 = vpop.permute.xlu0 %1076
      %1078 = vrot.lane.b32.xlu0 %v453, 124
      %v1079 = vpop.permute.xlu0 %1078
      %1080 = vrot.lane.b32.xlu0 %v454, 124
      %v1081 = vpop.permute.xlu0 %1080
      %1082 = vrot.lane.b32.xlu0 %v455, 124
      %v1083 = vpop.permute.xlu0 %1082
      %1084 = vrot.lane.b32.xlu0 %v456, 124
      %v1085 = vpop.permute.xlu0 %1084
      %1086 = vrot.lane.b32.xlu0 %v457, 124
      %v1087 = vpop.permute.xlu0 %1086
      %1088 = vrot.lane.b32.xlu0 %v458, 124
      %v1089 = vpop.permute.xlu0 %1088
      %1090 = vrot.lane.b32.xlu0 %v459, 124
      %v1091 = vpop.permute.xlu0 %1090
      %1092 = vrot.lane.b32.xlu0 %v460, 124
      %v1093 = vpop.permute.xlu0 %1092
      %1094 = vrot.lane.b32.xlu0 %v461, 124
      %v1095 = vpop.permute.xlu0 %1094
      %1096 = vrot.lane.b32.xlu0 %v462, 124
      %v1097 = vpop.permute.xlu0 %1096
      %1098 = vrot.lane.b32.xlu0 %v463, 124
      %v1099 = vpop.permute.xlu0 %1098
      %1100 = vrot.lane.b32.xlu0 %v464, 124
      %v1101 = vpop.permute.xlu0 %1100
      %1102 = vrot.lane.b32.xlu0 %v465, 124
      %v1103 = vpop.permute.xlu0 %1102
      %1104 = vrot.lane.b32.xlu0 %v466, 124
      %v1105 = vpop.permute.xlu0 %1104
      %1106 = vrot.lane.b32.xlu0 %v467, 124
      %v1107 = vpop.permute.xlu0 %1106
      %1108 = vrot.lane.b32.xlu0 %v468, 124
      %v1109 = vpop.permute.xlu0 %1108
      %1110 = vrot.lane.b32.xlu0 %v469, 124
      %v1111 = vpop.permute.xlu0 %1110
      %1112 = vrot.lane.b32.xlu0 %v470, 124
      %v1113 = vpop.permute.xlu0 %1112
      %1114 = vrot.lane.b32.xlu0 %v471, 124
      %v1115 = vpop.permute.xlu0 %1114
      %1116 = vrot.lane.b32.xlu0 0, 124
      %v1117 = vpop.permute.xlu0 %1116
      %vm1118 = vcmask 1014784
      %v1119 = vsel %vm1118, %v1047, %v1049
      %v1120 = vsel %vm1118, %v1049, %v1051
      %v1121 = vsel %vm1118, %v1051, %v1053
      %v1122 = vsel %vm1118, %v1053, %v1055
      %v1123 = vsel %vm1118, %v1055, %v1057
      %v1124 = vsel %vm1118, %v1057, %v1059
      %v1125 = vsel %vm1118, %v1059, %v1061
      %v1126 = vsel %vm1118, %v1061, %v1063
      %v1127 = vsel %vm1118, %v1063, %v1065
      %v1128 = vsel %vm1118, %v1065, %v1067
      %v1129 = vsel %vm1118, %v1067, %v1069
      %v1130 = vsel %vm1118, %v1069, %v1071
      %v1131 = vsel %vm1118, %v1071, %v1073
      %v1132 = vsel %vm1118, %v1073, %v1075
      %v1133 = vsel %vm1118, %v1075, %v1077
      %v1134 = vsel %vm1118, %v1077, %v1079
      %v1135 = vsel %vm1118, %v1079, %v1081
      %v1136 = vsel %vm1118, %v1081, %v1083
      %v1137 = vsel %vm1118, %v1083, %v1085
      %v1138 = vsel %vm1118, %v1085, %v1087
      %v1139 = vsel %vm1118, %v1087, %v1089
      %v1140 = vsel %vm1118, %v1089, %v1091
      %v1141 = vsel %vm1118, %v1091, %v1093
      %v1142 = vsel %vm1118, %v1093, %v1095
      %v1143 = vsel %vm1118, %v1095, %v1097
      %v1144 = vsel %vm1118, %v1097, %v1099
      %v1145 = vsel %vm1118, %v1099, %v1101
      %v1146 = vsel %vm1118, %v1101, %v1103
      %v1147 = vsel %vm1118, %v1103, %v1105
      %v1148 = vsel %vm1118, %v1105, %v1107
      %v1149 = vsel %vm1118, %v1107, %v1109
      %v1150 = vsel %vm1118, %v1109, %v1111
      %v1151 = vsel %vm1118, %v1111, %v1113
      %v1152 = vsel %vm1118, %v1113, %v1115
      %v1153 = vsel %vm1118, %v1115, %v1117
      %1154 = vrot.lane.b32.xlu0 %v474, 123
      %v1155 = vpop.permute.xlu0 %1154
      %1156 = vrot.lane.b32.xlu0 %v475, 123
      %v1157 = vpop.permute.xlu0 %1156
      %1158 = vrot.lane.b32.xlu0 %v476, 123
      %v1159 = vpop.permute.xlu0 %1158
      %1160 = vrot.lane.b32.xlu0 %v477, 123
      %v1161 = vpop.permute.xlu0 %1160
      %1162 = vrot.lane.b32.xlu0 %v478, 123
      %v1163 = vpop.permute.xlu0 %1162
      %1164 = vrot.lane.b32.xlu0 %v479, 123
      %v1165 = vpop.permute.xlu0 %1164
      %1166 = vrot.lane.b32.xlu0 %v480, 123
      %v1167 = vpop.permute.xlu0 %1166
      %1168 = vrot.lane.b32.xlu0 %v481, 123
      %v1169 = vpop.permute.xlu0 %1168
      %1170 = vrot.lane.b32.xlu0 %v482, 123
      %v1171 = vpop.permute.xlu0 %1170
      %1172 = vrot.lane.b32.xlu0 %v483, 123
      %v1173 = vpop.permute.xlu0 %1172
      %1174 = vrot.lane.b32.xlu0 %v484, 123
      %v1175 = vpop.permute.xlu0 %1174
      %1176 = vrot.lane.b32.xlu0 %v485, 123
      %v1177 = vpop.permute.xlu0 %1176
      %1178 = vrot.lane.b32.xlu0 %v486, 123
      %v1179 = vpop.permute.xlu0 %1178
      %1180 = vrot.lane.b32.xlu0 %v487, 123
      %v1181 = vpop.permute.xlu0 %1180
      %1182 = vrot.lane.b32.xlu0 %v488, 123
      %v1183 = vpop.permute.xlu0 %1182
      %1184 = vrot.lane.b32.xlu0 %v489, 123
      %v1185 = vpop.permute.xlu0 %1184
      %1186 = vrot.lane.b32.xlu0 %v490, 123
      %v1187 = vpop.permute.xlu0 %1186
      %1188 = vrot.lane.b32.xlu0 %v491, 123
      %v1189 = vpop.permute.xlu0 %1188
      %1190 = vrot.lane.b32.xlu0 %v492, 123
      %v1191 = vpop.permute.xlu0 %1190
      %1192 = vrot.lane.b32.xlu0 %v493, 123
      %v1193 = vpop.permute.xlu0 %1192
      %1194 = vrot.lane.b32.xlu0 %v494, 123
      %v1195 = vpop.permute.xlu0 %1194
      %1196 = vrot.lane.b32.xlu0 %v495, 123
      %v1197 = vpop.permute.xlu0 %1196
      %1198 = vrot.lane.b32.xlu0 %v496, 123
      %v1199 = vpop.permute.xlu0 %1198
      %1200 = vrot.lane.b32.xlu0 %v497, 123
      %v1201 = vpop.permute.xlu0 %1200
      %1202 = vrot.lane.b32.xlu0 %v498, 123
      %v1203 = vpop.permute.xlu0 %1202
      %1204 = vrot.lane.b32.xlu0 %v499, 123
      %v1205 = vpop.permute.xlu0 %1204
      %1206 = vrot.lane.b32.xlu0 %v500, 123
      %v1207 = vpop.permute.xlu0 %1206
      %1208 = vrot.lane.b32.xlu0 %v501, 123
      %v1209 = vpop.permute.xlu0 %1208
      %1210 = vrot.lane.b32.xlu0 %v502, 123
      %v1211 = vpop.permute.xlu0 %1210
      %1212 = vrot.lane.b32.xlu0 %v503, 123
      %v1213 = vpop.permute.xlu0 %1212
      %1214 = vrot.lane.b32.xlu0 %v504, 123
      %v1215 = vpop.permute.xlu0 %1214
      %1216 = vrot.lane.b32.xlu0 %v505, 123
      %v1217 = vpop.permute.xlu0 %1216
      %1218 = vrot.lane.b32.xlu0 %v506, 123
      %v1219 = vpop.permute.xlu0 %1218
      %1220 = vrot.lane.b32.xlu0 %v507, 123
      %v1221 = vpop.permute.xlu0 %1220
      %1222 = vrot.lane.b32.xlu0 %v508, 123
      %v1223 = vpop.permute.xlu0 %1222
      %1224 = vrot.lane.b32.xlu0 %v473, 123
      %v1225 = vpop.permute.xlu0 %1224
      %vm1226 = vcmask 1006592
      %v1227 = vsel %vm1226, %v1155, %v1157
      %v1228 = vsel %vm1226, %v1157, %v1159
      %v1229 = vsel %vm1226, %v1159, %v1161
      %v1230 = vsel %vm1226, %v1161, %v1163
      %v1231 = vsel %vm1226, %v1163, %v1165
      %v1232 = vsel %vm1226, %v1165, %v1167
      %v1233 = vsel %vm1226, %v1167, %v1169
      %v1234 = vsel %vm1226, %v1169, %v1171
      %v1235 = vsel %vm1226, %v1171, %v1173
      %v1236 = vsel %vm1226, %v1173, %v1175
      %v1237 = vsel %vm1226, %v1175, %v1177
      %v1238 = vsel %vm1226, %v1177, %v1179
      %v1239 = vsel %vm1226, %v1179, %v1181
      %v1240 = vsel %vm1226, %v1181, %v1183
      %v1241 = vsel %vm1226, %v1183, %v1185
      %v1242 = vsel %vm1226, %v1185, %v1187
      %v1243 = vsel %vm1226, %v1187, %v1189
      %v1244 = vsel %vm1226, %v1189, %v1191
      %v1245 = vsel %vm1226, %v1191, %v1193
      %v1246 = vsel %vm1226, %v1193, %v1195
      %v1247 = vsel %vm1226, %v1195, %v1197
      %v1248 = vsel %vm1226, %v1197, %v1199
      %v1249 = vsel %vm1226, %v1199, %v1201
      %v1250 = vsel %vm1226, %v1201, %v1203
      %v1251 = vsel %vm1226, %v1203, %v1205
      %v1252 = vsel %vm1226, %v1205, %v1207
      %v1253 = vsel %vm1226, %v1207, %v1209
      %v1254 = vsel %vm1226, %v1209, %v1211
      %v1255 = vsel %vm1226, %v1211, %v1213
      %v1256 = vsel %vm1226, %v1213, %v1215
      %v1257 = vsel %vm1226, %v1215, %v1217
      %v1258 = vsel %vm1226, %v1217, %v1219
      %v1259 = vsel %vm1226, %v1219, %v1221
      %v1260 = vsel %vm1226, %v1221, %v1223
      %v1261 = vsel %vm1226, %v1223, %v1225
      %1262 = vrot.lane.b32.xlu0 %v437, 122
      %v1263 = vpop.permute.xlu0 %1262
      %1264 = vrot.lane.b32.xlu0 %v438, 122
      %v1265 = vpop.permute.xlu0 %1264
      %1266 = vrot.lane.b32.xlu0 %v439, 122
      %v1267 = vpop.permute.xlu0 %1266
      %1268 = vrot.lane.b32.xlu0 %v440, 122
      %v1269 = vpop.permute.xlu0 %1268
      %1270 = vrot.lane.b32.xlu0 %v441, 122
      %v1271 = vpop.permute.xlu0 %1270
      %1272 = vrot.lane.b32.xlu0 %v442, 122
      %v1273 = vpop.permute.xlu0 %1272
      %1274 = vrot.lane.b32.xlu0 %v443, 122
      %v1275 = vpop.permute.xlu0 %1274
      %1276 = vrot.lane.b32.xlu0 %v444, 122
      %v1277 = vpop.permute.xlu0 %1276
      %1278 = vrot.lane.b32.xlu0 %v445, 122
      %v1279 = vpop.permute.xlu0 %1278
      %1280 = vrot.lane.b32.xlu0 %v446, 122
      %v1281 = vpop.permute.xlu0 %1280
      %1282 = vrot.lane.b32.xlu0 %v447, 122
      %v1283 = vpop.permute.xlu0 %1282
      %1284 = vrot.lane.b32.xlu0 %v448, 122
      %v1285 = vpop.permute.xlu0 %1284
      %1286 = vrot.lane.b32.xlu0 %v449, 122
      %v1287 = vpop.permute.xlu0 %1286
      %1288 = vrot.lane.b32.xlu0 %v450, 122
      %v1289 = vpop.permute.xlu0 %1288
      %1290 = vrot.lane.b32.xlu0 %v451, 122
      %v1291 = vpop.permute.xlu0 %1290
      %1292 = vrot.lane.b32.xlu0 %v452, 122
      %v1293 = vpop.permute.xlu0 %1292
      %1294 = vrot.lane.b32.xlu0 %v453, 122
      %v1295 = vpop.permute.xlu0 %1294
      %1296 = vrot.lane.b32.xlu0 %v454, 122
      %v1297 = vpop.permute.xlu0 %1296
      %1298 = vrot.lane.b32.xlu0 %v455, 122
      %v1299 = vpop.permute.xlu0 %1298
      %1300 = vrot.lane.b32.xlu0 %v456, 122
      %v1301 = vpop.permute.xlu0 %1300
      %1302 = vrot.lane.b32.xlu0 %v457, 122
      %v1303 = vpop.permute.xlu0 %1302
      %1304 = vrot.lane.b32.xlu0 %v458, 122
      %v1305 = vpop.permute.xlu0 %1304
      %1306 = vrot.lane.b32.xlu0 %v459, 122
      %v1307 = vpop.permute.xlu0 %1306
      %1308 = vrot.lane.b32.xlu0 %v460, 122
      %v1309 = vpop.permute.xlu0 %1308
      %1310 = vrot.lane.b32.xlu0 %v461, 122
      %v1311 = vpop.permute.xlu0 %1310
      %1312 = vrot.lane.b32.xlu0 %v462, 122
      %v1313 = vpop.permute.xlu0 %1312
      %1314 = vrot.lane.b32.xlu0 %v463, 122
      %v1315 = vpop.permute.xlu0 %1314
      %1316 = vrot.lane.b32.xlu0 %v464, 122
      %v1317 = vpop.permute.xlu0 %1316
      %1318 = vrot.lane.b32.xlu0 %v465, 122
      %v1319 = vpop.permute.xlu0 %1318
      %1320 = vrot.lane.b32.xlu0 %v466, 122
      %v1321 = vpop.permute.xlu0 %1320
      %1322 = vrot.lane.b32.xlu0 %v467, 122
      %v1323 = vpop.permute.xlu0 %1322
      %1324 = vrot.lane.b32.xlu0 %v468, 122
      %v1325 = vpop.permute.xlu0 %1324
      %1326 = vrot.lane.b32.xlu0 %v469, 122
      %v1327 = vpop.permute.xlu0 %1326
      %1328 = vrot.lane.b32.xlu0 %v470, 122
      %v1329 = vpop.permute.xlu0 %1328
      %1330 = vrot.lane.b32.xlu0 %v471, 122
      %v1331 = vpop.permute.xlu0 %1330
      %1332 = vrot.lane.b32.xlu0 0, 122
      %v1333 = vpop.permute.xlu0 %1332
      %vm1334 = vcmask 998400
      %v1335 = vsel %vm1334, %v1263, %v1265
      %v1336 = vsel %vm1334, %v1265, %v1267
      %v1337 = vsel %vm1334, %v1267, %v1269
      %v1338 = vsel %vm1334, %v1269, %v1271
      %v1339 = vsel %vm1334, %v1271, %v1273
      %v1340 = vsel %vm1334, %v1273, %v1275
      %v1341 = vsel %vm1334, %v1275, %v1277
      %v1342 = vsel %vm1334, %v1277, %v1279
      %v1343 = vsel %vm1334, %v1279, %v1281
      %v1344 = vsel %vm1334, %v1281, %v1283
      %v1345 = vsel %vm1334, %v1283, %v1285
      %v1346 = vsel %vm1334, %v1285, %v1287
      %v1347 = vsel %vm1334, %v1287, %v1289
      %v1348 = vsel %vm1334, %v1289, %v1291
      %v1349 = vsel %vm1334, %v1291, %v1293
      %v1350 = vsel %vm1334, %v1293, %v1295
      %v1351 = vsel %vm1334, %v1295, %v1297
      %v1352 = vsel %vm1334, %v1297, %v1299
      %v1353 = vsel %vm1334, %v1299, %v1301
      %v1354 = vsel %vm1334, %v1301, %v1303
      %v1355 = vsel %vm1334, %v1303, %v1305
      %v1356 = vsel %vm1334, %v1305, %v1307
      %v1357 = vsel %vm1334, %v1307, %v1309
      %v1358 = vsel %vm1334, %v1309, %v1311
      %v1359 = vsel %vm1334, %v1311, %v1313
      %v1360 = vsel %vm1334, %v1313, %v1315
      %v1361 = vsel %vm1334, %v1315, %v1317
      %v1362 = vsel %vm1334, %v1317, %v1319
      %v1363 = vsel %vm1334, %v1319, %v1321
      %v1364 = vsel %vm1334, %v1321, %v1323
      %v1365 = vsel %vm1334, %v1323, %v1325
      %v1366 = vsel %vm1334, %v1325, %v1327
      %v1367 = vsel %vm1334, %v1327, %v1329
      %v1368 = vsel %vm1334, %v1329, %v1331
      %v1369 = vsel %vm1334, %v1331, %v1333
      %vm1370 = vcmask 1043456
      %v1373 = vsel %vm1370, 0, %v582
      %v1376 = vsel %vm1370, %v437, %v583
      %v1379 = vsel %vm1370, %v438, %v584
      %v1382 = vsel %vm1370, %v439, %v585
      %v1385 = vsel %vm1370, %v440, %v586
      %v1388 = vsel %vm1370, %v441, %v587
      %v1391 = vsel %vm1370, %v442, %v588
      %v1394 = vsel %vm1370, %v443, %v589
      %v1397 = vsel %vm1370, %v444, %v590
      %v1400 = vsel %vm1370, %v445, %v591
      %v1403 = vsel %vm1370, %v446, %v592
      %v1406 = vsel %vm1370, %v447, %v593
      %v1409 = vsel %vm1370, %v448, %v594
      %v1412 = vsel %vm1370, %v449, %v595
      %v1415 = vsel %vm1370, %v450, %v596
      %v1418 = vsel %vm1370, %v451, %v597
      %v1421 = vsel %vm1370, %v452, %v598
      %v1424 = vsel %vm1370, %v453, %v599
      %v1427 = vsel %vm1370, %v454, %v600
      %v1430 = vsel %vm1370, %v455, %v601
      %v1433 = vsel %vm1370, %v456, %v602
      %v1436 = vsel %vm1370, %v457, %v603
      %v1439 = vsel %vm1370, %v458, %v604
      %v1442 = vsel %vm1370, %v459, %v605
      %v1445 = vsel %vm1370, %v460, %v606
      %v1448 = vsel %vm1370, %v461, %v607
      %v1451 = vsel %vm1370, %v462, %v608
      %v1454 = vsel %vm1370, %v463, %v609
      %v1457 = vsel %vm1370, %v464, %v610
      %v1460 = vsel %vm1370, %v465, %v611
      %v1463 = vsel %vm1370, %v466, %v612
      %v1466 = vsel %vm1370, %v467, %v613
      %v1469 = vsel %vm1370, %v468, %v614
      %v1472 = vsel %vm1370, %v469, %v615
      %v1475 = vsel %vm1370, %v470, %v616
      %v1478 = vsel %vm1370, %v471, %v580
      %v1481 = vsel %vm1370, %v690, %v798
      %v1484 = vsel %vm1370, %v691, %v799
      %v1487 = vsel %vm1370, %v692, %v800
      %v1490 = vsel %vm1370, %v693, %v801
      %v1493 = vsel %vm1370, %v694, %v802
      %v1496 = vsel %vm1370, %v695, %v803
      %v1499 = vsel %vm1370, %v696, %v804
      %v1502 = vsel %vm1370, %v697, %v805
      %v1505 = vsel %vm1370, %v698, %v806
      %v1508 = vsel %vm1370, %v699, %v807
      %v1511 = vsel %vm1370, %v700, %v808
      %v1514 = vsel %vm1370, %v701, %v809
      %v1517 = vsel %vm1370, %v702, %v810
      %v1520 = vsel %vm1370, %v703, %v811
      %v1523 = vsel %vm1370, %v704, %v812
      %v1526 = vsel %vm1370, %v705, %v813
      %v1529 = vsel %vm1370, %v706, %v814
      %v1532 = vsel %vm1370, %v707, %v815
      %v1535 = vsel %vm1370, %v708, %v816
      %v1538 = vsel %vm1370, %v709, %v817
      %v1541 = vsel %vm1370, %v710, %v818
      %v1544 = vsel %vm1370, %v711, %v819
      %v1547 = vsel %vm1370, %v712, %v820
      %v1550 = vsel %vm1370, %v713, %v821
      %v1553 = vsel %vm1370, %v714, %v822
      %v1556 = vsel %vm1370, %v715, %v823
      %v1559 = vsel %vm1370, %v716, %v824
      %v1562 = vsel %vm1370, %v717, %v825
      %v1565 = vsel %vm1370, %v718, %v826
      %v1568 = vsel %vm1370, %v719, %v827
      %v1571 = vsel %vm1370, %v720, %v828
      %v1574 = vsel %vm1370, %v721, %v829
      %v1577 = vsel %vm1370, %v722, %v830
      %v1580 = vsel %vm1370, %v723, %v831
      %v1583 = vsel %vm1370, %v724, %v832
      %v1586 = vsel %vm1370, %v688, %v796
      %v1589 = vsel %vm1370, %v834, %v939
      %v1592 = vsel %vm1370, %v904, %v1011
      %v1595 = vsel %vm1370, %v905, %v1012
      %v1598 = vsel %vm1370, %v906, %v1013
      %v1601 = vsel %vm1370, %v907, %v1014
      %v1604 = vsel %vm1370, %v908, %v1015
      %v1607 = vsel %vm1370, %v909, %v1016
      %v1610 = vsel %vm1370, %v910, %v1017
      %v1613 = vsel %vm1370, %v911, %v1018
      %v1616 = vsel %vm1370, %v912, %v1019
      %v1619 = vsel %vm1370, %v913, %v1020
      %v1622 = vsel %vm1370, %v914, %v1021
      %v1625 = vsel %vm1370, %v915, %v1022
      %v1628 = vsel %vm1370, %v916, %v1023
      %v1631 = vsel %vm1370, %v917, %v1024
      %v1634 = vsel %vm1370, %v918, %v1025
      %v1637 = vsel %vm1370, %v919, %v1026
      %v1640 = vsel %vm1370, %v920, %v1027
      %v1643 = vsel %vm1370, %v921, %v1028
      %v1646 = vsel %vm1370, %v922, %v1029
      %v1649 = vsel %vm1370, %v923, %v1030
      %v1652 = vsel %vm1370, %v924, %v1031
      %v1655 = vsel %vm1370, %v925, %v1032
      %v1658 = vsel %vm1370, %v926, %v1033
      %v1661 = vsel %vm1370, %v927, %v1034
      %v1664 = vsel %vm1370, %v928, %v1035
      %v1667 = vsel %vm1370, %v929, %v1036
      %v1670 = vsel %vm1370, %v930, %v1037
      %v1673 = vsel %vm1370, %v931, %v1038
      %v1676 = vsel %vm1370, %v932, %v1039
      %v1679 = vsel %vm1370, %v933, %v1040
      %v1682 = vsel %vm1370, %v934, %v1041
      %v1685 = vsel %vm1370, %v935, %v1042
      %v1688 = vsel %vm1370, %v936, %v1043
      %v1691 = vsel %vm1370, %v937, %v1044
      %v1694 = vsel %vm1370, %v902, %v1045
      %v1697 = vsel %vm1370, %v1119, %v1227
      %v1700 = vsel %vm1370, %v1120, %v1228
      %v1703 = vsel %vm1370, %v1121, %v1229
      %v1706 = vsel %vm1370, %v1122, %v1230
      %v1709 = vsel %vm1370, %v1123, %v1231
      %v1712 = vsel %vm1370, %v1124, %v1232
      %v1715 = vsel %vm1370, %v1125, %v1233
      %v1718 = vsel %vm1370, %v1126, %v1234
      %v1721 = vsel %vm1370, %v1127, %v1235
      %v1724 = vsel %vm1370, %v1128, %v1236
      %v1727 = vsel %vm1370, %v1129, %v1237
      %v1730 = vsel %vm1370, %v1130, %v1238
      %v1733 = vsel %vm1370, %v1131, %v1239
      %v1736 = vsel %vm1370, %v1132, %v1240
      %v1739 = vsel %vm1370, %v1133, %v1241
      %v1742 = vsel %vm1370, %v1134, %v1242
      %v1745 = vsel %vm1370, %v1135, %v1243
      %v1748 = vsel %vm1370, %v1136, %v1244
      %v1751 = vsel %vm1370, %v1137, %v1245
      %v1754 = vsel %vm1370, %v1138, %v1246
      %v1757 = vsel %vm1370, %v1139, %v1247
      %v1760 = vsel %vm1370, %v1140, %v1248
      %v1763 = vsel %vm1370, %v1141, %v1249
      %v1766 = vsel %vm1370, %v1142, %v1250
      %v1769 = vsel %vm1370, %v1143, %v1251
      %v1772 = vsel %vm1370, %v1144, %v1252
      %v1775 = vsel %vm1370, %v1145, %v1253
      %v1778 = vsel %vm1370, %v1146, %v1254
      %v1781 = vsel %vm1370, %v1147, %v1255
      %v1784 = vsel %vm1370, %v1148, %v1256
      %v1787 = vsel %vm1370, %v1149, %v1257
      %v1790 = vsel %vm1370, %v1150, %v1258
      %v1793 = vsel %vm1370, %v1151, %v1259
      %v1796 = vsel %vm1370, %v1152, %v1260
      %v1799 = vsel %vm1370, %v1153, %v1261
      %v1802 = vsel %vm1370, %v1117, %v1225
      %v1803 = vld [vmem:[%s2] sm:$0xf]
      %v1804 = vld [vmem:[%s3] sm:$0xff]
      %1806 = vset.pattern.permute.xlu0 0
      %1807 = vperm.xlu0 %1806, %v1804
      %v1808 = vpop.permute.xlu0 %1807
      %1954 = vrot.lane.b32.xlu0 %v1373, 67
      %v1955 = vpop.permute.xlu0 %1954
      %1956 = vrot.lane.b32.xlu0 %v1376, 67
      %v1957 = vpop.permute.xlu0 %1956
      %1958 = vrot.lane.b32.xlu0 %v1379, 67
      %v1959 = vpop.permute.xlu0 %1958
      %1960 = vrot.lane.b32.xlu0 %v1382, 67
      %v1961 = vpop.permute.xlu0 %1960
      %1962 = vrot.lane.b32.xlu0 %v1385, 67
      %v1963 = vpop.permute.xlu0 %1962
      %1964 = vrot.lane.b32.xlu0 %v1388, 67
      %v1965 = vpop.permute.xlu0 %1964
      %1966 = vrot.lane.b32.xlu0 %v1391, 67
      %v1967 = vpop.permute.xlu0 %1966
      %1968 = vrot.lane.b32.xlu0 %v1394, 67
      %v1969 = vpop.permute.xlu0 %1968
      %1970 = vrot.lane.b32.xlu0 %v1397, 67
      %v1971 = vpop.permute.xlu0 %1970
      %1972 = vrot.lane.b32.xlu0 %v1400, 67
      %v1973 = vpop.permute.xlu0 %1972
      %1974 = vrot.lane.b32.xlu0 %v1403, 67
      %v1975 = vpop.permute.xlu0 %1974
      %1976 = vrot.lane.b32.xlu0 %v1406, 67
      %v1977 = vpop.permute.xlu0 %1976
      %1978 = vrot.lane.b32.xlu0 %v1409, 67
      %v1979 = vpop.permute.xlu0 %1978
      %1980 = vrot.lane.b32.xlu0 %v1412, 67
      %v1981 = vpop.permute.xlu0 %1980
      %1982 = vrot.lane.b32.xlu0 %v1415, 67
      %v1983 = vpop.permute.xlu0 %1982
      %1984 = vrot.lane.b32.xlu0 %v1418, 67
      %v1985 = vpop.permute.xlu0 %1984
      %1986 = vrot.lane.b32.xlu0 %v1421, 67
      %v1987 = vpop.permute.xlu0 %1986
      %1988 = vrot.lane.b32.xlu0 %v1424, 67
      %v1989 = vpop.permute.xlu0 %1988
      %1990 = vrot.lane.b32.xlu0 %v1427, 67
      %v1991 = vpop.permute.xlu0 %1990
      %1992 = vrot.lane.b32.xlu0 %v1430, 67
      %v1993 = vpop.permute.xlu0 %1992
      %1994 = vrot.lane.b32.xlu0 %v1433, 67
      %v1995 = vpop.permute.xlu0 %1994
      %1996 = vrot.lane.b32.xlu0 %v1436, 67
      %v1997 = vpop.permute.xlu0 %1996
      %1998 = vrot.lane.b32.xlu0 %v1439, 67
      %v1999 = vpop.permute.xlu0 %1998
      %2000 = vrot.lane.b32.xlu0 %v1442, 67
      %v2001 = vpop.permute.xlu0 %2000
      %2002 = vrot.lane.b32.xlu0 %v1445, 67
      %v2003 = vpop.permute.xlu0 %2002
      %2004 = vrot.lane.b32.xlu0 %v1448, 67
      %v2005 = vpop.permute.xlu0 %2004
      %2006 = vrot.lane.b32.xlu0 %v1451, 67
      %v2007 = vpop.permute.xlu0 %2006
      %2008 = vrot.lane.b32.xlu0 %v1454, 67
      %v2009 = vpop.permute.xlu0 %2008
      %2010 = vrot.lane.b32.xlu0 %v1457, 67
      %v2011 = vpop.permute.xlu0 %2010
      %2012 = vrot.lane.b32.xlu0 %v1460, 67
      %v2013 = vpop.permute.xlu0 %2012
      %2014 = vrot.lane.b32.xlu0 %v1463, 67
      %v2015 = vpop.permute.xlu0 %2014
      %2016 = vrot.lane.b32.xlu0 %v1466, 67
      %v2017 = vpop.permute.xlu0 %2016
      %2018 = vrot.lane.b32.xlu0 %v1469, 67
      %v2019 = vpop.permute.xlu0 %2018
      %2020 = vrot.lane.b32.xlu0 %v1472, 67
      %v2021 = vpop.permute.xlu0 %2020
      %2022 = vrot.lane.b32.xlu0 %v1475, 67
      %v2023 = vpop.permute.xlu0 %2022
      %2024 = vrot.lane.b32.xlu0 %v1478, 67
      %v2025 = vpop.permute.xlu0 %2024
      %2026 = vrot.lane.b32.xlu0 %v1481, 67
      %v2027 = vpop.permute.xlu0 %2026
      %2028 = vrot.lane.b32.xlu0 %v1484, 67
      %v2029 = vpop.permute.xlu0 %2028
      %2030 = vrot.lane.b32.xlu0 %v1487, 67
      %v2031 = vpop.permute.xlu0 %2030
      %2032 = vrot.lane.b32.xlu0 %v1490, 67
      %v2033 = vpop.permute.xlu0 %2032
      %2034 = vrot.lane.b32.xlu0 %v1493, 67
      %v2035 = vpop.permute.xlu0 %2034
      %2036 = vrot.lane.b32.xlu0 %v1496, 67
      %v2037 = vpop.permute.xlu0 %2036
      %2038 = vrot.lane.b32.xlu0 %v1499, 67
      %v2039 = vpop.permute.xlu0 %2038
      %2040 = vrot.lane.b32.xlu0 %v1502, 67
      %v2041 = vpop.permute.xlu0 %2040
      %2042 = vrot.lane.b32.xlu0 %v1505, 67
      %v2043 = vpop.permute.xlu0 %2042
      %2044 = vrot.lane.b32.xlu0 %v1508, 67
      %v2045 = vpop.permute.xlu0 %2044
      %2046 = vrot.lane.b32.xlu0 %v1511, 67
      %v2047 = vpop.permute.xlu0 %2046
      %2048 = vrot.lane.b32.xlu0 %v1514, 67
      %v2049 = vpop.permute.xlu0 %2048
      %2050 = vrot.lane.b32.xlu0 %v1517, 67
      %v2051 = vpop.permute.xlu0 %2050
      %2052 = vrot.lane.b32.xlu0 %v1520, 67
      %v2053 = vpop.permute.xlu0 %2052
      %2054 = vrot.lane.b32.xlu0 %v1523, 67
      %v2055 = vpop.permute.xlu0 %2054
      %2056 = vrot.lane.b32.xlu0 %v1526, 67
      %v2057 = vpop.permute.xlu0 %2056
      %2058 = vrot.lane.b32.xlu0 %v1529, 67
      %v2059 = vpop.permute.xlu0 %2058
      %2060 = vrot.lane.b32.xlu0 %v1532, 67
      %v2061 = vpop.permute.xlu0 %2060
      %2062 = vrot.lane.b32.xlu0 %v1535, 67
      %v2063 = vpop.permute.xlu0 %2062
      %2064 = vrot.lane.b32.xlu0 %v1538, 67
      %v2065 = vpop.permute.xlu0 %2064
      %2066 = vrot.lane.b32.xlu0 %v1541, 67
      %v2067 = vpop.permute.xlu0 %2066
      %2068 = vrot.lane.b32.xlu0 %v1544, 67
      %v2069 = vpop.permute.xlu0 %2068
      %2070 = vrot.lane.b32.xlu0 %v1547, 67
      %v2071 = vpop.permute.xlu0 %2070
      %2072 = vrot.lane.b32.xlu0 %v1550, 67
      %v2073 = vpop.permute.xlu0 %2072
      %2074 = vrot.lane.b32.xlu0 %v1553, 67
      %v2075 = vpop.permute.xlu0 %2074
      %2076 = vrot.lane.b32.xlu0 %v1556, 67
      %v2077 = vpop.permute.xlu0 %2076
      %2078 = vrot.lane.b32.xlu0 %v1559, 67
      %v2079 = vpop.permute.xlu0 %2078
      %2080 = vrot.lane.b32.xlu0 %v1562, 67
      %v2081 = vpop.permute.xlu0 %2080
      %2082 = vrot.lane.b32.xlu0 %v1565, 67
      %v2083 = vpop.permute.xlu0 %2082
      %2084 = vrot.lane.b32.xlu0 %v1568, 67
      %v2085 = vpop.permute.xlu0 %2084
      %2086 = vrot.lane.b32.xlu0 %v1571, 67
      %v2087 = vpop.permute.xlu0 %2086
      %2088 = vrot.lane.b32.xlu0 %v1574, 67
      %v2089 = vpop.permute.xlu0 %2088
      %2090 = vrot.lane.b32.xlu0 %v1577, 67
      %v2091 = vpop.permute.xlu0 %2090
      %2092 = vrot.lane.b32.xlu0 %v1580, 67
      %v2093 = vpop.permute.xlu0 %2092
      %2094 = vrot.lane.b32.xlu0 %v1583, 67
      %v2095 = vpop.permute.xlu0 %2094
      %2096 = vrot.lane.b32.xlu0 %v1586, 67
      %v2097 = vpop.permute.xlu0 %2096
      %2098 = vrot.lane.b32.xlu0 %v1589, 67
      %v2099 = vpop.permute.xlu0 %2098
      %2100 = vrot.lane.b32.xlu0 %v1592, 67
      %v2101 = vpop.permute.xlu0 %2100
      %2102 = vrot.lane.b32.xlu0 %v1595, 67
      %v2103 = vpop.permute.xlu0 %2102
      %2104 = vrot.lane.b32.xlu0 %v1598, 67
      %v2105 = vpop.permute.xlu0 %2104
      %2106 = vrot.lane.b32.xlu0 %v1601, 67
      %v2107 = vpop.permute.xlu0 %2106
      %2108 = vrot.lane.b32.xlu0 %v1604, 67
      %v2109 = vpop.permute.xlu0 %2108
      %2110 = vrot.lane.b32.xlu0 %v1607, 67
      %v2111 = vpop.permute.xlu0 %2110
      %2112 = vrot.lane.b32.xlu0 %v1610, 67
      %v2113 = vpop.permute.xlu0 %2112
      %2114 = vrot.lane.b32.xlu0 %v1613, 67
      %v2115 = vpop.permute.xlu0 %2114
      %2116 = vrot.lane.b32.xlu0 %v1616, 67
      %v2117 = vpop.permute.xlu0 %2116
      %2118 = vrot.lane.b32.xlu0 %v1619, 67
      %v2119 = vpop.permute.xlu0 %2118
      %2120 = vrot.lane.b32.xlu0 %v1622, 67
      %v2121 = vpop.permute.xlu0 %2120
      %2122 = vrot.lane.b32.xlu0 %v1625, 67
      %v2123 = vpop.permute.xlu0 %2122
      %2124 = vrot.lane.b32.xlu0 %v1628, 67
      %v2125 = vpop.permute.xlu0 %2124
      %2126 = vrot.lane.b32.xlu0 %v1631, 67
      %v2127 = vpop.permute.xlu0 %2126
      %2128 = vrot.lane.b32.xlu0 %v1634, 67
      %v2129 = vpop.permute.xlu0 %2128
      %2130 = vrot.lane.b32.xlu0 %v1637, 67
      %v2131 = vpop.permute.xlu0 %2130
      %2132 = vrot.lane.b32.xlu0 %v1640, 67
      %v2133 = vpop.permute.xlu0 %2132
      %2134 = vrot.lane.b32.xlu0 %v1643, 67
      %v2135 = vpop.permute.xlu0 %2134
      %2136 = vrot.lane.b32.xlu0 %v1646, 67
      %v2137 = vpop.permute.xlu0 %2136
      %2138 = vrot.lane.b32.xlu0 %v1649, 67
      %v2139 = vpop.permute.xlu0 %2138
      %2140 = vrot.lane.b32.xlu0 %v1652, 67
      %v2141 = vpop.permute.xlu0 %2140
      %2142 = vrot.lane.b32.xlu0 %v1655, 67
      %v2143 = vpop.permute.xlu0 %2142
      %2144 = vrot.lane.b32.xlu0 %v1658, 67
      %v2145 = vpop.permute.xlu0 %2144
      %2146 = vrot.lane.b32.xlu0 %v1661, 67
      %v2147 = vpop.permute.xlu0 %2146
      %2148 = vrot.lane.b32.xlu0 %v1664, 67
      %v2149 = vpop.permute.xlu0 %2148
      %2150 = vrot.lane.b32.xlu0 %v1667, 67
      %v2151 = vpop.permute.xlu0 %2150
      %2152 = vrot.lane.b32.xlu0 %v1670, 67
      %v2153 = vpop.permute.xlu0 %2152
      %2154 = vrot.lane.b32.xlu0 %v1673, 67
      %v2155 = vpop.permute.xlu0 %2154
      %2156 = vrot.lane.b32.xlu0 %v1676, 67
      %v2157 = vpop.permute.xlu0 %2156
      %2158 = vrot.lane.b32.xlu0 %v1679, 67
      %v2159 = vpop.permute.xlu0 %2158
      %2160 = vrot.lane.b32.xlu0 %v1682, 67
      %v2161 = vpop.permute.xlu0 %2160
      %2162 = vrot.lane.b32.xlu0 %v1685, 67
      %v2163 = vpop.permute.xlu0 %2162
      %2164 = vrot.lane.b32.xlu0 %v1688, 67
      %v2165 = vpop.permute.xlu0 %2164
      %2166 = vrot.lane.b32.xlu0 %v1691, 67
      %v2167 = vpop.permute.xlu0 %2166
      %2168 = vrot.lane.b32.xlu0 %v1694, 67
      %v2169 = vpop.permute.xlu0 %2168
      %2170 = vrot.lane.b32.xlu0 %v1697, 67
      %v2171 = vpop.permute.xlu0 %2170
      %2172 = vrot.lane.b32.xlu0 %v1700, 67
      %v2173 = vpop.permute.xlu0 %2172
      %2174 = vrot.lane.b32.xlu0 %v1703, 67
      %v2175 = vpop.permute.xlu0 %2174
      %2176 = vrot.lane.b32.xlu0 %v1706, 67
      %v2177 = vpop.permute.xlu0 %2176
      %2178 = vrot.lane.b32.xlu0 %v1709, 67
      %v2179 = vpop.permute.xlu0 %2178
      %2180 = vrot.lane.b32.xlu0 %v1712, 67
      %v2181 = vpop.permute.xlu0 %2180
      %2182 = vrot.lane.b32.xlu0 %v1715, 67
      %v2183 = vpop.permute.xlu0 %2182
      %2184 = vrot.lane.b32.xlu0 %v1718, 67
      %v2185 = vpop.permute.xlu0 %2184
      %2186 = vrot.lane.b32.xlu0 %v1721, 67
      %v2187 = vpop.permute.xlu0 %2186
      %2188 = vrot.lane.b32.xlu0 %v1724, 67
      %v2189 = vpop.permute.xlu0 %2188
      %2190 = vrot.lane.b32.xlu0 %v1727, 67
      %v2191 = vpop.permute.xlu0 %2190
      %2192 = vrot.lane.b32.xlu0 %v1730, 67
      %v2193 = vpop.permute.xlu0 %2192
      %2194 = vrot.lane.b32.xlu0 %v1733, 67
      %v2195 = vpop.permute.xlu0 %2194
      %2196 = vrot.lane.b32.xlu0 %v1736, 67
      %v2197 = vpop.permute.xlu0 %2196
      %2198 = vrot.lane.b32.xlu0 %v1739, 67
      %v2199 = vpop.permute.xlu0 %2198
      %2200 = vrot.lane.b32.xlu0 %v1742, 67
      %v2201 = vpop.permute.xlu0 %2200
      %2202 = vrot.lane.b32.xlu0 %v1745, 67
      %v2203 = vpop.permute.xlu0 %2202
      %2204 = vrot.lane.b32.xlu0 %v1748, 67
      %v2205 = vpop.permute.xlu0 %2204
      %2206 = vrot.lane.b32.xlu0 %v1751, 67
      %v2207 = vpop.permute.xlu0 %2206
      %2208 = vrot.lane.b32.xlu0 %v1754, 67
      %v2209 = vpop.permute.xlu0 %2208
      %2210 = vrot.lane.b32.xlu0 %v1757, 67
      %v2211 = vpop.permute.xlu0 %2210
      %2212 = vrot.lane.b32.xlu0 %v1760, 67
      %v2213 = vpop.permute.xlu0 %2212
      %2214 = vrot.lane.b32.xlu0 %v1763, 67
      %v2215 = vpop.permute.xlu0 %2214
      %2216 = vrot.lane.b32.xlu0 %v1766, 67
      %v2217 = vpop.permute.xlu0 %2216
      %2218 = vrot.lane.b32.xlu0 %v1769, 67
      %v2219 = vpop.permute.xlu0 %2218
      %2220 = vrot.lane.b32.xlu0 %v1772, 67
      %v2221 = vpop.permute.xlu0 %2220
      %2222 = vrot.lane.b32.xlu0 %v1775, 67
      %v2223 = vpop.permute.xlu0 %2222
      %2224 = vrot.lane.b32.xlu0 %v1778, 67
      %v2225 = vpop.permute.xlu0 %2224
      %2226 = vrot.lane.b32.xlu0 %v1781, 67
      %v2227 = vpop.permute.xlu0 %2226
      %2228 = vrot.lane.b32.xlu0 %v1784, 67
      %v2229 = vpop.permute.xlu0 %2228
      %2230 = vrot.lane.b32.xlu0 %v1787, 67
      %v2231 = vpop.permute.xlu0 %2230
      %2232 = vrot.lane.b32.xlu0 %v1790, 67
      %v2233 = vpop.permute.xlu0 %2232
      %2234 = vrot.lane.b32.xlu0 %v1793, 67
      %v2235 = vpop.permute.xlu0 %2234
      %2236 = vrot.lane.b32.xlu0 %v1796, 67
      %v2237 = vpop.permute.xlu0 %2236
      %2238 = vrot.lane.b32.xlu0 %v1799, 67
      %v2239 = vpop.permute.xlu0 %2238
      %2240 = vrot.lane.b32.xlu0 %v1802, 67
      %v2241 = vpop.permute.xlu0 %2240
      %2242 = vrot.lane.b32.xlu0 %v1335, 67
      %v2243 = vpop.permute.xlu0 %2242
      %2244 = vrot.lane.b32.xlu0 %v1336, 67
      %v2245 = vpop.permute.xlu0 %2244
      %2246 = vrot.lane.b32.xlu0 %v1337, 67
      %v2247 = vpop.permute.xlu0 %2246
      %2248 = vrot.lane.b32.xlu0 %v1338, 67
      %v2249 = vpop.permute.xlu0 %2248
      %2250 = vrot.lane.b32.xlu0 %v1339, 67
      %v2251 = vpop.permute.xlu0 %2250
      %2252 = vrot.lane.b32.xlu0 %v1340, 67
      %v2253 = vpop.permute.xlu0 %2252
      %2254 = vrot.lane.b32.xlu0 %v1341, 67
      %v2255 = vpop.permute.xlu0 %2254
      %2256 = vrot.lane.b32.xlu0 %v1342, 67
      %v2257 = vpop.permute.xlu0 %2256
      %2258 = vrot.lane.b32.xlu0 %v1343, 67
      %v2259 = vpop.permute.xlu0 %2258
      %2260 = vrot.lane.b32.xlu0 %v1344, 67
      %v2261 = vpop.permute.xlu0 %2260
      %2262 = vrot.lane.b32.xlu0 %v1345, 67
      %v2263 = vpop.permute.xlu0 %2262
      %2264 = vrot.lane.b32.xlu0 %v1346, 67
      %v2265 = vpop.permute.xlu0 %2264
      %2266 = vrot.lane.b32.xlu0 %v1347, 67
      %v2267 = vpop.permute.xlu0 %2266
      %2268 = vrot.lane.b32.xlu0 %v1348, 67
      %v2269 = vpop.permute.xlu0 %2268
      %2270 = vrot.lane.b32.xlu0 %v1349, 67
      %v2271 = vpop.permute.xlu0 %2270
      %2272 = vrot.lane.b32.xlu0 %v1350, 67
      %v2273 = vpop.permute.xlu0 %2272
      %2274 = vrot.lane.b32.xlu0 %v1351, 67
      %v2275 = vpop.permute.xlu0 %2274
      %2276 = vrot.lane.b32.xlu0 %v1352, 67
      %v2277 = vpop.permute.xlu0 %2276
      %2278 = vrot.lane.b32.xlu0 %v1353, 67
      %v2279 = vpop.permute.xlu0 %2278
      %2280 = vrot.lane.b32.xlu0 %v1354, 67
      %v2281 = vpop.permute.xlu0 %2280
      %2282 = vrot.lane.b32.xlu0 %v1355, 67
      %v2283 = vpop.permute.xlu0 %2282
      %2284 = vrot.lane.b32.xlu0 %v1356, 67
      %v2285 = vpop.permute.xlu0 %2284
      %2286 = vrot.lane.b32.xlu0 %v1357, 67
      %v2287 = vpop.permute.xlu0 %2286
      %2288 = vrot.lane.b32.xlu0 %v1358, 67
      %v2289 = vpop.permute.xlu0 %2288
      %2290 = vrot.lane.b32.xlu0 %v1359, 67
      %v2291 = vpop.permute.xlu0 %2290
      %2292 = vrot.lane.b32.xlu0 %v1360, 67
      %v2293 = vpop.permute.xlu0 %2292
      %2294 = vrot.lane.b32.xlu0 %v1361, 67
      %v2295 = vpop.permute.xlu0 %2294
      %2296 = vrot.lane.b32.xlu0 %v1362, 67
      %v2297 = vpop.permute.xlu0 %2296
      %2298 = vrot.lane.b32.xlu0 %v1363, 67
      %v2299 = vpop.permute.xlu0 %2298
      %2300 = vrot.lane.b32.xlu0 %v1364, 67
      %v2301 = vpop.permute.xlu0 %2300
      %2302 = vrot.lane.b32.xlu0 %v1365, 67
      %v2303 = vpop.permute.xlu0 %2302
      %2304 = vrot.lane.b32.xlu0 %v1366, 67
      %v2305 = vpop.permute.xlu0 %2304
      %2306 = vrot.lane.b32.xlu0 %v1367, 67
      %v2307 = vpop.permute.xlu0 %2306
      %2308 = vrot.lane.b32.xlu0 %v1368, 67
      %v2309 = vpop.permute.xlu0 %2308
      %2310 = vrot.lane.b32.xlu0 %v1369, 67
      %v2311 = vpop.permute.xlu0 %2310
      %2312 = vrot.lane.b32.xlu0 %v1333, 67
      %v2313 = vpop.permute.xlu0 %2312
      %vm2314 = vcmask 547840
      %v2315 = vsel %vm2314, %v1955, %v1957
      %v2316 = vsel %vm2314, %v1957, %v1959
      %v2317 = vsel %vm2314, %v1959, %v1961
      %v2318 = vsel %vm2314, %v1961, %v1963
      %v2319 = vsel %vm2314, %v1963, %v1965
      %v2320 = vsel %vm2314, %v1965, %v1967
      %v2321 = vsel %vm2314, %v1967, %v1969
      %v2322 = vsel %vm2314, %v1969, %v1971
      %v2323 = vsel %vm2314, %v1971, %v1973
      %v2324 = vsel %vm2314, %v1973, %v1975
      %v2325 = vsel %vm2314, %v1975, %v1977
      %v2326 = vsel %vm2314, %v1977, %v1979
      %v2327 = vsel %vm2314, %v1979, %v1981
      %v2328 = vsel %vm2314, %v1981, %v1983
      %v2329 = vsel %vm2314, %v1983, %v1985
      %v2330 = vsel %vm2314, %v1985, %v1987
      %v2331 = vsel %vm2314, %v1987, %v1989
      %v2332 = vsel %vm2314, %v1989, %v1991
      %v2333 = vsel %vm2314, %v1991, %v1993
      %v2334 = vsel %vm2314, %v1993, %v1995
      %v2335 = vsel %vm2314, %v1995, %v1997
      %v2336 = vsel %vm2314, %v1997, %v1999
      %v2337 = vsel %vm2314, %v1999, %v2001
      %v2338 = vsel %vm2314, %v2001, %v2003
      %v2339 = vsel %vm2314, %v2003, %v2005
      %v2340 = vsel %vm2314, %v2005, %v2007
      %v2341 = vsel %vm2314, %v2007, %v2009
      %v2342 = vsel %vm2314, %v2009, %v2011
      %v2343 = vsel %vm2314, %v2011, %v2013
      %v2344 = vsel %vm2314, %v2013, %v2015
      %v2345 = vsel %vm2314, %v2015, %v2017
      %v2346 = vsel %vm2314, %v2017, %v2019
      %v2347 = vsel %vm2314, %v2019, %v2021
      %v2348 = vsel %vm2314, %v2021, %v2023
      %v2349 = vsel %vm2314, %v2023, %v2025
      %v2350 = vsel %vm2314, %v2027, %v2029
      %v2351 = vsel %vm2314, %v2029, %v2031
      %v2352 = vsel %vm2314, %v2031, %v2033
      %v2353 = vsel %vm2314, %v2033, %v2035
      %v2354 = vsel %vm2314, %v2035, %v2037
      %v2355 = vsel %vm2314, %v2037, %v2039
      %v2356 = vsel %vm2314, %v2039, %v2041
      %v2357 = vsel %vm2314, %v2041, %v2043
      %v2358 = vsel %vm2314, %v2043, %v2045
      %v2359 = vsel %vm2314, %v2045, %v2047
      %v2360 = vsel %vm2314, %v2047, %v2049
      %v2361 = vsel %vm2314, %v2049, %v2051
      %v2362 = vsel %vm2314, %v2051, %v2053
      %v2363 = vsel %vm2314, %v2053, %v2055
      %v2364 = vsel %vm2314, %v2055, %v2057
      %v2365 = vsel %vm2314, %v2057, %v2059
      %v2366 = vsel %vm2314, %v2059, %v2061
      %v2367 = vsel %vm2314, %v2061, %v2063
      %v2368 = vsel %vm2314, %v2063, %v2065
      %v2369 = vsel %vm2314, %v2065, %v2067
      %v2370 = vsel %vm2314, %v2067, %v2069
      %v2371 = vsel %vm2314, %v2069, %v2071
      %v2372 = vsel %vm2314, %v2071, %v2073
      %v2373 = vsel %vm2314, %v2073, %v2075
      %v2374 = vsel %vm2314, %v2075, %v2077
      %v2375 = vsel %vm2314, %v2077, %v2079
      %v2376 = vsel %vm2314, %v2079, %v2081
      %v2377 = vsel %vm2314, %v2081, %v2083
      %v2378 = vsel %vm2314, %v2083, %v2085
      %v2379 = vsel %vm2314, %v2085, %v2087
      %v2380 = vsel %vm2314, %v2087, %v2089
      %v2381 = vsel %vm2314, %v2089, %v2091
      %v2382 = vsel %vm2314, %v2091, %v2093
      %v2383 = vsel %vm2314, %v2093, %v2095
      %v2384 = vsel %vm2314, %v2095, %v2097
      %v2385 = vsel %vm2314, %v2099, %v2101
      %v2386 = vsel %vm2314, %v2101, %v2103
      %v2387 = vsel %vm2314, %v2103, %v2105
      %v2388 = vsel %vm2314, %v2105, %v2107
      %v2389 = vsel %vm2314, %v2107, %v2109
      %v2390 = vsel %vm2314, %v2109, %v2111
      %v2391 = vsel %vm2314, %v2111, %v2113
      %v2392 = vsel %vm2314, %v2113, %v2115
      %v2393 = vsel %vm2314, %v2115, %v2117
      %v2394 = vsel %vm2314, %v2117, %v2119
      %v2395 = vsel %vm2314, %v2119, %v2121
      %v2396 = vsel %vm2314, %v2121, %v2123
      %v2397 = vsel %vm2314, %v2123, %v2125
      %v2398 = vsel %vm2314, %v2125, %v2127
      %v2399 = vsel %vm2314, %v2127, %v2129
      %v2400 = vsel %vm2314, %v2129, %v2131
      %v2401 = vsel %vm2314, %v2131, %v2133
      %v2402 = vsel %vm2314, %v2133, %v2135
      %v2403 = vsel %vm2314, %v2135, %v2137
      %v2404 = vsel %vm2314, %v2137, %v2139
      %v2405 = vsel %vm2314, %v2139, %v2141
      %v2406 = vsel %vm2314, %v2141, %v2143
      %v2407 = vsel %vm2314, %v2143, %v2145
      %v2408 = vsel %vm2314, %v2145, %v2147
      %v2409 = vsel %vm2314, %v2147, %v2149
      %v2410 = vsel %vm2314, %v2149, %v2151
      %v2411 = vsel %vm2314, %v2151, %v2153
      %v2412 = vsel %vm2314, %v2153, %v2155
      %v2413 = vsel %vm2314, %v2155, %v2157
      %v2414 = vsel %vm2314, %v2157, %v2159
      %v2415 = vsel %vm2314, %v2159, %v2161
      %v2416 = vsel %vm2314, %v2161, %v2163
      %v2417 = vsel %vm2314, %v2163, %v2165
      %v2418 = vsel %vm2314, %v2165, %v2167
      %v2419 = vsel %vm2314, %v2167, %v2169
      %v2420 = vsel %vm2314, %v2171, %v2173
      %v2421 = vsel %vm2314, %v2173, %v2175
      %v2422 = vsel %vm2314, %v2175, %v2177
      %v2423 = vsel %vm2314, %v2177, %v2179
      %v2424 = vsel %vm2314, %v2179, %v2181
      %v2425 = vsel %vm2314, %v2181, %v2183
      %v2426 = vsel %vm2314, %v2183, %v2185
      %v2427 = vsel %vm2314, %v2185, %v2187
      %v2428 = vsel %vm2314, %v2187, %v2189
      %v2429 = vsel %vm2314, %v2189, %v2191
      %v2430 = vsel %vm2314, %v2191, %v2193
      %v2431 = vsel %vm2314, %v2193, %v2195
      %v2432 = vsel %vm2314, %v2195, %v2197
      %v2433 = vsel %vm2314, %v2197, %v2199
      %v2434 = vsel %vm2314, %v2199, %v2201
      %v2435 = vsel %vm2314, %v2201, %v2203
      %v2436 = vsel %vm2314, %v2203, %v2205
      %v2437 = vsel %vm2314, %v2205, %v2207
      %v2438 = vsel %vm2314, %v2207, %v2209
      %v2439 = vsel %vm2314, %v2209, %v2211
      %v2440 = vsel %vm2314, %v2211, %v2213
      %v2441 = vsel %vm2314, %v2213, %v2215
      %v2442 = vsel %vm2314, %v2215, %v2217
      %v2443 = vsel %vm2314, %v2217, %v2219
      %v2444 = vsel %vm2314, %v2219, %v2221
      %v2445 = vsel %vm2314, %v2221, %v2223
      %v2446 = vsel %vm2314, %v2223, %v2225
      %v2447 = vsel %vm2314, %v2225, %v2227
      %v2448 = vsel %vm2314, %v2227, %v2229
      %v2449 = vsel %vm2314, %v2229, %v2231
      %v2450 = vsel %vm2314, %v2231, %v2233
      %v2451 = vsel %vm2314, %v2233, %v2235
      %v2452 = vsel %vm2314, %v2235, %v2237
      %v2453 = vsel %vm2314, %v2237, %v2239
      %v2454 = vsel %vm2314, %v2239, %v2241
      %v2455 = vsel %vm2314, %v2243, %v2245
      %v2456 = vsel %vm2314, %v2245, %v2247
      %v2457 = vsel %vm2314, %v2247, %v2249
      %v2458 = vsel %vm2314, %v2249, %v2251
      %v2459 = vsel %vm2314, %v2251, %v2253
      %v2460 = vsel %vm2314, %v2253, %v2255
      %v2461 = vsel %vm2314, %v2255, %v2257
      %v2462 = vsel %vm2314, %v2257, %v2259
      %v2463 = vsel %vm2314, %v2259, %v2261
      %v2464 = vsel %vm2314, %v2261, %v2263
      %v2465 = vsel %vm2314, %v2263, %v2265
      %v2466 = vsel %vm2314, %v2265, %v2267
      %v2467 = vsel %vm2314, %v2267, %v2269
      %v2468 = vsel %vm2314, %v2269, %v2271
      %v2469 = vsel %vm2314, %v2271, %v2273
      %v2470 = vsel %vm2314, %v2273, %v2275
      %v2471 = vsel %vm2314, %v2275, %v2277
      %v2472 = vsel %vm2314, %v2277, %v2279
      %v2473 = vsel %vm2314, %v2279, %v2281
      %v2474 = vsel %vm2314, %v2281, %v2283
      %v2475 = vsel %vm2314, %v2283, %v2285
      %v2476 = vsel %vm2314, %v2285, %v2287
      %v2477 = vsel %vm2314, %v2287, %v2289
      %v2478 = vsel %vm2314, %v2289, %v2291
      %v2479 = vsel %vm2314, %v2291, %v2293
      %v2480 = vsel %vm2314, %v2293, %v2295
      %v2481 = vsel %vm2314, %v2295, %v2297
      %v2482 = vsel %vm2314, %v2297, %v2299
      %v2483 = vsel %vm2314, %v2299, %v2301
      %v2484 = vsel %vm2314, %v2301, %v2303
      %v2485 = vsel %vm2314, %v2303, %v2305
      %v2486 = vsel %vm2314, %v2305, %v2307
      %v2487 = vsel %vm2314, %v2307, %v2309
      %v2488 = vsel %vm2314, %v2309, %v2311
      %v2489 = vsel %vm2314, %v2311, %v2313
      %vm2630 = vcmask 588800
      %v2632 = vsel %vm2630, %v1803, 0
      %v2635 = vsel %vm1370, %v2455, 0
      %v2638 = vsel %vm1370, %v2456, 0
      %v2641 = vsel %vm1370, %v2457, 0
      %v2644 = vsel %vm1370, %v2458, 0
      %v2647 = vsel %vm1370, %v2459, 0
      %v2650 = vsel %vm1370, %v2460, 0
      %v2653 = vsel %vm1370, %v2461, 0
      %v2656 = vsel %vm1370, %v2462, 0
      %v2659 = vsel %vm1370, %v2463, 0
      %v2662 = vsel %vm1370, %v2464, 0
      %v2665 = vsel %vm1370, %v2465, 0
      %v2668 = vsel %vm1370, %v2466, 0
      %v2671 = vsel %vm1370, %v2467, 0
      %v2674 = vsel %vm1370, %v2468, 0
      %v2677 = vsel %vm1370, %v2469, 0
      %v2680 = vsel %vm1370, %v2470, 0
      %v2683 = vsel %vm1370, %v2471, 0
      %v2686 = vsel %vm1370, %v2472, 0
      %v2689 = vsel %vm1370, %v2473, 0
      %v2692 = vsel %vm1370, %v2474, 0
      %v2695 = vsel %vm1370, %v2475, 0
      %v2698 = vsel %vm1370, %v2476, 0
      %v2701 = vsel %vm1370, %v2477, 0
      %v2704 = vsel %vm1370, %v2478, 0
      %v2707 = vsel %vm1370, %v2479, 0
      %v2710 = vsel %vm1370, %v2480, 0
      %v2713 = vsel %vm1370, %v2481, 0
      %v2716 = vsel %vm1370, %v2482, 0
      %v2719 = vsel %vm1370, %v2483, 0
      %v2722 = vsel %vm1370, %v2484, 0
      %v2725 = vsel %vm1370, %v2485, 0
      %v2728 = vsel %vm1370, %v2486, 0
      %v2731 = vsel %vm1370, %v2487, 0
      %v2734 = vsel %vm1370, %v2488, 0
      %v2737 = vsel %vm1370, %v2489, 0
      %2739 = vmatpush.bf16.msra.mxu0 0
      %2740 = vmatpush.bf16.msra.mxu0 0
      %2741 = vmatpush.bf16.msra.mxu0 0
      %2742 = vmatpush.bf16.msra.mxu0 %v2635
      %2743 = vmatpush.bf16.msra.mxu0 %v2420
      %2744 = vmatpush.bf16.msra.mxu0 %v2385
      %2745 = vmatpush.bf16.msra.mxu0 %v2350
      %2746 = vmatpush.bf16.msra.mxu0 %v2315
      %2747 = vmatmul.bf16.gmra.mxu0 %v2632
      %v2748 = vpop.f32.mrf.mxu0
      %v2749 = vadd.f32 %v1808, %v2748
      %v2750 = vpop.f32.mrf.mxu0
      %2751 = vdwg.mxu0
      %2752 = vmatpush.bf16.msra.mxu0 0
      %2753 = vmatpush.bf16.msra.mxu0 0
      %2754 = vmatpush.bf16.msra.mxu0 0
      %2755 = vmatpush.bf16.msra.mxu0 %v2638
      %2756 = vmatpush.bf16.msra.mxu0 %v2421
      %2757 = vmatpush.bf16.msra.mxu0 %v2386
      %2758 = vmatpush.bf16.msra.mxu0 %v2351
      %2759 = vmatpush.bf16.msra.mxu0 %v2316
      %2760 = vmatmul.bf16.gmra.mxu0 %v2632
      %v2761 = vpop.f32.mrf.mxu0
      %v2762 = vadd.f32 %v1808, %v2761
      %v2763 = vpop.f32.mrf.mxu0
      %2764 = vdwg.mxu0
      %2765 = vmatpush.bf16.msra.mxu0 0
      %2766 = vmatpush.bf16.msra.mxu0 0
      %2767 = vmatpush.bf16.msra.mxu0 0
      %2768 = vmatpush.bf16.msra.mxu0 %v2641
      %2769 = vmatpush.bf16.msra.mxu0 %v2422
      %2770 = vmatpush.bf16.msra.mxu0 %v2387
      %2771 = vmatpush.bf16.msra.mxu0 %v2352
      %2772 = vmatpush.bf16.msra.mxu0 %v2317
      %2773 = vmatmul.bf16.gmra.mxu0 %v2632
      %v2774 = vpop.f32.mrf.mxu0
      %v2775 = vadd.f32 %v1808, %v2774
      %v2776 = vpop.f32.mrf.mxu0
      %2777 = vdwg.mxu0
      %2778 = vmatpush.bf16.msra.mxu0 0
      %2779 = vmatpush.bf16.msra.mxu0 0
      %2780 = vmatpush.bf16.msra.mxu0 0
      %2781 = vmatpush.bf16.msra.mxu0 %v2644
      %2782 = vmatpush.bf16.msra.mxu0 %v2423
      %2783 = vmatpush.bf16.msra.mxu0 %v2388
      %2784 = vmatpush.bf16.msra.mxu0 %v2353
      %2785 = vmatpush.bf16.msra.mxu0 %v2318
      %2786 = vmatmul.bf16.gmra.mxu0 %v2632
      %v2787 = vpop.f32.mrf.mxu0
      %v2788 = vadd.f32 %v1808, %v2787
      %v2789 = vpop.f32.mrf.mxu0
      %2790 = vdwg.mxu0
      %2791 = vmatpush.bf16.msra.mxu0 0
      %2792 = vmatpush.bf16.msra.mxu0 0
      %2793 = vmatpush.bf16.msra.mxu0 0
      %2794 = vmatpush.bf16.msra.mxu0 %v2647
      %2795 = vmatpush.bf16.msra.mxu0 %v2424
      %2796 = vmatpush.bf16.msra.mxu0 %v2389
      %2797 = vmatpush.bf16.msra.mxu0 %v2354
      %2798 = vmatpush.bf16.msra.mxu0 %v2319
      %2799 = vmatmul.bf16.gmra.mxu0 %v2632
      %v2800 = vpop.f32.mrf.mxu0
      %v2801 = vadd.f32 %v1808, %v2800
      %v2802 = vpop.f32.mrf.mxu0
      %2803 = vdwg.mxu0
      %2804 = vmatpush.bf16.msra.mxu0 0
      %2805 = vmatpush.bf16.msra.mxu0 0
      %2806 = vmatpush.bf16.msra.mxu0 0
      %2807 = vmatpush.bf16.msra.mxu0 %v2650
      %2808 = vmatpush.bf16.msra.mxu0 %v2425
      %2809 = vmatpush.bf16.msra.mxu0 %v2390
      %2810 = vmatpush.bf16.msra.mxu0 %v2355
      %2811 = vmatpush.bf16.msra.mxu0 %v2320
      %2812 = vmatmul.bf16.gmra.mxu0 %v2632
      %v2813 = vpop.f32.mrf.mxu0
      %v2814 = vadd.f32 %v1808, %v2813
      %v2815 = vpop.f32.mrf.mxu0
      %2816 = vdwg.mxu0
      %2817 = vmatpush.bf16.msra.mxu0 0
      %2818 = vmatpush.bf16.msra.mxu0 0
      %2819 = vmatpush.bf16.msra.mxu0 0
      %2820 = vmatpush.bf16.msra.mxu0 %v2653
      %2821 = vmatpush.bf16.msra.mxu0 %v2426
      %2822 = vmatpush.bf16.msra.mxu0 %v2391
      %2823 = vmatpush.bf16.msra.mxu0 %v2356
      %2824 = vmatpush.bf16.msra.mxu0 %v2321
      %2825 = vmatmul.bf16.gmra.mxu0 %v2632
      %v2826 = vpop.f32.mrf.mxu0
      %v2827 = vadd.f32 %v1808, %v2826
      %v2828 = vpop.f32.mrf.mxu0
      %2829 = vdwg.mxu0
      %2830 = vmatpush.bf16.msra.mxu0 0
      %2831 = vmatpush.bf16.msra.mxu0 0
      %2832 = vmatpush.bf16.msra.mxu0 0
      %2833 = vmatpush.bf16.msra.mxu0 %v2656
      %2834 = vmatpush.bf16.msra.mxu0 %v2427
      %2835 = vmatpush.bf16.msra.mxu0 %v2392
      %2836 = vmatpush.bf16.msra.mxu0 %v2357
      %2837 = vmatpush.bf16.msra.mxu0 %v2322
      %2838 = vmatmul.bf16.gmra.mxu0 %v2632
      %v2839 = vpop.f32.mrf.mxu0
      %v2840 = vadd.f32 %v1808, %v2839
      %v2841 = vpop.f32.mrf.mxu0
      %2842 = vdwg.mxu0
      %2843 = vmatpush.bf16.msra.mxu0 0
      %2844 = vmatpush.bf16.msra.mxu0 0
      %2845 = vmatpush.bf16.msra.mxu0 0
      %2846 = vmatpush.bf16.msra.mxu0 %v2659
      %2847 = vmatpush.bf16.msra.mxu0 %v2428
      %2848 = vmatpush.bf16.msra.mxu0 %v2393
      %2849 = vmatpush.bf16.msra.mxu0 %v2358
      %2850 = vmatpush.bf16.msra.mxu0 %v2323
      %2851 = vmatmul.bf16.gmra.mxu0 %v2632
      %v2852 = vpop.f32.mrf.mxu0
      %v2853 = vadd.f32 %v1808, %v2852
      %v2854 = vpop.f32.mrf.mxu0
      %2855 = vdwg.mxu0
      %2856 = vmatpush.bf16.msra.mxu0 0
      %2857 = vmatpush.bf16.msra.mxu0 0
      %2858 = vmatpush.bf16.msra.mxu0 0
      %2859 = vmatpush.bf16.msra.mxu0 %v2662
      %2860 = vmatpush.bf16.msra.mxu0 %v2429
      %2861 = vmatpush.bf16.msra.mxu0 %v2394
      %2862 = vmatpush.bf16.msra.mxu0 %v2359
      %2863 = vmatpush.bf16.msra.mxu0 %v2324
      %2864 = vmatmul.bf16.gmra.mxu0 %v2632
      %v2865 = vpop.f32.mrf.mxu0
      %v2866 = vadd.f32 %v1808, %v2865
      %v2867 = vpop.f32.mrf.mxu0
      %2868 = vdwg.mxu0
      %2869 = vmatpush.bf16.msra.mxu0 0
      %2870 = vmatpush.bf16.msra.mxu0 0
      %2871 = vmatpush.bf16.msra.mxu0 0
      %2872 = vmatpush.bf16.msra.mxu0 %v2665
      %2873 = vmatpush.bf16.msra.mxu0 %v2430
      %2874 = vmatpush.bf16.msra.mxu0 %v2395
      %2875 = vmatpush.bf16.msra.mxu0 %v2360
      %2876 = vmatpush.bf16.msra.mxu0 %v2325
      %2877 = vmatmul.bf16.gmra.mxu0 %v2632
      %v2878 = vpop.f32.mrf.mxu0
      %v2879 = vadd.f32 %v1808, %v2878
      %v2880 = vpop.f32.mrf.mxu0
      %2881 = vdwg.mxu0
      %2882 = vmatpush.bf16.msra.mxu0 0
      %2883 = vmatpush.bf16.msra.mxu0 0
      %2884 = vmatpush.bf16.msra.mxu0 0
      %2885 = vmatpush.bf16.msra.mxu0 %v2668
      %2886 = vmatpush.bf16.msra.mxu0 %v2431
      %2887 = vmatpush.bf16.msra.mxu0 %v2396
      %2888 = vmatpush.bf16.msra.mxu0 %v2361
      %2889 = vmatpush.bf16.msra.mxu0 %v2326
      %2890 = vmatmul.bf16.gmra.mxu0 %v2632
      %v2891 = vpop.f32.mrf.mxu0
      %v2892 = vadd.f32 %v1808, %v2891
      %v2893 = vpop.f32.mrf.mxu0
      %2894 = vdwg.mxu0
      %2895 = vmatpush.bf16.msra.mxu0 0
      %2896 = vmatpush.bf16.msra.mxu0 0
      %2897 = vmatpush.bf16.msra.mxu0 0
      %2898 = vmatpush.bf16.msra.mxu0 %v2671
      %2899 = vmatpush.bf16.msra.mxu0 %v2432
      %2900 = vmatpush.bf16.msra.mxu0 %v2397
      %2901 = vmatpush.bf16.msra.mxu0 %v2362
      %2902 = vmatpush.bf16.msra.mxu0 %v2327
      %2903 = vmatmul.bf16.gmra.mxu0 %v2632
      %v2904 = vpop.f32.mrf.mxu0
      %v2905 = vadd.f32 %v1808, %v2904
      %v2906 = vpop.f32.mrf.mxu0
      %2907 = vdwg.mxu0
      %2908 = vmatpush.bf16.msra.mxu0 0
      %2909 = vmatpush.bf16.msra.mxu0 0
      %2910 = vmatpush.bf16.msra.mxu0 0
      %2911 = vmatpush.bf16.msra.mxu0 %v2674
      %2912 = vmatpush.bf16.msra.mxu0 %v2433
      %2913 = vmatpush.bf16.msra.mxu0 %v2398
      %2914 = vmatpush.bf16.msra.mxu0 %v2363
      %2915 = vmatpush.bf16.msra.mxu0 %v2328
      %2916 = vmatmul.bf16.gmra.mxu0 %v2632
      %v2917 = vpop.f32.mrf.mxu0
      %v2918 = vadd.f32 %v1808, %v2917
      %v2919 = vpop.f32.mrf.mxu0
      %2920 = vdwg.mxu0
      %2921 = vmatpush.bf16.msra.mxu0 0
      %2922 = vmatpush.bf16.msra.mxu0 0
      %2923 = vmatpush.bf16.msra.mxu0 0
      %2924 = vmatpush.bf16.msra.mxu0 %v2677
      %2925 = vmatpush.bf16.msra.mxu0 %v2434
      %2926 = vmatpush.bf16.msra.mxu0 %v2399
      %2927 = vmatpush.bf16.msra.mxu0 %v2364
      %2928 = vmatpush.bf16.msra.mxu0 %v2329
      %2929 = vmatmul.bf16.gmra.mxu0 %v2632
      %v2930 = vpop.f32.mrf.mxu0
      %v2931 = vadd.f32 %v1808, %v2930
      %v2932 = vpop.f32.mrf.mxu0
      %2933 = vdwg.mxu0
      %2934 = vmatpush.bf16.msra.mxu0 0
      %2935 = vmatpush.bf16.msra.mxu0 0
      %2936 = vmatpush.bf16.msra.mxu0 0
      %2937 = vmatpush.bf16.msra.mxu0 %v2680
      %2938 = vmatpush.bf16.msra.mxu0 %v2435
      %2939 = vmatpush.bf16.msra.mxu0 %v2400
      %2940 = vmatpush.bf16.msra.mxu0 %v2365
      %2941 = vmatpush.bf16.msra.mxu0 %v2330
      %2942 = vmatmul.bf16.gmra.mxu0 %v2632
      %v2943 = vpop.f32.mrf.mxu0
      %v2944 = vadd.f32 %v1808, %v2943
      %v2945 = vpop.f32.mrf.mxu0
      %2946 = vdwg.mxu0
      %2947 = vmatpush.bf16.msra.mxu0 0
      %2948 = vmatpush.bf16.msra.mxu0 0
      %2949 = vmatpush.bf16.msra.mxu0 0
      %2950 = vmatpush.bf16.msra.mxu0 %v2683
      %2951 = vmatpush.bf16.msra.mxu0 %v2436
      %2952 = vmatpush.bf16.msra.mxu0 %v2401
      %2953 = vmatpush.bf16.msra.mxu0 %v2366
      %2954 = vmatpush.bf16.msra.mxu0 %v2331
      %2955 = vmatmul.bf16.gmra.mxu0 %v2632
      %v2956 = vpop.f32.mrf.mxu0
      %v2957 = vadd.f32 %v1808, %v2956
      %v2958 = vpop.f32.mrf.mxu0
      %2959 = vdwg.mxu0
      %2960 = vmatpush.bf16.msra.mxu0 0
      %2961 = vmatpush.bf16.msra.mxu0 0
      %2962 = vmatpush.bf16.msra.mxu0 0
      %2963 = vmatpush.bf16.msra.mxu0 %v2686
      %2964 = vmatpush.bf16.msra.mxu0 %v2437
      %2965 = vmatpush.bf16.msra.mxu0 %v2402
      %2966 = vmatpush.bf16.msra.mxu0 %v2367
      %2967 = vmatpush.bf16.msra.mxu0 %v2332
      %2968 = vmatmul.bf16.gmra.mxu0 %v2632
      %v2969 = vpop.f32.mrf.mxu0
      %v2970 = vadd.f32 %v1808, %v2969
      %v2971 = vpop.f32.mrf.mxu0
      %2972 = vdwg.mxu0
      %2973 = vmatpush.bf16.msra.mxu0 0
      %2974 = vmatpush.bf16.msra.mxu0 0
      %2975 = vmatpush.bf16.msra.mxu0 0
      %2976 = vmatpush.bf16.msra.mxu0 %v2689
      %2977 = vmatpush.bf16.msra.mxu0 %v2438
      %2978 = vmatpush.bf16.msra.mxu0 %v2403
      %2979 = vmatpush.bf16.msra.mxu0 %v2368
      %2980 = vmatpush.bf16.msra.mxu0 %v2333
      %2981 = vmatmul.bf16.gmra.mxu0 %v2632
      %v2982 = vpop.f32.mrf.mxu0
      %v2983 = vadd.f32 %v1808, %v2982
      %v2984 = vpop.f32.mrf.mxu0
      %2985 = vdwg.mxu0
      %2986 = vmatpush.bf16.msra.mxu0 0
      %2987 = vmatpush.bf16.msra.mxu0 0
      %2988 = vmatpush.bf16.msra.mxu0 0
      %2989 = vmatpush.bf16.msra.mxu0 %v2692
      %2990 = vmatpush.bf16.msra.mxu0 %v2439
      %2991 = vmatpush.bf16.msra.mxu0 %v2404
      %2992 = vmatpush.bf16.msra.mxu0 %v2369
      %2993 = vmatpush.bf16.msra.mxu0 %v2334
      %2994 = vmatmul.bf16.gmra.mxu0 %v2632
      %v2995 = vpop.f32.mrf.mxu0
      %v2996 = vadd.f32 %v1808, %v2995
      %v2997 = vpop.f32.mrf.mxu0
      %2998 = vdwg.mxu0
      %2999 = vmatpush.bf16.msra.mxu0 0
      %3000 = vmatpush.bf16.msra.mxu0 0
      %3001 = vmatpush.bf16.msra.mxu0 0
      %3002 = vmatpush.bf16.msra.mxu0 %v2695
      %3003 = vmatpush.bf16.msra.mxu0 %v2440
      %3004 = vmatpush.bf16.msra.mxu0 %v2405
      %3005 = vmatpush.bf16.msra.mxu0 %v2370
      %3006 = vmatpush.bf16.msra.mxu0 %v2335
      %3007 = vmatmul.bf16.gmra.mxu0 %v2632
      %v3008 = vpop.f32.mrf.mxu0
      %v3009 = vadd.f32 %v1808, %v3008
      %v3010 = vpop.f32.mrf.mxu0
      %3011 = vdwg.mxu0
      %3012 = vmatpush.bf16.msra.mxu0 0
      %3013 = vmatpush.bf16.msra.mxu0 0
      %3014 = vmatpush.bf16.msra.mxu0 0
      %3015 = vmatpush.bf16.msra.mxu0 %v2698
      %3016 = vmatpush.bf16.msra.mxu0 %v2441
      %3017 = vmatpush.bf16.msra.mxu0 %v2406
      %3018 = vmatpush.bf16.msra.mxu0 %v2371
      %3019 = vmatpush.bf16.msra.mxu0 %v2336
      %3020 = vmatmul.bf16.gmra.mxu0 %v2632
      %v3021 = vpop.f32.mrf.mxu0
      %v3022 = vadd.f32 %v1808, %v3021
      %v3023 = vpop.f32.mrf.mxu0
      %3024 = vdwg.mxu0
      %3025 = vmatpush.bf16.msra.mxu0 0
      %3026 = vmatpush.bf16.msra.mxu0 0
      %3027 = vmatpush.bf16.msra.mxu0 0
      %3028 = vmatpush.bf16.msra.mxu0 %v2701
      %3029 = vmatpush.bf16.msra.mxu0 %v2442
      %3030 = vmatpush.bf16.msra.mxu0 %v2407
      %3031 = vmatpush.bf16.msra.mxu0 %v2372
      %3032 = vmatpush.bf16.msra.mxu0 %v2337
      %3033 = vmatmul.bf16.gmra.mxu0 %v2632
      %v3034 = vpop.f32.mrf.mxu0
      %v3035 = vadd.f32 %v1808, %v3034
      %v3036 = vpop.f32.mrf.mxu0
      %3037 = vdwg.mxu0
      %3038 = vmatpush.bf16.msra.mxu0 0
      %3039 = vmatpush.bf16.msra.mxu0 0
      %3040 = vmatpush.bf16.msra.mxu0 0
      %3041 = vmatpush.bf16.msra.mxu0 %v2704
      %3042 = vmatpush.bf16.msra.mxu0 %v2443
      %3043 = vmatpush.bf16.msra.mxu0 %v2408
      %3044 = vmatpush.bf16.msra.mxu0 %v2373
      %3045 = vmatpush.bf16.msra.mxu0 %v2338
      %3046 = vmatmul.bf16.gmra.mxu0 %v2632
      %v3047 = vpop.f32.mrf.mxu0
      %v3048 = vadd.f32 %v1808, %v3047
      %v3049 = vpop.f32.mrf.mxu0
      %3050 = vdwg.mxu0
      %3051 = vmatpush.bf16.msra.mxu0 0
      %3052 = vmatpush.bf16.msra.mxu0 0
      %3053 = vmatpush.bf16.msra.mxu0 0
      %3054 = vmatpush.bf16.msra.mxu0 %v2707
      %3055 = vmatpush.bf16.msra.mxu0 %v2444
      %3056 = vmatpush.bf16.msra.mxu0 %v2409
      %3057 = vmatpush.bf16.msra.mxu0 %v2374
      %3058 = vmatpush.bf16.msra.mxu0 %v2339
      %3059 = vmatmul.bf16.gmra.mxu0 %v2632
      %v3060 = vpop.f32.mrf.mxu0
      %v3061 = vadd.f32 %v1808, %v3060
      %v3062 = vpop.f32.mrf.mxu0
      %3063 = vdwg.mxu0
      %3064 = vmatpush.bf16.msra.mxu0 0
      %3065 = vmatpush.bf16.msra.mxu0 0
      %3066 = vmatpush.bf16.msra.mxu0 0
      %3067 = vmatpush.bf16.msra.mxu0 %v2710
      %3068 = vmatpush.bf16.msra.mxu0 %v2445
      %3069 = vmatpush.bf16.msra.mxu0 %v2410
      %3070 = vmatpush.bf16.msra.mxu0 %v2375
      %3071 = vmatpush.bf16.msra.mxu0 %v2340
      %3072 = vmatmul.bf16.gmra.mxu0 %v2632
      %v3073 = vpop.f32.mrf.mxu0
      %v3074 = vadd.f32 %v1808, %v3073
      %v3075 = vpop.f32.mrf.mxu0
      %3076 = vdwg.mxu0
      %3077 = vmatpush.bf16.msra.mxu0 0
      %3078 = vmatpush.bf16.msra.mxu0 0
      %3079 = vmatpush.bf16.msra.mxu0 0
      %3080 = vmatpush.bf16.msra.mxu0 %v2713
      %3081 = vmatpush.bf16.msra.mxu0 %v2446
      %3082 = vmatpush.bf16.msra.mxu0 %v2411
      %3083 = vmatpush.bf16.msra.mxu0 %v2376
      %3084 = vmatpush.bf16.msra.mxu0 %v2341
      %3085 = vmatmul.bf16.gmra.mxu0 %v2632
      %v3086 = vpop.f32.mrf.mxu0
      %v3087 = vadd.f32 %v1808, %v3086
      %v3088 = vpop.f32.mrf.mxu0
      %3089 = vdwg.mxu0
      %3090 = vmatpush.bf16.msra.mxu0 0
      %3091 = vmatpush.bf16.msra.mxu0 0
      %3092 = vmatpush.bf16.msra.mxu0 0
      %3093 = vmatpush.bf16.msra.mxu0 %v2716
      %3094 = vmatpush.bf16.msra.mxu0 %v2447
      %3095 = vmatpush.bf16.msra.mxu0 %v2412
      %3096 = vmatpush.bf16.msra.mxu0 %v2377
      %3097 = vmatpush.bf16.msra.mxu0 %v2342
      %3098 = vmatmul.bf16.gmra.mxu0 %v2632
      %v3099 = vpop.f32.mrf.mxu0
      %v3100 = vadd.f32 %v1808, %v3099
      %v3101 = vpop.f32.mrf.mxu0
      %3102 = vdwg.mxu0
      %3103 = vmatpush.bf16.msra.mxu0 0
      %3104 = vmatpush.bf16.msra.mxu0 0
      %3105 = vmatpush.bf16.msra.mxu0 0
      %3106 = vmatpush.bf16.msra.mxu0 %v2719
      %3107 = vmatpush.bf16.msra.mxu0 %v2448
      %3108 = vmatpush.bf16.msra.mxu0 %v2413
      %3109 = vmatpush.bf16.msra.mxu0 %v2378
      %3110 = vmatpush.bf16.msra.mxu0 %v2343
      %3111 = vmatmul.bf16.gmra.mxu0 %v2632
      %v3112 = vpop.f32.mrf.mxu0
      %v3113 = vadd.f32 %v1808, %v3112
      %v3114 = vpop.f32.mrf.mxu0
      %3115 = vdwg.mxu0
      %3116 = vmatpush.bf16.msra.mxu0 0
      %3117 = vmatpush.bf16.msra.mxu0 0
      %3118 = vmatpush.bf16.msra.mxu0 0
      %3119 = vmatpush.bf16.msra.mxu0 %v2722
      %3120 = vmatpush.bf16.msra.mxu0 %v2449
      %3121 = vmatpush.bf16.msra.mxu0 %v2414
      %3122 = vmatpush.bf16.msra.mxu0 %v2379
      %3123 = vmatpush.bf16.msra.mxu0 %v2344
      %3124 = vmatmul.bf16.gmra.mxu0 %v2632
      %v3125 = vpop.f32.mrf.mxu0
      %v3126 = vadd.f32 %v1808, %v3125
      %v3127 = vpop.f32.mrf.mxu0
      %3128 = vdwg.mxu0
      %3129 = vmatpush.bf16.msra.mxu0 0
      %3130 = vmatpush.bf16.msra.mxu0 0
      %3131 = vmatpush.bf16.msra.mxu0 0
      %3132 = vmatpush.bf16.msra.mxu0 %v2725
      %3133 = vmatpush.bf16.msra.mxu0 %v2450
      %3134 = vmatpush.bf16.msra.mxu0 %v2415
      %3135 = vmatpush.bf16.msra.mxu0 %v2380
      %3136 = vmatpush.bf16.msra.mxu0 %v2345
      %3137 = vmatmul.bf16.gmra.mxu0 %v2632
      %v3138 = vpop.f32.mrf.mxu0
      %v3139 = vadd.f32 %v1808, %v3138
      %v3140 = vpop.f32.mrf.mxu0
      %3141 = vdwg.mxu0
      %3142 = vmatpush.bf16.msra.mxu0 0
      %3143 = vmatpush.bf16.msra.mxu0 0
      %3144 = vmatpush.bf16.msra.mxu0 0
      %3145 = vmatpush.bf16.msra.mxu0 %v2728
      %3146 = vmatpush.bf16.msra.mxu0 %v2451
      %3147 = vmatpush.bf16.msra.mxu0 %v2416
      %3148 = vmatpush.bf16.msra.mxu0 %v2381
      %3149 = vmatpush.bf16.msra.mxu0 %v2346
      %3150 = vmatmul.bf16.gmra.mxu0 %v2632
      %v3151 = vpop.f32.mrf.mxu0
      %v3152 = vadd.f32 %v1808, %v3151
      %v3153 = vpop.f32.mrf.mxu0
      %3154 = vdwg.mxu0
      %3155 = vmatpush.bf16.msra.mxu0 0
      %3156 = vmatpush.bf16.msra.mxu0 0
      %3157 = vmatpush.bf16.msra.mxu0 0
      %3158 = vmatpush.bf16.msra.mxu0 %v2731
      %3159 = vmatpush.bf16.msra.mxu0 %v2452
      %3160 = vmatpush.bf16.msra.mxu0 %v2417
      %3161 = vmatpush.bf16.msra.mxu0 %v2382
      %3162 = vmatpush.bf16.msra.mxu0 %v2347
      %3163 = vmatmul.bf16.gmra.mxu0 %v2632
      %v3164 = vpop.f32.mrf.mxu0
      %v3165 = vadd.f32 %v1808, %v3164
      %v3166 = vpop.f32.mrf.mxu0
      %3167 = vdwg.mxu0
      %3168 = vmatpush.bf16.msra.mxu0 0
      %3169 = vmatpush.bf16.msra.mxu0 0
      %3170 = vmatpush.bf16.msra.mxu0 0
      %3171 = vmatpush.bf16.msra.mxu0 %v2734
      %3172 = vmatpush.bf16.msra.mxu0 %v2453
      %3173 = vmatpush.bf16.msra.mxu0 %v2418
      %3174 = vmatpush.bf16.msra.mxu0 %v2383
      %3175 = vmatpush.bf16.msra.mxu0 %v2348
      %3176 = vmatmul.bf16.gmra.mxu0 %v2632
      %v3177 = vpop.f32.mrf.mxu0
      %v3178 = vadd.f32 %v1808, %v3177
      %v3179 = vpop.f32.mrf.mxu0
      %3180 = vdwg.mxu0
      %3181 = vmatpush.bf16.msra.mxu0 0
      %3182 = vmatpush.bf16.msra.mxu0 0
      %3183 = vmatpush.bf16.msra.mxu0 0
      %3184 = vmatpush.bf16.msra.mxu0 %v2737
      %3185 = vmatpush.bf16.msra.mxu0 %v2454
      %3186 = vmatpush.bf16.msra.mxu0 %v2419
      %3187 = vmatpush.bf16.msra.mxu0 %v2384
      %3188 = vmatpush.bf16.msra.mxu0 %v2349
      %3189 = vmatmul.bf16.gmra.mxu0 %v2632
      %v3190 = vpop.f32.mrf.mxu0
      %v3191 = vadd.f32 %v1808, %v3190
      %v3192 = vpop.f32.mrf.mxu0
      %3193 = vdwg.mxu0
      %v3199 = vperm.slane %v361, 0
      %v3200 = vperm.slane %v361, 1
      %v3201 = vperm.slane %v361, 2
      %v3202 = vperm.slane %v361, 3
      %v3203 = vperm.slane %v361, 4
      %v3204 = vperm.slane %v361, 5
      %v3205 = vperm.slane %v361, 6
      %v3206 = vperm.slane %v361, 7
      %v3207 = vperm.slane %v362, 0
      %v3208 = vperm.slane %v362, 1
      %v3209 = vperm.slane %v362, 2
      %v3210 = vperm.slane %v362, 3
      %v3211 = vperm.slane %v362, 4
      %v3212 = vperm.slane %v362, 5
      %v3213 = vperm.slane %v362, 6
      %v3214 = vperm.slane %v362, 7
      %v3215 = vperm.slane %v363, 0
      %v3216 = vperm.slane %v363, 1
      %v3217 = vperm.slane %v363, 2
      %v3218 = vperm.slane %v363, 3
      %v3219 = vperm.slane %v363, 4
      %v3220 = vperm.slane %v363, 5
      %v3221 = vperm.slane %v363, 6
      %v3222 = vperm.slane %v363, 7
      %v3223 = vperm.slane %v364, 0
      %v3224 = vperm.slane %v364, 1
      %v3225 = vperm.slane %v364, 2
      %v3226 = vperm.slane %v364, 3
      %v3227 = vperm.slane %v364, 4
      %v3228 = vperm.slane %v364, 5
      %v3229 = vperm.slane %v364, 6
      %v3230 = vperm.slane %v364, 7
      %v3231 = vperm.slane %v365, 0
      %v3232 = vperm.slane %v365, 1
      %v3233 = vperm.slane %v365, 2
      %v3269 = vmul.f32 %v2749, %v3199
      %v3270 = vmul.f32 %v2762, %v3200
      %v3271 = vmul.f32 %v2775, %v3201
      %v3272 = vmul.f32 %v2788, %v3202
      %v3273 = vmul.f32 %v2801, %v3203
      %v3274 = vmul.f32 %v2814, %v3204
      %v3275 = vmul.f32 %v2827, %v3205
      %v3276 = vmul.f32 %v2840, %v3206
      %v3277 = vmul.f32 %v2853, %v3207
      %v3278 = vmul.f32 %v2866, %v3208
      %v3279 = vmul.f32 %v2879, %v3209
      %v3280 = vmul.f32 %v2892, %v3210
      %v3281 = vmul.f32 %v2905, %v3211
      %v3282 = vmul.f32 %v2918, %v3212
      %v3283 = vmul.f32 %v2931, %v3213
      %v3284 = vmul.f32 %v2944, %v3214
      %v3285 = vmul.f32 %v2957, %v3215
      %v3286 = vmul.f32 %v2970, %v3216
      %v3287 = vmul.f32 %v2983, %v3217
      %v3288 = vmul.f32 %v2996, %v3218
      %v3289 = vmul.f32 %v3009, %v3219
      %v3290 = vmul.f32 %v3022, %v3220
      %v3291 = vmul.f32 %v3035, %v3221
      %v3292 = vmul.f32 %v3048, %v3222
      %v3293 = vmul.f32 %v3061, %v3223
      %v3294 = vmul.f32 %v3074, %v3224
      %v3295 = vmul.f32 %v3087, %v3225
      %v3296 = vmul.f32 %v3100, %v3226
      %v3297 = vmul.f32 %v3113, %v3227
      %v3298 = vmul.f32 %v3126, %v3228
      %v3299 = vmul.f32 %v3139, %v3229
      %v3300 = vmul.f32 %v3152, %v3230
      %v3301 = vmul.f32 %v3165, %v3231
      %v3302 = vmul.f32 %v3178, %v3232
      %v3303 = vmul.f32 %v3191, %v3233
      %v3304 = vld [vmem:[%s4] sm:$0xf]
      %v3305 = vpack.c.bf16 %v3269, %v3269
      %v3306 = vpack.c.bf16 %v3270, %v3270
      %v3307 = vpack.c.bf16 %v3271, %v3271
      %v3308 = vpack.c.bf16 %v3272, %v3272
      %v3309 = vpack.c.bf16 %v3273, %v3273
      %v3310 = vpack.c.bf16 %v3274, %v3274
      %v3311 = vpack.c.bf16 %v3275, %v3275
      %v3312 = vpack.c.bf16 %v3276, %v3276
      %v3313 = vpack.c.bf16 %v3277, %v3277
      %v3314 = vpack.c.bf16 %v3278, %v3278
      %v3315 = vpack.c.bf16 %v3279, %v3279
      %v3316 = vpack.c.bf16 %v3280, %v3280
      %v3317 = vpack.c.bf16 %v3281, %v3281
      %v3318 = vpack.c.bf16 %v3282, %v3282
      %v3319 = vpack.c.bf16 %v3283, %v3283
      %v3320 = vpack.c.bf16 %v3284, %v3284
      %v3321 = vpack.c.bf16 %v3285, %v3285
      %v3322 = vpack.c.bf16 %v3286, %v3286
      %v3323 = vpack.c.bf16 %v3287, %v3287
      %v3324 = vpack.c.bf16 %v3288, %v3288
      %v3325 = vpack.c.bf16 %v3289, %v3289
      %v3326 = vpack.c.bf16 %v3290, %v3290
      %v3327 = vpack.c.bf16 %v3291, %v3291
      %v3328 = vpack.c.bf16 %v3292, %v3292
      %v3329 = vpack.c.bf16 %v3293, %v3293
      %v3330 = vpack.c.bf16 %v3294, %v3294
      %v3331 = vpack.c.bf16 %v3295, %v3295
      %v3332 = vpack.c.bf16 %v3296, %v3296
      %v3333 = vpack.c.bf16 %v3297, %v3297
      %v3334 = vpack.c.bf16 %v3298, %v3298
      %v3335 = vpack.c.bf16 %v3299, %v3299
      %v3336 = vpack.c.bf16 %v3300, %v3300
      %v3337 = vpack.c.bf16 %v3301, %v3301
      %v3338 = vpack.c.bf16 %v3302, %v3302
      %v3339 = vpack.c.bf16 %v3303, %v3303
      %v3340 = vld [vmem:[%s5] sm:$0xff]
      %3342 = vset.pattern.permute.xlu0 0
      %3343 = vperm.xlu0 %3342, %v3340
      %v3344 = vpop.permute.xlu0 %3343
      %vm3346 = vcmask 64512
      %v3348 = vsel %vm3346, %v3304, 0
      %v3351 = vsel %vm1370, %v3305, 0
      %v3354 = vsel %vm1370, %v3306, 0
      %v3357 = vsel %vm1370, %v3307, 0
      %v3360 = vsel %vm1370, %v3308, 0
      %v3363 = vsel %vm1370, %v3309, 0
      %v3366 = vsel %vm1370, %v3310, 0
      %v3369 = vsel %vm1370, %v3311, 0
      %v3372 = vsel %vm1370, %v3312, 0
      %v3375 = vsel %vm1370, %v3313, 0
      %v3378 = vsel %vm1370, %v3314, 0
      %v3381 = vsel %vm1370, %v3315, 0
      %v3384 = vsel %vm1370, %v3316, 0
      %v3387 = vsel %vm1370, %v3317, 0
      %v3390 = vsel %vm1370, %v3318, 0
      %v3393 = vsel %vm1370, %v3319, 0
      %v3396 = vsel %vm1370, %v3320, 0
      %v3399 = vsel %vm1370, %v3321, 0
      %v3402 = vsel %vm1370, %v3322, 0
      %v3405 = vsel %vm1370, %v3323, 0
      %v3408 = vsel %vm1370, %v3324, 0
      %v3411 = vsel %vm1370, %v3325, 0
      %v3414 = vsel %vm1370, %v3326, 0
      %v3417 = vsel %vm1370, %v3327, 0
      %v3420 = vsel %vm1370, %v3328, 0
      %v3423 = vsel %vm1370, %v3329, 0
      %v3426 = vsel %vm1370, %v3330, 0
      %v3429 = vsel %vm1370, %v3331, 0
      %v3432 = vsel %vm1370, %v3332, 0
      %v3435 = vsel %vm1370, %v3333, 0
      %v3438 = vsel %vm1370, %v3334, 0
      %v3441 = vsel %vm1370, %v3335, 0
      %v3444 = vsel %vm1370, %v3336, 0
      %v3447 = vsel %vm1370, %v3337, 0
      %v3450 = vsel %vm1370, %v3338, 0
      %v3453 = vsel %vm1370, %v3339, 0
      %3455 = vmatpush.bf16.msra.mxu0 0
      %3456 = vmatpush.bf16.msra.mxu0 0
      %3457 = vmatpush.bf16.msra.mxu0 0
      %3458 = vmatpush.bf16.msra.mxu0 0
      %3459 = vmatpush.bf16.msra.mxu0 0
      %3460 = vmatpush.bf16.msra.mxu0 0
      %3461 = vmatpush.bf16.msra.mxu0 0
      %3462 = vmatpush.bf16.msra.mxu0 %v3351
      %3463 = vmatmul.bf16.gmra.mxu0 %v3348
      %v3464 = vpop.f32.mrf.mxu0
      %v3465 = vadd.f32 %v3344, %v3464
      %v3466 = vpop.f32.mrf.mxu0
      %3467 = vdwg.mxu0
      %3468 = vmatpush.bf16.msra.mxu0 0
      %3469 = vmatpush.bf16.msra.mxu0 0
      %3470 = vmatpush.bf16.msra.mxu0 0
      %3471 = vmatpush.bf16.msra.mxu0 0
      %3472 = vmatpush.bf16.msra.mxu0 0
      %3473 = vmatpush.bf16.msra.mxu0 0
      %3474 = vmatpush.bf16.msra.mxu0 0
      %3475 = vmatpush.bf16.msra.mxu0 %v3354
      %3476 = vmatmul.bf16.gmra.mxu0 %v3348
      %v3477 = vpop.f32.mrf.mxu0
      %v3478 = vadd.f32 %v3344, %v3477
      %v3479 = vpop.f32.mrf.mxu0
      %3480 = vdwg.mxu0
      %3481 = vmatpush.bf16.msra.mxu0 0
      %3482 = vmatpush.bf16.msra.mxu0 0
      %3483 = vmatpush.bf16.msra.mxu0 0
      %3484 = vmatpush.bf16.msra.mxu0 0
      %3485 = vmatpush.bf16.msra.mxu0 0
      %3486 = vmatpush.bf16.msra.mxu0 0
      %3487 = vmatpush.bf16.msra.mxu0 0
      %3488 = vmatpush.bf16.msra.mxu0 %v3357
      %3489 = vmatmul.bf16.gmra.mxu0 %v3348
      %v3490 = vpop.f32.mrf.mxu0
      %v3491 = vadd.f32 %v3344, %v3490
      %v3492 = vpop.f32.mrf.mxu0
      %3493 = vdwg.mxu0
      %3494 = vmatpush.bf16.msra.mxu0 0
      %3495 = vmatpush.bf16.msra.mxu0 0
      %3496 = vmatpush.bf16.msra.mxu0 0
      %3497 = vmatpush.bf16.msra.mxu0 0
      %3498 = vmatpush.bf16.msra.mxu0 0
      %3499 = vmatpush.bf16.msra.mxu0 0
      %3500 = vmatpush.bf16.msra.mxu0 0
      %3501 = vmatpush.bf16.msra.mxu0 %v3360
      %3502 = vmatmul.bf16.gmra.mxu0 %v3348
      %v3503 = vpop.f32.mrf.mxu0
      %v3504 = vadd.f32 %v3344, %v3503
      %v3505 = vpop.f32.mrf.mxu0
      %3506 = vdwg.mxu0
      %3507 = vmatpush.bf16.msra.mxu0 0
      %3508 = vmatpush.bf16.msra.mxu0 0
      %3509 = vmatpush.bf16.msra.mxu0 0
      %3510 = vmatpush.bf16.msra.mxu0 0
      %3511 = vmatpush.bf16.msra.mxu0 0
      %3512 = vmatpush.bf16.msra.mxu0 0
      %3513 = vmatpush.bf16.msra.mxu0 0
      %3514 = vmatpush.bf16.msra.mxu0 %v3363
      %3515 = vmatmul.bf16.gmra.mxu0 %v3348
      %v3516 = vpop.f32.mrf.mxu0
      %v3517 = vadd.f32 %v3344, %v3516
      %v3518 = vpop.f32.mrf.mxu0
      %3519 = vdwg.mxu0
      %3520 = vmatpush.bf16.msra.mxu0 0
      %3521 = vmatpush.bf16.msra.mxu0 0
      %3522 = vmatpush.bf16.msra.mxu0 0
      %3523 = vmatpush.bf16.msra.mxu0 0
      %3524 = vmatpush.bf16.msra.mxu0 0
      %3525 = vmatpush.bf16.msra.mxu0 0
      %3526 = vmatpush.bf16.msra.mxu0 0
      %3527 = vmatpush.bf16.msra.mxu0 %v3366
      %3528 = vmatmul.bf16.gmra.mxu0 %v3348
      %v3529 = vpop.f32.mrf.mxu0
      %v3530 = vadd.f32 %v3344, %v3529
      %v3531 = vpop.f32.mrf.mxu0
      %3532 = vdwg.mxu0
      %3533 = vmatpush.bf16.msra.mxu0 0
      %3534 = vmatpush.bf16.msra.mxu0 0
      %3535 = vmatpush.bf16.msra.mxu0 0
      %3536 = vmatpush.bf16.msra.mxu0 0
      %3537 = vmatpush.bf16.msra.mxu0 0
      %3538 = vmatpush.bf16.msra.mxu0 0
      %3539 = vmatpush.bf16.msra.mxu0 0
      %3540 = vmatpush.bf16.msra.mxu0 %v3369
      %3541 = vmatmul.bf16.gmra.mxu0 %v3348
      %v3542 = vpop.f32.mrf.mxu0
      %v3543 = vadd.f32 %v3344, %v3542
      %v3544 = vpop.f32.mrf.mxu0
      %3545 = vdwg.mxu0
      %3546 = vmatpush.bf16.msra.mxu0 0
      %3547 = vmatpush.bf16.msra.mxu0 0
      %3548 = vmatpush.bf16.msra.mxu0 0
      %3549 = vmatpush.bf16.msra.mxu0 0
      %3550 = vmatpush.bf16.msra.mxu0 0
      %3551 = vmatpush.bf16.msra.mxu0 0
      %3552 = vmatpush.bf16.msra.mxu0 0
      %3553 = vmatpush.bf16.msra.mxu0 %v3372
      %3554 = vmatmul.bf16.gmra.mxu0 %v3348
      %v3555 = vpop.f32.mrf.mxu0
      %v3556 = vadd.f32 %v3344, %v3555
      %v3557 = vpop.f32.mrf.mxu0
      %3558 = vdwg.mxu0
      %3559 = vmatpush.bf16.msra.mxu0 0
      %3560 = vmatpush.bf16.msra.mxu0 0
      %3561 = vmatpush.bf16.msra.mxu0 0
      %3562 = vmatpush.bf16.msra.mxu0 0
      %3563 = vmatpush.bf16.msra.mxu0 0
      %3564 = vmatpush.bf16.msra.mxu0 0
      %3565 = vmatpush.bf16.msra.mxu0 0
      %3566 = vmatpush.bf16.msra.mxu0 %v3375
      %3567 = vmatmul.bf16.gmra.mxu0 %v3348
      %v3568 = vpop.f32.mrf.mxu0
      %v3569 = vadd.f32 %v3344, %v3568
      %v3570 = vpop.f32.mrf.mxu0
      %3571 = vdwg.mxu0
      %3572 = vmatpush.bf16.msra.mxu0 0
      %3573 = vmatpush.bf16.msra.mxu0 0
      %3574 = vmatpush.bf16.msra.mxu0 0
      %3575 = vmatpush.bf16.msra.mxu0 0
      %3576 = vmatpush.bf16.msra.mxu0 0
      %3577 = vmatpush.bf16.msra.mxu0 0
      %3578 = vmatpush.bf16.msra.mxu0 0
      %3579 = vmatpush.bf16.msra.mxu0 %v3378
      %3580 = vmatmul.bf16.gmra.mxu0 %v3348
      %v3581 = vpop.f32.mrf.mxu0
      %v3582 = vadd.f32 %v3344, %v3581
      %v3583 = vpop.f32.mrf.mxu0
      %3584 = vdwg.mxu0
      %3585 = vmatpush.bf16.msra.mxu0 0
      %3586 = vmatpush.bf16.msra.mxu0 0
      %3587 = vmatpush.bf16.msra.mxu0 0
      %3588 = vmatpush.bf16.msra.mxu0 0
      %3589 = vmatpush.bf16.msra.mxu0 0
      %3590 = vmatpush.bf16.msra.mxu0 0
      %3591 = vmatpush.bf16.msra.mxu0 0
      %3592 = vmatpush.bf16.msra.mxu0 %v3381
      %3593 = vmatmul.bf16.gmra.mxu0 %v3348
      %v3594 = vpop.f32.mrf.mxu0
      %v3595 = vadd.f32 %v3344, %v3594
      %v3596 = vpop.f32.mrf.mxu0
      %3597 = vdwg.mxu0
      %3598 = vmatpush.bf16.msra.mxu0 0
      %3599 = vmatpush.bf16.msra.mxu0 0
      %3600 = vmatpush.bf16.msra.mxu0 0
      %3601 = vmatpush.bf16.msra.mxu0 0
      %3602 = vmatpush.bf16.msra.mxu0 0
      %3603 = vmatpush.bf16.msra.mxu0 0
      %3604 = vmatpush.bf16.msra.mxu0 0
      %3605 = vmatpush.bf16.msra.mxu0 %v3384
      %3606 = vmatmul.bf16.gmra.mxu0 %v3348
      %v3607 = vpop.f32.mrf.mxu0
      %v3608 = vadd.f32 %v3344, %v3607
      %v3609 = vpop.f32.mrf.mxu0
      %3610 = vdwg.mxu0
      %3611 = vmatpush.bf16.msra.mxu0 0
      %3612 = vmatpush.bf16.msra.mxu0 0
      %3613 = vmatpush.bf16.msra.mxu0 0
      %3614 = vmatpush.bf16.msra.mxu0 0
      %3615 = vmatpush.bf16.msra.mxu0 0
      %3616 = vmatpush.bf16.msra.mxu0 0
      %3617 = vmatpush.bf16.msra.mxu0 0
      %3618 = vmatpush.bf16.msra.mxu0 %v3387
      %3619 = vmatmul.bf16.gmra.mxu0 %v3348
      %v3620 = vpop.f32.mrf.mxu0
      %v3621 = vadd.f32 %v3344, %v3620
      %v3622 = vpop.f32.mrf.mxu0
      %3623 = vdwg.mxu0
      %3624 = vmatpush.bf16.msra.mxu0 0
      %3625 = vmatpush.bf16.msra.mxu0 0
      %3626 = vmatpush.bf16.msra.mxu0 0
      %3627 = vmatpush.bf16.msra.mxu0 0
      %3628 = vmatpush.bf16.msra.mxu0 0
      %3629 = vmatpush.bf16.msra.mxu0 0
      %3630 = vmatpush.bf16.msra.mxu0 0
      %3631 = vmatpush.bf16.msra.mxu0 %v3390
      %3632 = vmatmul.bf16.gmra.mxu0 %v3348
      %v3633 = vpop.f32.mrf.mxu0
      %v3634 = vadd.f32 %v3344, %v3633
      %v3635 = vpop.f32.mrf.mxu0
      %3636 = vdwg.mxu0
      %3637 = vmatpush.bf16.msra.mxu0 0
      %3638 = vmatpush.bf16.msra.mxu0 0
      %3639 = vmatpush.bf16.msra.mxu0 0
      %3640 = vmatpush.bf16.msra.mxu0 0
      %3641 = vmatpush.bf16.msra.mxu0 0
      %3642 = vmatpush.bf16.msra.mxu0 0
      %3643 = vmatpush.bf16.msra.mxu0 0
      %3644 = vmatpush.bf16.msra.mxu0 %v3393
      %3645 = vmatmul.bf16.gmra.mxu0 %v3348
      %v3646 = vpop.f32.mrf.mxu0
      %v3647 = vadd.f32 %v3344, %v3646
      %v3648 = vpop.f32.mrf.mxu0
      %3649 = vdwg.mxu0
      %3650 = vmatpush.bf16.msra.mxu0 0
      %3651 = vmatpush.bf16.msra.mxu0 0
      %3652 = vmatpush.bf16.msra.mxu0 0
      %3653 = vmatpush.bf16.msra.mxu0 0
      %3654 = vmatpush.bf16.msra.mxu0 0
      %3655 = vmatpush.bf16.msra.mxu0 0
      %3656 = vmatpush.bf16.msra.mxu0 0
      %3657 = vmatpush.bf16.msra.mxu0 %v3396
      %3658 = vmatmul.bf16.gmra.mxu0 %v3348
      %v3659 = vpop.f32.mrf.mxu0
      %v3660 = vadd.f32 %v3344, %v3659
      %v3661 = vpop.f32.mrf.mxu0
      %3662 = vdwg.mxu0
      %3663 = vmatpush.bf16.msra.mxu0 0
      %3664 = vmatpush.bf16.msra.mxu0 0
      %3665 = vmatpush.bf16.msra.mxu0 0
      %3666 = vmatpush.bf16.msra.mxu0 0
      %3667 = vmatpush.bf16.msra.mxu0 0
      %3668 = vmatpush.bf16.msra.mxu0 0
      %3669 = vmatpush.bf16.msra.mxu0 0
      %3670 = vmatpush.bf16.msra.mxu0 %v3399
      %3671 = vmatmul.bf16.gmra.mxu0 %v3348
      %v3672 = vpop.f32.mrf.mxu0
      %v3673 = vadd.f32 %v3344, %v3672
      %v3674 = vpop.f32.mrf.mxu0
      %3675 = vdwg.mxu0
      %3676 = vmatpush.bf16.msra.mxu0 0
      %3677 = vmatpush.bf16.msra.mxu0 0
      %3678 = vmatpush.bf16.msra.mxu0 0
      %3679 = vmatpush.bf16.msra.mxu0 0
      %3680 = vmatpush.bf16.msra.mxu0 0
      %3681 = vmatpush.bf16.msra.mxu0 0
      %3682 = vmatpush.bf16.msra.mxu0 0
      %3683 = vmatpush.bf16.msra.mxu0 %v3402
      %3684 = vmatmul.bf16.gmra.mxu0 %v3348
      %v3685 = vpop.f32.mrf.mxu0
      %v3686 = vadd.f32 %v3344, %v3685
      %v3687 = vpop.f32.mrf.mxu0
      %3688 = vdwg.mxu0
      %3689 = vmatpush.bf16.msra.mxu0 0
      %3690 = vmatpush.bf16.msra.mxu0 0
      %3691 = vmatpush.bf16.msra.mxu0 0
      %3692 = vmatpush.bf16.msra.mxu0 0
      %3693 = vmatpush.bf16.msra.mxu0 0
      %3694 = vmatpush.bf16.msra.mxu0 0
      %3695 = vmatpush.bf16.msra.mxu0 0
      %3696 = vmatpush.bf16.msra.mxu0 %v3405
      %3697 = vmatmul.bf16.gmra.mxu0 %v3348
      %v3698 = vpop.f32.mrf.mxu0
      %v3699 = vadd.f32 %v3344, %v3698
      %v3700 = vpop.f32.mrf.mxu0
      %3701 = vdwg.mxu0
      %3702 = vmatpush.bf16.msra.mxu0 0
      %3703 = vmatpush.bf16.msra.mxu0 0
      %3704 = vmatpush.bf16.msra.mxu0 0
      %3705 = vmatpush.bf16.msra.mxu0 0
      %3706 = vmatpush.bf16.msra.mxu0 0
      %3707 = vmatpush.bf16.msra.mxu0 0
      %3708 = vmatpush.bf16.msra.mxu0 0
      %3709 = vmatpush.bf16.msra.mxu0 %v3408
      %3710 = vmatmul.bf16.gmra.mxu0 %v3348
      %v3711 = vpop.f32.mrf.mxu0
      %v3712 = vadd.f32 %v3344, %v3711
      %v3713 = vpop.f32.mrf.mxu0
      %3714 = vdwg.mxu0
      %3715 = vmatpush.bf16.msra.mxu0 0
      %3716 = vmatpush.bf16.msra.mxu0 0
      %3717 = vmatpush.bf16.msra.mxu0 0
      %3718 = vmatpush.bf16.msra.mxu0 0
      %3719 = vmatpush.bf16.msra.mxu0 0
      %3720 = vmatpush.bf16.msra.mxu0 0
      %3721 = vmatpush.bf16.msra.mxu0 0
      %3722 = vmatpush.bf16.msra.mxu0 %v3411
      %3723 = vmatmul.bf16.gmra.mxu0 %v3348
      %v3724 = vpop.f32.mrf.mxu0
      %v3725 = vadd.f32 %v3344, %v3724
      %v3726 = vpop.f32.mrf.mxu0
      %3727 = vdwg.mxu0
      %3728 = vmatpush.bf16.msra.mxu0 0
      %3729 = vmatpush.bf16.msra.mxu0 0
      %3730 = vmatpush.bf16.msra.mxu0 0
      %3731 = vmatpush.bf16.msra.mxu0 0
      %3732 = vmatpush.bf16.msra.mxu0 0
      %3733 = vmatpush.bf16.msra.mxu0 0
      %3734 = vmatpush.bf16.msra.mxu0 0
      %3735 = vmatpush.bf16.msra.mxu0 %v3414
      %3736 = vmatmul.bf16.gmra.mxu0 %v3348
      %v3737 = vpop.f32.mrf.mxu0
      %v3738 = vadd.f32 %v3344, %v3737
      %v3739 = vpop.f32.mrf.mxu0
      %3740 = vdwg.mxu0
      %3741 = vmatpush.bf16.msra.mxu0 0
      %3742 = vmatpush.bf16.msra.mxu0 0
      %3743 = vmatpush.bf16.msra.mxu0 0
      %3744 = vmatpush.bf16.msra.mxu0 0
      %3745 = vmatpush.bf16.msra.mxu0 0
      %3746 = vmatpush.bf16.msra.mxu0 0
      %3747 = vmatpush.bf16.msra.mxu0 0
      %3748 = vmatpush.bf16.msra.mxu0 %v3417
      %3749 = vmatmul.bf16.gmra.mxu0 %v3348
      %v3750 = vpop.f32.mrf.mxu0
      %v3751 = vadd.f32 %v3344, %v3750
      %v3752 = vpop.f32.mrf.mxu0
      %3753 = vdwg.mxu0
      %3754 = vmatpush.bf16.msra.mxu0 0
      %3755 = vmatpush.bf16.msra.mxu0 0
      %3756 = vmatpush.bf16.msra.mxu0 0
      %3757 = vmatpush.bf16.msra.mxu0 0
      %3758 = vmatpush.bf16.msra.mxu0 0
      %3759 = vmatpush.bf16.msra.mxu0 0
      %3760 = vmatpush.bf16.msra.mxu0 0
      %3761 = vmatpush.bf16.msra.mxu0 %v3420
      %3762 = vmatmul.bf16.gmra.mxu0 %v3348
      %v3763 = vpop.f32.mrf.mxu0
      %v3764 = vadd.f32 %v3344, %v3763
      %v3765 = vpop.f32.mrf.mxu0
      %3766 = vdwg.mxu0
      %3767 = vmatpush.bf16.msra.mxu0 0
      %3768 = vmatpush.bf16.msra.mxu0 0
      %3769 = vmatpush.bf16.msra.mxu0 0
      %3770 = vmatpush.bf16.msra.mxu0 0
      %3771 = vmatpush.bf16.msra.mxu0 0
      %3772 = vmatpush.bf16.msra.mxu0 0
      %3773 = vmatpush.bf16.msra.mxu0 0
      %3774 = vmatpush.bf16.msra.mxu0 %v3423
      %3775 = vmatmul.bf16.gmra.mxu0 %v3348
      %v3776 = vpop.f32.mrf.mxu0
      %v3777 = vadd.f32 %v3344, %v3776
      %v3778 = vpop.f32.mrf.mxu0
      %3779 = vdwg.mxu0
      %3780 = vmatpush.bf16.msra.mxu0 0
      %3781 = vmatpush.bf16.msra.mxu0 0
      %3782 = vmatpush.bf16.msra.mxu0 0
      %3783 = vmatpush.bf16.msra.mxu0 0
      %3784 = vmatpush.bf16.msra.mxu0 0
      %3785 = vmatpush.bf16.msra.mxu0 0
      %3786 = vmatpush.bf16.msra.mxu0 0
      %3787 = vmatpush.bf16.msra.mxu0 %v3426
      %3788 = vmatmul.bf16.gmra.mxu0 %v3348
      %v3789 = vpop.f32.mrf.mxu0
      %v3790 = vadd.f32 %v3344, %v3789
      %v3791 = vpop.f32.mrf.mxu0
      %3792 = vdwg.mxu0
      %3793 = vmatpush.bf16.msra.mxu0 0
      %3794 = vmatpush.bf16.msra.mxu0 0
      %3795 = vmatpush.bf16.msra.mxu0 0
      %3796 = vmatpush.bf16.msra.mxu0 0
      %3797 = vmatpush.bf16.msra.mxu0 0
      %3798 = vmatpush.bf16.msra.mxu0 0
      %3799 = vmatpush.bf16.msra.mxu0 0
      %3800 = vmatpush.bf16.msra.mxu0 %v3429
      %3801 = vmatmul.bf16.gmra.mxu0 %v3348
      %v3802 = vpop.f32.mrf.mxu0
      %v3803 = vadd.f32 %v3344, %v3802
      %v3804 = vpop.f32.mrf.mxu0
      %3805 = vdwg.mxu0
      %3806 = vmatpush.bf16.msra.mxu0 0
      %3807 = vmatpush.bf16.msra.mxu0 0
      %3808 = vmatpush.bf16.msra.mxu0 0
      %3809 = vmatpush.bf16.msra.mxu0 0
      %3810 = vmatpush.bf16.msra.mxu0 0
      %3811 = vmatpush.bf16.msra.mxu0 0
      %3812 = vmatpush.bf16.msra.mxu0 0
      %3813 = vmatpush.bf16.msra.mxu0 %v3432
      %3814 = vmatmul.bf16.gmra.mxu0 %v3348
      %v3815 = vpop.f32.mrf.mxu0
      %v3816 = vadd.f32 %v3344, %v3815
      %v3817 = vpop.f32.mrf.mxu0
      %3818 = vdwg.mxu0
      %3819 = vmatpush.bf16.msra.mxu0 0
      %3820 = vmatpush.bf16.msra.mxu0 0
      %3821 = vmatpush.bf16.msra.mxu0 0
      %3822 = vmatpush.bf16.msra.mxu0 0
      %3823 = vmatpush.bf16.msra.mxu0 0
      %3824 = vmatpush.bf16.msra.mxu0 0
      %3825 = vmatpush.bf16.msra.mxu0 0
      %3826 = vmatpush.bf16.msra.mxu0 %v3435
      %3827 = vmatmul.bf16.gmra.mxu0 %v3348
      %v3828 = vpop.f32.mrf.mxu0
      %v3829 = vadd.f32 %v3344, %v3828
      %v3830 = vpop.f32.mrf.mxu0
      %3831 = vdwg.mxu0
      %3832 = vmatpush.bf16.msra.mxu0 0
      %3833 = vmatpush.bf16.msra.mxu0 0
      %3834 = vmatpush.bf16.msra.mxu0 0
      %3835 = vmatpush.bf16.msra.mxu0 0
      %3836 = vmatpush.bf16.msra.mxu0 0
      %3837 = vmatpush.bf16.msra.mxu0 0
      %3838 = vmatpush.bf16.msra.mxu0 0
      %3839 = vmatpush.bf16.msra.mxu0 %v3438
      %3840 = vmatmul.bf16.gmra.mxu0 %v3348
      %v3841 = vpop.f32.mrf.mxu0
      %v3842 = vadd.f32 %v3344, %v3841
      %v3843 = vpop.f32.mrf.mxu0
      %3844 = vdwg.mxu0
      %3845 = vmatpush.bf16.msra.mxu0 0
      %3846 = vmatpush.bf16.msra.mxu0 0
      %3847 = vmatpush.bf16.msra.mxu0 0
      %3848 = vmatpush.bf16.msra.mxu0 0
      %3849 = vmatpush.bf16.msra.mxu0 0
      %3850 = vmatpush.bf16.msra.mxu0 0
      %3851 = vmatpush.bf16.msra.mxu0 0
      %3852 = vmatpush.bf16.msra.mxu0 %v3441
      %3853 = vmatmul.bf16.gmra.mxu0 %v3348
      %v3854 = vpop.f32.mrf.mxu0
      %v3855 = vadd.f32 %v3344, %v3854
      %v3856 = vpop.f32.mrf.mxu0
      %3857 = vdwg.mxu0
      %3858 = vmatpush.bf16.msra.mxu0 0
      %3859 = vmatpush.bf16.msra.mxu0 0
      %3860 = vmatpush.bf16.msra.mxu0 0
      %3861 = vmatpush.bf16.msra.mxu0 0
      %3862 = vmatpush.bf16.msra.mxu0 0
      %3863 = vmatpush.bf16.msra.mxu0 0
      %3864 = vmatpush.bf16.msra.mxu0 0
      %3865 = vmatpush.bf16.msra.mxu0 %v3444
      %3866 = vmatmul.bf16.gmra.mxu0 %v3348
      %v3867 = vpop.f32.mrf.mxu0
      %v3868 = vadd.f32 %v3344, %v3867
      %v3869 = vpop.f32.mrf.mxu0
      %3870 = vdwg.mxu0
      %3871 = vmatpush.bf16.msra.mxu0 0
      %3872 = vmatpush.bf16.msra.mxu0 0
      %3873 = vmatpush.bf16.msra.mxu0 0
      %3874 = vmatpush.bf16.msra.mxu0 0
      %3875 = vmatpush.bf16.msra.mxu0 0
      %3876 = vmatpush.bf16.msra.mxu0 0
      %3877 = vmatpush.bf16.msra.mxu0 0
      %3878 = vmatpush.bf16.msra.mxu0 %v3447
      %3879 = vmatmul.bf16.gmra.mxu0 %v3348
      %v3880 = vpop.f32.mrf.mxu0
      %v3881 = vadd.f32 %v3344, %v3880
      %v3882 = vpop.f32.mrf.mxu0
      %3883 = vdwg.mxu0
      %3884 = vmatpush.bf16.msra.mxu0 0
      %3885 = vmatpush.bf16.msra.mxu0 0
      %3886 = vmatpush.bf16.msra.mxu0 0
      %3887 = vmatpush.bf16.msra.mxu0 0
      %3888 = vmatpush.bf16.msra.mxu0 0
      %3889 = vmatpush.bf16.msra.mxu0 0
      %3890 = vmatpush.bf16.msra.mxu0 0
      %3891 = vmatpush.bf16.msra.mxu0 %v3450
      %3892 = vmatmul.bf16.gmra.mxu0 %v3348
      %v3893 = vpop.f32.mrf.mxu0
      %v3894 = vadd.f32 %v3344, %v3893
      %v3895 = vpop.f32.mrf.mxu0
      %3896 = vdwg.mxu0
      %3897 = vmatpush.bf16.msra.mxu0 0
      %3898 = vmatpush.bf16.msra.mxu0 0
      %3899 = vmatpush.bf16.msra.mxu0 0
      %3900 = vmatpush.bf16.msra.mxu0 0
      %3901 = vmatpush.bf16.msra.mxu0 0
      %3902 = vmatpush.bf16.msra.mxu0 0
      %3903 = vmatpush.bf16.msra.mxu0 0
      %3904 = vmatpush.bf16.msra.mxu0 %v3453
      %3905 = vmatmul.bf16.gmra.mxu0 %v3348
      %v3906 = vpop.f32.mrf.mxu0
      %v3907 = vadd.f32 %v3344, %v3906
      %v3908 = vpop.f32.mrf.mxu0
      %3909 = vdwg.mxu0
      %v3910 = vsub.f32 0.0, %v3465
      %v3911 = vsub.f32 0.0, %v3478
      %v3912 = vsub.f32 0.0, %v3491
      %v3913 = vsub.f32 0.0, %v3504
      %v3914 = vsub.f32 0.0, %v3517
      %v3915 = vsub.f32 0.0, %v3530
      %v3916 = vsub.f32 0.0, %v3543
      %v3917 = vsub.f32 0.0, %v3556
      %v3918 = vsub.f32 0.0, %v3569
      %v3919 = vsub.f32 0.0, %v3582
      %v3920 = vsub.f32 0.0, %v3595
      %v3921 = vsub.f32 0.0, %v3608
      %v3922 = vsub.f32 0.0, %v3621
      %v3923 = vsub.f32 0.0, %v3634
      %v3924 = vsub.f32 0.0, %v3647
      %v3925 = vsub.f32 0.0, %v3660
      %v3926 = vsub.f32 0.0, %v3673
      %v3927 = vsub.f32 0.0, %v3686
      %v3928 = vsub.f32 0.0, %v3699
      %v3929 = vsub.f32 0.0, %v3712
      %v3930 = vsub.f32 0.0, %v3725
      %v3931 = vsub.f32 0.0, %v3738
      %v3932 = vsub.f32 0.0, %v3751
      %v3933 = vsub.f32 0.0, %v3764
      %v3934 = vsub.f32 0.0, %v3777
      %v3935 = vsub.f32 0.0, %v3790
      %v3936 = vsub.f32 0.0, %v3803
      %v3937 = vsub.f32 0.0, %v3816
      %v3938 = vsub.f32 0.0, %v3829
      %v3939 = vsub.f32 0.0, %v3842
      %v3940 = vsub.f32 0.0, %v3855
      %v3941 = vsub.f32 0.0, %v3868
      %v3942 = vsub.f32 0.0, %v3881
      %v3943 = vsub.f32 0.0, %v3894
      %v3944 = vsub.f32 0.0, %v3907
      %v3945 = vmul.f32 %v3910, 1.442695
      %v3946 = vpow.pop %v3945
      %v3947 = vmul.f32 %v3911, 1.442695
      %v3948 = vpow.pop %v3947
      %v3949 = vmul.f32 %v3912, 1.442695
      %v3950 = vpow.pop %v3949
      %v3951 = vmul.f32 %v3913, 1.442695
      %v3952 = vpow.pop %v3951
      %v3953 = vmul.f32 %v3914, 1.442695
      %v3954 = vpow.pop %v3953
      %v3955 = vmul.f32 %v3915, 1.442695
      %v3956 = vpow.pop %v3955
      %v3957 = vmul.f32 %v3916, 1.442695
      %v3958 = vpow.pop %v3957
      %v3959 = vmul.f32 %v3917, 1.442695
      %v3960 = vpow.pop %v3959
      %v3961 = vmul.f32 %v3918, 1.442695
      %v3962 = vpow.pop %v3961
      %v3963 = vmul.f32 %v3919, 1.442695
      %v3964 = vpow.pop %v3963
      %v3965 = vmul.f32 %v3920, 1.442695
      %v3966 = vpow.pop %v3965
      %v3967 = vmul.f32 %v3921, 1.442695
      %v3968 = vpow.pop %v3967
      %v3969 = vmul.f32 %v3922, 1.442695
      %v3970 = vpow.pop %v3969
      %v3971 = vmul.f32 %v3923, 1.442695
      %v3972 = vpow.pop %v3971
      %v3973 = vmul.f32 %v3924, 1.442695
      %v3974 = vpow.pop %v3973
      %v3975 = vmul.f32 %v3925, 1.442695
      %v3976 = vpow.pop %v3975
      %v3977 = vmul.f32 %v3926, 1.442695
      %v3978 = vpow.pop %v3977
      %v3979 = vmul.f32 %v3927, 1.442695
      %v3980 = vpow.pop %v3979
      %v3981 = vmul.f32 %v3928, 1.442695
      %v3982 = vpow.pop %v3981
      %v3983 = vmul.f32 %v3929, 1.442695
      %v3984 = vpow.pop %v3983
      %v3985 = vmul.f32 %v3930, 1.442695
      %v3986 = vpow.pop %v3985
      %v3987 = vmul.f32 %v3931, 1.442695
      %v3988 = vpow.pop %v3987
      %v3989 = vmul.f32 %v3932, 1.442695
      %v3990 = vpow.pop %v3989
      %v3991 = vmul.f32 %v3933, 1.442695
      %v3992 = vpow.pop %v3991
      %v3993 = vmul.f32 %v3934, 1.442695
      %v3994 = vpow.pop %v3993
      %v3995 = vmul.f32 %v3935, 1.442695
      %v3996 = vpow.pop %v3995
      %v3997 = vmul.f32 %v3936, 1.442695
      %v3998 = vpow.pop %v3997
      %v3999 = vmul.f32 %v3937, 1.442695
      %v4000 = vpow.pop %v3999
      %v4001 = vmul.f32 %v3938, 1.442695
      %v4002 = vpow.pop %v4001
      %v4003 = vmul.f32 %v3939, 1.442695
      %v4004 = vpow.pop %v4003
      %v4005 = vmul.f32 %v3940, 1.442695
      %v4006 = vpow.pop %v4005
      %v4007 = vmul.f32 %v3941, 1.442695
      %v4008 = vpow.pop %v4007
      %v4009 = vmul.f32 %v3942, 1.442695
      %v4010 = vpow.pop %v4009
      %v4011 = vmul.f32 %v3943, 1.442695
      %v4012 = vpow.pop %v4011
      %v4013 = vmul.f32 %v3944, 1.442695
      %v4014 = vpow.pop %v4013
      %v4015 = vadd.f32 %v3946, 1.0
      %v4016 = vadd.f32 %v3948, 1.0
      %v4017 = vadd.f32 %v3950, 1.0
      %v4018 = vadd.f32 %v3952, 1.0
      %v4019 = vadd.f32 %v3954, 1.0
      %v4020 = vadd.f32 %v3956, 1.0
      %v4021 = vadd.f32 %v3958, 1.0
      %v4022 = vadd.f32 %v3960, 1.0
      %v4023 = vadd.f32 %v3962, 1.0
      %v4024 = vadd.f32 %v3964, 1.0
      %v4025 = vadd.f32 %v3966, 1.0
      %v4026 = vadd.f32 %v3968, 1.0
      %v4027 = vadd.f32 %v3970, 1.0
      %v4028 = vadd.f32 %v3972, 1.0
      %v4029 = vadd.f32 %v3974, 1.0
      %v4030 = vadd.f32 %v3976, 1.0
      %v4031 = vadd.f32 %v3978, 1.0
      %v4032 = vadd.f32 %v3980, 1.0
      %v4033 = vadd.f32 %v3982, 1.0
      %v4034 = vadd.f32 %v3984, 1.0
      %v4035 = vadd.f32 %v3986, 1.0
      %v4036 = vadd.f32 %v3988, 1.0
      %v4037 = vadd.f32 %v3990, 1.0
      %v4038 = vadd.f32 %v3992, 1.0
      %v4039 = vadd.f32 %v3994, 1.0
      %v4040 = vadd.f32 %v3996, 1.0
      %v4041 = vadd.f32 %v3998, 1.0
      %v4042 = vadd.f32 %v4000, 1.0
      %v4043 = vadd.f32 %v4002, 1.0
      %v4044 = vadd.f32 %v4004, 1.0
      %v4045 = vadd.f32 %v4006, 1.0
      %v4046 = vadd.f32 %v4008, 1.0
      %v4047 = vadd.f32 %v4010, 1.0
      %v4048 = vadd.f32 %v4012, 1.0
      %v4049 = vadd.f32 %v4014, 1.0
      %v4050 = vrcp.pop %v4015
      %v4051 = vmul.f32 %v4015, %v4050
      %v4052 = vsub.f32 1.0, %v4051
      %v4053 = vmul.f32 %v4050, %v4052
      %v4054 = vadd.f32 %v4050, %v4053
      %vm4055 = vweird.f32 %v4015
      %vm4056 = vweird.f32 %v4050
      %vm4057 = vmor %vm4055, %vm4056
      %v4058 = vsel %vm4057, %v4050, %v4054
      %v4059 = vand.u32 2147483647, %v4015
      %vm4060 = vcmp.eq.f32.partialorder %v4059, 8.507059e+37
      %v4061 = vand.u32 %v4015, 2147483648
      %v4062 = vor.u32 1.1754944e-38, %v4061
      %v4063 = vsel %vm4060, %v4062, %v4058
      %v4064 = vmul.f32 1.0, %v4063
      %v4065 = vrcp.pop %v4016
      %v4066 = vmul.f32 %v4016, %v4065
      %v4067 = vsub.f32 1.0, %v4066
      %v4068 = vmul.f32 %v4065, %v4067
      %v4069 = vadd.f32 %v4065, %v4068
      %vm4070 = vweird.f32 %v4016
      %vm4071 = vweird.f32 %v4065
      %vm4072 = vmor %vm4070, %vm4071
      %v4073 = vsel %vm4072, %v4065, %v4069
      %v4074 = vand.u32 2147483647, %v4016
      %vm4075 = vcmp.eq.f32.partialorder %v4074, 8.507059e+37
      %v4076 = vand.u32 %v4016, 2147483648
      %v4077 = vor.u32 1.1754944e-38, %v4076
      %v4078 = vsel %vm4075, %v4077, %v4073
      %v4079 = vmul.f32 1.0, %v4078
      %v4080 = vrcp.pop %v4017
      %v4081 = vmul.f32 %v4017, %v4080
      %v4082 = vsub.f32 1.0, %v4081
      %v4083 = vmul.f32 %v4080, %v4082
      %v4084 = vadd.f32 %v4080, %v4083
      %vm4085 = vweird.f32 %v4017
      %vm4086 = vweird.f32 %v4080
      %vm4087 = vmor %vm4085, %vm4086
      %v4088 = vsel %vm4087, %v4080, %v4084
      %v4089 = vand.u32 2147483647, %v4017
      %vm4090 = vcmp.eq.f32.partialorder %v4089, 8.507059e+37
      %v4091 = vand.u32 %v4017, 2147483648
      %v4092 = vor.u32 1.1754944e-38, %v4091
      %v4093 = vsel %vm4090, %v4092, %v4088
      %v4094 = vmul.f32 1.0, %v4093
      %v4095 = vrcp.pop %v4018
      %v4096 = vmul.f32 %v4018, %v4095
      %v4097 = vsub.f32 1.0, %v4096
      %v4098 = vmul.f32 %v4095, %v4097
      %v4099 = vadd.f32 %v4095, %v4098
      %vm4100 = vweird.f32 %v4018
      %vm4101 = vweird.f32 %v4095
      %vm4102 = vmor %vm4100, %vm4101
      %v4103 = vsel %vm4102, %v4095, %v4099
      %v4104 = vand.u32 2147483647, %v4018
      %vm4105 = vcmp.eq.f32.partialorder %v4104, 8.507059e+37
      %v4106 = vand.u32 %v4018, 2147483648
      %v4107 = vor.u32 1.1754944e-38, %v4106
      %v4108 = vsel %vm4105, %v4107, %v4103
      %v4109 = vmul.f32 1.0, %v4108
      %v4110 = vrcp.pop %v4019
      %v4111 = vmul.f32 %v4019, %v4110
      %v4112 = vsub.f32 1.0, %v4111
      %v4113 = vmul.f32 %v4110, %v4112
      %v4114 = vadd.f32 %v4110, %v4113
      %vm4115 = vweird.f32 %v4019
      %vm4116 = vweird.f32 %v4110
      %vm4117 = vmor %vm4115, %vm4116
      %v4118 = vsel %vm4117, %v4110, %v4114
      %v4119 = vand.u32 2147483647, %v4019
      %vm4120 = vcmp.eq.f32.partialorder %v4119, 8.507059e+37
      %v4121 = vand.u32 %v4019, 2147483648
      %v4122 = vor.u32 1.1754944e-38, %v4121
      %v4123 = vsel %vm4120, %v4122, %v4118
      %v4124 = vmul.f32 1.0, %v4123
      %v4125 = vrcp.pop %v4020
      %v4126 = vmul.f32 %v4020, %v4125
      %v4127 = vsub.f32 1.0, %v4126
      %v4128 = vmul.f32 %v4125, %v4127
      %v4129 = vadd.f32 %v4125, %v4128
      %vm4130 = vweird.f32 %v4020
      %vm4131 = vweird.f32 %v4125
      %vm4132 = vmor %vm4130, %vm4131
      %v4133 = vsel %vm4132, %v4125, %v4129
      %v4134 = vand.u32 2147483647, %v4020
      %vm4135 = vcmp.eq.f32.partialorder %v4134, 8.507059e+37
      %v4136 = vand.u32 %v4020, 2147483648
      %v4137 = vor.u32 1.1754944e-38, %v4136
      %v4138 = vsel %vm4135, %v4137, %v4133
      %v4139 = vmul.f32 1.0, %v4138
      %v4140 = vrcp.pop %v4021
      %v4141 = vmul.f32 %v4021, %v4140
      %v4142 = vsub.f32 1.0, %v4141
      %v4143 = vmul.f32 %v4140, %v4142
      %v4144 = vadd.f32 %v4140, %v4143
      %vm4145 = vweird.f32 %v4021
      %vm4146 = vweird.f32 %v4140
      %vm4147 = vmor %vm4145, %vm4146
      %v4148 = vsel %vm4147, %v4140, %v4144
      %v4149 = vand.u32 2147483647, %v4021
      %vm4150 = vcmp.eq.f32.partialorder %v4149, 8.507059e+37
      %v4151 = vand.u32 %v4021, 2147483648
      %v4152 = vor.u32 1.1754944e-38, %v4151
      %v4153 = vsel %vm4150, %v4152, %v4148
      %v4154 = vmul.f32 1.0, %v4153
      %v4155 = vrcp.pop %v4022
      %v4156 = vmul.f32 %v4022, %v4155
      %v4157 = vsub.f32 1.0, %v4156
      %v4158 = vmul.f32 %v4155, %v4157
      %v4159 = vadd.f32 %v4155, %v4158
      %vm4160 = vweird.f32 %v4022
      %vm4161 = vweird.f32 %v4155
      %vm4162 = vmor %vm4160, %vm4161
      %v4163 = vsel %vm4162, %v4155, %v4159
      %v4164 = vand.u32 2147483647, %v4022
      %vm4165 = vcmp.eq.f32.partialorder %v4164, 8.507059e+37
      %v4166 = vand.u32 %v4022, 2147483648
      %v4167 = vor.u32 1.1754944e-38, %v4166
      %v4168 = vsel %vm4165, %v4167, %v4163
      %v4169 = vmul.f32 1.0, %v4168
      %v4170 = vrcp.pop %v4023
      %v4171 = vmul.f32 %v4023, %v4170
      %v4172 = vsub.f32 1.0, %v4171
      %v4173 = vmul.f32 %v4170, %v4172
      %v4174 = vadd.f32 %v4170, %v4173
      %vm4175 = vweird.f32 %v4023
      %vm4176 = vweird.f32 %v4170
      %vm4177 = vmor %vm4175, %vm4176
      %v4178 = vsel %vm4177, %v4170, %v4174
      %v4179 = vand.u32 2147483647, %v4023
      %vm4180 = vcmp.eq.f32.partialorder %v4179, 8.507059e+37
      %v4181 = vand.u32 %v4023, 2147483648
      %v4182 = vor.u32 1.1754944e-38, %v4181
      %v4183 = vsel %vm4180, %v4182, %v4178
      %v4184 = vmul.f32 1.0, %v4183
      %v4185 = vrcp.pop %v4024
      %v4186 = vmul.f32 %v4024, %v4185
      %v4187 = vsub.f32 1.0, %v4186
      %v4188 = vmul.f32 %v4185, %v4187
      %v4189 = vadd.f32 %v4185, %v4188
      %vm4190 = vweird.f32 %v4024
      %vm4191 = vweird.f32 %v4185
      %vm4192 = vmor %vm4190, %vm4191
      %v4193 = vsel %vm4192, %v4185, %v4189
      %v4194 = vand.u32 2147483647, %v4024
      %vm4195 = vcmp.eq.f32.partialorder %v4194, 8.507059e+37
      %v4196 = vand.u32 %v4024, 2147483648
      %v4197 = vor.u32 1.1754944e-38, %v4196
      %v4198 = vsel %vm4195, %v4197, %v4193
      %v4199 = vmul.f32 1.0, %v4198
      %v4200 = vrcp.pop %v4025
      %v4201 = vmul.f32 %v4025, %v4200
      %v4202 = vsub.f32 1.0, %v4201
      %v4203 = vmul.f32 %v4200, %v4202
      %v4204 = vadd.f32 %v4200, %v4203
      %vm4205 = vweird.f32 %v4025
      %vm4206 = vweird.f32 %v4200
      %vm4207 = vmor %vm4205, %vm4206
      %v4208 = vsel %vm4207, %v4200, %v4204
      %v4209 = vand.u32 2147483647, %v4025
      %vm4210 = vcmp.eq.f32.partialorder %v4209, 8.507059e+37
      %v4211 = vand.u32 %v4025, 2147483648
      %v4212 = vor.u32 1.1754944e-38, %v4211
      %v4213 = vsel %vm4210, %v4212, %v4208
      %v4214 = vmul.f32 1.0, %v4213
      %v4215 = vrcp.pop %v4026
      %v4216 = vmul.f32 %v4026, %v4215
      %v4217 = vsub.f32 1.0, %v4216
      %v4218 = vmul.f32 %v4215, %v4217
      %v4219 = vadd.f32 %v4215, %v4218
      %vm4220 = vweird.f32 %v4026
      %vm4221 = vweird.f32 %v4215
      %vm4222 = vmor %vm4220, %vm4221
      %v4223 = vsel %vm4222, %v4215, %v4219
      %v4224 = vand.u32 2147483647, %v4026
      %vm4225 = vcmp.eq.f32.partialorder %v4224, 8.507059e+37
      %v4226 = vand.u32 %v4026, 2147483648
      %v4227 = vor.u32 1.1754944e-38, %v4226
      %v4228 = vsel %vm4225, %v4227, %v4223
      %v4229 = vmul.f32 1.0, %v4228
      %v4230 = vrcp.pop %v4027
      %v4231 = vmul.f32 %v4027, %v4230
      %v4232 = vsub.f32 1.0, %v4231
      %v4233 = vmul.f32 %v4230, %v4232
      %v4234 = vadd.f32 %v4230, %v4233
      %vm4235 = vweird.f32 %v4027
      %vm4236 = vweird.f32 %v4230
      %vm4237 = vmor %vm4235, %vm4236
      %v4238 = vsel %vm4237, %v4230, %v4234
      %v4239 = vand.u32 2147483647, %v4027
      %vm4240 = vcmp.eq.f32.partialorder %v4239, 8.507059e+37
      %v4241 = vand.u32 %v4027, 2147483648
      %v4242 = vor.u32 1.1754944e-38, %v4241
      %v4243 = vsel %vm4240, %v4242, %v4238
      %v4244 = vmul.f32 1.0, %v4243
      %v4245 = vrcp.pop %v4028
      %v4246 = vmul.f32 %v4028, %v4245
      %v4247 = vsub.f32 1.0, %v4246
      %v4248 = vmul.f32 %v4245, %v4247
      %v4249 = vadd.f32 %v4245, %v4248
      %vm4250 = vweird.f32 %v4028
      %vm4251 = vweird.f32 %v4245
      %vm4252 = vmor %vm4250, %vm4251
      %v4253 = vsel %vm4252, %v4245, %v4249
      %v4254 = vand.u32 2147483647, %v4028
      %vm4255 = vcmp.eq.f32.partialorder %v4254, 8.507059e+37
      %v4256 = vand.u32 %v4028, 2147483648
      %v4257 = vor.u32 1.1754944e-38, %v4256
      %v4258 = vsel %vm4255, %v4257, %v4253
      %v4259 = vmul.f32 1.0, %v4258
      %v4260 = vrcp.pop %v4029
      %v4261 = vmul.f32 %v4029, %v4260
      %v4262 = vsub.f32 1.0, %v4261
      %v4263 = vmul.f32 %v4260, %v4262
      %v4264 = vadd.f32 %v4260, %v4263
      %vm4265 = vweird.f32 %v4029
      %vm4266 = vweird.f32 %v4260
      %vm4267 = vmor %vm4265, %vm4266
      %v4268 = vsel %vm4267, %v4260, %v4264
      %v4269 = vand.u32 2147483647, %v4029
      %vm4270 = vcmp.eq.f32.partialorder %v4269, 8.507059e+37
      %v4271 = vand.u32 %v4029, 2147483648
      %v4272 = vor.u32 1.1754944e-38, %v4271
      %v4273 = vsel %vm4270, %v4272, %v4268
      %v4274 = vmul.f32 1.0, %v4273
      %v4275 = vrcp.pop %v4030
      %v4276 = vmul.f32 %v4030, %v4275
      %v4277 = vsub.f32 1.0, %v4276
      %v4278 = vmul.f32 %v4275, %v4277
      %v4279 = vadd.f32 %v4275, %v4278
      %vm4280 = vweird.f32 %v4030
      %vm4281 = vweird.f32 %v4275
      %vm4282 = vmor %vm4280, %vm4281
      %v4283 = vsel %vm4282, %v4275, %v4279
      %v4284 = vand.u32 2147483647, %v4030
      %vm4285 = vcmp.eq.f32.partialorder %v4284, 8.507059e+37
      %v4286 = vand.u32 %v4030, 2147483648
      %v4287 = vor.u32 1.1754944e-38, %v4286
      %v4288 = vsel %vm4285, %v4287, %v4283
      %v4289 = vmul.f32 1.0, %v4288
      %v4290 = vrcp.pop %v4031
      %v4291 = vmul.f32 %v4031, %v4290
      %v4292 = vsub.f32 1.0, %v4291
      %v4293 = vmul.f32 %v4290, %v4292
      %v4294 = vadd.f32 %v4290, %v4293
      %vm4295 = vweird.f32 %v4031
      %vm4296 = vweird.f32 %v4290
      %vm4297 = vmor %vm4295, %vm4296
      %v4298 = vsel %vm4297, %v4290, %v4294
      %v4299 = vand.u32 2147483647, %v4031
      %vm4300 = vcmp.eq.f32.partialorder %v4299, 8.507059e+37
      %v4301 = vand.u32 %v4031, 2147483648
      %v4302 = vor.u32 1.1754944e-38, %v4301
      %v4303 = vsel %vm4300, %v4302, %v4298
      %v4304 = vmul.f32 1.0, %v4303
      %v4305 = vrcp.pop %v4032
      %v4306 = vmul.f32 %v4032, %v4305
      %v4307 = vsub.f32 1.0, %v4306
      %v4308 = vmul.f32 %v4305, %v4307
      %v4309 = vadd.f32 %v4305, %v4308
      %vm4310 = vweird.f32 %v4032
      %vm4311 = vweird.f32 %v4305
      %vm4312 = vmor %vm4310, %vm4311
      %v4313 = vsel %vm4312, %v4305, %v4309
      %v4314 = vand.u32 2147483647, %v4032
      %vm4315 = vcmp.eq.f32.partialorder %v4314, 8.507059e+37
      %v4316 = vand.u32 %v4032, 2147483648
      %v4317 = vor.u32 1.1754944e-38, %v4316
      %v4318 = vsel %vm4315, %v4317, %v4313
      %v4319 = vmul.f32 1.0, %v4318
      %v4320 = vrcp.pop %v4033
      %v4321 = vmul.f32 %v4033, %v4320
      %v4322 = vsub.f32 1.0, %v4321
      %v4323 = vmul.f32 %v4320, %v4322
      %v4324 = vadd.f32 %v4320, %v4323
      %vm4325 = vweird.f32 %v4033
      %vm4326 = vweird.f32 %v4320
      %vm4327 = vmor %vm4325, %vm4326
      %v4328 = vsel %vm4327, %v4320, %v4324
      %v4329 = vand.u32 2147483647, %v4033
      %vm4330 = vcmp.eq.f32.partialorder %v4329, 8.507059e+37
      %v4331 = vand.u32 %v4033, 2147483648
      %v4332 = vor.u32 1.1754944e-38, %v4331
      %v4333 = vsel %vm4330, %v4332, %v4328
      %v4334 = vmul.f32 1.0, %v4333
      %v4335 = vrcp.pop %v4034
      %v4336 = vmul.f32 %v4034, %v4335
      %v4337 = vsub.f32 1.0, %v4336
      %v4338 = vmul.f32 %v4335, %v4337
      %v4339 = vadd.f32 %v4335, %v4338
      %vm4340 = vweird.f32 %v4034
      %vm4341 = vweird.f32 %v4335
      %vm4342 = vmor %vm4340, %vm4341
      %v4343 = vsel %vm4342, %v4335, %v4339
      %v4344 = vand.u32 2147483647, %v4034
      %vm4345 = vcmp.eq.f32.partialorder %v4344, 8.507059e+37
      %v4346 = vand.u32 %v4034, 2147483648
      %v4347 = vor.u32 1.1754944e-38, %v4346
      %v4348 = vsel %vm4345, %v4347, %v4343
      %v4349 = vmul.f32 1.0, %v4348
      %v4350 = vrcp.pop %v4035
      %v4351 = vmul.f32 %v4035, %v4350
      %v4352 = vsub.f32 1.0, %v4351
      %v4353 = vmul.f32 %v4350, %v4352
      %v4354 = vadd.f32 %v4350, %v4353
      %vm4355 = vweird.f32 %v4035
      %vm4356 = vweird.f32 %v4350
      %vm4357 = vmor %vm4355, %vm4356
      %v4358 = vsel %vm4357, %v4350, %v4354
      %v4359 = vand.u32 2147483647, %v4035
      %vm4360 = vcmp.eq.f32.partialorder %v4359, 8.507059e+37
      %v4361 = vand.u32 %v4035, 2147483648
      %v4362 = vor.u32 1.1754944e-38, %v4361
      %v4363 = vsel %vm4360, %v4362, %v4358
      %v4364 = vmul.f32 1.0, %v4363
      %v4365 = vrcp.pop %v4036
      %v4366 = vmul.f32 %v4036, %v4365
      %v4367 = vsub.f32 1.0, %v4366
      %v4368 = vmul.f32 %v4365, %v4367
      %v4369 = vadd.f32 %v4365, %v4368
      %vm4370 = vweird.f32 %v4036
      %vm4371 = vweird.f32 %v4365
      %vm4372 = vmor %vm4370, %vm4371
      %v4373 = vsel %vm4372, %v4365, %v4369
      %v4374 = vand.u32 2147483647, %v4036
      %vm4375 = vcmp.eq.f32.partialorder %v4374, 8.507059e+37
      %v4376 = vand.u32 %v4036, 2147483648
      %v4377 = vor.u32 1.1754944e-38, %v4376
      %v4378 = vsel %vm4375, %v4377, %v4373
      %v4379 = vmul.f32 1.0, %v4378
      %v4380 = vrcp.pop %v4037
      %v4381 = vmul.f32 %v4037, %v4380
      %v4382 = vsub.f32 1.0, %v4381
      %v4383 = vmul.f32 %v4380, %v4382
      %v4384 = vadd.f32 %v4380, %v4383
      %vm4385 = vweird.f32 %v4037
      %vm4386 = vweird.f32 %v4380
      %vm4387 = vmor %vm4385, %vm4386
      %v4388 = vsel %vm4387, %v4380, %v4384
      %v4389 = vand.u32 2147483647, %v4037
      %vm4390 = vcmp.eq.f32.partialorder %v4389, 8.507059e+37
      %v4391 = vand.u32 %v4037, 2147483648
      %v4392 = vor.u32 1.1754944e-38, %v4391
      %v4393 = vsel %vm4390, %v4392, %v4388
      %v4394 = vmul.f32 1.0, %v4393
      %v4395 = vrcp.pop %v4038
      %v4396 = vmul.f32 %v4038, %v4395
      %v4397 = vsub.f32 1.0, %v4396
      %v4398 = vmul.f32 %v4395, %v4397
      %v4399 = vadd.f32 %v4395, %v4398
      %vm4400 = vweird.f32 %v4038
      %vm4401 = vweird.f32 %v4395
      %vm4402 = vmor %vm4400, %vm4401
      %v4403 = vsel %vm4402, %v4395, %v4399
      %v4404 = vand.u32 2147483647, %v4038
      %vm4405 = vcmp.eq.f32.partialorder %v4404, 8.507059e+37
      %v4406 = vand.u32 %v4038, 2147483648
      %v4407 = vor.u32 1.1754944e-38, %v4406
      %v4408 = vsel %vm4405, %v4407, %v4403
      %v4409 = vmul.f32 1.0, %v4408
      %v4410 = vrcp.pop %v4039
      %v4411 = vmul.f32 %v4039, %v4410
      %v4412 = vsub.f32 1.0, %v4411
      %v4413 = vmul.f32 %v4410, %v4412
      %v4414 = vadd.f32 %v4410, %v4413
      %vm4415 = vweird.f32 %v4039
      %vm4416 = vweird.f32 %v4410
      %vm4417 = vmor %vm4415, %vm4416
      %v4418 = vsel %vm4417, %v4410, %v4414
      %v4419 = vand.u32 2147483647, %v4039
      %vm4420 = vcmp.eq.f32.partialorder %v4419, 8.507059e+37
      %v4421 = vand.u32 %v4039, 2147483648
      %v4422 = vor.u32 1.1754944e-38, %v4421
      %v4423 = vsel %vm4420, %v4422, %v4418
      %v4424 = vmul.f32 1.0, %v4423
      %v4425 = vrcp.pop %v4040
      %v4426 = vmul.f32 %v4040, %v4425
      %v4427 = vsub.f32 1.0, %v4426
      %v4428 = vmul.f32 %v4425, %v4427
      %v4429 = vadd.f32 %v4425, %v4428
      %vm4430 = vweird.f32 %v4040
      %vm4431 = vweird.f32 %v4425
      %vm4432 = vmor %vm4430, %vm4431
      %v4433 = vsel %vm4432, %v4425, %v4429
      %v4434 = vand.u32 2147483647, %v4040
      %vm4435 = vcmp.eq.f32.partialorder %v4434, 8.507059e+37
      %v4436 = vand.u32 %v4040, 2147483648
      %v4437 = vor.u32 1.1754944e-38, %v4436
      %v4438 = vsel %vm4435, %v4437, %v4433
      %v4439 = vmul.f32 1.0, %v4438
      %v4440 = vrcp.pop %v4041
      %v4441 = vmul.f32 %v4041, %v4440
      %v4442 = vsub.f32 1.0, %v4441
      %v4443 = vmul.f32 %v4440, %v4442
      %v4444 = vadd.f32 %v4440, %v4443
      %vm4445 = vweird.f32 %v4041
      %vm4446 = vweird.f32 %v4440
      %vm4447 = vmor %vm4445, %vm4446
      %v4448 = vsel %vm4447, %v4440, %v4444
      %v4449 = vand.u32 2147483647, %v4041
      %vm4450 = vcmp.eq.f32.partialorder %v4449, 8.507059e+37
      %v4451 = vand.u32 %v4041, 2147483648
      %v4452 = vor.u32 1.1754944e-38, %v4451
      %v4453 = vsel %vm4450, %v4452, %v4448
      %v4454 = vmul.f32 1.0, %v4453
      %v4455 = vrcp.pop %v4042
      %v4456 = vmul.f32 %v4042, %v4455
      %v4457 = vsub.f32 1.0, %v4456
      %v4458 = vmul.f32 %v4455, %v4457
      %v4459 = vadd.f32 %v4455, %v4458
      %vm4460 = vweird.f32 %v4042
      %vm4461 = vweird.f32 %v4455
      %vm4462 = vmor %vm4460, %vm4461
      %v4463 = vsel %vm4462, %v4455, %v4459
      %v4464 = vand.u32 2147483647, %v4042
      %vm4465 = vcmp.eq.f32.partialorder %v4464, 8.507059e+37
      %v4466 = vand.u32 %v4042, 2147483648
      %v4467 = vor.u32 1.1754944e-38, %v4466
      %v4468 = vsel %vm4465, %v4467, %v4463
      %v4469 = vmul.f32 1.0, %v4468
      %v4470 = vrcp.pop %v4043
      %v4471 = vmul.f32 %v4043, %v4470
      %v4472 = vsub.f32 1.0, %v4471
      %v4473 = vmul.f32 %v4470, %v4472
      %v4474 = vadd.f32 %v4470, %v4473
      %vm4475 = vweird.f32 %v4043
      %vm4476 = vweird.f32 %v4470
      %vm4477 = vmor %vm4475, %vm4476
      %v4478 = vsel %vm4477, %v4470, %v4474
      %v4479 = vand.u32 2147483647, %v4043
      %vm4480 = vcmp.eq.f32.partialorder %v4479, 8.507059e+37
      %v4481 = vand.u32 %v4043, 2147483648
      %v4482 = vor.u32 1.1754944e-38, %v4481
      %v4483 = vsel %vm4480, %v4482, %v4478
      %v4484 = vmul.f32 1.0, %v4483
      %v4485 = vrcp.pop %v4044
      %v4486 = vmul.f32 %v4044, %v4485
      %v4487 = vsub.f32 1.0, %v4486
      %v4488 = vmul.f32 %v4485, %v4487
      %v4489 = vadd.f32 %v4485, %v4488
      %vm4490 = vweird.f32 %v4044
      %vm4491 = vweird.f32 %v4485
      %vm4492 = vmor %vm4490, %vm4491
      %v4493 = vsel %vm4492, %v4485, %v4489
      %v4494 = vand.u32 2147483647, %v4044
      %vm4495 = vcmp.eq.f32.partialorder %v4494, 8.507059e+37
      %v4496 = vand.u32 %v4044, 2147483648
      %v4497 = vor.u32 1.1754944e-38, %v4496
      %v4498 = vsel %vm4495, %v4497, %v4493
      %v4499 = vmul.f32 1.0, %v4498
      %v4500 = vrcp.pop %v4045
      %v4501 = vmul.f32 %v4045, %v4500
      %v4502 = vsub.f32 1.0, %v4501
      %v4503 = vmul.f32 %v4500, %v4502
      %v4504 = vadd.f32 %v4500, %v4503
      %vm4505 = vweird.f32 %v4045
      %vm4506 = vweird.f32 %v4500
      %vm4507 = vmor %vm4505, %vm4506
      %v4508 = vsel %vm4507, %v4500, %v4504
      %v4509 = vand.u32 2147483647, %v4045
      %vm4510 = vcmp.eq.f32.partialorder %v4509, 8.507059e+37
      %v4511 = vand.u32 %v4045, 2147483648
      %v4512 = vor.u32 1.1754944e-38, %v4511
      %v4513 = vsel %vm4510, %v4512, %v4508
      %v4514 = vmul.f32 1.0, %v4513
      %v4515 = vrcp.pop %v4046
      %v4516 = vmul.f32 %v4046, %v4515
      %v4517 = vsub.f32 1.0, %v4516
      %v4518 = vmul.f32 %v4515, %v4517
      %v4519 = vadd.f32 %v4515, %v4518
      %vm4520 = vweird.f32 %v4046
      %vm4521 = vweird.f32 %v4515
      %vm4522 = vmor %vm4520, %vm4521
      %v4523 = vsel %vm4522, %v4515, %v4519
      %v4524 = vand.u32 2147483647, %v4046
      %vm4525 = vcmp.eq.f32.partialorder %v4524, 8.507059e+37
      %v4526 = vand.u32 %v4046, 2147483648
      %v4527 = vor.u32 1.1754944e-38, %v4526
      %v4528 = vsel %vm4525, %v4527, %v4523
      %v4529 = vmul.f32 1.0, %v4528
      %v4530 = vrcp.pop %v4047
      %v4531 = vmul.f32 %v4047, %v4530
      %v4532 = vsub.f32 1.0, %v4531
      %v4533 = vmul.f32 %v4530, %v4532
      %v4534 = vadd.f32 %v4530, %v4533
      %vm4535 = vweird.f32 %v4047
      %vm4536 = vweird.f32 %v4530
      %vm4537 = vmor %vm4535, %vm4536
      %v4538 = vsel %vm4537, %v4530, %v4534
      %v4539 = vand.u32 2147483647, %v4047
      %vm4540 = vcmp.eq.f32.partialorder %v4539, 8.507059e+37
      %v4541 = vand.u32 %v4047, 2147483648
      %v4542 = vor.u32 1.1754944e-38, %v4541
      %v4543 = vsel %vm4540, %v4542, %v4538
      %v4544 = vmul.f32 1.0, %v4543
      %v4545 = vrcp.pop %v4048
      %v4546 = vmul.f32 %v4048, %v4545
      %v4547 = vsub.f32 1.0, %v4546
      %v4548 = vmul.f32 %v4545, %v4547
      %v4549 = vadd.f32 %v4545, %v4548
      %vm4550 = vweird.f32 %v4048
      %vm4551 = vweird.f32 %v4545
      %vm4552 = vmor %vm4550, %vm4551
      %v4553 = vsel %vm4552, %v4545, %v4549
      %v4554 = vand.u32 2147483647, %v4048
      %vm4555 = vcmp.eq.f32.partialorder %v4554, 8.507059e+37
      %v4556 = vand.u32 %v4048, 2147483648
      %v4557 = vor.u32 1.1754944e-38, %v4556
      %v4558 = vsel %vm4555, %v4557, %v4553
      %v4559 = vmul.f32 1.0, %v4558
      %v4560 = vrcp.pop %v4049
      %v4561 = vmul.f32 %v4049, %v4560
      %v4562 = vsub.f32 1.0, %v4561
      %v4563 = vmul.f32 %v4560, %v4562
      %v4564 = vadd.f32 %v4560, %v4563
      %vm4565 = vweird.f32 %v4049
      %vm4566 = vweird.f32 %v4560
      %vm4567 = vmor %vm4565, %vm4566
      %v4568 = vsel %vm4567, %v4560, %v4564
      %v4569 = vand.u32 2147483647, %v4049
      %vm4570 = vcmp.eq.f32.partialorder %v4569, 8.507059e+37
      %v4571 = vand.u32 %v4049, 2147483648
      %v4572 = vor.u32 1.1754944e-38, %v4571
      %v4573 = vsel %vm4570, %v4572, %v4568
      %v4574 = vmul.f32 1.0, %v4573
      %v4575 = vmul.f32 %v3269, %v4064
      %v4576 = vmul.f32 %v3270, %v4079
      %v4577 = vmul.f32 %v3271, %v4094
      %v4578 = vmul.f32 %v3272, %v4109
      %v4579 = vmul.f32 %v3273, %v4124
      %v4580 = vmul.f32 %v3274, %v4139
      %v4581 = vmul.f32 %v3275, %v4154
      %v4582 = vmul.f32 %v3276, %v4169
      %v4583 = vmul.f32 %v3277, %v4184
      %v4584 = vmul.f32 %v3278, %v4199
      %v4585 = vmul.f32 %v3279, %v4214
      %v4586 = vmul.f32 %v3280, %v4229
      %v4587 = vmul.f32 %v3281, %v4244
      %v4588 = vmul.f32 %v3282, %v4259
      %v4589 = vmul.f32 %v3283, %v4274
      %v4590 = vmul.f32 %v3284, %v4289
      %v4591 = vmul.f32 %v3285, %v4304
      %v4592 = vmul.f32 %v3286, %v4319
      %v4593 = vmul.f32 %v3287, %v4334
      %v4594 = vmul.f32 %v3288, %v4349
      %v4595 = vmul.f32 %v3289, %v4364
      %v4596 = vmul.f32 %v3290, %v4379
      %v4597 = vmul.f32 %v3291, %v4394
      %v4598 = vmul.f32 %v3292, %v4409
      %v4599 = vmul.f32 %v3293, %v4424
      %v4600 = vmul.f32 %v3294, %v4439
      %v4601 = vmul.f32 %v3295, %v4454
      %v4602 = vmul.f32 %v3296, %v4469
      %v4603 = vmul.f32 %v3297, %v4484
      %v4604 = vmul.f32 %v3298, %v4499
      %v4605 = vmul.f32 %v3299, %v4514
      %v4606 = vmul.f32 %v3300, %v4529
      %v4607 = vmul.f32 %v3301, %v4544
      %v4608 = vmul.f32 %v3302, %v4559
      %v4609 = vmul.f32 %v3303, %v4574
      %vm4610 = vcmp.ge.f32.partialorder %v4575, 0.0
      %vm4611 = vcmp.ge.f32.partialorder %v4576, 0.0
      %vm4612 = vcmp.ge.f32.partialorder %v4577, 0.0
      %vm4613 = vcmp.ge.f32.partialorder %v4578, 0.0
      %vm4614 = vcmp.ge.f32.partialorder %v4579, 0.0
      %vm4615 = vcmp.ge.f32.partialorder %v4580, 0.0
      %vm4616 = vcmp.ge.f32.partialorder %v4581, 0.0
      %vm4617 = vcmp.ge.f32.partialorder %v4582, 0.0
      %vm4618 = vcmp.ge.f32.partialorder %v4583, 0.0
      %vm4619 = vcmp.ge.f32.partialorder %v4584, 0.0
      %vm4620 = vcmp.ge.f32.partialorder %v4585, 0.0
      %vm4621 = vcmp.ge.f32.partialorder %v4586, 0.0
      %vm4622 = vcmp.ge.f32.partialorder %v4587, 0.0
      %vm4623 = vcmp.ge.f32.partialorder %v4588, 0.0
      %vm4624 = vcmp.ge.f32.partialorder %v4589, 0.0
      %vm4625 = vcmp.ge.f32.partialorder %v4590, 0.0
      %vm4626 = vcmp.ge.f32.partialorder %v4591, 0.0
      %vm4627 = vcmp.ge.f32.partialorder %v4592, 0.0
      %vm4628 = vcmp.ge.f32.partialorder %v4593, 0.0
      %vm4629 = vcmp.ge.f32.partialorder %v4594, 0.0
      %vm4630 = vcmp.ge.f32.partialorder %v4595, 0.0
      %vm4631 = vcmp.ge.f32.partialorder %v4596, 0.0
      %vm4632 = vcmp.ge.f32.partialorder %v4597, 0.0
      %vm4633 = vcmp.ge.f32.partialorder %v4598, 0.0
      %vm4634 = vcmp.ge.f32.partialorder %v4599, 0.0
      %vm4635 = vcmp.ge.f32.partialorder %v4600, 0.0
      %vm4636 = vcmp.ge.f32.partialorder %v4601, 0.0
      %vm4637 = vcmp.ge.f32.partialorder %v4602, 0.0
      %vm4638 = vcmp.ge.f32.partialorder %v4603, 0.0
      %vm4639 = vcmp.ge.f32.partialorder %v4604, 0.0
      %vm4640 = vcmp.ge.f32.partialorder %v4605, 0.0
      %vm4641 = vcmp.ge.f32.partialorder %v4606, 0.0
      %vm4642 = vcmp.ge.f32.partialorder %v4607, 0.0
      %vm4643 = vcmp.ge.f32.partialorder %v4608, 0.0
      %vm4644 = vcmp.ge.f32.partialorder %v4609, 0.0
      %v4645 = vmul.f32 %v4575, 0.2
      %v4646 = vmul.f32 %v4576, 0.2
      %v4647 = vmul.f32 %v4577, 0.2
      %v4648 = vmul.f32 %v4578, 0.2
      %v4649 = vmul.f32 %v4579, 0.2
      %v4650 = vmul.f32 %v4580, 0.2
      %v4651 = vmul.f32 %v4581, 0.2
      %v4652 = vmul.f32 %v4582, 0.2
      %v4653 = vmul.f32 %v4583, 0.2
      %v4654 = vmul.f32 %v4584, 0.2
      %v4655 = vmul.f32 %v4585, 0.2
      %v4656 = vmul.f32 %v4586, 0.2
      %v4657 = vmul.f32 %v4587, 0.2
      %v4658 = vmul.f32 %v4588, 0.2
      %v4659 = vmul.f32 %v4589, 0.2
      %v4660 = vmul.f32 %v4590, 0.2
      %v4661 = vmul.f32 %v4591, 0.2
      %v4662 = vmul.f32 %v4592, 0.2
      %v4663 = vmul.f32 %v4593, 0.2
      %v4664 = vmul.f32 %v4594, 0.2
      %v4665 = vmul.f32 %v4595, 0.2
      %v4666 = vmul.f32 %v4596, 0.2
      %v4667 = vmul.f32 %v4597, 0.2
      %v4668 = vmul.f32 %v4598, 0.2
      %v4669 = vmul.f32 %v4599, 0.2
      %v4670 = vmul.f32 %v4600, 0.2
      %v4671 = vmul.f32 %v4601, 0.2
      %v4672 = vmul.f32 %v4602, 0.2
      %v4673 = vmul.f32 %v4603, 0.2
      %v4674 = vmul.f32 %v4604, 0.2
      %v4675 = vmul.f32 %v4605, 0.2
      %v4676 = vmul.f32 %v4606, 0.2
      %v4677 = vmul.f32 %v4607, 0.2
      %v4678 = vmul.f32 %v4608, 0.2
      %v4679 = vmul.f32 %v4609, 0.2
      %v4680 = vsel %vm4610, %v4575, %v4645
      %v4681 = vsel %vm4611, %v4576, %v4646
      %v4682 = vsel %vm4612, %v4577, %v4647
      %v4683 = vsel %vm4613, %v4578, %v4648
      %v4684 = vsel %vm4614, %v4579, %v4649
      %v4685 = vsel %vm4615, %v4580, %v4650
      %v4686 = vsel %vm4616, %v4581, %v4651
      %v4687 = vsel %vm4617, %v4582, %v4652
      %v4688 = vsel %vm4618, %v4583, %v4653
      %v4689 = vsel %vm4619, %v4584, %v4654
      %v4690 = vsel %vm4620, %v4585, %v4655
      %v4691 = vsel %vm4621, %v4586, %v4656
      %v4692 = vsel %vm4622, %v4587, %v4657
      %v4693 = vsel %vm4623, %v4588, %v4658
      %v4694 = vsel %vm4624, %v4589, %v4659
      %v4695 = vsel %vm4625, %v4590, %v4660
      %v4696 = vsel %vm4626, %v4591, %v4661
      %v4697 = vsel %vm4627, %v4592, %v4662
      %v4698 = vsel %vm4628, %v4593, %v4663
      %v4699 = vsel %vm4629, %v4594, %v4664
      %v4700 = vsel %vm4630, %v4595, %v4665
      %v4701 = vsel %vm4631, %v4596, %v4666
      %v4702 = vsel %vm4632, %v4597, %v4667
      %v4703 = vsel %vm4633, %v4598, %v4668
      %v4704 = vsel %vm4634, %v4599, %v4669
      %v4705 = vsel %vm4635, %v4600, %v4670
      %v4706 = vsel %vm4636, %v4601, %v4671
      %v4707 = vsel %vm4637, %v4602, %v4672
      %v4708 = vsel %vm4638, %v4603, %v4673
      %v4709 = vsel %vm4639, %v4604, %v4674
      %v4710 = vsel %vm4640, %v4605, %v4675
      %v4711 = vsel %vm4641, %v4606, %v4676
      %v4712 = vsel %vm4642, %v4607, %v4677
      %v4713 = vsel %vm4643, %v4608, %v4678
      %v4714 = vsel %vm4644, %v4609, %v4679
      %v4715 = vpack.c.bf16 %v4681, %v4680
      %v4716 = vpack.c.bf16 %v4683, %v4682
      %v4717 = vpack.c.bf16 %v4685, %v4684
      %v4718 = vpack.c.bf16 %v4687, %v4686
      %v4719 = vpack.c.bf16 %v4689, %v4688
      %v4720 = vpack.c.bf16 %v4691, %v4690
      %v4721 = vpack.c.bf16 %v4693, %v4692
      %v4722 = vpack.c.bf16 %v4695, %v4694
      %v4723 = vpack.c.bf16 %v4697, %v4696
      %v4724 = vpack.c.bf16 %v4699, %v4698
      %v4725 = vpack.c.bf16 %v4701, %v4700
      %v4726 = vpack.c.bf16 %v4703, %v4702
      %v4727 = vpack.c.bf16 %v4705, %v4704
      %v4728 = vpack.c.bf16 %v4707, %v4706
      %v4729 = vpack.c.bf16 %v4709, %v4708
      %v4730 = vpack.c.bf16 %v4711, %v4710
      %v4731 = vpack.c.bf16 %v4713, %v4712
      %v4732 = vpack.c.bf16 %v4714, %v4714
      %v4751 = vunpack.c.l.b16 %v4715
      %v4752 = vunpack.c.h.b16 %v4715
      %v4753 = vunpack.c.l.b16 %v4716
      %v4754 = vunpack.c.h.b16 %v4716
      %v4755 = vunpack.c.l.b16 %v4717
      %v4756 = vunpack.c.h.b16 %v4717
      %v4757 = vunpack.c.l.b16 %v4718
      %v4758 = vunpack.c.h.b16 %v4718
      %v4759 = vunpack.c.l.b16 %v4719
      %v4760 = vunpack.c.h.b16 %v4719
      %v4761 = vunpack.c.l.b16 %v4720
      %v4762 = vunpack.c.h.b16 %v4720
      %v4763 = vunpack.c.l.b16 %v4721
      %v4764 = vunpack.c.h.b16 %v4721
      %v4765 = vunpack.c.l.b16 %v4722
      %v4766 = vunpack.c.h.b16 %v4722
      %v4767 = vunpack.c.l.b16 %v4723
      %v4768 = vunpack.c.h.b16 %v4723
      %v4769 = vunpack.c.l.b16 %v4724
      %v4770 = vunpack.c.h.b16 %v4724
      %v4771 = vunpack.c.l.b16 %v4725
      %v4772 = vunpack.c.h.b16 %v4725
      %v4773 = vunpack.c.l.b16 %v4726
      %v4774 = vunpack.c.h.b16 %v4726
      %v4775 = vunpack.c.l.b16 %v4727
      %v4776 = vunpack.c.h.b16 %v4727
      %v4777 = vunpack.c.l.b16 %v4728
      %v4778 = vunpack.c.h.b16 %v4728
      %v4779 = vunpack.c.l.b16 %v4729
      %v4780 = vunpack.c.h.b16 %v4729
      %v4781 = vunpack.c.l.b16 %v4730
      %v4782 = vunpack.c.h.b16 %v4730
      %v4783 = vunpack.c.l.b16 %v4731
      %v4784 = vunpack.c.h.b16 %v4731
      %v4785 = vunpack.c.l.b16 %v4732
      %v4786 = vpack.c.b16 %v4751, %v4751
      %v4787 = vpack.c.b16 %v4752, %v4752
      %v4788 = vpack.c.b16 %v4753, %v4753
      %v4789 = vpack.c.b16 %v4754, %v4754
      %v4790 = vpack.c.b16 %v4755, %v4755
      %v4791 = vpack.c.b16 %v4756, %v4756
      %v4792 = vpack.c.b16 %v4757, %v4757
      %v4793 = vpack.c.b16 %v4758, %v4758
      %v4794 = vpack.c.b16 %v4759, %v4759
      %v4795 = vpack.c.b16 %v4760, %v4760
      %v4796 = vpack.c.b16 %v4761, %v4761
      %v4797 = vpack.c.b16 %v4762, %v4762
      %v4798 = vpack.c.b16 %v4763, %v4763
      %v4799 = vpack.c.b16 %v4764, %v4764
      %v4800 = vpack.c.b16 %v4765, %v4765
      %v4801 = vpack.c.b16 %v4766, %v4766
      %v4802 = vpack.c.b16 %v4767, %v4767
      %v4803 = vpack.c.b16 %v4768, %v4768
      %v4804 = vpack.c.b16 %v4769, %v4769
      %v4805 = vpack.c.b16 %v4770, %v4770
      %v4806 = vpack.c.b16 %v4771, %v4771
      %v4807 = vpack.c.b16 %v4772, %v4772
      %v4808 = vpack.c.b16 %v4773, %v4773
      %v4809 = vpack.c.b16 %v4774, %v4774
      %v4810 = vpack.c.b16 %v4775, %v4775
      %v4811 = vpack.c.b16 %v4776, %v4776
      %v4812 = vpack.c.b16 %v4777, %v4777
      %v4813 = vpack.c.b16 %v4778, %v4778
      %v4814 = vpack.c.b16 %v4779, %v4779
      %v4815 = vpack.c.b16 %v4780, %v4780
      %v4816 = vpack.c.b16 %v4781, %v4781
      %v4817 = vpack.c.b16 %v4782, %v4782
      %v4818 = vpack.c.b16 %v4783, %v4783
      %v4819 = vpack.c.b16 %v4784, %v4784
      %v4820 = vpack.c.b16 %v4785, %v4785
      %v4821 = vrot.slane %v4786, 4
      %v4822 = vrot.slane %v4787, 4
      %v4823 = vrot.slane %v4788, 4
      %v4824 = vrot.slane %v4789, 4
      %v4825 = vrot.slane %v4790, 4
      %v4826 = vrot.slane %v4791, 4
      %v4827 = vrot.slane %v4792, 4
      %v4828 = vrot.slane %v4793, 4
      %v4829 = vrot.slane %v4794, 4
      %v4830 = vrot.slane %v4795, 4
      %v4831 = vrot.slane %v4796, 4
      %v4832 = vrot.slane %v4797, 4
      %v4833 = vrot.slane %v4798, 4
      %v4834 = vrot.slane %v4799, 4
      %v4835 = vrot.slane %v4800, 4
      %v4836 = vrot.slane %v4801, 4
      %v4837 = vrot.slane %v4802, 4
      %v4838 = vrot.slane %v4803, 4
      %v4839 = vrot.slane %v4804, 4
      %v4840 = vrot.slane %v4805, 4
      %v4841 = vrot.slane %v4806, 4
      %v4842 = vrot.slane %v4807, 4
      %v4843 = vrot.slane %v4808, 4
      %v4844 = vrot.slane %v4809, 4
      %v4845 = vrot.slane %v4810, 4
      %v4846 = vrot.slane %v4811, 4
      %v4847 = vrot.slane %v4812, 4
      %v4848 = vrot.slane %v4813, 4
      %v4849 = vrot.slane %v4814, 4
      %v4850 = vrot.slane %v4815, 4
      %v4851 = vrot.slane %v4816, 4
      %v4852 = vrot.slane %v4817, 4
      %v4853 = vrot.slane %v4818, 4
      %v4854 = vrot.slane %v4819, 4
      %v4855 = vrot.slane %v4820, 4
      %4856 = vrot.lane.b32.xlu0 %v4821, 127
      %v4857 = vpop.permute.xlu0 %4856
      %4858 = vrot.lane.b32.xlu0 %v4822, 127
      %v4859 = vpop.permute.xlu0 %4858
      %4860 = vrot.lane.b32.xlu0 %v4823, 127
      %v4861 = vpop.permute.xlu0 %4860
      %4862 = vrot.lane.b32.xlu0 %v4824, 127
      %v4863 = vpop.permute.xlu0 %4862
      %4864 = vrot.lane.b32.xlu0 %v4825, 127
      %v4865 = vpop.permute.xlu0 %4864
      %4866 = vrot.lane.b32.xlu0 %v4826, 127
      %v4867 = vpop.permute.xlu0 %4866
      %4868 = vrot.lane.b32.xlu0 %v4827, 127
      %v4869 = vpop.permute.xlu0 %4868
      %4870 = vrot.lane.b32.xlu0 %v4828, 127
      %v4871 = vpop.permute.xlu0 %4870
      %4872 = vrot.lane.b32.xlu0 %v4829, 127
      %v4873 = vpop.permute.xlu0 %4872
      %4874 = vrot.lane.b32.xlu0 %v4830, 127
      %v4875 = vpop.permute.xlu0 %4874
      %4876 = vrot.lane.b32.xlu0 %v4831, 127
      %v4877 = vpop.permute.xlu0 %4876
      %4878 = vrot.lane.b32.xlu0 %v4832, 127
      %v4879 = vpop.permute.xlu0 %4878
      %4880 = vrot.lane.b32.xlu0 %v4833, 127
      %v4881 = vpop.permute.xlu0 %4880
      %4882 = vrot.lane.b32.xlu0 %v4834, 127
      %v4883 = vpop.permute.xlu0 %4882
      %4884 = vrot.lane.b32.xlu0 %v4835, 127
      %v4885 = vpop.permute.xlu0 %4884
      %4886 = vrot.lane.b32.xlu0 %v4836, 127
      %v4887 = vpop.permute.xlu0 %4886
      %4888 = vrot.lane.b32.xlu0 %v4837, 127
      %v4889 = vpop.permute.xlu0 %4888
      %4890 = vrot.lane.b32.xlu0 %v4838, 127
      %v4891 = vpop.permute.xlu0 %4890
      %4892 = vrot.lane.b32.xlu0 %v4839, 127
      %v4893 = vpop.permute.xlu0 %4892
      %4894 = vrot.lane.b32.xlu0 %v4840, 127
      %v4895 = vpop.permute.xlu0 %4894
      %4896 = vrot.lane.b32.xlu0 %v4841, 127
      %v4897 = vpop.permute.xlu0 %4896
      %4898 = vrot.lane.b32.xlu0 %v4842, 127
      %v4899 = vpop.permute.xlu0 %4898
      %4900 = vrot.lane.b32.xlu0 %v4843, 127
      %v4901 = vpop.permute.xlu0 %4900
      %4902 = vrot.lane.b32.xlu0 %v4844, 127
      %v4903 = vpop.permute.xlu0 %4902
      %4904 = vrot.lane.b32.xlu0 %v4845, 127
      %v4905 = vpop.permute.xlu0 %4904
      %4906 = vrot.lane.b32.xlu0 %v4846, 127
      %v4907 = vpop.permute.xlu0 %4906
      %4908 = vrot.lane.b32.xlu0 %v4847, 127
      %v4909 = vpop.permute.xlu0 %4908
      %4910 = vrot.lane.b32.xlu0 %v4848, 127
      %v4911 = vpop.permute.xlu0 %4910
      %4912 = vrot.lane.b32.xlu0 %v4849, 127
      %v4913 = vpop.permute.xlu0 %4912
      %4914 = vrot.lane.b32.xlu0 %v4850, 127
      %v4915 = vpop.permute.xlu0 %4914
      %4916 = vrot.lane.b32.xlu0 %v4851, 127
      %v4917 = vpop.permute.xlu0 %4916
      %4918 = vrot.lane.b32.xlu0 %v4852, 127
      %v4919 = vpop.permute.xlu0 %4918
      %4920 = vrot.lane.b32.xlu0 %v4853, 127
      %v4921 = vpop.permute.xlu0 %4920
      %4922 = vrot.lane.b32.xlu0 %v4854, 127
      %v4923 = vpop.permute.xlu0 %4922
      %4924 = vrot.lane.b32.xlu0 %v4855, 127
      %v4925 = vpop.permute.xlu0 %4924
      %v4926 = vsel %vm581, %v510, %v4857
      %v4927 = vsel %vm581, %v4857, %v4859
      %v4928 = vsel %vm581, %v4859, %v4861
      %v4929 = vsel %vm581, %v4861, %v4863
      %v4930 = vsel %vm581, %v4863, %v4865
      %v4931 = vsel %vm581, %v4865, %v4867
      %v4932 = vsel %vm581, %v4867, %v4869
      %v4933 = vsel %vm581, %v4869, %v4871
      %v4934 = vsel %vm581, %v4871, %v4873
      %v4935 = vsel %vm581, %v4873, %v4875
      %v4936 = vsel %vm581, %v4875, %v4877
      %v4937 = vsel %vm581, %v4877, %v4879
      %v4938 = vsel %vm581, %v4879, %v4881
      %v4939 = vsel %vm581, %v4881, %v4883
      %v4940 = vsel %vm581, %v4883, %v4885
      %v4941 = vsel %vm581, %v4885, %v4887
      %v4942 = vsel %vm581, %v4887, %v4889
      %v4943 = vsel %vm581, %v4889, %v4891
      %v4944 = vsel %vm581, %v4891, %v4893
      %v4945 = vsel %vm581, %v4893, %v4895
      %v4946 = vsel %vm581, %v4895, %v4897
      %v4947 = vsel %vm581, %v4897, %v4899
      %v4948 = vsel %vm581, %v4899, %v4901
      %v4949 = vsel %vm581, %v4901, %v4903
      %v4950 = vsel %vm581, %v4903, %v4905
      %v4951 = vsel %vm581, %v4905, %v4907
      %v4952 = vsel %vm581, %v4907, %v4909
      %v4953 = vsel %vm581, %v4909, %v4911
      %v4954 = vsel %vm581, %v4911, %v4913
      %v4955 = vsel %vm581, %v4913, %v4915
      %v4956 = vsel %vm581, %v4915, %v4917
      %v4957 = vsel %vm581, %v4917, %v4919
      %v4958 = vsel %vm581, %v4919, %v4921
      %v4959 = vsel %vm581, %v4921, %v4923
      %v4960 = vsel %vm581, %v4923, %v4925
      %4961 = vrot.lane.b32.xlu0 %v4786, 126
      %v4962 = vpop.permute.xlu0 %4961
      %4963 = vrot.lane.b32.xlu0 %v4787, 126
      %v4964 = vpop.permute.xlu0 %4963
      %4965 = vrot.lane.b32.xlu0 %v4788, 126
      %v4966 = vpop.permute.xlu0 %4965
      %4967 = vrot.lane.b32.xlu0 %v4789, 126
      %v4968 = vpop.permute.xlu0 %4967
      %4969 = vrot.lane.b32.xlu0 %v4790, 126
      %v4970 = vpop.permute.xlu0 %4969
      %4971 = vrot.lane.b32.xlu0 %v4791, 126
      %v4972 = vpop.permute.xlu0 %4971
      %4973 = vrot.lane.b32.xlu0 %v4792, 126
      %v4974 = vpop.permute.xlu0 %4973
      %4975 = vrot.lane.b32.xlu0 %v4793, 126
      %v4976 = vpop.permute.xlu0 %4975
      %4977 = vrot.lane.b32.xlu0 %v4794, 126
      %v4978 = vpop.permute.xlu0 %4977
      %4979 = vrot.lane.b32.xlu0 %v4795, 126
      %v4980 = vpop.permute.xlu0 %4979
      %4981 = vrot.lane.b32.xlu0 %v4796, 126
      %v4982 = vpop.permute.xlu0 %4981
      %4983 = vrot.lane.b32.xlu0 %v4797, 126
      %v4984 = vpop.permute.xlu0 %4983
      %4985 = vrot.lane.b32.xlu0 %v4798, 126
      %v4986 = vpop.permute.xlu0 %4985
      %4987 = vrot.lane.b32.xlu0 %v4799, 126
      %v4988 = vpop.permute.xlu0 %4987
      %4989 = vrot.lane.b32.xlu0 %v4800, 126
      %v4990 = vpop.permute.xlu0 %4989
      %4991 = vrot.lane.b32.xlu0 %v4801, 126
      %v4992 = vpop.permute.xlu0 %4991
      %4993 = vrot.lane.b32.xlu0 %v4802, 126
      %v4994 = vpop.permute.xlu0 %4993
      %4995 = vrot.lane.b32.xlu0 %v4803, 126
      %v4996 = vpop.permute.xlu0 %4995
      %4997 = vrot.lane.b32.xlu0 %v4804, 126
      %v4998 = vpop.permute.xlu0 %4997
      %4999 = vrot.lane.b32.xlu0 %v4805, 126
      %v5000 = vpop.permute.xlu0 %4999
      %5001 = vrot.lane.b32.xlu0 %v4806, 126
      %v5002 = vpop.permute.xlu0 %5001
      %5003 = vrot.lane.b32.xlu0 %v4807, 126
      %v5004 = vpop.permute.xlu0 %5003
      %5005 = vrot.lane.b32.xlu0 %v4808, 126
      %v5006 = vpop.permute.xlu0 %5005
      %5007 = vrot.lane.b32.xlu0 %v4809, 126
      %v5008 = vpop.permute.xlu0 %5007
      %5009 = vrot.lane.b32.xlu0 %v4810, 126
      %v5010 = vpop.permute.xlu0 %5009
      %5011 = vrot.lane.b32.xlu0 %v4811, 126
      %v5012 = vpop.permute.xlu0 %5011
      %5013 = vrot.lane.b32.xlu0 %v4812, 126
      %v5014 = vpop.permute.xlu0 %5013
      %5015 = vrot.lane.b32.xlu0 %v4813, 126
      %v5016 = vpop.permute.xlu0 %5015
      %5017 = vrot.lane.b32.xlu0 %v4814, 126
      %v5018 = vpop.permute.xlu0 %5017
      %5019 = vrot.lane.b32.xlu0 %v4815, 126
      %v5020 = vpop.permute.xlu0 %5019
      %5021 = vrot.lane.b32.xlu0 %v4816, 126
      %v5022 = vpop.permute.xlu0 %5021
      %5023 = vrot.lane.b32.xlu0 %v4817, 126
      %v5024 = vpop.permute.xlu0 %5023
      %5025 = vrot.lane.b32.xlu0 %v4818, 126
      %v5026 = vpop.permute.xlu0 %5025
      %5027 = vrot.lane.b32.xlu0 %v4819, 126
      %v5028 = vpop.permute.xlu0 %5027
      %5029 = vrot.lane.b32.xlu0 %v4820, 126
      %v5030 = vpop.permute.xlu0 %5029
      %v5031 = vsel %vm689, %v618, %v4962
      %v5032 = vsel %vm689, %v4962, %v4964
      %v5033 = vsel %vm689, %v4964, %v4966
      %v5034 = vsel %vm689, %v4966, %v4968
      %v5035 = vsel %vm689, %v4968, %v4970
      %v5036 = vsel %vm689, %v4970, %v4972
      %v5037 = vsel %vm689, %v4972, %v4974
      %v5038 = vsel %vm689, %v4974, %v4976
      %v5039 = vsel %vm689, %v4976, %v4978
      %v5040 = vsel %vm689, %v4978, %v4980
      %v5041 = vsel %vm689, %v4980, %v4982
      %v5042 = vsel %vm689, %v4982, %v4984
      %v5043 = vsel %vm689, %v4984, %v4986
      %v5044 = vsel %vm689, %v4986, %v4988
      %v5045 = vsel %vm689, %v4988, %v4990
      %v5046 = vsel %vm689, %v4990, %v4992
      %v5047 = vsel %vm689, %v4992, %v4994
      %v5048 = vsel %vm689, %v4994, %v4996
      %v5049 = vsel %vm689, %v4996, %v4998
      %v5050 = vsel %vm689, %v4998, %v5000
      %v5051 = vsel %vm689, %v5000, %v5002
      %v5052 = vsel %vm689, %v5002, %v5004
      %v5053 = vsel %vm689, %v5004, %v5006
      %v5054 = vsel %vm689, %v5006, %v5008
      %v5055 = vsel %vm689, %v5008, %v5010
      %v5056 = vsel %vm689, %v5010, %v5012
      %v5057 = vsel %vm689, %v5012, %v5014
      %v5058 = vsel %vm689, %v5014, %v5016
      %v5059 = vsel %vm689, %v5016, %v5018
      %v5060 = vsel %vm689, %v5018, %v5020
      %v5061 = vsel %vm689, %v5020, %v5022
      %v5062 = vsel %vm689, %v5022, %v5024
      %v5063 = vsel %vm689, %v5024, %v5026
      %v5064 = vsel %vm689, %v5026, %v5028
      %v5065 = vsel %vm689, %v5028, %v5030
      %5066 = vrot.lane.b32.xlu0 %v4821, 62
      %v5067 = vpop.permute.xlu0 %5066
      %5068 = vrot.lane.b32.xlu0 %v4822, 62
      %v5069 = vpop.permute.xlu0 %5068
      %5070 = vrot.lane.b32.xlu0 %v4823, 62
      %v5071 = vpop.permute.xlu0 %5070
      %5072 = vrot.lane.b32.xlu0 %v4824, 62
      %v5073 = vpop.permute.xlu0 %5072
      %5074 = vrot.lane.b32.xlu0 %v4825, 62
      %v5075 = vpop.permute.xlu0 %5074
      %5076 = vrot.lane.b32.xlu0 %v4826, 62
      %v5077 = vpop.permute.xlu0 %5076
      %5078 = vrot.lane.b32.xlu0 %v4827, 62
      %v5079 = vpop.permute.xlu0 %5078
      %5080 = vrot.lane.b32.xlu0 %v4828, 62
      %v5081 = vpop.permute.xlu0 %5080
      %5082 = vrot.lane.b32.xlu0 %v4829, 62
      %v5083 = vpop.permute.xlu0 %5082
      %5084 = vrot.lane.b32.xlu0 %v4830, 62
      %v5085 = vpop.permute.xlu0 %5084
      %5086 = vrot.lane.b32.xlu0 %v4831, 62
      %v5087 = vpop.permute.xlu0 %5086
      %5088 = vrot.lane.b32.xlu0 %v4832, 62
      %v5089 = vpop.permute.xlu0 %5088
      %5090 = vrot.lane.b32.xlu0 %v4833, 62
      %v5091 = vpop.permute.xlu0 %5090
      %5092 = vrot.lane.b32.xlu0 %v4834, 62
      %v5093 = vpop.permute.xlu0 %5092
      %5094 = vrot.lane.b32.xlu0 %v4835, 62
      %v5095 = vpop.permute.xlu0 %5094
      %5096 = vrot.lane.b32.xlu0 %v4836, 62
      %v5097 = vpop.permute.xlu0 %5096
      %5098 = vrot.lane.b32.xlu0 %v4837, 62
      %v5099 = vpop.permute.xlu0 %5098
      %5100 = vrot.lane.b32.xlu0 %v4838, 62
      %v5101 = vpop.permute.xlu0 %5100
      %5102 = vrot.lane.b32.xlu0 %v4839, 62
      %v5103 = vpop.permute.xlu0 %5102
      %5104 = vrot.lane.b32.xlu0 %v4840, 62
      %v5105 = vpop.permute.xlu0 %5104
      %5106 = vrot.lane.b32.xlu0 %v4841, 62
      %v5107 = vpop.permute.xlu0 %5106
      %5108 = vrot.lane.b32.xlu0 %v4842, 62
      %v5109 = vpop.permute.xlu0 %5108
      %5110 = vrot.lane.b32.xlu0 %v4843, 62
      %v5111 = vpop.permute.xlu0 %5110
      %5112 = vrot.lane.b32.xlu0 %v4844, 62
      %v5113 = vpop.permute.xlu0 %5112
      %5114 = vrot.lane.b32.xlu0 %v4845, 62
      %v5115 = vpop.permute.xlu0 %5114
      %5116 = vrot.lane.b32.xlu0 %v4846, 62
      %v5117 = vpop.permute.xlu0 %5116
      %5118 = vrot.lane.b32.xlu0 %v4847, 62
      %v5119 = vpop.permute.xlu0 %5118
      %5120 = vrot.lane.b32.xlu0 %v4848, 62
      %v5121 = vpop.permute.xlu0 %5120
      %5122 = vrot.lane.b32.xlu0 %v4849, 62
      %v5123 = vpop.permute.xlu0 %5122
      %5124 = vrot.lane.b32.xlu0 %v4850, 62
      %v5125 = vpop.permute.xlu0 %5124
      %5126 = vrot.lane.b32.xlu0 %v4851, 62
      %v5127 = vpop.permute.xlu0 %5126
      %5128 = vrot.lane.b32.xlu0 %v4852, 62
      %v5129 = vpop.permute.xlu0 %5128
      %5130 = vrot.lane.b32.xlu0 %v4853, 62
      %v5131 = vpop.permute.xlu0 %5130
      %5132 = vrot.lane.b32.xlu0 %v4854, 62
      %v5133 = vpop.permute.xlu0 %5132
      %5134 = vrot.lane.b32.xlu0 %v4855, 62
      %v5135 = vpop.permute.xlu0 %5134
      %v5136 = vsel %vm797, %v726, %v5067
      %v5137 = vsel %vm797, %v5067, %v5069
      %v5138 = vsel %vm797, %v5069, %v5071
      %v5139 = vsel %vm797, %v5071, %v5073
      %v5140 = vsel %vm797, %v5073, %v5075
      %v5141 = vsel %vm797, %v5075, %v5077
      %v5142 = vsel %vm797, %v5077, %v5079
      %v5143 = vsel %vm797, %v5079, %v5081
      %v5144 = vsel %vm797, %v5081, %v5083
      %v5145 = vsel %vm797, %v5083, %v5085
      %v5146 = vsel %vm797, %v5085, %v5087
      %v5147 = vsel %vm797, %v5087, %v5089
      %v5148 = vsel %vm797, %v5089, %v5091
      %v5149 = vsel %vm797, %v5091, %v5093
      %v5150 = vsel %vm797, %v5093, %v5095
      %v5151 = vsel %vm797, %v5095, %v5097
      %v5152 = vsel %vm797, %v5097, %v5099
      %v5153 = vsel %vm797, %v5099, %v5101
      %v5154 = vsel %vm797, %v5101, %v5103
      %v5155 = vsel %vm797, %v5103, %v5105
      %v5156 = vsel %vm797, %v5105, %v5107
      %v5157 = vsel %vm797, %v5107, %v5109
      %v5158 = vsel %vm797, %v5109, %v5111
      %v5159 = vsel %vm797, %v5111, %v5113
      %v5160 = vsel %vm797, %v5113, %v5115
      %v5161 = vsel %vm797, %v5115, %v5117
      %v5162 = vsel %vm797, %v5117, %v5119
      %v5163 = vsel %vm797, %v5119, %v5121
      %v5164 = vsel %vm797, %v5121, %v5123
      %v5165 = vsel %vm797, %v5123, %v5125
      %v5166 = vsel %vm797, %v5125, %v5127
      %v5167 = vsel %vm797, %v5127, %v5129
      %v5168 = vsel %vm797, %v5129, %v5131
      %v5169 = vsel %vm797, %v5131, %v5133
      %v5170 = vsel %vm797, %v5133, %v5135
      %5171 = vrot.lane.b32.xlu0 %v4786, 61
      %v5172 = vpop.permute.xlu0 %5171
      %5173 = vrot.lane.b32.xlu0 %v4787, 61
      %v5174 = vpop.permute.xlu0 %5173
      %5175 = vrot.lane.b32.xlu0 %v4788, 61
      %v5176 = vpop.permute.xlu0 %5175
      %5177 = vrot.lane.b32.xlu0 %v4789, 61
      %v5178 = vpop.permute.xlu0 %5177
      %5179 = vrot.lane.b32.xlu0 %v4790, 61
      %v5180 = vpop.permute.xlu0 %5179
      %5181 = vrot.lane.b32.xlu0 %v4791, 61
      %v5182 = vpop.permute.xlu0 %5181
      %5183 = vrot.lane.b32.xlu0 %v4792, 61
      %v5184 = vpop.permute.xlu0 %5183
      %5185 = vrot.lane.b32.xlu0 %v4793, 61
      %v5186 = vpop.permute.xlu0 %5185
      %5187 = vrot.lane.b32.xlu0 %v4794, 61
      %v5188 = vpop.permute.xlu0 %5187
      %5189 = vrot.lane.b32.xlu0 %v4795, 61
      %v5190 = vpop.permute.xlu0 %5189
      %5191 = vrot.lane.b32.xlu0 %v4796, 61
      %v5192 = vpop.permute.xlu0 %5191
      %5193 = vrot.lane.b32.xlu0 %v4797, 61
      %v5194 = vpop.permute.xlu0 %5193
      %5195 = vrot.lane.b32.xlu0 %v4798, 61
      %v5196 = vpop.permute.xlu0 %5195
      %5197 = vrot.lane.b32.xlu0 %v4799, 61
      %v5198 = vpop.permute.xlu0 %5197
      %5199 = vrot.lane.b32.xlu0 %v4800, 61
      %v5200 = vpop.permute.xlu0 %5199
      %5201 = vrot.lane.b32.xlu0 %v4801, 61
      %v5202 = vpop.permute.xlu0 %5201
      %5203 = vrot.lane.b32.xlu0 %v4802, 61
      %v5204 = vpop.permute.xlu0 %5203
      %5205 = vrot.lane.b32.xlu0 %v4803, 61
      %v5206 = vpop.permute.xlu0 %5205
      %5207 = vrot.lane.b32.xlu0 %v4804, 61
      %v5208 = vpop.permute.xlu0 %5207
      %5209 = vrot.lane.b32.xlu0 %v4805, 61
      %v5210 = vpop.permute.xlu0 %5209
      %5211 = vrot.lane.b32.xlu0 %v4806, 61
      %v5212 = vpop.permute.xlu0 %5211
      %5213 = vrot.lane.b32.xlu0 %v4807, 61
      %v5214 = vpop.permute.xlu0 %5213
      %5215 = vrot.lane.b32.xlu0 %v4808, 61
      %v5216 = vpop.permute.xlu0 %5215
      %5217 = vrot.lane.b32.xlu0 %v4809, 61
      %v5218 = vpop.permute.xlu0 %5217
      %5219 = vrot.lane.b32.xlu0 %v4810, 61
      %v5220 = vpop.permute.xlu0 %5219
      %5221 = vrot.lane.b32.xlu0 %v4811, 61
      %v5222 = vpop.permute.xlu0 %5221
      %5223 = vrot.lane.b32.xlu0 %v4812, 61
      %v5224 = vpop.permute.xlu0 %5223
      %5225 = vrot.lane.b32.xlu0 %v4813, 61
      %v5226 = vpop.permute.xlu0 %5225
      %5227 = vrot.lane.b32.xlu0 %v4814, 61
      %v5228 = vpop.permute.xlu0 %5227
      %5229 = vrot.lane.b32.xlu0 %v4815, 61
      %v5230 = vpop.permute.xlu0 %5229
      %5231 = vrot.lane.b32.xlu0 %v4816, 61
      %v5232 = vpop.permute.xlu0 %5231
      %5233 = vrot.lane.b32.xlu0 %v4817, 61
      %v5234 = vpop.permute.xlu0 %5233
      %5235 = vrot.lane.b32.xlu0 %v4818, 61
      %v5236 = vpop.permute.xlu0 %5235
      %5237 = vrot.lane.b32.xlu0 %v4819, 61
      %v5238 = vpop.permute.xlu0 %5237
      %5239 = vrot.lane.b32.xlu0 %v4820, 61
      %v5240 = vpop.permute.xlu0 %5239
      %v5241 = vsel %vm903, %v5172, %v5174
      %v5242 = vsel %vm903, %v5174, %v5176
      %v5243 = vsel %vm903, %v5176, %v5178
      %v5244 = vsel %vm903, %v5178, %v5180
      %v5245 = vsel %vm903, %v5180, %v5182
      %v5246 = vsel %vm903, %v5182, %v5184
      %v5247 = vsel %vm903, %v5184, %v5186
      %v5248 = vsel %vm903, %v5186, %v5188
      %v5249 = vsel %vm903, %v5188, %v5190
      %v5250 = vsel %vm903, %v5190, %v5192
      %v5251 = vsel %vm903, %v5192, %v5194
      %v5252 = vsel %vm903, %v5194, %v5196
      %v5253 = vsel %vm903, %v5196, %v5198
      %v5254 = vsel %vm903, %v5198, %v5200
      %v5255 = vsel %vm903, %v5200, %v5202
      %v5256 = vsel %vm903, %v5202, %v5204
      %v5257 = vsel %vm903, %v5204, %v5206
      %v5258 = vsel %vm903, %v5206, %v5208
      %v5259 = vsel %vm903, %v5208, %v5210
      %v5260 = vsel %vm903, %v5210, %v5212
      %v5261 = vsel %vm903, %v5212, %v5214
      %v5262 = vsel %vm903, %v5214, %v5216
      %v5263 = vsel %vm903, %v5216, %v5218
      %v5264 = vsel %vm903, %v5218, %v5220
      %v5265 = vsel %vm903, %v5220, %v5222
      %v5266 = vsel %vm903, %v5222, %v5224
      %v5267 = vsel %vm903, %v5224, %v5226
      %v5268 = vsel %vm903, %v5226, %v5228
      %v5269 = vsel %vm903, %v5228, %v5230
      %v5270 = vsel %vm903, %v5230, %v5232
      %v5271 = vsel %vm903, %v5232, %v5234
      %v5272 = vsel %vm903, %v5234, %v5236
      %v5273 = vsel %vm903, %v5236, %v5238
      %v5274 = vsel %vm903, %v5238, %v5240
      %5275 = vrot.lane.b32.xlu0 %v4821, 60
      %v5276 = vpop.permute.xlu0 %5275
      %5277 = vrot.lane.b32.xlu0 %v4822, 60
      %v5278 = vpop.permute.xlu0 %5277
      %5279 = vrot.lane.b32.xlu0 %v4823, 60
      %v5280 = vpop.permute.xlu0 %5279
      %5281 = vrot.lane.b32.xlu0 %v4824, 60
      %v5282 = vpop.permute.xlu0 %5281
      %5283 = vrot.lane.b32.xlu0 %v4825, 60
      %v5284 = vpop.permute.xlu0 %5283
      %5285 = vrot.lane.b32.xlu0 %v4826, 60
      %v5286 = vpop.permute.xlu0 %5285
      %5287 = vrot.lane.b32.xlu0 %v4827, 60
      %v5288 = vpop.permute.xlu0 %5287
      %5289 = vrot.lane.b32.xlu0 %v4828, 60
      %v5290 = vpop.permute.xlu0 %5289
      %5291 = vrot.lane.b32.xlu0 %v4829, 60
      %v5292 = vpop.permute.xlu0 %5291
      %5293 = vrot.lane.b32.xlu0 %v4830, 60
      %v5294 = vpop.permute.xlu0 %5293
      %5295 = vrot.lane.b32.xlu0 %v4831, 60
      %v5296 = vpop.permute.xlu0 %5295
      %5297 = vrot.lane.b32.xlu0 %v4832, 60
      %v5298 = vpop.permute.xlu0 %5297
      %5299 = vrot.lane.b32.xlu0 %v4833, 60
      %v5300 = vpop.permute.xlu0 %5299
      %5301 = vrot.lane.b32.xlu0 %v4834, 60
      %v5302 = vpop.permute.xlu0 %5301
      %5303 = vrot.lane.b32.xlu0 %v4835, 60
      %v5304 = vpop.permute.xlu0 %5303
      %5305 = vrot.lane.b32.xlu0 %v4836, 60
      %v5306 = vpop.permute.xlu0 %5305
      %5307 = vrot.lane.b32.xlu0 %v4837, 60
      %v5308 = vpop.permute.xlu0 %5307
      %5309 = vrot.lane.b32.xlu0 %v4838, 60
      %v5310 = vpop.permute.xlu0 %5309
      %5311 = vrot.lane.b32.xlu0 %v4839, 60
      %v5312 = vpop.permute.xlu0 %5311
      %5313 = vrot.lane.b32.xlu0 %v4840, 60
      %v5314 = vpop.permute.xlu0 %5313
      %5315 = vrot.lane.b32.xlu0 %v4841, 60
      %v5316 = vpop.permute.xlu0 %5315
      %5317 = vrot.lane.b32.xlu0 %v4842, 60
      %v5318 = vpop.permute.xlu0 %5317
      %5319 = vrot.lane.b32.xlu0 %v4843, 60
      %v5320 = vpop.permute.xlu0 %5319
      %5321 = vrot.lane.b32.xlu0 %v4844, 60
      %v5322 = vpop.permute.xlu0 %5321
      %5323 = vrot.lane.b32.xlu0 %v4845, 60
      %v5324 = vpop.permute.xlu0 %5323
      %5325 = vrot.lane.b32.xlu0 %v4846, 60
      %v5326 = vpop.permute.xlu0 %5325
      %5327 = vrot.lane.b32.xlu0 %v4847, 60
      %v5328 = vpop.permute.xlu0 %5327
      %5329 = vrot.lane.b32.xlu0 %v4848, 60
      %v5330 = vpop.permute.xlu0 %5329
      %5331 = vrot.lane.b32.xlu0 %v4849, 60
      %v5332 = vpop.permute.xlu0 %5331
      %5333 = vrot.lane.b32.xlu0 %v4850, 60
      %v5334 = vpop.permute.xlu0 %5333
      %5335 = vrot.lane.b32.xlu0 %v4851, 60
      %v5336 = vpop.permute.xlu0 %5335
      %5337 = vrot.lane.b32.xlu0 %v4852, 60
      %v5338 = vpop.permute.xlu0 %5337
      %5339 = vrot.lane.b32.xlu0 %v4853, 60
      %v5340 = vpop.permute.xlu0 %5339
      %5341 = vrot.lane.b32.xlu0 %v4854, 60
      %v5342 = vpop.permute.xlu0 %5341
      %5343 = vrot.lane.b32.xlu0 %v4855, 60
      %v5344 = vpop.permute.xlu0 %5343
      %v5345 = vsel %vm1010, %v5276, %v5278
      %v5346 = vsel %vm1010, %v5278, %v5280
      %v5347 = vsel %vm1010, %v5280, %v5282
      %v5348 = vsel %vm1010, %v5282, %v5284
      %v5349 = vsel %vm1010, %v5284, %v5286
      %v5350 = vsel %vm1010, %v5286, %v5288
      %v5351 = vsel %vm1010, %v5288, %v5290
      %v5352 = vsel %vm1010, %v5290, %v5292
      %v5353 = vsel %vm1010, %v5292, %v5294
      %v5354 = vsel %vm1010, %v5294, %v5296
      %v5355 = vsel %vm1010, %v5296, %v5298
      %v5356 = vsel %vm1010, %v5298, %v5300
      %v5357 = vsel %vm1010, %v5300, %v5302
      %v5358 = vsel %vm1010, %v5302, %v5304
      %v5359 = vsel %vm1010, %v5304, %v5306
      %v5360 = vsel %vm1010, %v5306, %v5308
      %v5361 = vsel %vm1010, %v5308, %v5310
      %v5362 = vsel %vm1010, %v5310, %v5312
      %v5363 = vsel %vm1010, %v5312, %v5314
      %v5364 = vsel %vm1010, %v5314, %v5316
      %v5365 = vsel %vm1010, %v5316, %v5318
      %v5366 = vsel %vm1010, %v5318, %v5320
      %v5367 = vsel %vm1010, %v5320, %v5322
      %v5368 = vsel %vm1010, %v5322, %v5324
      %v5369 = vsel %vm1010, %v5324, %v5326
      %v5370 = vsel %vm1010, %v5326, %v5328
      %v5371 = vsel %vm1010, %v5328, %v5330
      %v5372 = vsel %vm1010, %v5330, %v5332
      %v5373 = vsel %vm1010, %v5332, %v5334
      %v5374 = vsel %vm1010, %v5334, %v5336
      %v5375 = vsel %vm1010, %v5336, %v5338
      %v5376 = vsel %vm1010, %v5338, %v5340
      %v5377 = vsel %vm1010, %v5340, %v5342
      %v5378 = vsel %vm1010, %v5342, %v5344
      %v5379 = vsel %vm1010, %v5344, %v1009
      %5380 = vrot.lane.b32.xlu0 %v4786, 124
      %v5381 = vpop.permute.xlu0 %5380
      %5382 = vrot.lane.b32.xlu0 %v4787, 124
      %v5383 = vpop.permute.xlu0 %5382
      %5384 = vrot.lane.b32.xlu0 %v4788, 124
      %v5385 = vpop.permute.xlu0 %5384
      %5386 = vrot.lane.b32.xlu0 %v4789, 124
      %v5387 = vpop.permute.xlu0 %5386
      %5388 = vrot.lane.b32.xlu0 %v4790, 124
      %v5389 = vpop.permute.xlu0 %5388
      %5390 = vrot.lane.b32.xlu0 %v4791, 124
      %v5391 = vpop.permute.xlu0 %5390
      %5392 = vrot.lane.b32.xlu0 %v4792, 124
      %v5393 = vpop.permute.xlu0 %5392
      %5394 = vrot.lane.b32.xlu0 %v4793, 124
      %v5395 = vpop.permute.xlu0 %5394
      %5396 = vrot.lane.b32.xlu0 %v4794, 124
      %v5397 = vpop.permute.xlu0 %5396
      %5398 = vrot.lane.b32.xlu0 %v4795, 124
      %v5399 = vpop.permute.xlu0 %5398
      %5400 = vrot.lane.b32.xlu0 %v4796, 124
      %v5401 = vpop.permute.xlu0 %5400
      %5402 = vrot.lane.b32.xlu0 %v4797, 124
      %v5403 = vpop.permute.xlu0 %5402
      %5404 = vrot.lane.b32.xlu0 %v4798, 124
      %v5405 = vpop.permute.xlu0 %5404
      %5406 = vrot.lane.b32.xlu0 %v4799, 124
      %v5407 = vpop.permute.xlu0 %5406
      %5408 = vrot.lane.b32.xlu0 %v4800, 124
      %v5409 = vpop.permute.xlu0 %5408
      %5410 = vrot.lane.b32.xlu0 %v4801, 124
      %v5411 = vpop.permute.xlu0 %5410
      %5412 = vrot.lane.b32.xlu0 %v4802, 124
      %v5413 = vpop.permute.xlu0 %5412
      %5414 = vrot.lane.b32.xlu0 %v4803, 124
      %v5415 = vpop.permute.xlu0 %5414
      %5416 = vrot.lane.b32.xlu0 %v4804, 124
      %v5417 = vpop.permute.xlu0 %5416
      %5418 = vrot.lane.b32.xlu0 %v4805, 124
      %v5419 = vpop.permute.xlu0 %5418
      %5420 = vrot.lane.b32.xlu0 %v4806, 124
      %v5421 = vpop.permute.xlu0 %5420
      %5422 = vrot.lane.b32.xlu0 %v4807, 124
      %v5423 = vpop.permute.xlu0 %5422
      %5424 = vrot.lane.b32.xlu0 %v4808, 124
      %v5425 = vpop.permute.xlu0 %5424
      %5426 = vrot.lane.b32.xlu0 %v4809, 124
      %v5427 = vpop.permute.xlu0 %5426
      %5428 = vrot.lane.b32.xlu0 %v4810, 124
      %v5429 = vpop.permute.xlu0 %5428
      %5430 = vrot.lane.b32.xlu0 %v4811, 124
      %v5431 = vpop.permute.xlu0 %5430
      %5432 = vrot.lane.b32.xlu0 %v4812, 124
      %v5433 = vpop.permute.xlu0 %5432
      %5434 = vrot.lane.b32.xlu0 %v4813, 124
      %v5435 = vpop.permute.xlu0 %5434
      %5436 = vrot.lane.b32.xlu0 %v4814, 124
      %v5437 = vpop.permute.xlu0 %5436
      %5438 = vrot.lane.b32.xlu0 %v4815, 124
      %v5439 = vpop.permute.xlu0 %5438
      %5440 = vrot.lane.b32.xlu0 %v4816, 124
      %v5441 = vpop.permute.xlu0 %5440
      %5442 = vrot.lane.b32.xlu0 %v4817, 124
      %v5443 = vpop.permute.xlu0 %5442
      %5444 = vrot.lane.b32.xlu0 %v4818, 124
      %v5445 = vpop.permute.xlu0 %5444
      %5446 = vrot.lane.b32.xlu0 %v4819, 124
      %v5447 = vpop.permute.xlu0 %5446
      %5448 = vrot.lane.b32.xlu0 %v4820, 124
      %v5449 = vpop.permute.xlu0 %5448
      %v5450 = vsel %vm1118, %v5381, %v5383
      %v5451 = vsel %vm1118, %v5383, %v5385
      %v5452 = vsel %vm1118, %v5385, %v5387
      %v5453 = vsel %vm1118, %v5387, %v5389
      %v5454 = vsel %vm1118, %v5389, %v5391
      %v5455 = vsel %vm1118, %v5391, %v5393
      %v5456 = vsel %vm1118, %v5393, %v5395
      %v5457 = vsel %vm1118, %v5395, %v5397
      %v5458 = vsel %vm1118, %v5397, %v5399
      %v5459 = vsel %vm1118, %v5399, %v5401
      %v5460 = vsel %vm1118, %v5401, %v5403
      %v5461 = vsel %vm1118, %v5403, %v5405
      %v5462 = vsel %vm1118, %v5405, %v5407
      %v5463 = vsel %vm1118, %v5407, %v5409
      %v5464 = vsel %vm1118, %v5409, %v5411
      %v5465 = vsel %vm1118, %v5411, %v5413
      %v5466 = vsel %vm1118, %v5413, %v5415
      %v5467 = vsel %vm1118, %v5415, %v5417
      %v5468 = vsel %vm1118, %v5417, %v5419
      %v5469 = vsel %vm1118, %v5419, %v5421
      %v5470 = vsel %vm1118, %v5421, %v5423
      %v5471 = vsel %vm1118, %v5423, %v5425
      %v5472 = vsel %vm1118, %v5425, %v5427
      %v5473 = vsel %vm1118, %v5427, %v5429
      %v5474 = vsel %vm1118, %v5429, %v5431
      %v5475 = vsel %vm1118, %v5431, %v5433
      %v5476 = vsel %vm1118, %v5433, %v5435
      %v5477 = vsel %vm1118, %v5435, %v5437
      %v5478 = vsel %vm1118, %v5437, %v5439
      %v5479 = vsel %vm1118, %v5439, %v5441
      %v5480 = vsel %vm1118, %v5441, %v5443
      %v5481 = vsel %vm1118, %v5443, %v5445
      %v5482 = vsel %vm1118, %v5445, %v5447
      %v5483 = vsel %vm1118, %v5447, %v5449
      %v5484 = vsel %vm1118, %v5449, %v1117
      %5485 = vrot.lane.b32.xlu0 %v4821, 123
      %v5486 = vpop.permute.xlu0 %5485
      %5487 = vrot.lane.b32.xlu0 %v4822, 123
      %v5488 = vpop.permute.xlu0 %5487
      %5489 = vrot.lane.b32.xlu0 %v4823, 123
      %v5490 = vpop.permute.xlu0 %5489
      %5491 = vrot.lane.b32.xlu0 %v4824, 123
      %v5492 = vpop.permute.xlu0 %5491
      %5493 = vrot.lane.b32.xlu0 %v4825, 123
      %v5494 = vpop.permute.xlu0 %5493
      %5495 = vrot.lane.b32.xlu0 %v4826, 123
      %v5496 = vpop.permute.xlu0 %5495
      %5497 = vrot.lane.b32.xlu0 %v4827, 123
      %v5498 = vpop.permute.xlu0 %5497
      %5499 = vrot.lane.b32.xlu0 %v4828, 123
      %v5500 = vpop.permute.xlu0 %5499
      %5501 = vrot.lane.b32.xlu0 %v4829, 123
      %v5502 = vpop.permute.xlu0 %5501
      %5503 = vrot.lane.b32.xlu0 %v4830, 123
      %v5504 = vpop.permute.xlu0 %5503
      %5505 = vrot.lane.b32.xlu0 %v4831, 123
      %v5506 = vpop.permute.xlu0 %5505
      %5507 = vrot.lane.b32.xlu0 %v4832, 123
      %v5508 = vpop.permute.xlu0 %5507
      %5509 = vrot.lane.b32.xlu0 %v4833, 123
      %v5510 = vpop.permute.xlu0 %5509
      %5511 = vrot.lane.b32.xlu0 %v4834, 123
      %v5512 = vpop.permute.xlu0 %5511
      %5513 = vrot.lane.b32.xlu0 %v4835, 123
      %v5514 = vpop.permute.xlu0 %5513
      %5515 = vrot.lane.b32.xlu0 %v4836, 123
      %v5516 = vpop.permute.xlu0 %5515
      %5517 = vrot.lane.b32.xlu0 %v4837, 123
      %v5518 = vpop.permute.xlu0 %5517
      %5519 = vrot.lane.b32.xlu0 %v4838, 123
      %v5520 = vpop.permute.xlu0 %5519
      %5521 = vrot.lane.b32.xlu0 %v4839, 123
      %v5522 = vpop.permute.xlu0 %5521
      %5523 = vrot.lane.b32.xlu0 %v4840, 123
      %v5524 = vpop.permute.xlu0 %5523
      %5525 = vrot.lane.b32.xlu0 %v4841, 123
      %v5526 = vpop.permute.xlu0 %5525
      %5527 = vrot.lane.b32.xlu0 %v4842, 123
      %v5528 = vpop.permute.xlu0 %5527
      %5529 = vrot.lane.b32.xlu0 %v4843, 123
      %v5530 = vpop.permute.xlu0 %5529
      %5531 = vrot.lane.b32.xlu0 %v4844, 123
      %v5532 = vpop.permute.xlu0 %5531
      %5533 = vrot.lane.b32.xlu0 %v4845, 123
      %v5534 = vpop.permute.xlu0 %5533
      %5535 = vrot.lane.b32.xlu0 %v4846, 123
      %v5536 = vpop.permute.xlu0 %5535
      %5537 = vrot.lane.b32.xlu0 %v4847, 123
      %v5538 = vpop.permute.xlu0 %5537
      %5539 = vrot.lane.b32.xlu0 %v4848, 123
      %v5540 = vpop.permute.xlu0 %5539
      %5541 = vrot.lane.b32.xlu0 %v4849, 123
      %v5542 = vpop.permute.xlu0 %5541
      %5543 = vrot.lane.b32.xlu0 %v4850, 123
      %v5544 = vpop.permute.xlu0 %5543
      %5545 = vrot.lane.b32.xlu0 %v4851, 123
      %v5546 = vpop.permute.xlu0 %5545
      %5547 = vrot.lane.b32.xlu0 %v4852, 123
      %v5548 = vpop.permute.xlu0 %5547
      %5549 = vrot.lane.b32.xlu0 %v4853, 123
      %v5550 = vpop.permute.xlu0 %5549
      %5551 = vrot.lane.b32.xlu0 %v4854, 123
      %v5552 = vpop.permute.xlu0 %5551
      %5553 = vrot.lane.b32.xlu0 %v4855, 123
      %v5554 = vpop.permute.xlu0 %5553
      %v5555 = vsel %vm1226, %v5486, %v5488
      %v5556 = vsel %vm1226, %v5488, %v5490
      %v5557 = vsel %vm1226, %v5490, %v5492
      %v5558 = vsel %vm1226, %v5492, %v5494
      %v5559 = vsel %vm1226, %v5494, %v5496
      %v5560 = vsel %vm1226, %v5496, %v5498
      %v5561 = vsel %vm1226, %v5498, %v5500
      %v5562 = vsel %vm1226, %v5500, %v5502
      %v5563 = vsel %vm1226, %v5502, %v5504
      %v5564 = vsel %vm1226, %v5504, %v5506
      %v5565 = vsel %vm1226, %v5506, %v5508
      %v5566 = vsel %vm1226, %v5508, %v5510
      %v5567 = vsel %vm1226, %v5510, %v5512
      %v5568 = vsel %vm1226, %v5512, %v5514
      %v5569 = vsel %vm1226, %v5514, %v5516
      %v5570 = vsel %vm1226, %v5516, %v5518
      %v5571 = vsel %vm1226, %v5518, %v5520
      %v5572 = vsel %vm1226, %v5520, %v5522
      %v5573 = vsel %vm1226, %v5522, %v5524
      %v5574 = vsel %vm1226, %v5524, %v5526
      %v5575 = vsel %vm1226, %v5526, %v5528
      %v5576 = vsel %vm1226, %v5528, %v5530
      %v5577 = vsel %vm1226, %v5530, %v5532
      %v5578 = vsel %vm1226, %v5532, %v5534
      %v5579 = vsel %vm1226, %v5534, %v5536
      %v5580 = vsel %vm1226, %v5536, %v5538
      %v5581 = vsel %vm1226, %v5538, %v5540
      %v5582 = vsel %vm1226, %v5540, %v5542
      %v5583 = vsel %vm1226, %v5542, %v5544
      %v5584 = vsel %vm1226, %v5544, %v5546
      %v5585 = vsel %vm1226, %v5546, %v5548
      %v5586 = vsel %vm1226, %v5548, %v5550
      %v5587 = vsel %vm1226, %v5550, %v5552
      %v5588 = vsel %vm1226, %v5552, %v5554
      %v5589 = vsel %vm1226, %v5554, %v1225
      %5590 = vrot.lane.b32.xlu0 %v4786, 122
      %v5591 = vpop.permute.xlu0 %5590
      %5592 = vrot.lane.b32.xlu0 %v4787, 122
      %v5593 = vpop.permute.xlu0 %5592
      %5594 = vrot.lane.b32.xlu0 %v4788, 122
      %v5595 = vpop.permute.xlu0 %5594
      %5596 = vrot.lane.b32.xlu0 %v4789, 122
      %v5597 = vpop.permute.xlu0 %5596
      %5598 = vrot.lane.b32.xlu0 %v4790, 122
      %v5599 = vpop.permute.xlu0 %5598
      %5600 = vrot.lane.b32.xlu0 %v4791, 122
      %v5601 = vpop.permute.xlu0 %5600
      %5602 = vrot.lane.b32.xlu0 %v4792, 122
      %v5603 = vpop.permute.xlu0 %5602
      %5604 = vrot.lane.b32.xlu0 %v4793, 122
      %v5605 = vpop.permute.xlu0 %5604
      %5606 = vrot.lane.b32.xlu0 %v4794, 122
      %v5607 = vpop.permute.xlu0 %5606
      %5608 = vrot.lane.b32.xlu0 %v4795, 122
      %v5609 = vpop.permute.xlu0 %5608
      %5610 = vrot.lane.b32.xlu0 %v4796, 122
      %v5611 = vpop.permute.xlu0 %5610
      %5612 = vrot.lane.b32.xlu0 %v4797, 122
      %v5613 = vpop.permute.xlu0 %5612
      %5614 = vrot.lane.b32.xlu0 %v4798, 122
      %v5615 = vpop.permute.xlu0 %5614
      %5616 = vrot.lane.b32.xlu0 %v4799, 122
      %v5617 = vpop.permute.xlu0 %5616
      %5618 = vrot.lane.b32.xlu0 %v4800, 122
      %v5619 = vpop.permute.xlu0 %5618
      %5620 = vrot.lane.b32.xlu0 %v4801, 122
      %v5621 = vpop.permute.xlu0 %5620
      %5622 = vrot.lane.b32.xlu0 %v4802, 122
      %v5623 = vpop.permute.xlu0 %5622
      %5624 = vrot.lane.b32.xlu0 %v4803, 122
      %v5625 = vpop.permute.xlu0 %5624
      %5626 = vrot.lane.b32.xlu0 %v4804, 122
      %v5627 = vpop.permute.xlu0 %5626
      %5628 = vrot.lane.b32.xlu0 %v4805, 122
      %v5629 = vpop.permute.xlu0 %5628
      %5630 = vrot.lane.b32.xlu0 %v4806, 122
      %v5631 = vpop.permute.xlu0 %5630
      %5632 = vrot.lane.b32.xlu0 %v4807, 122
      %v5633 = vpop.permute.xlu0 %5632
      %5634 = vrot.lane.b32.xlu0 %v4808, 122
      %v5635 = vpop.permute.xlu0 %5634
      %5636 = vrot.lane.b32.xlu0 %v4809, 122
      %v5637 = vpop.permute.xlu0 %5636
      %5638 = vrot.lane.b32.xlu0 %v4810, 122
      %v5639 = vpop.permute.xlu0 %5638
      %5640 = vrot.lane.b32.xlu0 %v4811, 122
      %v5641 = vpop.permute.xlu0 %5640
      %5642 = vrot.lane.b32.xlu0 %v4812, 122
      %v5643 = vpop.permute.xlu0 %5642
      %5644 = vrot.lane.b32.xlu0 %v4813, 122
      %v5645 = vpop.permute.xlu0 %5644
      %5646 = vrot.lane.b32.xlu0 %v4814, 122
      %v5647 = vpop.permute.xlu0 %5646
      %5648 = vrot.lane.b32.xlu0 %v4815, 122
      %v5649 = vpop.permute.xlu0 %5648
      %5650 = vrot.lane.b32.xlu0 %v4816, 122
      %v5651 = vpop.permute.xlu0 %5650
      %5652 = vrot.lane.b32.xlu0 %v4817, 122
      %v5653 = vpop.permute.xlu0 %5652
      %5654 = vrot.lane.b32.xlu0 %v4818, 122
      %v5655 = vpop.permute.xlu0 %5654
      %5656 = vrot.lane.b32.xlu0 %v4819, 122
      %v5657 = vpop.permute.xlu0 %5656
      %5658 = vrot.lane.b32.xlu0 %v4820, 122
      %v5659 = vpop.permute.xlu0 %5658
      %v5660 = vsel %vm1334, %v5591, %v5593
      %v5661 = vsel %vm1334, %v5593, %v5595
      %v5662 = vsel %vm1334, %v5595, %v5597
      %v5663 = vsel %vm1334, %v5597, %v5599
      %v5664 = vsel %vm1334, %v5599, %v5601
      %v5665 = vsel %vm1334, %v5601, %v5603
      %v5666 = vsel %vm1334, %v5603, %v5605
      %v5667 = vsel %vm1334, %v5605, %v5607
      %v5668 = vsel %vm1334, %v5607, %v5609
      %v5669 = vsel %vm1334, %v5609, %v5611
      %v5670 = vsel %vm1334, %v5611, %v5613
      %v5671 = vsel %vm1334, %v5613, %v5615
      %v5672 = vsel %vm1334, %v5615, %v5617
      %v5673 = vsel %vm1334, %v5617, %v5619
      %v5674 = vsel %vm1334, %v5619, %v5621
      %v5675 = vsel %vm1334, %v5621, %v5623
      %v5676 = vsel %vm1334, %v5623, %v5625
      %v5677 = vsel %vm1334, %v5625, %v5627
      %v5678 = vsel %vm1334, %v5627, %v5629
      %v5679 = vsel %vm1334, %v5629, %v5631
      %v5680 = vsel %vm1334, %v5631, %v5633
      %v5681 = vsel %vm1334, %v5633, %v5635
      %v5682 = vsel %vm1334, %v5635, %v5637
      %v5683 = vsel %vm1334, %v5637, %v5639
      %v5684 = vsel %vm1334, %v5639, %v5641
      %v5685 = vsel %vm1334, %v5641, %v5643
      %v5686 = vsel %vm1334, %v5643, %v5645
      %v5687 = vsel %vm1334, %v5645, %v5647
      %v5688 = vsel %vm1334, %v5647, %v5649
      %v5689 = vsel %vm1334, %v5649, %v5651
      %v5690 = vsel %vm1334, %v5651, %v5653
      %v5691 = vsel %vm1334, %v5653, %v5655
      %v5692 = vsel %vm1334, %v5655, %v5657
      %v5693 = vsel %vm1334, %v5657, %v5659
      %v5694 = vsel %vm1334, %v5659, %v1333
      %v5696 = vsel %vm1370, 0, %v4926
      %v5699 = vsel %vm1370, %v4786, %v4927
      %v5702 = vsel %vm1370, %v4787, %v4928
      %v5705 = vsel %vm1370, %v4788, %v4929
      %v5708 = vsel %vm1370, %v4789, %v4930
      %v5711 = vsel %vm1370, %v4790, %v4931
      %v5714 = vsel %vm1370, %v4791, %v4932
      %v5717 = vsel %vm1370, %v4792, %v4933
      %v5720 = vsel %vm1370, %v4793, %v4934
      %v5723 = vsel %vm1370, %v4794, %v4935
      %v5726 = vsel %vm1370, %v4795, %v4936
      %v5729 = vsel %vm1370, %v4796, %v4937
      %v5732 = vsel %vm1370, %v4797, %v4938
      %v5735 = vsel %vm1370, %v4798, %v4939
      %v5738 = vsel %vm1370, %v4799, %v4940
      %v5741 = vsel %vm1370, %v4800, %v4941
      %v5744 = vsel %vm1370, %v4801, %v4942
      %v5747 = vsel %vm1370, %v4802, %v4943
      %v5750 = vsel %vm1370, %v4803, %v4944
      %v5753 = vsel %vm1370, %v4804, %v4945
      %v5756 = vsel %vm1370, %v4805, %v4946
      %v5759 = vsel %vm1370, %v4806, %v4947
      %v5762 = vsel %vm1370, %v4807, %v4948
      %v5765 = vsel %vm1370, %v4808, %v4949
      %v5768 = vsel %vm1370, %v4809, %v4950
      %v5771 = vsel %vm1370, %v4810, %v4951
      %v5774 = vsel %vm1370, %v4811, %v4952
      %v5777 = vsel %vm1370, %v4812, %v4953
      %v5780 = vsel %vm1370, %v4813, %v4954
      %v5783 = vsel %vm1370, %v4814, %v4955
      %v5786 = vsel %vm1370, %v4815, %v4956
      %v5789 = vsel %vm1370, %v4816, %v4957
      %v5792 = vsel %vm1370, %v4817, %v4958
      %v5795 = vsel %vm1370, %v4818, %v4959
      %v5798 = vsel %vm1370, %v4819, %v4960
      %v5801 = vsel %vm1370, %v4820, %v4925
      %v5804 = vsel %vm1370, %v5031, %v5136
      %v5807 = vsel %vm1370, %v5032, %v5137
      %v5810 = vsel %vm1370, %v5033, %v5138
      %v5813 = vsel %vm1370, %v5034, %v5139
      %v5816 = vsel %vm1370, %v5035, %v5140
      %v5819 = vsel %vm1370, %v5036, %v5141
      %v5822 = vsel %vm1370, %v5037, %v5142
      %v5825 = vsel %vm1370, %v5038, %v5143
      %v5828 = vsel %vm1370, %v5039, %v5144
      %v5831 = vsel %vm1370, %v5040, %v5145
      %v5834 = vsel %vm1370, %v5041, %v5146
      %v5837 = vsel %vm1370, %v5042, %v5147
      %v5840 = vsel %vm1370, %v5043, %v5148
      %v5843 = vsel %vm1370, %v5044, %v5149
      %v5846 = vsel %vm1370, %v5045, %v5150
      %v5849 = vsel %vm1370, %v5046, %v5151
      %v5852 = vsel %vm1370, %v5047, %v5152
      %v5855 = vsel %vm1370, %v5048, %v5153
      %v5858 = vsel %vm1370, %v5049, %v5154
      %v5861 = vsel %vm1370, %v5050, %v5155
      %v5864 = vsel %vm1370, %v5051, %v5156
      %v5867 = vsel %vm1370, %v5052, %v5157
      %v5870 = vsel %vm1370, %v5053, %v5158
      %v5873 = vsel %vm1370, %v5054, %v5159
      %v5876 = vsel %vm1370, %v5055, %v5160
      %v5879 = vsel %vm1370, %v5056, %v5161
      %v5882 = vsel %vm1370, %v5057, %v5162
      %v5885 = vsel %vm1370, %v5058, %v5163
      %v5888 = vsel %vm1370, %v5059, %v5164
      %v5891 = vsel %vm1370, %v5060, %v5165
      %v5894 = vsel %vm1370, %v5061, %v5166
      %v5897 = vsel %vm1370, %v5062, %v5167
      %v5900 = vsel %vm1370, %v5063, %v5168
      %v5903 = vsel %vm1370, %v5064, %v5169
      %v5906 = vsel %vm1370, %v5065, %v5170
      %v5909 = vsel %vm1370, %v5030, %v5135
      %v5912 = vsel %vm1370, %v5172, %v5276
      %v5915 = vsel %vm1370, %v5241, %v5345
      %v5918 = vsel %vm1370, %v5242, %v5346
      %v5921 = vsel %vm1370, %v5243, %v5347
      %v5924 = vsel %vm1370, %v5244, %v5348
      %v5927 = vsel %vm1370, %v5245, %v5349
      %v5930 = vsel %vm1370, %v5246, %v5350
      %v5933 = vsel %vm1370, %v5247, %v5351
      %v5936 = vsel %vm1370, %v5248, %v5352
      %v5939 = vsel %vm1370, %v5249, %v5353
      %v5942 = vsel %vm1370, %v5250, %v5354
      %v5945 = vsel %vm1370, %v5251, %v5355
      %v5948 = vsel %vm1370, %v5252, %v5356
      %v5951 = vsel %vm1370, %v5253, %v5357
      %v5954 = vsel %vm1370, %v5254, %v5358
      %v5957 = vsel %vm1370, %v5255, %v5359
      %v5960 = vsel %vm1370, %v5256, %v5360
      %v5963 = vsel %vm1370, %v5257, %v5361
      %v5966 = vsel %vm1370, %v5258, %v5362
      %v5969 = vsel %vm1370, %v5259, %v5363
      %v5972 = vsel %vm1370, %v5260, %v5364
      %v5975 = vsel %vm1370, %v5261, %v5365
      %v5978 = vsel %vm1370, %v5262, %v5366
      %v5981 = vsel %vm1370, %v5263, %v5367
      %v5984 = vsel %vm1370, %v5264, %v5368
      %v5987 = vsel %vm1370, %v5265, %v5369
      %v5990 = vsel %vm1370, %v5266, %v5370
      %v5993 = vsel %vm1370, %v5267, %v5371
      %v5996 = vsel %vm1370, %v5268, %v5372
      %v5999 = vsel %vm1370, %v5269, %v5373
      %v6002 = vsel %vm1370, %v5270, %v5374
      %v6005 = vsel %vm1370, %v5271, %v5375
      %v6008 = vsel %vm1370, %v5272, %v5376
      %v6011 = vsel %vm1370, %v5273, %v5377
      %v6014 = vsel %vm1370, %v5274, %v5378
      %v6017 = vsel %vm1370, %v5240, %v5379
      %v6020 = vsel %vm1370, %v5450, %v5555
      %v6023 = vsel %vm1370, %v5451, %v5556
      %v6026 = vsel %vm1370, %v5452, %v5557
      %v6029 = vsel %vm1370, %v5453, %v5558
      %v6032 = vsel %vm1370, %v5454, %v5559
      %v6035 = vsel %vm1370, %v5455, %v5560
      %v6038 = vsel %vm1370, %v5456, %v5561
      %v6041 = vsel %vm1370, %v5457, %v5562
      %v6044 = vsel %vm1370, %v5458, %v5563
      %v6047 = vsel %vm1370, %v5459, %v5564
      %v6050 = vsel %vm1370, %v5460, %v5565
      %v6053 = vsel %vm1370, %v5461, %v5566
      %v6056 = vsel %vm1370, %v5462, %v5567
      %v6059 = vsel %vm1370, %v5463, %v5568
      %v6062 = vsel %vm1370, %v5464, %v5569
      %v6065 = vsel %vm1370, %v5465, %v5570
      %v6068 = vsel %vm1370, %v5466, %v5571
      %v6071 = vsel %vm1370, %v5467, %v5572
      %v6074 = vsel %vm1370, %v5468, %v5573
      %v6077 = vsel %vm1370, %v5469, %v5574
      %v6080 = vsel %vm1370, %v5470, %v5575
      %v6083 = vsel %vm1370, %v5471, %v5576
      %v6086 = vsel %vm1370, %v5472, %v5577
      %v6089 = vsel %vm1370, %v5473, %v5578
      %v6092 = vsel %vm1370, %v5474, %v5579
      %v6095 = vsel %vm1370, %v5475, %v5580
      %v6098 = vsel %vm1370, %v5476, %v5581
      %v6101 = vsel %vm1370, %v5477, %v5582
      %v6104 = vsel %vm1370, %v5478, %v5583
      %v6107 = vsel %vm1370, %v5479, %v5584
      %v6110 = vsel %vm1370, %v5480, %v5585
      %v6113 = vsel %vm1370, %v5481, %v5586
      %v6116 = vsel %vm1370, %v5482, %v5587
      %v6119 = vsel %vm1370, %v5483, %v5588
      %v6122 = vsel %vm1370, %v5484, %v5589
      %v6123 = vld [vmem:[%s6] sm:$0xf]
      %v6124 = vld [vmem:[%s7] sm:$0xff]
      %6126 = vset.pattern.permute.xlu0 0
      %6127 = vperm.xlu0 %6126, %v6124
      %v6128 = vpop.permute.xlu0 %6127
      %6273 = vrot.lane.b32.xlu0 %v5696, 67
      %v6274 = vpop.permute.xlu0 %6273
      %6275 = vrot.lane.b32.xlu0 %v5699, 67
      %v6276 = vpop.permute.xlu0 %6275
      %6277 = vrot.lane.b32.xlu0 %v5702, 67
      %v6278 = vpop.permute.xlu0 %6277
      %6279 = vrot.lane.b32.xlu0 %v5705, 67
      %v6280 = vpop.permute.xlu0 %6279
      %6281 = vrot.lane.b32.xlu0 %v5708, 67
      %v6282 = vpop.permute.xlu0 %6281
      %6283 = vrot.lane.b32.xlu0 %v5711, 67
      %v6284 = vpop.permute.xlu0 %6283
      %6285 = vrot.lane.b32.xlu0 %v5714, 67
      %v6286 = vpop.permute.xlu0 %6285
      %6287 = vrot.lane.b32.xlu0 %v5717, 67
      %v6288 = vpop.permute.xlu0 %6287
      %6289 = vrot.lane.b32.xlu0 %v5720, 67
      %v6290 = vpop.permute.xlu0 %6289
      %6291 = vrot.lane.b32.xlu0 %v5723, 67
      %v6292 = vpop.permute.xlu0 %6291
      %6293 = vrot.lane.b32.xlu0 %v5726, 67
      %v6294 = vpop.permute.xlu0 %6293
      %6295 = vrot.lane.b32.xlu0 %v5729, 67
      %v6296 = vpop.permute.xlu0 %6295
      %6297 = vrot.lane.b32.xlu0 %v5732, 67
      %v6298 = vpop.permute.xlu0 %6297
      %6299 = vrot.lane.b32.xlu0 %v5735, 67
      %v6300 = vpop.permute.xlu0 %6299
      %6301 = vrot.lane.b32.xlu0 %v5738, 67
      %v6302 = vpop.permute.xlu0 %6301
      %6303 = vrot.lane.b32.xlu0 %v5741, 67
      %v6304 = vpop.permute.xlu0 %6303
      %6305 = vrot.lane.b32.xlu0 %v5744, 67
      %v6306 = vpop.permute.xlu0 %6305
      %6307 = vrot.lane.b32.xlu0 %v5747, 67
      %v6308 = vpop.permute.xlu0 %6307
      %6309 = vrot.lane.b32.xlu0 %v5750, 67
      %v6310 = vpop.permute.xlu0 %6309
      %6311 = vrot.lane.b32.xlu0 %v5753, 67
      %v6312 = vpop.permute.xlu0 %6311
      %6313 = vrot.lane.b32.xlu0 %v5756, 67
      %v6314 = vpop.permute.xlu0 %6313
      %6315 = vrot.lane.b32.xlu0 %v5759, 67
      %v6316 = vpop.permute.xlu0 %6315
      %6317 = vrot.lane.b32.xlu0 %v5762, 67
      %v6318 = vpop.permute.xlu0 %6317
      %6319 = vrot.lane.b32.xlu0 %v5765, 67
      %v6320 = vpop.permute.xlu0 %6319
      %6321 = vrot.lane.b32.xlu0 %v5768, 67
      %v6322 = vpop.permute.xlu0 %6321
      %6323 = vrot.lane.b32.xlu0 %v5771, 67
      %v6324 = vpop.permute.xlu0 %6323
      %6325 = vrot.lane.b32.xlu0 %v5774, 67
      %v6326 = vpop.permute.xlu0 %6325
      %6327 = vrot.lane.b32.xlu0 %v5777, 67
      %v6328 = vpop.permute.xlu0 %6327
      %6329 = vrot.lane.b32.xlu0 %v5780, 67
      %v6330 = vpop.permute.xlu0 %6329
      %6331 = vrot.lane.b32.xlu0 %v5783, 67
      %v6332 = vpop.permute.xlu0 %6331
      %6333 = vrot.lane.b32.xlu0 %v5786, 67
      %v6334 = vpop.permute.xlu0 %6333
      %6335 = vrot.lane.b32.xlu0 %v5789, 67
      %v6336 = vpop.permute.xlu0 %6335
      %6337 = vrot.lane.b32.xlu0 %v5792, 67
      %v6338 = vpop.permute.xlu0 %6337
      %6339 = vrot.lane.b32.xlu0 %v5795, 67
      %v6340 = vpop.permute.xlu0 %6339
      %6341 = vrot.lane.b32.xlu0 %v5798, 67
      %v6342 = vpop.permute.xlu0 %6341
      %6343 = vrot.lane.b32.xlu0 %v5801, 67
      %v6344 = vpop.permute.xlu0 %6343
      %6345 = vrot.lane.b32.xlu0 %v5804, 67
      %v6346 = vpop.permute.xlu0 %6345
      %6347 = vrot.lane.b32.xlu0 %v5807, 67
      %v6348 = vpop.permute.xlu0 %6347
      %6349 = vrot.lane.b32.xlu0 %v5810, 67
      %v6350 = vpop.permute.xlu0 %6349
      %6351 = vrot.lane.b32.xlu0 %v5813, 67
      %v6352 = vpop.permute.xlu0 %6351
      %6353 = vrot.lane.b32.xlu0 %v5816, 67
      %v6354 = vpop.permute.xlu0 %6353
      %6355 = vrot.lane.b32.xlu0 %v5819, 67
      %v6356 = vpop.permute.xlu0 %6355
      %6357 = vrot.lane.b32.xlu0 %v5822, 67
      %v6358 = vpop.permute.xlu0 %6357
      %6359 = vrot.lane.b32.xlu0 %v5825, 67
      %v6360 = vpop.permute.xlu0 %6359
      %6361 = vrot.lane.b32.xlu0 %v5828, 67
      %v6362 = vpop.permute.xlu0 %6361
      %6363 = vrot.lane.b32.xlu0 %v5831, 67
      %v6364 = vpop.permute.xlu0 %6363
      %6365 = vrot.lane.b32.xlu0 %v5834, 67
      %v6366 = vpop.permute.xlu0 %6365
      %6367 = vrot.lane.b32.xlu0 %v5837, 67
      %v6368 = vpop.permute.xlu0 %6367
      %6369 = vrot.lane.b32.xlu0 %v5840, 67
      %v6370 = vpop.permute.xlu0 %6369
      %6371 = vrot.lane.b32.xlu0 %v5843, 67
      %v6372 = vpop.permute.xlu0 %6371
      %6373 = vrot.lane.b32.xlu0 %v5846, 67
      %v6374 = vpop.permute.xlu0 %6373
      %6375 = vrot.lane.b32.xlu0 %v5849, 67
      %v6376 = vpop.permute.xlu0 %6375
      %6377 = vrot.lane.b32.xlu0 %v5852, 67
      %v6378 = vpop.permute.xlu0 %6377
      %6379 = vrot.lane.b32.xlu0 %v5855, 67
      %v6380 = vpop.permute.xlu0 %6379
      %6381 = vrot.lane.b32.xlu0 %v5858, 67
      %v6382 = vpop.permute.xlu0 %6381
      %6383 = vrot.lane.b32.xlu0 %v5861, 67
      %v6384 = vpop.permute.xlu0 %6383
      %6385 = vrot.lane.b32.xlu0 %v5864, 67
      %v6386 = vpop.permute.xlu0 %6385
      %6387 = vrot.lane.b32.xlu0 %v5867, 67
      %v6388 = vpop.permute.xlu0 %6387
      %6389 = vrot.lane.b32.xlu0 %v5870, 67
      %v6390 = vpop.permute.xlu0 %6389
      %6391 = vrot.lane.b32.xlu0 %v5873, 67
      %v6392 = vpop.permute.xlu0 %6391
      %6393 = vrot.lane.b32.xlu0 %v5876, 67
      %v6394 = vpop.permute.xlu0 %6393
      %6395 = vrot.lane.b32.xlu0 %v5879, 67
      %v6396 = vpop.permute.xlu0 %6395
      %6397 = vrot.lane.b32.xlu0 %v5882, 67
      %v6398 = vpop.permute.xlu0 %6397
      %6399 = vrot.lane.b32.xlu0 %v5885, 67
      %v6400 = vpop.permute.xlu0 %6399
      %6401 = vrot.lane.b32.xlu0 %v5888, 67
      %v6402 = vpop.permute.xlu0 %6401
      %6403 = vrot.lane.b32.xlu0 %v5891, 67
      %v6404 = vpop.permute.xlu0 %6403
      %6405 = vrot.lane.b32.xlu0 %v5894, 67
      %v6406 = vpop.permute.xlu0 %6405
      %6407 = vrot.lane.b32.xlu0 %v5897, 67
      %v6408 = vpop.permute.xlu0 %6407
      %6409 = vrot.lane.b32.xlu0 %v5900, 67
      %v6410 = vpop.permute.xlu0 %6409
      %6411 = vrot.lane.b32.xlu0 %v5903, 67
      %v6412 = vpop.permute.xlu0 %6411
      %6413 = vrot.lane.b32.xlu0 %v5906, 67
      %v6414 = vpop.permute.xlu0 %6413
      %6415 = vrot.lane.b32.xlu0 %v5909, 67
      %v6416 = vpop.permute.xlu0 %6415
      %6417 = vrot.lane.b32.xlu0 %v5912, 67
      %v6418 = vpop.permute.xlu0 %6417
      %6419 = vrot.lane.b32.xlu0 %v5915, 67
      %v6420 = vpop.permute.xlu0 %6419
      %6421 = vrot.lane.b32.xlu0 %v5918, 67
      %v6422 = vpop.permute.xlu0 %6421
      %6423 = vrot.lane.b32.xlu0 %v5921, 67
      %v6424 = vpop.permute.xlu0 %6423
      %6425 = vrot.lane.b32.xlu0 %v5924, 67
      %v6426 = vpop.permute.xlu0 %6425
      %6427 = vrot.lane.b32.xlu0 %v5927, 67
      %v6428 = vpop.permute.xlu0 %6427
      %6429 = vrot.lane.b32.xlu0 %v5930, 67
      %v6430 = vpop.permute.xlu0 %6429
      %6431 = vrot.lane.b32.xlu0 %v5933, 67
      %v6432 = vpop.permute.xlu0 %6431
      %6433 = vrot.lane.b32.xlu0 %v5936, 67
      %v6434 = vpop.permute.xlu0 %6433
      %6435 = vrot.lane.b32.xlu0 %v5939, 67
      %v6436 = vpop.permute.xlu0 %6435
      %6437 = vrot.lane.b32.xlu0 %v5942, 67
      %v6438 = vpop.permute.xlu0 %6437
      %6439 = vrot.lane.b32.xlu0 %v5945, 67
      %v6440 = vpop.permute.xlu0 %6439
      %6441 = vrot.lane.b32.xlu0 %v5948, 67
      %v6442 = vpop.permute.xlu0 %6441
      %6443 = vrot.lane.b32.xlu0 %v5951, 67
      %v6444 = vpop.permute.xlu0 %6443
      %6445 = vrot.lane.b32.xlu0 %v5954, 67
      %v6446 = vpop.permute.xlu0 %6445
      %6447 = vrot.lane.b32.xlu0 %v5957, 67
      %v6448 = vpop.permute.xlu0 %6447
      %6449 = vrot.lane.b32.xlu0 %v5960, 67
      %v6450 = vpop.permute.xlu0 %6449
      %6451 = vrot.lane.b32.xlu0 %v5963, 67
      %v6452 = vpop.permute.xlu0 %6451
      %6453 = vrot.lane.b32.xlu0 %v5966, 67
      %v6454 = vpop.permute.xlu0 %6453
      %6455 = vrot.lane.b32.xlu0 %v5969, 67
      %v6456 = vpop.permute.xlu0 %6455
      %6457 = vrot.lane.b32.xlu0 %v5972, 67
      %v6458 = vpop.permute.xlu0 %6457
      %6459 = vrot.lane.b32.xlu0 %v5975, 67
      %v6460 = vpop.permute.xlu0 %6459
      %6461 = vrot.lane.b32.xlu0 %v5978, 67
      %v6462 = vpop.permute.xlu0 %6461
      %6463 = vrot.lane.b32.xlu0 %v5981, 67
      %v6464 = vpop.permute.xlu0 %6463
      %6465 = vrot.lane.b32.xlu0 %v5984, 67
      %v6466 = vpop.permute.xlu0 %6465
      %6467 = vrot.lane.b32.xlu0 %v5987, 67
      %v6468 = vpop.permute.xlu0 %6467
      %6469 = vrot.lane.b32.xlu0 %v5990, 67
      %v6470 = vpop.permute.xlu0 %6469
      %6471 = vrot.lane.b32.xlu0 %v5993, 67
      %v6472 = vpop.permute.xlu0 %6471
      %6473 = vrot.lane.b32.xlu0 %v5996, 67
      %v6474 = vpop.permute.xlu0 %6473
      %6475 = vrot.lane.b32.xlu0 %v5999, 67
      %v6476 = vpop.permute.xlu0 %6475
      %6477 = vrot.lane.b32.xlu0 %v6002, 67
      %v6478 = vpop.permute.xlu0 %6477
      %6479 = vrot.lane.b32.xlu0 %v6005, 67
      %v6480 = vpop.permute.xlu0 %6479
      %6481 = vrot.lane.b32.xlu0 %v6008, 67
      %v6482 = vpop.permute.xlu0 %6481
      %6483 = vrot.lane.b32.xlu0 %v6011, 67
      %v6484 = vpop.permute.xlu0 %6483
      %6485 = vrot.lane.b32.xlu0 %v6014, 67
      %v6486 = vpop.permute.xlu0 %6485
      %6487 = vrot.lane.b32.xlu0 %v6017, 67
      %v6488 = vpop.permute.xlu0 %6487
      %6489 = vrot.lane.b32.xlu0 %v6020, 67
      %v6490 = vpop.permute.xlu0 %6489
      %6491 = vrot.lane.b32.xlu0 %v6023, 67
      %v6492 = vpop.permute.xlu0 %6491
      %6493 = vrot.lane.b32.xlu0 %v6026, 67
      %v6494 = vpop.permute.xlu0 %6493
      %6495 = vrot.lane.b32.xlu0 %v6029, 67
      %v6496 = vpop.permute.xlu0 %6495
      %6497 = vrot.lane.b32.xlu0 %v6032, 67
      %v6498 = vpop.permute.xlu0 %6497
      %6499 = vrot.lane.b32.xlu0 %v6035, 67
      %v6500 = vpop.permute.xlu0 %6499
      %6501 = vrot.lane.b32.xlu0 %v6038, 67
      %v6502 = vpop.permute.xlu0 %6501
      %6503 = vrot.lane.b32.xlu0 %v6041, 67
      %v6504 = vpop.permute.xlu0 %6503
      %6505 = vrot.lane.b32.xlu0 %v6044, 67
      %v6506 = vpop.permute.xlu0 %6505
      %6507 = vrot.lane.b32.xlu0 %v6047, 67
      %v6508 = vpop.permute.xlu0 %6507
      %6509 = vrot.lane.b32.xlu0 %v6050, 67
      %v6510 = vpop.permute.xlu0 %6509
      %6511 = vrot.lane.b32.xlu0 %v6053, 67
      %v6512 = vpop.permute.xlu0 %6511
      %6513 = vrot.lane.b32.xlu0 %v6056, 67
      %v6514 = vpop.permute.xlu0 %6513
      %6515 = vrot.lane.b32.xlu0 %v6059, 67
      %v6516 = vpop.permute.xlu0 %6515
      %6517 = vrot.lane.b32.xlu0 %v6062, 67
      %v6518 = vpop.permute.xlu0 %6517
      %6519 = vrot.lane.b32.xlu0 %v6065, 67
      %v6520 = vpop.permute.xlu0 %6519
      %6521 = vrot.lane.b32.xlu0 %v6068, 67
      %v6522 = vpop.permute.xlu0 %6521
      %6523 = vrot.lane.b32.xlu0 %v6071, 67
      %v6524 = vpop.permute.xlu0 %6523
      %6525 = vrot.lane.b32.xlu0 %v6074, 67
      %v6526 = vpop.permute.xlu0 %6525
      %6527 = vrot.lane.b32.xlu0 %v6077, 67
      %v6528 = vpop.permute.xlu0 %6527
      %6529 = vrot.lane.b32.xlu0 %v6080, 67
      %v6530 = vpop.permute.xlu0 %6529
      %6531 = vrot.lane.b32.xlu0 %v6083, 67
      %v6532 = vpop.permute.xlu0 %6531
      %6533 = vrot.lane.b32.xlu0 %v6086, 67
      %v6534 = vpop.permute.xlu0 %6533
      %6535 = vrot.lane.b32.xlu0 %v6089, 67
      %v6536 = vpop.permute.xlu0 %6535
      %6537 = vrot.lane.b32.xlu0 %v6092, 67
      %v6538 = vpop.permute.xlu0 %6537
      %6539 = vrot.lane.b32.xlu0 %v6095, 67
      %v6540 = vpop.permute.xlu0 %6539
      %6541 = vrot.lane.b32.xlu0 %v6098, 67
      %v6542 = vpop.permute.xlu0 %6541
      %6543 = vrot.lane.b32.xlu0 %v6101, 67
      %v6544 = vpop.permute.xlu0 %6543
      %6545 = vrot.lane.b32.xlu0 %v6104, 67
      %v6546 = vpop.permute.xlu0 %6545
      %6547 = vrot.lane.b32.xlu0 %v6107, 67
      %v6548 = vpop.permute.xlu0 %6547
      %6549 = vrot.lane.b32.xlu0 %v6110, 67
      %v6550 = vpop.permute.xlu0 %6549
      %6551 = vrot.lane.b32.xlu0 %v6113, 67
      %v6552 = vpop.permute.xlu0 %6551
      %6553 = vrot.lane.b32.xlu0 %v6116, 67
      %v6554 = vpop.permute.xlu0 %6553
      %6555 = vrot.lane.b32.xlu0 %v6119, 67
      %v6556 = vpop.permute.xlu0 %6555
      %6557 = vrot.lane.b32.xlu0 %v6122, 67
      %v6558 = vpop.permute.xlu0 %6557
      %6559 = vrot.lane.b32.xlu0 %v5660, 67
      %v6560 = vpop.permute.xlu0 %6559
      %6561 = vrot.lane.b32.xlu0 %v5661, 67
      %v6562 = vpop.permute.xlu0 %6561
      %6563 = vrot.lane.b32.xlu0 %v5662, 67
      %v6564 = vpop.permute.xlu0 %6563
      %6565 = vrot.lane.b32.xlu0 %v5663, 67
      %v6566 = vpop.permute.xlu0 %6565
      %6567 = vrot.lane.b32.xlu0 %v5664, 67
      %v6568 = vpop.permute.xlu0 %6567
      %6569 = vrot.lane.b32.xlu0 %v5665, 67
      %v6570 = vpop.permute.xlu0 %6569
      %6571 = vrot.lane.b32.xlu0 %v5666, 67
      %v6572 = vpop.permute.xlu0 %6571
      %6573 = vrot.lane.b32.xlu0 %v5667, 67
      %v6574 = vpop.permute.xlu0 %6573
      %6575 = vrot.lane.b32.xlu0 %v5668, 67
      %v6576 = vpop.permute.xlu0 %6575
      %6577 = vrot.lane.b32.xlu0 %v5669, 67
      %v6578 = vpop.permute.xlu0 %6577
      %6579 = vrot.lane.b32.xlu0 %v5670, 67
      %v6580 = vpop.permute.xlu0 %6579
      %6581 = vrot.lane.b32.xlu0 %v5671, 67
      %v6582 = vpop.permute.xlu0 %6581
      %6583 = vrot.lane.b32.xlu0 %v5672, 67
      %v6584 = vpop.permute.xlu0 %6583
      %6585 = vrot.lane.b32.xlu0 %v5673, 67
      %v6586 = vpop.permute.xlu0 %6585
      %6587 = vrot.lane.b32.xlu0 %v5674, 67
      %v6588 = vpop.permute.xlu0 %6587
      %6589 = vrot.lane.b32.xlu0 %v5675, 67
      %v6590 = vpop.permute.xlu0 %6589
      %6591 = vrot.lane.b32.xlu0 %v5676, 67
      %v6592 = vpop.permute.xlu0 %6591
      %6593 = vrot.lane.b32.xlu0 %v5677, 67
      %v6594 = vpop.permute.xlu0 %6593
      %6595 = vrot.lane.b32.xlu0 %v5678, 67
      %v6596 = vpop.permute.xlu0 %6595
      %6597 = vrot.lane.b32.xlu0 %v5679, 67
      %v6598 = vpop.permute.xlu0 %6597
      %6599 = vrot.lane.b32.xlu0 %v5680, 67
      %v6600 = vpop.permute.xlu0 %6599
      %6601 = vrot.lane.b32.xlu0 %v5681, 67
      %v6602 = vpop.permute.xlu0 %6601
      %6603 = vrot.lane.b32.xlu0 %v5682, 67
      %v6604 = vpop.permute.xlu0 %6603
      %6605 = vrot.lane.b32.xlu0 %v5683, 67
      %v6606 = vpop.permute.xlu0 %6605
      %6607 = vrot.lane.b32.xlu0 %v5684, 67
      %v6608 = vpop.permute.xlu0 %6607
      %6609 = vrot.lane.b32.xlu0 %v5685, 67
      %v6610 = vpop.permute.xlu0 %6609
      %6611 = vrot.lane.b32.xlu0 %v5686, 67
      %v6612 = vpop.permute.xlu0 %6611
      %6613 = vrot.lane.b32.xlu0 %v5687, 67
      %v6614 = vpop.permute.xlu0 %6613
      %6615 = vrot.lane.b32.xlu0 %v5688, 67
      %v6616 = vpop.permute.xlu0 %6615
      %6617 = vrot.lane.b32.xlu0 %v5689, 67
      %v6618 = vpop.permute.xlu0 %6617
      %6619 = vrot.lane.b32.xlu0 %v5690, 67
      %v6620 = vpop.permute.xlu0 %6619
      %6621 = vrot.lane.b32.xlu0 %v5691, 67
      %v6622 = vpop.permute.xlu0 %6621
      %6623 = vrot.lane.b32.xlu0 %v5692, 67
      %v6624 = vpop.permute.xlu0 %6623
      %6625 = vrot.lane.b32.xlu0 %v5693, 67
      %v6626 = vpop.permute.xlu0 %6625
      %6627 = vrot.lane.b32.xlu0 %v5694, 67
      %v6628 = vpop.permute.xlu0 %6627
      %v6629 = vsel %vm2314, %v6274, %v6276
      %v6630 = vsel %vm2314, %v6276, %v6278
      %v6631 = vsel %vm2314, %v6278, %v6280
      %v6632 = vsel %vm2314, %v6280, %v6282
      %v6633 = vsel %vm2314, %v6282, %v6284
      %v6634 = vsel %vm2314, %v6284, %v6286
      %v6635 = vsel %vm2314, %v6286, %v6288
      %v6636 = vsel %vm2314, %v6288, %v6290
      %v6637 = vsel %vm2314, %v6290, %v6292
      %v6638 = vsel %vm2314, %v6292, %v6294
      %v6639 = vsel %vm2314, %v6294, %v6296
      %v6640 = vsel %vm2314, %v6296, %v6298
      %v6641 = vsel %vm2314, %v6298, %v6300
      %v6642 = vsel %vm2314, %v6300, %v6302
      %v6643 = vsel %vm2314, %v6302, %v6304
      %v6644 = vsel %vm2314, %v6304, %v6306
      %v6645 = vsel %vm2314, %v6306, %v6308
      %v6646 = vsel %vm2314, %v6308, %v6310
      %v6647 = vsel %vm2314, %v6310, %v6312
      %v6648 = vsel %vm2314, %v6312, %v6314
      %v6649 = vsel %vm2314, %v6314, %v6316
      %v6650 = vsel %vm2314, %v6316, %v6318
      %v6651 = vsel %vm2314, %v6318, %v6320
      %v6652 = vsel %vm2314, %v6320, %v6322
      %v6653 = vsel %vm2314, %v6322, %v6324
      %v6654 = vsel %vm2314, %v6324, %v6326
      %v6655 = vsel %vm2314, %v6326, %v6328
      %v6656 = vsel %vm2314, %v6328, %v6330
      %v6657 = vsel %vm2314, %v6330, %v6332
      %v6658 = vsel %vm2314, %v6332, %v6334
      %v6659 = vsel %vm2314, %v6334, %v6336
      %v6660 = vsel %vm2314, %v6336, %v6338
      %v6661 = vsel %vm2314, %v6338, %v6340
      %v6662 = vsel %vm2314, %v6340, %v6342
      %v6663 = vsel %vm2314, %v6342, %v6344
      %v6664 = vsel %vm2314, %v6346, %v6348
      %v6665 = vsel %vm2314, %v6348, %v6350
      %v6666 = vsel %vm2314, %v6350, %v6352
      %v6667 = vsel %vm2314, %v6352, %v6354
      %v6668 = vsel %vm2314, %v6354, %v6356
      %v6669 = vsel %vm2314, %v6356, %v6358
      %v6670 = vsel %vm2314, %v6358, %v6360
      %v6671 = vsel %vm2314, %v6360, %v6362
      %v6672 = vsel %vm2314, %v6362, %v6364
      %v6673 = vsel %vm2314, %v6364, %v6366
      %v6674 = vsel %vm2314, %v6366, %v6368
      %v6675 = vsel %vm2314, %v6368, %v6370
      %v6676 = vsel %vm2314, %v6370, %v6372
      %v6677 = vsel %vm2314, %v6372, %v6374
      %v6678 = vsel %vm2314, %v6374, %v6376
      %v6679 = vsel %vm2314, %v6376, %v6378
      %v6680 = vsel %vm2314, %v6378, %v6380
      %v6681 = vsel %vm2314, %v6380, %v6382
      %v6682 = vsel %vm2314, %v6382, %v6384
      %v6683 = vsel %vm2314, %v6384, %v6386
      %v6684 = vsel %vm2314, %v6386, %v6388
      %v6685 = vsel %vm2314, %v6388, %v6390
      %v6686 = vsel %vm2314, %v6390, %v6392
      %v6687 = vsel %vm2314, %v6392, %v6394
      %v6688 = vsel %vm2314, %v6394, %v6396
      %v6689 = vsel %vm2314, %v6396, %v6398
      %v6690 = vsel %vm2314, %v6398, %v6400
      %v6691 = vsel %vm2314, %v6400, %v6402
      %v6692 = vsel %vm2314, %v6402, %v6404
      %v6693 = vsel %vm2314, %v6404, %v6406
      %v6694 = vsel %vm2314, %v6406, %v6408
      %v6695 = vsel %vm2314, %v6408, %v6410
      %v6696 = vsel %vm2314, %v6410, %v6412
      %v6697 = vsel %vm2314, %v6412, %v6414
      %v6698 = vsel %vm2314, %v6414, %v6416
      %v6699 = vsel %vm2314, %v6418, %v6420
      %v6700 = vsel %vm2314, %v6420, %v6422
      %v6701 = vsel %vm2314, %v6422, %v6424
      %v6702 = vsel %vm2314, %v6424, %v6426
      %v6703 = vsel %vm2314, %v6426, %v6428
      %v6704 = vsel %vm2314, %v6428, %v6430
      %v6705 = vsel %vm2314, %v6430, %v6432
      %v6706 = vsel %vm2314, %v6432, %v6434
      %v6707 = vsel %vm2314, %v6434, %v6436
      %v6708 = vsel %vm2314, %v6436, %v6438
      %v6709 = vsel %vm2314, %v6438, %v6440
      %v6710 = vsel %vm2314, %v6440, %v6442
      %v6711 = vsel %vm2314, %v6442, %v6444
      %v6712 = vsel %vm2314, %v6444, %v6446
      %v6713 = vsel %vm2314, %v6446, %v6448
      %v6714 = vsel %vm2314, %v6448, %v6450
      %v6715 = vsel %vm2314, %v6450, %v6452
      %v6716 = vsel %vm2314, %v6452, %v6454
      %v6717 = vsel %vm2314, %v6454, %v6456
      %v6718 = vsel %vm2314, %v6456, %v6458
      %v6719 = vsel %vm2314, %v6458, %v6460
      %v6720 = vsel %vm2314, %v6460, %v6462
      %v6721 = vsel %vm2314, %v6462, %v6464
      %v6722 = vsel %vm2314, %v6464, %v6466
      %v6723 = vsel %vm2314, %v6466, %v6468
      %v6724 = vsel %vm2314, %v6468, %v6470
      %v6725 = vsel %vm2314, %v6470, %v6472
      %v6726 = vsel %vm2314, %v6472, %v6474
      %v6727 = vsel %vm2314, %v6474, %v6476
      %v6728 = vsel %vm2314, %v6476, %v6478
      %v6729 = vsel %vm2314, %v6478, %v6480
      %v6730 = vsel %vm2314, %v6480, %v6482
      %v6731 = vsel %vm2314, %v6482, %v6484
      %v6732 = vsel %vm2314, %v6484, %v6486
      %v6733 = vsel %vm2314, %v6486, %v6488
      %v6734 = vsel %vm2314, %v6490, %v6492
      %v6735 = vsel %vm2314, %v6492, %v6494
      %v6736 = vsel %vm2314, %v6494, %v6496
      %v6737 = vsel %vm2314, %v6496, %v6498
      %v6738 = vsel %vm2314, %v6498, %v6500
      %v6739 = vsel %vm2314, %v6500, %v6502
      %v6740 = vsel %vm2314, %v6502, %v6504
      %v6741 = vsel %vm2314, %v6504, %v6506
      %v6742 = vsel %vm2314, %v6506, %v6508
      %v6743 = vsel %vm2314, %v6508, %v6510
      %v6744 = vsel %vm2314, %v6510, %v6512
      %v6745 = vsel %vm2314, %v6512, %v6514
      %v6746 = vsel %vm2314, %v6514, %v6516
      %v6747 = vsel %vm2314, %v6516, %v6518
      %v6748 = vsel %vm2314, %v6518, %v6520
      %v6749 = vsel %vm2314, %v6520, %v6522
      %v6750 = vsel %vm2314, %v6522, %v6524
      %v6751 = vsel %vm2314, %v6524, %v6526
      %v6752 = vsel %vm2314, %v6526, %v6528
      %v6753 = vsel %vm2314, %v6528, %v6530
      %v6754 = vsel %vm2314, %v6530, %v6532
      %v6755 = vsel %vm2314, %v6532, %v6534
      %v6756 = vsel %vm2314, %v6534, %v6536
      %v6757 = vsel %vm2314, %v6536, %v6538
      %v6758 = vsel %vm2314, %v6538, %v6540
      %v6759 = vsel %vm2314, %v6540, %v6542
      %v6760 = vsel %vm2314, %v6542, %v6544
      %v6761 = vsel %vm2314, %v6544, %v6546
      %v6762 = vsel %vm2314, %v6546, %v6548
      %v6763 = vsel %vm2314, %v6548, %v6550
      %v6764 = vsel %vm2314, %v6550, %v6552
      %v6765 = vsel %vm2314, %v6552, %v6554
      %v6766 = vsel %vm2314, %v6554, %v6556
      %v6767 = vsel %vm2314, %v6556, %v6558
      %v6768 = vsel %vm2314, %v6558, %v2241
      %v6769 = vsel %vm2314, %v6560, %v6562
      %v6770 = vsel %vm2314, %v6562, %v6564
      %v6771 = vsel %vm2314, %v6564, %v6566
      %v6772 = vsel %vm2314, %v6566, %v6568
      %v6773 = vsel %vm2314, %v6568, %v6570
      %v6774 = vsel %vm2314, %v6570, %v6572
      %v6775 = vsel %vm2314, %v6572, %v6574
      %v6776 = vsel %vm2314, %v6574, %v6576
      %v6777 = vsel %vm2314, %v6576, %v6578
      %v6778 = vsel %vm2314, %v6578, %v6580
      %v6779 = vsel %vm2314, %v6580, %v6582
      %v6780 = vsel %vm2314, %v6582, %v6584
      %v6781 = vsel %vm2314, %v6584, %v6586
      %v6782 = vsel %vm2314, %v6586, %v6588
      %v6783 = vsel %vm2314, %v6588, %v6590
      %v6784 = vsel %vm2314, %v6590, %v6592
      %v6785 = vsel %vm2314, %v6592, %v6594
      %v6786 = vsel %vm2314, %v6594, %v6596
      %v6787 = vsel %vm2314, %v6596, %v6598
      %v6788 = vsel %vm2314, %v6598, %v6600
      %v6789 = vsel %vm2314, %v6600, %v6602
      %v6790 = vsel %vm2314, %v6602, %v6604
      %v6791 = vsel %vm2314, %v6604, %v6606
      %v6792 = vsel %vm2314, %v6606, %v6608
      %v6793 = vsel %vm2314, %v6608, %v6610
      %v6794 = vsel %vm2314, %v6610, %v6612
      %v6795 = vsel %vm2314, %v6612, %v6614
      %v6796 = vsel %vm2314, %v6614, %v6616
      %v6797 = vsel %vm2314, %v6616, %v6618
      %v6798 = vsel %vm2314, %v6618, %v6620
      %v6799 = vsel %vm2314, %v6620, %v6622
      %v6800 = vsel %vm2314, %v6622, %v6624
      %v6801 = vsel %vm2314, %v6624, %v6626
      %v6802 = vsel %vm2314, %v6626, %v6628
      %v6803 = vsel %vm2314, %v6628, %v2313
      %v6945 = vsel %vm2630, %v6123, 0
      %v6948 = vsel %vm1370, %v6769, 0
      %v6951 = vsel %vm1370, %v6770, 0
      %v6954 = vsel %vm1370, %v6771, 0
      %v6957 = vsel %vm1370, %v6772, 0
      %v6960 = vsel %vm1370, %v6773, 0
      %v6963 = vsel %vm1370, %v6774, 0
      %v6966 = vsel %vm1370, %v6775, 0
      %v6969 = vsel %vm1370, %v6776, 0
      %v6972 = vsel %vm1370, %v6777, 0
      %v6975 = vsel %vm1370, %v6778, 0
      %v6978 = vsel %vm1370, %v6779, 0
      %v6981 = vsel %vm1370, %v6780, 0
      %v6984 = vsel %vm1370, %v6781, 0
      %v6987 = vsel %vm1370, %v6782, 0
      %v6990 = vsel %vm1370, %v6783, 0
      %v6993 = vsel %vm1370, %v6784, 0
      %v6996 = vsel %vm1370, %v6785, 0
      %v6999 = vsel %vm1370, %v6786, 0
      %v7002 = vsel %vm1370, %v6787, 0
      %v7005 = vsel %vm1370, %v6788, 0
      %v7008 = vsel %vm1370, %v6789, 0
      %v7011 = vsel %vm1370, %v6790, 0
      %v7014 = vsel %vm1370, %v6791, 0
      %v7017 = vsel %vm1370, %v6792, 0
      %v7020 = vsel %vm1370, %v6793, 0
      %v7023 = vsel %vm1370, %v6794, 0
      %v7026 = vsel %vm1370, %v6795, 0
      %v7029 = vsel %vm1370, %v6796, 0
      %v7032 = vsel %vm1370, %v6797, 0
      %v7035 = vsel %vm1370, %v6798, 0
      %v7038 = vsel %vm1370, %v6799, 0
      %v7041 = vsel %vm1370, %v6800, 0
      %v7044 = vsel %vm1370, %v6801, 0
      %v7047 = vsel %vm1370, %v6802, 0
      %v7050 = vsel %vm1370, %v6803, 0
      %7052 = vmatpush.bf16.msra.mxu0 0
      %7053 = vmatpush.bf16.msra.mxu0 0
      %7054 = vmatpush.bf16.msra.mxu0 0
      %7055 = vmatpush.bf16.msra.mxu0 %v6948
      %7056 = vmatpush.bf16.msra.mxu0 %v6734
      %7057 = vmatpush.bf16.msra.mxu0 %v6699
      %7058 = vmatpush.bf16.msra.mxu0 %v6664
      %7059 = vmatpush.bf16.msra.mxu0 %v6629
      %7060 = vmatmul.bf16.gmra.mxu0 %v6945
      %v7061 = vpop.f32.mrf.mxu0
      %v7062 = vadd.f32 %v6128, %v7061
      %v7063 = vpop.f32.mrf.mxu0
      %7064 = vdwg.mxu0
      %7065 = vmatpush.bf16.msra.mxu0 0
      %7066 = vmatpush.bf16.msra.mxu0 0
      %7067 = vmatpush.bf16.msra.mxu0 0
      %7068 = vmatpush.bf16.msra.mxu0 %v6951
      %7069 = vmatpush.bf16.msra.mxu0 %v6735
      %7070 = vmatpush.bf16.msra.mxu0 %v6700
      %7071 = vmatpush.bf16.msra.mxu0 %v6665
      %7072 = vmatpush.bf16.msra.mxu0 %v6630
      %7073 = vmatmul.bf16.gmra.mxu0 %v6945
      %v7074 = vpop.f32.mrf.mxu0
      %v7075 = vadd.f32 %v6128, %v7074
      %v7076 = vpop.f32.mrf.mxu0
      %7077 = vdwg.mxu0
      %7078 = vmatpush.bf16.msra.mxu0 0
      %7079 = vmatpush.bf16.msra.mxu0 0
      %7080 = vmatpush.bf16.msra.mxu0 0
      %7081 = vmatpush.bf16.msra.mxu0 %v6954
      %7082 = vmatpush.bf16.msra.mxu0 %v6736
      %7083 = vmatpush.bf16.msra.mxu0 %v6701
      %7084 = vmatpush.bf16.msra.mxu0 %v6666
      %7085 = vmatpush.bf16.msra.mxu0 %v6631
      %7086 = vmatmul.bf16.gmra.mxu0 %v6945
      %v7087 = vpop.f32.mrf.mxu0
      %v7088 = vadd.f32 %v6128, %v7087
      %v7089 = vpop.f32.mrf.mxu0
      %7090 = vdwg.mxu0
      %7091 = vmatpush.bf16.msra.mxu0 0
      %7092 = vmatpush.bf16.msra.mxu0 0
      %7093 = vmatpush.bf16.msra.mxu0 0
      %7094 = vmatpush.bf16.msra.mxu0 %v6957
      %7095 = vmatpush.bf16.msra.mxu0 %v6737
      %7096 = vmatpush.bf16.msra.mxu0 %v6702
      %7097 = vmatpush.bf16.msra.mxu0 %v6667
      %7098 = vmatpush.bf16.msra.mxu0 %v6632
      %7099 = vmatmul.bf16.gmra.mxu0 %v6945
      %v7100 = vpop.f32.mrf.mxu0
      %v7101 = vadd.f32 %v6128, %v7100
      %v7102 = vpop.f32.mrf.mxu0
      %7103 = vdwg.mxu0
      %7104 = vmatpush.bf16.msra.mxu0 0
      %7105 = vmatpush.bf16.msra.mxu0 0
      %7106 = vmatpush.bf16.msra.mxu0 0
      %7107 = vmatpush.bf16.msra.mxu0 %v6960
      %7108 = vmatpush.bf16.msra.mxu0 %v6738
      %7109 = vmatpush.bf16.msra.mxu0 %v6703
      %7110 = vmatpush.bf16.msra.mxu0 %v6668
      %7111 = vmatpush.bf16.msra.mxu0 %v6633
      %7112 = vmatmul.bf16.gmra.mxu0 %v6945
      %v7113 = vpop.f32.mrf.mxu0
      %v7114 = vadd.f32 %v6128, %v7113
      %v7115 = vpop.f32.mrf.mxu0
      %7116 = vdwg.mxu0
      %7117 = vmatpush.bf16.msra.mxu0 0
      %7118 = vmatpush.bf16.msra.mxu0 0
      %7119 = vmatpush.bf16.msra.mxu0 0
      %7120 = vmatpush.bf16.msra.mxu0 %v6963
      %7121 = vmatpush.bf16.msra.mxu0 %v6739
      %7122 = vmatpush.bf16.msra.mxu0 %v6704
      %7123 = vmatpush.bf16.msra.mxu0 %v6669
      %7124 = vmatpush.bf16.msra.mxu0 %v6634
      %7125 = vmatmul.bf16.gmra.mxu0 %v6945
      %v7126 = vpop.f32.mrf.mxu0
      %v7127 = vadd.f32 %v6128, %v7126
      %v7128 = vpop.f32.mrf.mxu0
      %7129 = vdwg.mxu0
      %7130 = vmatpush.bf16.msra.mxu0 0
      %7131 = vmatpush.bf16.msra.mxu0 0
      %7132 = vmatpush.bf16.msra.mxu0 0
      %7133 = vmatpush.bf16.msra.mxu0 %v6966
      %7134 = vmatpush.bf16.msra.mxu0 %v6740
      %7135 = vmatpush.bf16.msra.mxu0 %v6705
      %7136 = vmatpush.bf16.msra.mxu0 %v6670
      %7137 = vmatpush.bf16.msra.mxu0 %v6635
      %7138 = vmatmul.bf16.gmra.mxu0 %v6945
      %v7139 = vpop.f32.mrf.mxu0
      %v7140 = vadd.f32 %v6128, %v7139
      %v7141 = vpop.f32.mrf.mxu0
      %7142 = vdwg.mxu0
      %7143 = vmatpush.bf16.msra.mxu0 0
      %7144 = vmatpush.bf16.msra.mxu0 0
      %7145 = vmatpush.bf16.msra.mxu0 0
      %7146 = vmatpush.bf16.msra.mxu0 %v6969
      %7147 = vmatpush.bf16.msra.mxu0 %v6741
      %7148 = vmatpush.bf16.msra.mxu0 %v6706
      %7149 = vmatpush.bf16.msra.mxu0 %v6671
      %7150 = vmatpush.bf16.msra.mxu0 %v6636
      %7151 = vmatmul.bf16.gmra.mxu0 %v6945
      %v7152 = vpop.f32.mrf.mxu0
      %v7153 = vadd.f32 %v6128, %v7152
      %v7154 = vpop.f32.mrf.mxu0
      %7155 = vdwg.mxu0
      %7156 = vmatpush.bf16.msra.mxu0 0
      %7157 = vmatpush.bf16.msra.mxu0 0
      %7158 = vmatpush.bf16.msra.mxu0 0
      %7159 = vmatpush.bf16.msra.mxu0 %v6972
      %7160 = vmatpush.bf16.msra.mxu0 %v6742
      %7161 = vmatpush.bf16.msra.mxu0 %v6707
      %7162 = vmatpush.bf16.msra.mxu0 %v6672
      %7163 = vmatpush.bf16.msra.mxu0 %v6637
      %7164 = vmatmul.bf16.gmra.mxu0 %v6945
      %v7165 = vpop.f32.mrf.mxu0
      %v7166 = vadd.f32 %v6128, %v7165
      %v7167 = vpop.f32.mrf.mxu0
      %7168 = vdwg.mxu0
      %7169 = vmatpush.bf16.msra.mxu0 0
      %7170 = vmatpush.bf16.msra.mxu0 0
      %7171 = vmatpush.bf16.msra.mxu0 0
      %7172 = vmatpush.bf16.msra.mxu0 %v6975
      %7173 = vmatpush.bf16.msra.mxu0 %v6743
      %7174 = vmatpush.bf16.msra.mxu0 %v6708
      %7175 = vmatpush.bf16.msra.mxu0 %v6673
      %7176 = vmatpush.bf16.msra.mxu0 %v6638
      %7177 = vmatmul.bf16.gmra.mxu0 %v6945
      %v7178 = vpop.f32.mrf.mxu0
      %v7179 = vadd.f32 %v6128, %v7178
      %v7180 = vpop.f32.mrf.mxu0
      %7181 = vdwg.mxu0
      %7182 = vmatpush.bf16.msra.mxu0 0
      %7183 = vmatpush.bf16.msra.mxu0 0
      %7184 = vmatpush.bf16.msra.mxu0 0
      %7185 = vmatpush.bf16.msra.mxu0 %v6978
      %7186 = vmatpush.bf16.msra.mxu0 %v6744
      %7187 = vmatpush.bf16.msra.mxu0 %v6709
      %7188 = vmatpush.bf16.msra.mxu0 %v6674
      %7189 = vmatpush.bf16.msra.mxu0 %v6639
      %7190 = vmatmul.bf16.gmra.mxu0 %v6945
      %v7191 = vpop.f32.mrf.mxu0
      %v7192 = vadd.f32 %v6128, %v7191
      %v7193 = vpop.f32.mrf.mxu0
      %7194 = vdwg.mxu0
      %7195 = vmatpush.bf16.msra.mxu0 0
      %7196 = vmatpush.bf16.msra.mxu0 0
      %7197 = vmatpush.bf16.msra.mxu0 0
      %7198 = vmatpush.bf16.msra.mxu0 %v6981
      %7199 = vmatpush.bf16.msra.mxu0 %v6745
      %7200 = vmatpush.bf16.msra.mxu0 %v6710
      %7201 = vmatpush.bf16.msra.mxu0 %v6675
      %7202 = vmatpush.bf16.msra.mxu0 %v6640
      %7203 = vmatmul.bf16.gmra.mxu0 %v6945
      %v7204 = vpop.f32.mrf.mxu0
      %v7205 = vadd.f32 %v6128, %v7204
      %v7206 = vpop.f32.mrf.mxu0
      %7207 = vdwg.mxu0
      %7208 = vmatpush.bf16.msra.mxu0 0
      %7209 = vmatpush.bf16.msra.mxu0 0
      %7210 = vmatpush.bf16.msra.mxu0 0
      %7211 = vmatpush.bf16.msra.mxu0 %v6984
      %7212 = vmatpush.bf16.msra.mxu0 %v6746
      %7213 = vmatpush.bf16.msra.mxu0 %v6711
      %7214 = vmatpush.bf16.msra.mxu0 %v6676
      %7215 = vmatpush.bf16.msra.mxu0 %v6641
      %7216 = vmatmul.bf16.gmra.mxu0 %v6945
      %v7217 = vpop.f32.mrf.mxu0
      %v7218 = vadd.f32 %v6128, %v7217
      %v7219 = vpop.f32.mrf.mxu0
      %7220 = vdwg.mxu0
      %7221 = vmatpush.bf16.msra.mxu0 0
      %7222 = vmatpush.bf16.msra.mxu0 0
      %7223 = vmatpush.bf16.msra.mxu0 0
      %7224 = vmatpush.bf16.msra.mxu0 %v6987
      %7225 = vmatpush.bf16.msra.mxu0 %v6747
      %7226 = vmatpush.bf16.msra.mxu0 %v6712
      %7227 = vmatpush.bf16.msra.mxu0 %v6677
      %7228 = vmatpush.bf16.msra.mxu0 %v6642
      %7229 = vmatmul.bf16.gmra.mxu0 %v6945
      %v7230 = vpop.f32.mrf.mxu0
      %v7231 = vadd.f32 %v6128, %v7230
      %v7232 = vpop.f32.mrf.mxu0
      %7233 = vdwg.mxu0
      %7234 = vmatpush.bf16.msra.mxu0 0
      %7235 = vmatpush.bf16.msra.mxu0 0
      %7236 = vmatpush.bf16.msra.mxu0 0
      %7237 = vmatpush.bf16.msra.mxu0 %v6990
      %7238 = vmatpush.bf16.msra.mxu0 %v6748
      %7239 = vmatpush.bf16.msra.mxu0 %v6713
      %7240 = vmatpush.bf16.msra.mxu0 %v6678
      %7241 = vmatpush.bf16.msra.mxu0 %v6643
      %7242 = vmatmul.bf16.gmra.mxu0 %v6945
      %v7243 = vpop.f32.mrf.mxu0
      %v7244 = vadd.f32 %v6128, %v7243
      %v7245 = vpop.f32.mrf.mxu0
      %7246 = vdwg.mxu0
      %7247 = vmatpush.bf16.msra.mxu0 0
      %7248 = vmatpush.bf16.msra.mxu0 0
      %7249 = vmatpush.bf16.msra.mxu0 0
      %7250 = vmatpush.bf16.msra.mxu0 %v6993
      %7251 = vmatpush.bf16.msra.mxu0 %v6749
      %7252 = vmatpush.bf16.msra.mxu0 %v6714
      %7253 = vmatpush.bf16.msra.mxu0 %v6679
      %7254 = vmatpush.bf16.msra.mxu0 %v6644
      %7255 = vmatmul.bf16.gmra.mxu0 %v6945
      %v7256 = vpop.f32.mrf.mxu0
      %v7257 = vadd.f32 %v6128, %v7256
      %v7258 = vpop.f32.mrf.mxu0
      %7259 = vdwg.mxu0
      %7260 = vmatpush.bf16.msra.mxu0 0
      %7261 = vmatpush.bf16.msra.mxu0 0
      %7262 = vmatpush.bf16.msra.mxu0 0
      %7263 = vmatpush.bf16.msra.mxu0 %v6996
      %7264 = vmatpush.bf16.msra.mxu0 %v6750
      %7265 = vmatpush.bf16.msra.mxu0 %v6715
      %7266 = vmatpush.bf16.msra.mxu0 %v6680
      %7267 = vmatpush.bf16.msra.mxu0 %v6645
      %7268 = vmatmul.bf16.gmra.mxu0 %v6945
      %v7269 = vpop.f32.mrf.mxu0
      %v7270 = vadd.f32 %v6128, %v7269
      %v7271 = vpop.f32.mrf.mxu0
      %7272 = vdwg.mxu0
      %7273 = vmatpush.bf16.msra.mxu0 0
      %7274 = vmatpush.bf16.msra.mxu0 0
      %7275 = vmatpush.bf16.msra.mxu0 0
      %7276 = vmatpush.bf16.msra.mxu0 %v6999
      %7277 = vmatpush.bf16.msra.mxu0 %v6751
      %7278 = vmatpush.bf16.msra.mxu0 %v6716
      %7279 = vmatpush.bf16.msra.mxu0 %v6681
      %7280 = vmatpush.bf16.msra.mxu0 %v6646
      %7281 = vmatmul.bf16.gmra.mxu0 %v6945
      %v7282 = vpop.f32.mrf.mxu0
      %v7283 = vadd.f32 %v6128, %v7282
      %v7284 = vpop.f32.mrf.mxu0
      %7285 = vdwg.mxu0
      %7286 = vmatpush.bf16.msra.mxu0 0
      %7287 = vmatpush.bf16.msra.mxu0 0
      %7288 = vmatpush.bf16.msra.mxu0 0
      %7289 = vmatpush.bf16.msra.mxu0 %v7002
      %7290 = vmatpush.bf16.msra.mxu0 %v6752
      %7291 = vmatpush.bf16.msra.mxu0 %v6717
      %7292 = vmatpush.bf16.msra.mxu0 %v6682
      %7293 = vmatpush.bf16.msra.mxu0 %v6647
      %7294 = vmatmul.bf16.gmra.mxu0 %v6945
      %v7295 = vpop.f32.mrf.mxu0
      %v7296 = vadd.f32 %v6128, %v7295
      %v7297 = vpop.f32.mrf.mxu0
      %7298 = vdwg.mxu0
      %7299 = vmatpush.bf16.msra.mxu0 0
      %7300 = vmatpush.bf16.msra.mxu0 0
      %7301 = vmatpush.bf16.msra.mxu0 0
      %7302 = vmatpush.bf16.msra.mxu0 %v7005
      %7303 = vmatpush.bf16.msra.mxu0 %v6753
      %7304 = vmatpush.bf16.msra.mxu0 %v6718
      %7305 = vmatpush.bf16.msra.mxu0 %v6683
      %7306 = vmatpush.bf16.msra.mxu0 %v6648
      %7307 = vmatmul.bf16.gmra.mxu0 %v6945
      %v7308 = vpop.f32.mrf.mxu0
      %v7309 = vadd.f32 %v6128, %v7308
      %v7310 = vpop.f32.mrf.mxu0
      %7311 = vdwg.mxu0
      %7312 = vmatpush.bf16.msra.mxu0 0
      %7313 = vmatpush.bf16.msra.mxu0 0
      %7314 = vmatpush.bf16.msra.mxu0 0
      %7315 = vmatpush.bf16.msra.mxu0 %v7008
      %7316 = vmatpush.bf16.msra.mxu0 %v6754
      %7317 = vmatpush.bf16.msra.mxu0 %v6719
      %7318 = vmatpush.bf16.msra.mxu0 %v6684
      %7319 = vmatpush.bf16.msra.mxu0 %v6649
      %7320 = vmatmul.bf16.gmra.mxu0 %v6945
      %v7321 = vpop.f32.mrf.mxu0
      %v7322 = vadd.f32 %v6128, %v7321
      %v7323 = vpop.f32.mrf.mxu0
      %7324 = vdwg.mxu0
      %7325 = vmatpush.bf16.msra.mxu0 0
      %7326 = vmatpush.bf16.msra.mxu0 0
      %7327 = vmatpush.bf16.msra.mxu0 0
      %7328 = vmatpush.bf16.msra.mxu0 %v7011
      %7329 = vmatpush.bf16.msra.mxu0 %v6755
      %7330 = vmatpush.bf16.msra.mxu0 %v6720
      %7331 = vmatpush.bf16.msra.mxu0 %v6685
      %7332 = vmatpush.bf16.msra.mxu0 %v6650
      %7333 = vmatmul.bf16.gmra.mxu0 %v6945
      %v7334 = vpop.f32.mrf.mxu0
      %v7335 = vadd.f32 %v6128, %v7334
      %v7336 = vpop.f32.mrf.mxu0
      %7337 = vdwg.mxu0
      %7338 = vmatpush.bf16.msra.mxu0 0
      %7339 = vmatpush.bf16.msra.mxu0 0
      %7340 = vmatpush.bf16.msra.mxu0 0
      %7341 = vmatpush.bf16.msra.mxu0 %v7014
      %7342 = vmatpush.bf16.msra.mxu0 %v6756
      %7343 = vmatpush.bf16.msra.mxu0 %v6721
      %7344 = vmatpush.bf16.msra.mxu0 %v6686
      %7345 = vmatpush.bf16.msra.mxu0 %v6651
      %7346 = vmatmul.bf16.gmra.mxu0 %v6945
      %v7347 = vpop.f32.mrf.mxu0
      %v7348 = vadd.f32 %v6128, %v7347
      %v7349 = vpop.f32.mrf.mxu0
      %7350 = vdwg.mxu0
      %7351 = vmatpush.bf16.msra.mxu0 0
      %7352 = vmatpush.bf16.msra.mxu0 0
      %7353 = vmatpush.bf16.msra.mxu0 0
      %7354 = vmatpush.bf16.msra.mxu0 %v7017
      %7355 = vmatpush.bf16.msra.mxu0 %v6757
      %7356 = vmatpush.bf16.msra.mxu0 %v6722
      %7357 = vmatpush.bf16.msra.mxu0 %v6687
      %7358 = vmatpush.bf16.msra.mxu0 %v6652
      %7359 = vmatmul.bf16.gmra.mxu0 %v6945
      %v7360 = vpop.f32.mrf.mxu0
      %v7361 = vadd.f32 %v6128, %v7360
      %v7362 = vpop.f32.mrf.mxu0
      %7363 = vdwg.mxu0
      %7364 = vmatpush.bf16.msra.mxu0 0
      %7365 = vmatpush.bf16.msra.mxu0 0
      %7366 = vmatpush.bf16.msra.mxu0 0
      %7367 = vmatpush.bf16.msra.mxu0 %v7020
      %7368 = vmatpush.bf16.msra.mxu0 %v6758
      %7369 = vmatpush.bf16.msra.mxu0 %v6723
      %7370 = vmatpush.bf16.msra.mxu0 %v6688
      %7371 = vmatpush.bf16.msra.mxu0 %v6653
      %7372 = vmatmul.bf16.gmra.mxu0 %v6945
      %v7373 = vpop.f32.mrf.mxu0
      %v7374 = vadd.f32 %v6128, %v7373
      %v7375 = vpop.f32.mrf.mxu0
      %7376 = vdwg.mxu0
      %7377 = vmatpush.bf16.msra.mxu0 0
      %7378 = vmatpush.bf16.msra.mxu0 0
      %7379 = vmatpush.bf16.msra.mxu0 0
      %7380 = vmatpush.bf16.msra.mxu0 %v7023
      %7381 = vmatpush.bf16.msra.mxu0 %v6759
      %7382 = vmatpush.bf16.msra.mxu0 %v6724
      %7383 = vmatpush.bf16.msra.mxu0 %v6689
      %7384 = vmatpush.bf16.msra.mxu0 %v6654
      %7385 = vmatmul.bf16.gmra.mxu0 %v6945
      %v7386 = vpop.f32.mrf.mxu0
      %v7387 = vadd.f32 %v6128, %v7386
      %v7388 = vpop.f32.mrf.mxu0
      %7389 = vdwg.mxu0
      %7390 = vmatpush.bf16.msra.mxu0 0
      %7391 = vmatpush.bf16.msra.mxu0 0
      %7392 = vmatpush.bf16.msra.mxu0 0
      %7393 = vmatpush.bf16.msra.mxu0 %v7026
      %7394 = vmatpush.bf16.msra.mxu0 %v6760
      %7395 = vmatpush.bf16.msra.mxu0 %v6725
      %7396 = vmatpush.bf16.msra.mxu0 %v6690
      %7397 = vmatpush.bf16.msra.mxu0 %v6655
      %7398 = vmatmul.bf16.gmra.mxu0 %v6945
      %v7399 = vpop.f32.mrf.mxu0
      %v7400 = vadd.f32 %v6128, %v7399
      %v7401 = vpop.f32.mrf.mxu0
      %7402 = vdwg.mxu0
      %7403 = vmatpush.bf16.msra.mxu0 0
      %7404 = vmatpush.bf16.msra.mxu0 0
      %7405 = vmatpush.bf16.msra.mxu0 0
      %7406 = vmatpush.bf16.msra.mxu0 %v7029
      %7407 = vmatpush.bf16.msra.mxu0 %v6761
      %7408 = vmatpush.bf16.msra.mxu0 %v6726
      %7409 = vmatpush.bf16.msra.mxu0 %v6691
      %7410 = vmatpush.bf16.msra.mxu0 %v6656
      %7411 = vmatmul.bf16.gmra.mxu0 %v6945
      %v7412 = vpop.f32.mrf.mxu0
      %v7413 = vadd.f32 %v6128, %v7412
      %v7414 = vpop.f32.mrf.mxu0
      %7415 = vdwg.mxu0
      %7416 = vmatpush.bf16.msra.mxu0 0
      %7417 = vmatpush.bf16.msra.mxu0 0
      %7418 = vmatpush.bf16.msra.mxu0 0
      %7419 = vmatpush.bf16.msra.mxu0 %v7032
      %7420 = vmatpush.bf16.msra.mxu0 %v6762
      %7421 = vmatpush.bf16.msra.mxu0 %v6727
      %7422 = vmatpush.bf16.msra.mxu0 %v6692
      %7423 = vmatpush.bf16.msra.mxu0 %v6657
      %7424 = vmatmul.bf16.gmra.mxu0 %v6945
      %v7425 = vpop.f32.mrf.mxu0
      %v7426 = vadd.f32 %v6128, %v7425
      %v7427 = vpop.f32.mrf.mxu0
      %7428 = vdwg.mxu0
      %7429 = vmatpush.bf16.msra.mxu0 0
      %7430 = vmatpush.bf16.msra.mxu0 0
      %7431 = vmatpush.bf16.msra.mxu0 0
      %7432 = vmatpush.bf16.msra.mxu0 %v7035
      %7433 = vmatpush.bf16.msra.mxu0 %v6763
      %7434 = vmatpush.bf16.msra.mxu0 %v6728
      %7435 = vmatpush.bf16.msra.mxu0 %v6693
      %7436 = vmatpush.bf16.msra.mxu0 %v6658
      %7437 = vmatmul.bf16.gmra.mxu0 %v6945
      %v7438 = vpop.f32.mrf.mxu0
      %v7439 = vadd.f32 %v6128, %v7438
      %v7440 = vpop.f32.mrf.mxu0
      %7441 = vdwg.mxu0
      %7442 = vmatpush.bf16.msra.mxu0 0
      %7443 = vmatpush.bf16.msra.mxu0 0
      %7444 = vmatpush.bf16.msra.mxu0 0
      %7445 = vmatpush.bf16.msra.mxu0 %v7038
      %7446 = vmatpush.bf16.msra.mxu0 %v6764
      %7447 = vmatpush.bf16.msra.mxu0 %v6729
      %7448 = vmatpush.bf16.msra.mxu0 %v6694
      %7449 = vmatpush.bf16.msra.mxu0 %v6659
      %7450 = vmatmul.bf16.gmra.mxu0 %v6945
      %v7451 = vpop.f32.mrf.mxu0
      %v7452 = vadd.f32 %v6128, %v7451
      %v7453 = vpop.f32.mrf.mxu0
      %7454 = vdwg.mxu0
      %7455 = vmatpush.bf16.msra.mxu0 0
      %7456 = vmatpush.bf16.msra.mxu0 0
      %7457 = vmatpush.bf16.msra.mxu0 0
      %7458 = vmatpush.bf16.msra.mxu0 %v7041
      %7459 = vmatpush.bf16.msra.mxu0 %v6765
      %7460 = vmatpush.bf16.msra.mxu0 %v6730
      %7461 = vmatpush.bf16.msra.mxu0 %v6695
      %7462 = vmatpush.bf16.msra.mxu0 %v6660
      %7463 = vmatmul.bf16.gmra.mxu0 %v6945
      %v7464 = vpop.f32.mrf.mxu0
      %v7465 = vadd.f32 %v6128, %v7464
      %v7466 = vpop.f32.mrf.mxu0
      %7467 = vdwg.mxu0
      %7468 = vmatpush.bf16.msra.mxu0 0
      %7469 = vmatpush.bf16.msra.mxu0 0
      %7470 = vmatpush.bf16.msra.mxu0 0
      %7471 = vmatpush.bf16.msra.mxu0 %v7044
      %7472 = vmatpush.bf16.msra.mxu0 %v6766
      %7473 = vmatpush.bf16.msra.mxu0 %v6731
      %7474 = vmatpush.bf16.msra.mxu0 %v6696
      %7475 = vmatpush.bf16.msra.mxu0 %v6661
      %7476 = vmatmul.bf16.gmra.mxu0 %v6945
      %v7477 = vpop.f32.mrf.mxu0
      %v7478 = vadd.f32 %v6128, %v7477
      %v7479 = vpop.f32.mrf.mxu0
      %7480 = vdwg.mxu0
      %7481 = vmatpush.bf16.msra.mxu0 0
      %7482 = vmatpush.bf16.msra.mxu0 0
      %7483 = vmatpush.bf16.msra.mxu0 0
      %7484 = vmatpush.bf16.msra.mxu0 %v7047
      %7485 = vmatpush.bf16.msra.mxu0 %v6767
      %7486 = vmatpush.bf16.msra.mxu0 %v6732
      %7487 = vmatpush.bf16.msra.mxu0 %v6697
      %7488 = vmatpush.bf16.msra.mxu0 %v6662
      %7489 = vmatmul.bf16.gmra.mxu0 %v6945
      %v7490 = vpop.f32.mrf.mxu0
      %v7491 = vadd.f32 %v6128, %v7490
      %v7492 = vpop.f32.mrf.mxu0
      %7493 = vdwg.mxu0
      %7494 = vmatpush.bf16.msra.mxu0 0
      %7495 = vmatpush.bf16.msra.mxu0 0
      %7496 = vmatpush.bf16.msra.mxu0 0
      %7497 = vmatpush.bf16.msra.mxu0 %v7050
      %7498 = vmatpush.bf16.msra.mxu0 %v6768
      %7499 = vmatpush.bf16.msra.mxu0 %v6733
      %7500 = vmatpush.bf16.msra.mxu0 %v6698
      %7501 = vmatpush.bf16.msra.mxu0 %v6663
      %7502 = vmatmul.bf16.gmra.mxu0 %v6945
      %v7503 = vpop.f32.mrf.mxu0
      %v7504 = vadd.f32 %v6128, %v7503
      %v7505 = vpop.f32.mrf.mxu0
      %7506 = vdwg.mxu0
      %v7507 = vmul.f32 %v7062, %v3199
      %v7508 = vmul.f32 %v7075, %v3200
      %v7509 = vmul.f32 %v7088, %v3201
      %v7510 = vmul.f32 %v7101, %v3202
      %v7511 = vmul.f32 %v7114, %v3203
      %v7512 = vmul.f32 %v7127, %v3204
      %v7513 = vmul.f32 %v7140, %v3205
      %v7514 = vmul.f32 %v7153, %v3206
      %v7515 = vmul.f32 %v7166, %v3207
      %v7516 = vmul.f32 %v7179, %v3208
      %v7517 = vmul.f32 %v7192, %v3209
      %v7518 = vmul.f32 %v7205, %v3210
      %v7519 = vmul.f32 %v7218, %v3211
      %v7520 = vmul.f32 %v7231, %v3212
      %v7521 = vmul.f32 %v7244, %v3213
      %v7522 = vmul.f32 %v7257, %v3214
      %v7523 = vmul.f32 %v7270, %v3215
      %v7524 = vmul.f32 %v7283, %v3216
      %v7525 = vmul.f32 %v7296, %v3217
      %v7526 = vmul.f32 %v7309, %v3218
      %v7527 = vmul.f32 %v7322, %v3219
      %v7528 = vmul.f32 %v7335, %v3220
      %v7529 = vmul.f32 %v7348, %v3221
      %v7530 = vmul.f32 %v7361, %v3222
      %v7531 = vmul.f32 %v7374, %v3223
      %v7532 = vmul.f32 %v7387, %v3224
      %v7533 = vmul.f32 %v7400, %v3225
      %v7534 = vmul.f32 %v7413, %v3226
      %v7535 = vmul.f32 %v7426, %v3227
      %v7536 = vmul.f32 %v7439, %v3228
      %v7537 = vmul.f32 %v7452, %v3229
      %v7538 = vmul.f32 %v7465, %v3230
      %v7539 = vmul.f32 %v7478, %v3231
      %v7540 = vmul.f32 %v7491, %v3232
      %v7541 = vmul.f32 %v7504, %v3233
      %vm7542 = vcmp.ge.f32.partialorder %v7507, 0.0
      %vm7543 = vcmp.ge.f32.partialorder %v7508, 0.0
      %vm7544 = vcmp.ge.f32.partialorder %v7509, 0.0
      %vm7545 = vcmp.ge.f32.partialorder %v7510, 0.0
      %vm7546 = vcmp.ge.f32.partialorder %v7511, 0.0
      %vm7547 = vcmp.ge.f32.partialorder %v7512, 0.0
      %vm7548 = vcmp.ge.f32.partialorder %v7513, 0.0
      %vm7549 = vcmp.ge.f32.partialorder %v7514, 0.0
      %vm7550 = vcmp.ge.f32.partialorder %v7515, 0.0
      %vm7551 = vcmp.ge.f32.partialorder %v7516, 0.0
      %vm7552 = vcmp.ge.f32.partialorder %v7517, 0.0
      %vm7553 = vcmp.ge.f32.partialorder %v7518, 0.0
      %vm7554 = vcmp.ge.f32.partialorder %v7519, 0.0
      %vm7555 = vcmp.ge.f32.partialorder %v7520, 0.0
      %vm7556 = vcmp.ge.f32.partialorder %v7521, 0.0
      %vm7557 = vcmp.ge.f32.partialorder %v7522, 0.0
      %vm7558 = vcmp.ge.f32.partialorder %v7523, 0.0
      %vm7559 = vcmp.ge.f32.partialorder %v7524, 0.0
      %vm7560 = vcmp.ge.f32.partialorder %v7525, 0.0
      %vm7561 = vcmp.ge.f32.partialorder %v7526, 0.0
      %vm7562 = vcmp.ge.f32.partialorder %v7527, 0.0
      %vm7563 = vcmp.ge.f32.partialorder %v7528, 0.0
      %vm7564 = vcmp.ge.f32.partialorder %v7529, 0.0
      %vm7565 = vcmp.ge.f32.partialorder %v7530, 0.0
      %vm7566 = vcmp.ge.f32.partialorder %v7531, 0.0
      %vm7567 = vcmp.ge.f32.partialorder %v7532, 0.0
      %vm7568 = vcmp.ge.f32.partialorder %v7533, 0.0
      %vm7569 = vcmp.ge.f32.partialorder %v7534, 0.0
      %vm7570 = vcmp.ge.f32.partialorder %v7535, 0.0
      %vm7571 = vcmp.ge.f32.partialorder %v7536, 0.0
      %vm7572 = vcmp.ge.f32.partialorder %v7537, 0.0
      %vm7573 = vcmp.ge.f32.partialorder %v7538, 0.0
      %vm7574 = vcmp.ge.f32.partialorder %v7539, 0.0
      %vm7575 = vcmp.ge.f32.partialorder %v7540, 0.0
      %vm7576 = vcmp.ge.f32.partialorder %v7541, 0.0
      %v7577 = vmul.f32 %v7507, 0.2
      %v7578 = vmul.f32 %v7508, 0.2
      %v7579 = vmul.f32 %v7509, 0.2
      %v7580 = vmul.f32 %v7510, 0.2
      %v7581 = vmul.f32 %v7511, 0.2
      %v7582 = vmul.f32 %v7512, 0.2
      %v7583 = vmul.f32 %v7513, 0.2
      %v7584 = vmul.f32 %v7514, 0.2
      %v7585 = vmul.f32 %v7515, 0.2
      %v7586 = vmul.f32 %v7516, 0.2
      %v7587 = vmul.f32 %v7517, 0.2
      %v7588 = vmul.f32 %v7518, 0.2
      %v7589 = vmul.f32 %v7519, 0.2
      %v7590 = vmul.f32 %v7520, 0.2
      %v7591 = vmul.f32 %v7521, 0.2
      %v7592 = vmul.f32 %v7522, 0.2
      %v7593 = vmul.f32 %v7523, 0.2
      %v7594 = vmul.f32 %v7524, 0.2
      %v7595 = vmul.f32 %v7525, 0.2
      %v7596 = vmul.f32 %v7526, 0.2
      %v7597 = vmul.f32 %v7527, 0.2
      %v7598 = vmul.f32 %v7528, 0.2
      %v7599 = vmul.f32 %v7529, 0.2
      %v7600 = vmul.f32 %v7530, 0.2
      %v7601 = vmul.f32 %v7531, 0.2
      %v7602 = vmul.f32 %v7532, 0.2
      %v7603 = vmul.f32 %v7533, 0.2
      %v7604 = vmul.f32 %v7534, 0.2
      %v7605 = vmul.f32 %v7535, 0.2
      %v7606 = vmul.f32 %v7536, 0.2
      %v7607 = vmul.f32 %v7537, 0.2
      %v7608 = vmul.f32 %v7538, 0.2
      %v7609 = vmul.f32 %v7539, 0.2
      %v7610 = vmul.f32 %v7540, 0.2
      %v7611 = vmul.f32 %v7541, 0.2
      %v7612 = vsel %vm7542, %v7507, %v7577
      %v7613 = vsel %vm7543, %v7508, %v7578
      %v7614 = vsel %vm7544, %v7509, %v7579
      %v7615 = vsel %vm7545, %v7510, %v7580
      %v7616 = vsel %vm7546, %v7511, %v7581
      %v7617 = vsel %vm7547, %v7512, %v7582
      %v7618 = vsel %vm7548, %v7513, %v7583
      %v7619 = vsel %vm7549, %v7514, %v7584
      %v7620 = vsel %vm7550, %v7515, %v7585
      %v7621 = vsel %vm7551, %v7516, %v7586
      %v7622 = vsel %vm7552, %v7517, %v7587
      %v7623 = vsel %vm7553, %v7518, %v7588
      %v7624 = vsel %vm7554, %v7519, %v7589
      %v7625 = vsel %vm7555, %v7520, %v7590
      %v7626 = vsel %vm7556, %v7521, %v7591
      %v7627 = vsel %vm7557, %v7522, %v7592
      %v7628 = vsel %vm7558, %v7523, %v7593
      %v7629 = vsel %vm7559, %v7524, %v7594
      %v7630 = vsel %vm7560, %v7525, %v7595
      %v7631 = vsel %vm7561, %v7526, %v7596
      %v7632 = vsel %vm7562, %v7527, %v7597
      %v7633 = vsel %vm7563, %v7528, %v7598
      %v7634 = vsel %vm7564, %v7529, %v7599
      %v7635 = vsel %vm7565, %v7530, %v7600
      %v7636 = vsel %vm7566, %v7531, %v7601
      %v7637 = vsel %vm7567, %v7532, %v7602
      %v7638 = vsel %vm7568, %v7533, %v7603
      %v7639 = vsel %vm7569, %v7534, %v7604
      %v7640 = vsel %vm7570, %v7535, %v7605
      %v7641 = vsel %vm7571, %v7536, %v7606
      %v7642 = vsel %vm7572, %v7537, %v7607
      %v7643 = vsel %vm7573, %v7538, %v7608
      %v7644 = vsel %vm7574, %v7539, %v7609
      %v7645 = vsel %vm7575, %v7540, %v7610
      %v7646 = vsel %vm7576, %v7541, %v7611
      %v7647 = vpack.c.bf16 %v7613, %v7612
      %v7648 = vpack.c.bf16 %v7615, %v7614
      %v7649 = vpack.c.bf16 %v7617, %v7616
      %v7650 = vpack.c.bf16 %v7619, %v7618
      %v7651 = vpack.c.bf16 %v7621, %v7620
      %v7652 = vpack.c.bf16 %v7623, %v7622
      %v7653 = vpack.c.bf16 %v7625, %v7624
      %v7654 = vpack.c.bf16 %v7627, %v7626
      %v7655 = vpack.c.bf16 %v7629, %v7628
      %v7656 = vpack.c.bf16 %v7631, %v7630
      %v7657 = vpack.c.bf16 %v7633, %v7632
      %v7658 = vpack.c.bf16 %v7635, %v7634
      %v7659 = vpack.c.bf16 %v7637, %v7636
      %v7660 = vpack.c.bf16 %v7639, %v7638
      %v7661 = vpack.c.bf16 %v7641, %v7640
      %v7662 = vpack.c.bf16 %v7643, %v7642
      %v7663 = vpack.c.bf16 %v7645, %v7644
      %v7664 = vpack.c.bf16 %v7646, %v7646
      %v7683 = vunpack.c.l.b16 %v7647
      %v7684 = vunpack.c.h.b16 %v7647
      %v7685 = vunpack.c.l.b16 %v7648
      %v7686 = vunpack.c.h.b16 %v7648
      %v7687 = vunpack.c.l.b16 %v7649
      %v7688 = vunpack.c.h.b16 %v7649
      %v7689 = vunpack.c.l.b16 %v7650
      %v7690 = vunpack.c.h.b16 %v7650
      %v7691 = vunpack.c.l.b16 %v7651
      %v7692 = vunpack.c.h.b16 %v7651
      %v7693 = vunpack.c.l.b16 %v7652
      %v7694 = vunpack.c.h.b16 %v7652
      %v7695 = vunpack.c.l.b16 %v7653
      %v7696 = vunpack.c.h.b16 %v7653
      %v7697 = vunpack.c.l.b16 %v7654
      %v7698 = vunpack.c.h.b16 %v7654
      %v7699 = vunpack.c.l.b16 %v7655
      %v7700 = vunpack.c.h.b16 %v7655
      %v7701 = vunpack.c.l.b16 %v7656
      %v7702 = vunpack.c.h.b16 %v7656
      %v7703 = vunpack.c.l.b16 %v7657
      %v7704 = vunpack.c.h.b16 %v7657
      %v7705 = vunpack.c.l.b16 %v7658
      %v7706 = vunpack.c.h.b16 %v7658
      %v7707 = vunpack.c.l.b16 %v7659
      %v7708 = vunpack.c.h.b16 %v7659
      %v7709 = vunpack.c.l.b16 %v7660
      %v7710 = vunpack.c.h.b16 %v7660
      %v7711 = vunpack.c.l.b16 %v7661
      %v7712 = vunpack.c.h.b16 %v7661
      %v7713 = vunpack.c.l.b16 %v7662
      %v7714 = vunpack.c.h.b16 %v7662
      %v7715 = vunpack.c.l.b16 %v7663
      %v7716 = vunpack.c.h.b16 %v7663
      %v7717 = vunpack.c.l.b16 %v7664
      %v7718 = vpack.c.b16 %v7683, %v7683
      %v7719 = vpack.c.b16 %v7684, %v7684
      %v7720 = vpack.c.b16 %v7685, %v7685
      %v7721 = vpack.c.b16 %v7686, %v7686
      %v7722 = vpack.c.b16 %v7687, %v7687
      %v7723 = vpack.c.b16 %v7688, %v7688
      %v7724 = vpack.c.b16 %v7689, %v7689
      %v7725 = vpack.c.b16 %v7690, %v7690
      %v7726 = vpack.c.b16 %v7691, %v7691
      %v7727 = vpack.c.b16 %v7692, %v7692
      %v7728 = vpack.c.b16 %v7693, %v7693
      %v7729 = vpack.c.b16 %v7694, %v7694
      %v7730 = vpack.c.b16 %v7695, %v7695
      %v7731 = vpack.c.b16 %v7696, %v7696
      %v7732 = vpack.c.b16 %v7697, %v7697
      %v7733 = vpack.c.b16 %v7698, %v7698
      %v7734 = vpack.c.b16 %v7699, %v7699
      %v7735 = vpack.c.b16 %v7700, %v7700
      %v7736 = vpack.c.b16 %v7701, %v7701
      %v7737 = vpack.c.b16 %v7702, %v7702
      %v7738 = vpack.c.b16 %v7703, %v7703
      %v7739 = vpack.c.b16 %v7704, %v7704
      %v7740 = vpack.c.b16 %v7705, %v7705
      %v7741 = vpack.c.b16 %v7706, %v7706
      %v7742 = vpack.c.b16 %v7707, %v7707
      %v7743 = vpack.c.b16 %v7708, %v7708
      %v7744 = vpack.c.b16 %v7709, %v7709
      %v7745 = vpack.c.b16 %v7710, %v7710
      %v7746 = vpack.c.b16 %v7711, %v7711
      %v7747 = vpack.c.b16 %v7712, %v7712
      %v7748 = vpack.c.b16 %v7713, %v7713
      %v7749 = vpack.c.b16 %v7714, %v7714
      %v7750 = vpack.c.b16 %v7715, %v7715
      %v7751 = vpack.c.b16 %v7716, %v7716
      %v7752 = vpack.c.b16 %v7717, %v7717
      %v7753 = vrot.slane %v7718, 4
      %v7754 = vrot.slane %v7719, 4
      %v7755 = vrot.slane %v7720, 4
      %v7756 = vrot.slane %v7721, 4
      %v7757 = vrot.slane %v7722, 4
      %v7758 = vrot.slane %v7723, 4
      %v7759 = vrot.slane %v7724, 4
      %v7760 = vrot.slane %v7725, 4
      %v7761 = vrot.slane %v7726, 4
      %v7762 = vrot.slane %v7727, 4
      %v7763 = vrot.slane %v7728, 4
      %v7764 = vrot.slane %v7729, 4
      %v7765 = vrot.slane %v7730, 4
      %v7766 = vrot.slane %v7731, 4
      %v7767 = vrot.slane %v7732, 4
      %v7768 = vrot.slane %v7733, 4
      %v7769 = vrot.slane %v7734, 4
      %v7770 = vrot.slane %v7735, 4
      %v7771 = vrot.slane %v7736, 4
      %v7772 = vrot.slane %v7737, 4
      %v7773 = vrot.slane %v7738, 4
      %v7774 = vrot.slane %v7739, 4
      %v7775 = vrot.slane %v7740, 4
      %v7776 = vrot.slane %v7741, 4
      %v7777 = vrot.slane %v7742, 4
      %v7778 = vrot.slane %v7743, 4
      %v7779 = vrot.slane %v7744, 4
      %v7780 = vrot.slane %v7745, 4
      %v7781 = vrot.slane %v7746, 4
      %v7782 = vrot.slane %v7747, 4
      %v7783 = vrot.slane %v7748, 4
      %v7784 = vrot.slane %v7749, 4
      %v7785 = vrot.slane %v7750, 4
      %v7786 = vrot.slane %v7751, 4
      %v7787 = vrot.slane %v7752, 4
      %7788 = vrot.lane.b32.xlu0 %v7753, 127
      %v7789 = vpop.permute.xlu0 %7788
      %7790 = vrot.lane.b32.xlu0 %v7754, 127
      %v7791 = vpop.permute.xlu0 %7790
      %7792 = vrot.lane.b32.xlu0 %v7755, 127
      %v7793 = vpop.permute.xlu0 %7792
      %7794 = vrot.lane.b32.xlu0 %v7756, 127
      %v7795 = vpop.permute.xlu0 %7794
      %7796 = vrot.lane.b32.xlu0 %v7757, 127
      %v7797 = vpop.permute.xlu0 %7796
      %7798 = vrot.lane.b32.xlu0 %v7758, 127
      %v7799 = vpop.permute.xlu0 %7798
      %7800 = vrot.lane.b32.xlu0 %v7759, 127
      %v7801 = vpop.permute.xlu0 %7800
      %7802 = vrot.lane.b32.xlu0 %v7760, 127
      %v7803 = vpop.permute.xlu0 %7802
      %7804 = vrot.lane.b32.xlu0 %v7761, 127
      %v7805 = vpop.permute.xlu0 %7804
      %7806 = vrot.lane.b32.xlu0 %v7762, 127
      %v7807 = vpop.permute.xlu0 %7806
      %7808 = vrot.lane.b32.xlu0 %v7763, 127
      %v7809 = vpop.permute.xlu0 %7808
      %7810 = vrot.lane.b32.xlu0 %v7764, 127
      %v7811 = vpop.permute.xlu0 %7810
      %7812 = vrot.lane.b32.xlu0 %v7765, 127
      %v7813 = vpop.permute.xlu0 %7812
      %7814 = vrot.lane.b32.xlu0 %v7766, 127
      %v7815 = vpop.permute.xlu0 %7814
      %7816 = vrot.lane.b32.xlu0 %v7767, 127
      %v7817 = vpop.permute.xlu0 %7816
      %7818 = vrot.lane.b32.xlu0 %v7768, 127
      %v7819 = vpop.permute.xlu0 %7818
      %7820 = vrot.lane.b32.xlu0 %v7769, 127
      %v7821 = vpop.permute.xlu0 %7820
      %7822 = vrot.lane.b32.xlu0 %v7770, 127
      %v7823 = vpop.permute.xlu0 %7822
      %7824 = vrot.lane.b32.xlu0 %v7771, 127
      %v7825 = vpop.permute.xlu0 %7824
      %7826 = vrot.lane.b32.xlu0 %v7772, 127
      %v7827 = vpop.permute.xlu0 %7826
      %7828 = vrot.lane.b32.xlu0 %v7773, 127
      %v7829 = vpop.permute.xlu0 %7828
      %7830 = vrot.lane.b32.xlu0 %v7774, 127
      %v7831 = vpop.permute.xlu0 %7830
      %7832 = vrot.lane.b32.xlu0 %v7775, 127
      %v7833 = vpop.permute.xlu0 %7832
      %7834 = vrot.lane.b32.xlu0 %v7776, 127
      %v7835 = vpop.permute.xlu0 %7834
      %7836 = vrot.lane.b32.xlu0 %v7777, 127
      %v7837 = vpop.permute.xlu0 %7836
      %7838 = vrot.lane.b32.xlu0 %v7778, 127
      %v7839 = vpop.permute.xlu0 %7838
      %7840 = vrot.lane.b32.xlu0 %v7779, 127
      %v7841 = vpop.permute.xlu0 %7840
      %7842 = vrot.lane.b32.xlu0 %v7780, 127
      %v7843 = vpop.permute.xlu0 %7842
      %7844 = vrot.lane.b32.xlu0 %v7781, 127
      %v7845 = vpop.permute.xlu0 %7844
      %7846 = vrot.lane.b32.xlu0 %v7782, 127
      %v7847 = vpop.permute.xlu0 %7846
      %7848 = vrot.lane.b32.xlu0 %v7783, 127
      %v7849 = vpop.permute.xlu0 %7848
      %7850 = vrot.lane.b32.xlu0 %v7784, 127
      %v7851 = vpop.permute.xlu0 %7850
      %7852 = vrot.lane.b32.xlu0 %v7785, 127
      %v7853 = vpop.permute.xlu0 %7852
      %7854 = vrot.lane.b32.xlu0 %v7786, 127
      %v7855 = vpop.permute.xlu0 %7854
      %7856 = vrot.lane.b32.xlu0 %v7787, 127
      %v7857 = vpop.permute.xlu0 %7856
      %v7858 = vsel %vm581, %v510, %v7789
      %v7859 = vsel %vm581, %v7789, %v7791
      %v7860 = vsel %vm581, %v7791, %v7793
      %v7861 = vsel %vm581, %v7793, %v7795
      %v7862 = vsel %vm581, %v7795, %v7797
      %v7863 = vsel %vm581, %v7797, %v7799
      %v7864 = vsel %vm581, %v7799, %v7801
      %v7865 = vsel %vm581, %v7801, %v7803
      %v7866 = vsel %vm581, %v7803, %v7805
      %v7867 = vsel %vm581, %v7805, %v7807
      %v7868 = vsel %vm581, %v7807, %v7809
      %v7869 = vsel %vm581, %v7809, %v7811
      %v7870 = vsel %vm581, %v7811, %v7813
      %v7871 = vsel %vm581, %v7813, %v7815
      %v7872 = vsel %vm581, %v7815, %v7817
      %v7873 = vsel %vm581, %v7817, %v7819
      %v7874 = vsel %vm581, %v7819, %v7821
      %v7875 = vsel %vm581, %v7821, %v7823
      %v7876 = vsel %vm581, %v7823, %v7825
      %v7877 = vsel %vm581, %v7825, %v7827
      %v7878 = vsel %vm581, %v7827, %v7829
      %v7879 = vsel %vm581, %v7829, %v7831
      %v7880 = vsel %vm581, %v7831, %v7833
      %v7881 = vsel %vm581, %v7833, %v7835
      %v7882 = vsel %vm581, %v7835, %v7837
      %v7883 = vsel %vm581, %v7837, %v7839
      %v7884 = vsel %vm581, %v7839, %v7841
      %v7885 = vsel %vm581, %v7841, %v7843
      %v7886 = vsel %vm581, %v7843, %v7845
      %v7887 = vsel %vm581, %v7845, %v7847
      %v7888 = vsel %vm581, %v7847, %v7849
      %v7889 = vsel %vm581, %v7849, %v7851
      %v7890 = vsel %vm581, %v7851, %v7853
      %v7891 = vsel %vm581, %v7853, %v7855
      %v7892 = vsel %vm581, %v7855, %v7857
      %7893 = vrot.lane.b32.xlu0 %v7718, 126
      %v7894 = vpop.permute.xlu0 %7893
      %7895 = vrot.lane.b32.xlu0 %v7719, 126
      %v7896 = vpop.permute.xlu0 %7895
      %7897 = vrot.lane.b32.xlu0 %v7720, 126
      %v7898 = vpop.permute.xlu0 %7897
      %7899 = vrot.lane.b32.xlu0 %v7721, 126
      %v7900 = vpop.permute.xlu0 %7899
      %7901 = vrot.lane.b32.xlu0 %v7722, 126
      %v7902 = vpop.permute.xlu0 %7901
      %7903 = vrot.lane.b32.xlu0 %v7723, 126
      %v7904 = vpop.permute.xlu0 %7903
      %7905 = vrot.lane.b32.xlu0 %v7724, 126
      %v7906 = vpop.permute.xlu0 %7905
      %7907 = vrot.lane.b32.xlu0 %v7725, 126
      %v7908 = vpop.permute.xlu0 %7907
      %7909 = vrot.lane.b32.xlu0 %v7726, 126
      %v7910 = vpop.permute.xlu0 %7909
      %7911 = vrot.lane.b32.xlu0 %v7727, 126
      %v7912 = vpop.permute.xlu0 %7911
      %7913 = vrot.lane.b32.xlu0 %v7728, 126
      %v7914 = vpop.permute.xlu0 %7913
      %7915 = vrot.lane.b32.xlu0 %v7729, 126
      %v7916 = vpop.permute.xlu0 %7915
      %7917 = vrot.lane.b32.xlu0 %v7730, 126
      %v7918 = vpop.permute.xlu0 %7917
      %7919 = vrot.lane.b32.xlu0 %v7731, 126
      %v7920 = vpop.permute.xlu0 %7919
      %7921 = vrot.lane.b32.xlu0 %v7732, 126
      %v7922 = vpop.permute.xlu0 %7921
      %7923 = vrot.lane.b32.xlu0 %v7733, 126
      %v7924 = vpop.permute.xlu0 %7923
      %7925 = vrot.lane.b32.xlu0 %v7734, 126
      %v7926 = vpop.permute.xlu0 %7925
      %7927 = vrot.lane.b32.xlu0 %v7735, 126
      %v7928 = vpop.permute.xlu0 %7927
      %7929 = vrot.lane.b32.xlu0 %v7736, 126
      %v7930 = vpop.permute.xlu0 %7929
      %7931 = vrot.lane.b32.xlu0 %v7737, 126
      %v7932 = vpop.permute.xlu0 %7931
      %7933 = vrot.lane.b32.xlu0 %v7738, 126
      %v7934 = vpop.permute.xlu0 %7933
      %7935 = vrot.lane.b32.xlu0 %v7739, 126
      %v7936 = vpop.permute.xlu0 %7935
      %7937 = vrot.lane.b32.xlu0 %v7740, 126
      %v7938 = vpop.permute.xlu0 %7937
      %7939 = vrot.lane.b32.xlu0 %v7741, 126
      %v7940 = vpop.permute.xlu0 %7939
      %7941 = vrot.lane.b32.xlu0 %v7742, 126
      %v7942 = vpop.permute.xlu0 %7941
      %7943 = vrot.lane.b32.xlu0 %v7743, 126
      %v7944 = vpop.permute.xlu0 %7943
      %7945 = vrot.lane.b32.xlu0 %v7744, 126
      %v7946 = vpop.permute.xlu0 %7945
      %7947 = vrot.lane.b32.xlu0 %v7745, 126
      %v7948 = vpop.permute.xlu0 %7947
      %7949 = vrot.lane.b32.xlu0 %v7746, 126
      %v7950 = vpop.permute.xlu0 %7949
      %7951 = vrot.lane.b32.xlu0 %v7747, 126
      %v7952 = vpop.permute.xlu0 %7951
      %7953 = vrot.lane.b32.xlu0 %v7748, 126
      %v7954 = vpop.permute.xlu0 %7953
      %7955 = vrot.lane.b32.xlu0 %v7749, 126
      %v7956 = vpop.permute.xlu0 %7955
      %7957 = vrot.lane.b32.xlu0 %v7750, 126
      %v7958 = vpop.permute.xlu0 %7957
      %7959 = vrot.lane.b32.xlu0 %v7751, 126
      %v7960 = vpop.permute.xlu0 %7959
      %7961 = vrot.lane.b32.xlu0 %v7752, 126
      %v7962 = vpop.permute.xlu0 %7961
      %v7963 = vsel %vm689, %v618, %v7894
      %v7964 = vsel %vm689, %v7894, %v7896
      %v7965 = vsel %vm689, %v7896, %v7898
      %v7966 = vsel %vm689, %v7898, %v7900
      %v7967 = vsel %vm689, %v7900, %v7902
      %v7968 = vsel %vm689, %v7902, %v7904
      %v7969 = vsel %vm689, %v7904, %v7906
      %v7970 = vsel %vm689, %v7906, %v7908
      %v7971 = vsel %vm689, %v7908, %v7910
      %v7972 = vsel %vm689, %v7910, %v7912
      %v7973 = vsel %vm689, %v7912, %v7914
      %v7974 = vsel %vm689, %v7914, %v7916
      %v7975 = vsel %vm689, %v7916, %v7918
      %v7976 = vsel %vm689, %v7918, %v7920
      %v7977 = vsel %vm689, %v7920, %v7922
      %v7978 = vsel %vm689, %v7922, %v7924
      %v7979 = vsel %vm689, %v7924, %v7926
      %v7980 = vsel %vm689, %v7926, %v7928
      %v7981 = vsel %vm689, %v7928, %v7930
      %v7982 = vsel %vm689, %v7930, %v7932
      %v7983 = vsel %vm689, %v7932, %v7934
      %v7984 = vsel %vm689, %v7934, %v7936
      %v7985 = vsel %vm689, %v7936, %v7938
      %v7986 = vsel %vm689, %v7938, %v7940
      %v7987 = vsel %vm689, %v7940, %v7942
      %v7988 = vsel %vm689, %v7942, %v7944
      %v7989 = vsel %vm689, %v7944, %v7946
      %v7990 = vsel %vm689, %v7946, %v7948
      %v7991 = vsel %vm689, %v7948, %v7950
      %v7992 = vsel %vm689, %v7950, %v7952
      %v7993 = vsel %vm689, %v7952, %v7954
      %v7994 = vsel %vm689, %v7954, %v7956
      %v7995 = vsel %vm689, %v7956, %v7958
      %v7996 = vsel %vm689, %v7958, %v7960
      %v7997 = vsel %vm689, %v7960, %v7962
      %7998 = vrot.lane.b32.xlu0 %v7753, 62
      %v7999 = vpop.permute.xlu0 %7998
      %8000 = vrot.lane.b32.xlu0 %v7754, 62
      %v8001 = vpop.permute.xlu0 %8000
      %8002 = vrot.lane.b32.xlu0 %v7755, 62
      %v8003 = vpop.permute.xlu0 %8002
      %8004 = vrot.lane.b32.xlu0 %v7756, 62
      %v8005 = vpop.permute.xlu0 %8004
      %8006 = vrot.lane.b32.xlu0 %v7757, 62
      %v8007 = vpop.permute.xlu0 %8006
      %8008 = vrot.lane.b32.xlu0 %v7758, 62
      %v8009 = vpop.permute.xlu0 %8008
      %8010 = vrot.lane.b32.xlu0 %v7759, 62
      %v8011 = vpop.permute.xlu0 %8010
      %8012 = vrot.lane.b32.xlu0 %v7760, 62
      %v8013 = vpop.permute.xlu0 %8012
      %8014 = vrot.lane.b32.xlu0 %v7761, 62
      %v8015 = vpop.permute.xlu0 %8014
      %8016 = vrot.lane.b32.xlu0 %v7762, 62
      %v8017 = vpop.permute.xlu0 %8016
      %8018 = vrot.lane.b32.xlu0 %v7763, 62
      %v8019 = vpop.permute.xlu0 %8018
      %8020 = vrot.lane.b32.xlu0 %v7764, 62
      %v8021 = vpop.permute.xlu0 %8020
      %8022 = vrot.lane.b32.xlu0 %v7765, 62
      %v8023 = vpop.permute.xlu0 %8022
      %8024 = vrot.lane.b32.xlu0 %v7766, 62
      %v8025 = vpop.permute.xlu0 %8024
      %8026 = vrot.lane.b32.xlu0 %v7767, 62
      %v8027 = vpop.permute.xlu0 %8026
      %8028 = vrot.lane.b32.xlu0 %v7768, 62
      %v8029 = vpop.permute.xlu0 %8028
      %8030 = vrot.lane.b32.xlu0 %v7769, 62
      %v8031 = vpop.permute.xlu0 %8030
      %8032 = vrot.lane.b32.xlu0 %v7770, 62
      %v8033 = vpop.permute.xlu0 %8032
      %8034 = vrot.lane.b32.xlu0 %v7771, 62
      %v8035 = vpop.permute.xlu0 %8034
      %8036 = vrot.lane.b32.xlu0 %v7772, 62
      %v8037 = vpop.permute.xlu0 %8036
      %8038 = vrot.lane.b32.xlu0 %v7773, 62
      %v8039 = vpop.permute.xlu0 %8038
      %8040 = vrot.lane.b32.xlu0 %v7774, 62
      %v8041 = vpop.permute.xlu0 %8040
      %8042 = vrot.lane.b32.xlu0 %v7775, 62
      %v8043 = vpop.permute.xlu0 %8042
      %8044 = vrot.lane.b32.xlu0 %v7776, 62
      %v8045 = vpop.permute.xlu0 %8044
      %8046 = vrot.lane.b32.xlu0 %v7777, 62
      %v8047 = vpop.permute.xlu0 %8046
      %8048 = vrot.lane.b32.xlu0 %v7778, 62
      %v8049 = vpop.permute.xlu0 %8048
      %8050 = vrot.lane.b32.xlu0 %v7779, 62
      %v8051 = vpop.permute.xlu0 %8050
      %8052 = vrot.lane.b32.xlu0 %v7780, 62
      %v8053 = vpop.permute.xlu0 %8052
      %8054 = vrot.lane.b32.xlu0 %v7781, 62
      %v8055 = vpop.permute.xlu0 %8054
      %8056 = vrot.lane.b32.xlu0 %v7782, 62
      %v8057 = vpop.permute.xlu0 %8056
      %8058 = vrot.lane.b32.xlu0 %v7783, 62
      %v8059 = vpop.permute.xlu0 %8058
      %8060 = vrot.lane.b32.xlu0 %v7784, 62
      %v8061 = vpop.permute.xlu0 %8060
      %8062 = vrot.lane.b32.xlu0 %v7785, 62
      %v8063 = vpop.permute.xlu0 %8062
      %8064 = vrot.lane.b32.xlu0 %v7786, 62
      %v8065 = vpop.permute.xlu0 %8064
      %8066 = vrot.lane.b32.xlu0 %v7787, 62
      %v8067 = vpop.permute.xlu0 %8066
      %v8068 = vsel %vm797, %v726, %v7999
      %v8069 = vsel %vm797, %v7999, %v8001
      %v8070 = vsel %vm797, %v8001, %v8003
      %v8071 = vsel %vm797, %v8003, %v8005
      %v8072 = vsel %vm797, %v8005, %v8007
      %v8073 = vsel %vm797, %v8007, %v8009
      %v8074 = vsel %vm797, %v8009, %v8011
      %v8075 = vsel %vm797, %v8011, %v8013
      %v8076 = vsel %vm797, %v8013, %v8015
      %v8077 = vsel %vm797, %v8015, %v8017
      %v8078 = vsel %vm797, %v8017, %v8019
      %v8079 = vsel %vm797, %v8019, %v8021
      %v8080 = vsel %vm797, %v8021, %v8023
      %v8081 = vsel %vm797, %v8023, %v8025
      %v8082 = vsel %vm797, %v8025, %v8027
      %v8083 = vsel %vm797, %v8027, %v8029
      %v8084 = vsel %vm797, %v8029, %v8031
      %v8085 = vsel %vm797, %v8031, %v8033
      %v8086 = vsel %vm797, %v8033, %v8035
      %v8087 = vsel %vm797, %v8035, %v8037
      %v8088 = vsel %vm797, %v8037, %v8039
      %v8089 = vsel %vm797, %v8039, %v8041
      %v8090 = vsel %vm797, %v8041, %v8043
      %v8091 = vsel %vm797, %v8043, %v8045
      %v8092 = vsel %vm797, %v8045, %v8047
      %v8093 = vsel %vm797, %v8047, %v8049
      %v8094 = vsel %vm797, %v8049, %v8051
      %v8095 = vsel %vm797, %v8051, %v8053
      %v8096 = vsel %vm797, %v8053, %v8055
      %v8097 = vsel %vm797, %v8055, %v8057
      %v8098 = vsel %vm797, %v8057, %v8059
      %v8099 = vsel %vm797, %v8059, %v8061
      %v8100 = vsel %vm797, %v8061, %v8063
      %v8101 = vsel %vm797, %v8063, %v8065
      %v8102 = vsel %vm797, %v8065, %v8067
      %8103 = vrot.lane.b32.xlu0 %v7718, 61
      %v8104 = vpop.permute.xlu0 %8103
      %8105 = vrot.lane.b32.xlu0 %v7719, 61
      %v8106 = vpop.permute.xlu0 %8105
      %8107 = vrot.lane.b32.xlu0 %v7720, 61
      %v8108 = vpop.permute.xlu0 %8107
      %8109 = vrot.lane.b32.xlu0 %v7721, 61
      %v8110 = vpop.permute.xlu0 %8109
      %8111 = vrot.lane.b32.xlu0 %v7722, 61
      %v8112 = vpop.permute.xlu0 %8111
      %8113 = vrot.lane.b32.xlu0 %v7723, 61
      %v8114 = vpop.permute.xlu0 %8113
      %8115 = vrot.lane.b32.xlu0 %v7724, 61
      %v8116 = vpop.permute.xlu0 %8115
      %8117 = vrot.lane.b32.xlu0 %v7725, 61
      %v8118 = vpop.permute.xlu0 %8117
      %8119 = vrot.lane.b32.xlu0 %v7726, 61
      %v8120 = vpop.permute.xlu0 %8119
      %8121 = vrot.lane.b32.xlu0 %v7727, 61
      %v8122 = vpop.permute.xlu0 %8121
      %8123 = vrot.lane.b32.xlu0 %v7728, 61
      %v8124 = vpop.permute.xlu0 %8123
      %8125 = vrot.lane.b32.xlu0 %v7729, 61
      %v8126 = vpop.permute.xlu0 %8125
      %8127 = vrot.lane.b32.xlu0 %v7730, 61
      %v8128 = vpop.permute.xlu0 %8127
      %8129 = vrot.lane.b32.xlu0 %v7731, 61
      %v8130 = vpop.permute.xlu0 %8129
      %8131 = vrot.lane.b32.xlu0 %v7732, 61
      %v8132 = vpop.permute.xlu0 %8131
      %8133 = vrot.lane.b32.xlu0 %v7733, 61
      %v8134 = vpop.permute.xlu0 %8133
      %8135 = vrot.lane.b32.xlu0 %v7734, 61
      %v8136 = vpop.permute.xlu0 %8135
      %8137 = vrot.lane.b32.xlu0 %v7735, 61
      %v8138 = vpop.permute.xlu0 %8137
      %8139 = vrot.lane.b32.xlu0 %v7736, 61
      %v8140 = vpop.permute.xlu0 %8139
      %8141 = vrot.lane.b32.xlu0 %v7737, 61
      %v8142 = vpop.permute.xlu0 %8141
      %8143 = vrot.lane.b32.xlu0 %v7738, 61
      %v8144 = vpop.permute.xlu0 %8143
      %8145 = vrot.lane.b32.xlu0 %v7739, 61
      %v8146 = vpop.permute.xlu0 %8145
      %8147 = vrot.lane.b32.xlu0 %v7740, 61
      %v8148 = vpop.permute.xlu0 %8147
      %8149 = vrot.lane.b32.xlu0 %v7741, 61
      %v8150 = vpop.permute.xlu0 %8149
      %8151 = vrot.lane.b32.xlu0 %v7742, 61
      %v8152 = vpop.permute.xlu0 %8151
      %8153 = vrot.lane.b32.xlu0 %v7743, 61
      %v8154 = vpop.permute.xlu0 %8153
      %8155 = vrot.lane.b32.xlu0 %v7744, 61
      %v8156 = vpop.permute.xlu0 %8155
      %8157 = vrot.lane.b32.xlu0 %v7745, 61
      %v8158 = vpop.permute.xlu0 %8157
      %8159 = vrot.lane.b32.xlu0 %v7746, 61
      %v8160 = vpop.permute.xlu0 %8159
      %8161 = vrot.lane.b32.xlu0 %v7747, 61
      %v8162 = vpop.permute.xlu0 %8161
      %8163 = vrot.lane.b32.xlu0 %v7748, 61
      %v8164 = vpop.permute.xlu0 %8163
      %8165 = vrot.lane.b32.xlu0 %v7749, 61
      %v8166 = vpop.permute.xlu0 %8165
      %8167 = vrot.lane.b32.xlu0 %v7750, 61
      %v8168 = vpop.permute.xlu0 %8167
      %8169 = vrot.lane.b32.xlu0 %v7751, 61
      %v8170 = vpop.permute.xlu0 %8169
      %8171 = vrot.lane.b32.xlu0 %v7752, 61
      %v8172 = vpop.permute.xlu0 %8171
      %v8173 = vsel %vm903, %v8104, %v8106
      %v8174 = vsel %vm903, %v8106, %v8108
      %v8175 = vsel %vm903, %v8108, %v8110
      %v8176 = vsel %vm903, %v8110, %v8112
      %v8177 = vsel %vm903, %v8112, %v8114
      %v8178 = vsel %vm903, %v8114, %v8116
      %v8179 = vsel %vm903, %v8116, %v8118
      %v8180 = vsel %vm903, %v8118, %v8120
      %v8181 = vsel %vm903, %v8120, %v8122
      %v8182 = vsel %vm903, %v8122, %v8124
      %v8183 = vsel %vm903, %v8124, %v8126
      %v8184 = vsel %vm903, %v8126, %v8128
      %v8185 = vsel %vm903, %v8128, %v8130
      %v8186 = vsel %vm903, %v8130, %v8132
      %v8187 = vsel %vm903, %v8132, %v8134
      %v8188 = vsel %vm903, %v8134, %v8136
      %v8189 = vsel %vm903, %v8136, %v8138
      %v8190 = vsel %vm903, %v8138, %v8140
      %v8191 = vsel %vm903, %v8140, %v8142
      %v8192 = vsel %vm903, %v8142, %v8144
      %v8193 = vsel %vm903, %v8144, %v8146
      %v8194 = vsel %vm903, %v8146, %v8148
      %v8195 = vsel %vm903, %v8148, %v8150
      %v8196 = vsel %vm903, %v8150, %v8152
      %v8197 = vsel %vm903, %v8152, %v8154
      %v8198 = vsel %vm903, %v8154, %v8156
      %v8199 = vsel %vm903, %v8156, %v8158
      %v8200 = vsel %vm903, %v8158, %v8160
      %v8201 = vsel %vm903, %v8160, %v8162
      %v8202 = vsel %vm903, %v8162, %v8164
      %v8203 = vsel %vm903, %v8164, %v8166
      %v8204 = vsel %vm903, %v8166, %v8168
      %v8205 = vsel %vm903, %v8168, %v8170
      %v8206 = vsel %vm903, %v8170, %v8172
      %8207 = vrot.lane.b32.xlu0 %v7753, 60
      %v8208 = vpop.permute.xlu0 %8207
      %8209 = vrot.lane.b32.xlu0 %v7754, 60
      %v8210 = vpop.permute.xlu0 %8209
      %8211 = vrot.lane.b32.xlu0 %v7755, 60
      %v8212 = vpop.permute.xlu0 %8211
      %8213 = vrot.lane.b32.xlu0 %v7756, 60
      %v8214 = vpop.permute.xlu0 %8213
      %8215 = vrot.lane.b32.xlu0 %v7757, 60
      %v8216 = vpop.permute.xlu0 %8215
      %8217 = vrot.lane.b32.xlu0 %v7758, 60
      %v8218 = vpop.permute.xlu0 %8217
      %8219 = vrot.lane.b32.xlu0 %v7759, 60
      %v8220 = vpop.permute.xlu0 %8219
      %8221 = vrot.lane.b32.xlu0 %v7760, 60
      %v8222 = vpop.permute.xlu0 %8221
      %8223 = vrot.lane.b32.xlu0 %v7761, 60
      %v8224 = vpop.permute.xlu0 %8223
      %8225 = vrot.lane.b32.xlu0 %v7762, 60
      %v8226 = vpop.permute.xlu0 %8225
      %8227 = vrot.lane.b32.xlu0 %v7763, 60
      %v8228 = vpop.permute.xlu0 %8227
      %8229 = vrot.lane.b32.xlu0 %v7764, 60
      %v8230 = vpop.permute.xlu0 %8229
      %8231 = vrot.lane.b32.xlu0 %v7765, 60
      %v8232 = vpop.permute.xlu0 %8231
      %8233 = vrot.lane.b32.xlu0 %v7766, 60
      %v8234 = vpop.permute.xlu0 %8233
      %8235 = vrot.lane.b32.xlu0 %v7767, 60
      %v8236 = vpop.permute.xlu0 %8235
      %8237 = vrot.lane.b32.xlu0 %v7768, 60
      %v8238 = vpop.permute.xlu0 %8237
      %8239 = vrot.lane.b32.xlu0 %v7769, 60
      %v8240 = vpop.permute.xlu0 %8239
      %8241 = vrot.lane.b32.xlu0 %v7770, 60
      %v8242 = vpop.permute.xlu0 %8241
      %8243 = vrot.lane.b32.xlu0 %v7771, 60
      %v8244 = vpop.permute.xlu0 %8243
      %8245 = vrot.lane.b32.xlu0 %v7772, 60
      %v8246 = vpop.permute.xlu0 %8245
      %8247 = vrot.lane.b32.xlu0 %v7773, 60
      %v8248 = vpop.permute.xlu0 %8247
      %8249 = vrot.lane.b32.xlu0 %v7774, 60
      %v8250 = vpop.permute.xlu0 %8249
      %8251 = vrot.lane.b32.xlu0 %v7775, 60
      %v8252 = vpop.permute.xlu0 %8251
      %8253 = vrot.lane.b32.xlu0 %v7776, 60
      %v8254 = vpop.permute.xlu0 %8253
      %8255 = vrot.lane.b32.xlu0 %v7777, 60
      %v8256 = vpop.permute.xlu0 %8255
      %8257 = vrot.lane.b32.xlu0 %v7778, 60
      %v8258 = vpop.permute.xlu0 %8257
      %8259 = vrot.lane.b32.xlu0 %v7779, 60
      %v8260 = vpop.permute.xlu0 %8259
      %8261 = vrot.lane.b32.xlu0 %v7780, 60
      %v8262 = vpop.permute.xlu0 %8261
      %8263 = vrot.lane.b32.xlu0 %v7781, 60
      %v8264 = vpop.permute.xlu0 %8263
      %8265 = vrot.lane.b32.xlu0 %v7782, 60
      %v8266 = vpop.permute.xlu0 %8265
      %8267 = vrot.lane.b32.xlu0 %v7783, 60
      %v8268 = vpop.permute.xlu0 %8267
      %8269 = vrot.lane.b32.xlu0 %v7784, 60
      %v8270 = vpop.permute.xlu0 %8269
      %8271 = vrot.lane.b32.xlu0 %v7785, 60
      %v8272 = vpop.permute.xlu0 %8271
      %8273 = vrot.lane.b32.xlu0 %v7786, 60
      %v8274 = vpop.permute.xlu0 %8273
      %8275 = vrot.lane.b32.xlu0 %v7787, 60
      %v8276 = vpop.permute.xlu0 %8275
      %v8277 = vsel %vm1010, %v8208, %v8210
      %v8278 = vsel %vm1010, %v8210, %v8212
      %v8279 = vsel %vm1010, %v8212, %v8214
      %v8280 = vsel %vm1010, %v8214, %v8216
      %v8281 = vsel %vm1010, %v8216, %v8218
      %v8282 = vsel %vm1010, %v8218, %v8220
      %v8283 = vsel %vm1010, %v8220, %v8222
      %v8284 = vsel %vm1010, %v8222, %v8224
      %v8285 = vsel %vm1010, %v8224, %v8226
      %v8286 = vsel %vm1010, %v8226, %v8228
      %v8287 = vsel %vm1010, %v8228, %v8230
      %v8288 = vsel %vm1010, %v8230, %v8232
      %v8289 = vsel %vm1010, %v8232, %v8234
      %v8290 = vsel %vm1010, %v8234, %v8236
      %v8291 = vsel %vm1010, %v8236, %v8238
      %v8292 = vsel %vm1010, %v8238, %v8240
      %v8293 = vsel %vm1010, %v8240, %v8242
      %v8294 = vsel %vm1010, %v8242, %v8244
      %v8295 = vsel %vm1010, %v8244, %v8246
      %v8296 = vsel %vm1010, %v8246, %v8248
      %v8297 = vsel %vm1010, %v8248, %v8250
      %v8298 = vsel %vm1010, %v8250, %v8252
      %v8299 = vsel %vm1010, %v8252, %v8254
      %v8300 = vsel %vm1010, %v8254, %v8256
      %v8301 = vsel %vm1010, %v8256, %v8258
      %v8302 = vsel %vm1010, %v8258, %v8260
      %v8303 = vsel %vm1010, %v8260, %v8262
      %v8304 = vsel %vm1010, %v8262, %v8264
      %v8305 = vsel %vm1010, %v8264, %v8266
      %v8306 = vsel %vm1010, %v8266, %v8268
      %v8307 = vsel %vm1010, %v8268, %v8270
      %v8308 = vsel %vm1010, %v8270, %v8272
      %v8309 = vsel %vm1010, %v8272, %v8274
      %v8310 = vsel %vm1010, %v8274, %v8276
      %v8311 = vsel %vm1010, %v8276, %v1009
      %8312 = vrot.lane.b32.xlu0 %v7718, 124
      %v8313 = vpop.permute.xlu0 %8312
      %8314 = vrot.lane.b32.xlu0 %v7719, 124
      %v8315 = vpop.permute.xlu0 %8314
      %8316 = vrot.lane.b32.xlu0 %v7720, 124
      %v8317 = vpop.permute.xlu0 %8316
      %8318 = vrot.lane.b32.xlu0 %v7721, 124
      %v8319 = vpop.permute.xlu0 %8318
      %8320 = vrot.lane.b32.xlu0 %v7722, 124
      %v8321 = vpop.permute.xlu0 %8320
      %8322 = vrot.lane.b32.xlu0 %v7723, 124
      %v8323 = vpop.permute.xlu0 %8322
      %8324 = vrot.lane.b32.xlu0 %v7724, 124
      %v8325 = vpop.permute.xlu0 %8324
      %8326 = vrot.lane.b32.xlu0 %v7725, 124
      %v8327 = vpop.permute.xlu0 %8326
      %8328 = vrot.lane.b32.xlu0 %v7726, 124
      %v8329 = vpop.permute.xlu0 %8328
      %8330 = vrot.lane.b32.xlu0 %v7727, 124
      %v8331 = vpop.permute.xlu0 %8330
      %8332 = vrot.lane.b32.xlu0 %v7728, 124
      %v8333 = vpop.permute.xlu0 %8332
      %8334 = vrot.lane.b32.xlu0 %v7729, 124
      %v8335 = vpop.permute.xlu0 %8334
      %8336 = vrot.lane.b32.xlu0 %v7730, 124
      %v8337 = vpop.permute.xlu0 %8336
      %8338 = vrot.lane.b32.xlu0 %v7731, 124
      %v8339 = vpop.permute.xlu0 %8338
      %8340 = vrot.lane.b32.xlu0 %v7732, 124
      %v8341 = vpop.permute.xlu0 %8340
      %8342 = vrot.lane.b32.xlu0 %v7733, 124
      %v8343 = vpop.permute.xlu0 %8342
      %8344 = vrot.lane.b32.xlu0 %v7734, 124
      %v8345 = vpop.permute.xlu0 %8344
      %8346 = vrot.lane.b32.xlu0 %v7735, 124
      %v8347 = vpop.permute.xlu0 %8346
      %8348 = vrot.lane.b32.xlu0 %v7736, 124
      %v8349 = vpop.permute.xlu0 %8348
      %8350 = vrot.lane.b32.xlu0 %v7737, 124
      %v8351 = vpop.permute.xlu0 %8350
      %8352 = vrot.lane.b32.xlu0 %v7738, 124
      %v8353 = vpop.permute.xlu0 %8352
      %8354 = vrot.lane.b32.xlu0 %v7739, 124
      %v8355 = vpop.permute.xlu0 %8354
      %8356 = vrot.lane.b32.xlu0 %v7740, 124
      %v8357 = vpop.permute.xlu0 %8356
      %8358 = vrot.lane.b32.xlu0 %v7741, 124
      %v8359 = vpop.permute.xlu0 %8358
      %8360 = vrot.lane.b32.xlu0 %v7742, 124
      %v8361 = vpop.permute.xlu0 %8360
      %8362 = vrot.lane.b32.xlu0 %v7743, 124
      %v8363 = vpop.permute.xlu0 %8362
      %8364 = vrot.lane.b32.xlu0 %v7744, 124
      %v8365 = vpop.permute.xlu0 %8364
      %8366 = vrot.lane.b32.xlu0 %v7745, 124
      %v8367 = vpop.permute.xlu0 %8366
      %8368 = vrot.lane.b32.xlu0 %v7746, 124
      %v8369 = vpop.permute.xlu0 %8368
      %8370 = vrot.lane.b32.xlu0 %v7747, 124
      %v8371 = vpop.permute.xlu0 %8370
      %8372 = vrot.lane.b32.xlu0 %v7748, 124
      %v8373 = vpop.permute.xlu0 %8372
      %8374 = vrot.lane.b32.xlu0 %v7749, 124
      %v8375 = vpop.permute.xlu0 %8374
      %8376 = vrot.lane.b32.xlu0 %v7750, 124
      %v8377 = vpop.permute.xlu0 %8376
      %8378 = vrot.lane.b32.xlu0 %v7751, 124
      %v8379 = vpop.permute.xlu0 %8378
      %8380 = vrot.lane.b32.xlu0 %v7752, 124
      %v8381 = vpop.permute.xlu0 %8380
      %v8382 = vsel %vm1118, %v8313, %v8315
      %v8383 = vsel %vm1118, %v8315, %v8317
      %v8384 = vsel %vm1118, %v8317, %v8319
      %v8385 = vsel %vm1118, %v8319, %v8321
      %v8386 = vsel %vm1118, %v8321, %v8323
      %v8387 = vsel %vm1118, %v8323, %v8325
      %v8388 = vsel %vm1118, %v8325, %v8327
      %v8389 = vsel %vm1118, %v8327, %v8329
      %v8390 = vsel %vm1118, %v8329, %v8331
      %v8391 = vsel %vm1118, %v8331, %v8333
      %v8392 = vsel %vm1118, %v8333, %v8335
      %v8393 = vsel %vm1118, %v8335, %v8337
      %v8394 = vsel %vm1118, %v8337, %v8339
      %v8395 = vsel %vm1118, %v8339, %v8341
      %v8396 = vsel %vm1118, %v8341, %v8343
      %v8397 = vsel %vm1118, %v8343, %v8345
      %v8398 = vsel %vm1118, %v8345, %v8347
      %v8399 = vsel %vm1118, %v8347, %v8349
      %v8400 = vsel %vm1118, %v8349, %v8351
      %v8401 = vsel %vm1118, %v8351, %v8353
      %v8402 = vsel %vm1118, %v8353, %v8355
      %v8403 = vsel %vm1118, %v8355, %v8357
      %v8404 = vsel %vm1118, %v8357, %v8359
      %v8405 = vsel %vm1118, %v8359, %v8361
      %v8406 = vsel %vm1118, %v8361, %v8363
      %v8407 = vsel %vm1118, %v8363, %v8365
      %v8408 = vsel %vm1118, %v8365, %v8367
      %v8409 = vsel %vm1118, %v8367, %v8369
      %v8410 = vsel %vm1118, %v8369, %v8371
      %v8411 = vsel %vm1118, %v8371, %v8373
      %v8412 = vsel %vm1118, %v8373, %v8375
      %v8413 = vsel %vm1118, %v8375, %v8377
      %v8414 = vsel %vm1118, %v8377, %v8379
      %v8415 = vsel %vm1118, %v8379, %v8381
      %v8416 = vsel %vm1118, %v8381, %v1117
      %8417 = vrot.lane.b32.xlu0 %v7753, 123
      %v8418 = vpop.permute.xlu0 %8417
      %8419 = vrot.lane.b32.xlu0 %v7754, 123
      %v8420 = vpop.permute.xlu0 %8419
      %8421 = vrot.lane.b32.xlu0 %v7755, 123
      %v8422 = vpop.permute.xlu0 %8421
      %8423 = vrot.lane.b32.xlu0 %v7756, 123
      %v8424 = vpop.permute.xlu0 %8423
      %8425 = vrot.lane.b32.xlu0 %v7757, 123
      %v8426 = vpop.permute.xlu0 %8425
      %8427 = vrot.lane.b32.xlu0 %v7758, 123
      %v8428 = vpop.permute.xlu0 %8427
      %8429 = vrot.lane.b32.xlu0 %v7759, 123
      %v8430 = vpop.permute.xlu0 %8429
      %8431 = vrot.lane.b32.xlu0 %v7760, 123
      %v8432 = vpop.permute.xlu0 %8431
      %8433 = vrot.lane.b32.xlu0 %v7761, 123
      %v8434 = vpop.permute.xlu0 %8433
      %8435 = vrot.lane.b32.xlu0 %v7762, 123
      %v8436 = vpop.permute.xlu0 %8435
      %8437 = vrot.lane.b32.xlu0 %v7763, 123
      %v8438 = vpop.permute.xlu0 %8437
      %8439 = vrot.lane.b32.xlu0 %v7764, 123
      %v8440 = vpop.permute.xlu0 %8439
      %8441 = vrot.lane.b32.xlu0 %v7765, 123
      %v8442 = vpop.permute.xlu0 %8441
      %8443 = vrot.lane.b32.xlu0 %v7766, 123
      %v8444 = vpop.permute.xlu0 %8443
      %8445 = vrot.lane.b32.xlu0 %v7767, 123
      %v8446 = vpop.permute.xlu0 %8445
      %8447 = vrot.lane.b32.xlu0 %v7768, 123
      %v8448 = vpop.permute.xlu0 %8447
      %8449 = vrot.lane.b32.xlu0 %v7769, 123
      %v8450 = vpop.permute.xlu0 %8449
      %8451 = vrot.lane.b32.xlu0 %v7770, 123
      %v8452 = vpop.permute.xlu0 %8451
      %8453 = vrot.lane.b32.xlu0 %v7771, 123
      %v8454 = vpop.permute.xlu0 %8453
      %8455 = vrot.lane.b32.xlu0 %v7772, 123
      %v8456 = vpop.permute.xlu0 %8455
      %8457 = vrot.lane.b32.xlu0 %v7773, 123
      %v8458 = vpop.permute.xlu0 %8457
      %8459 = vrot.lane.b32.xlu0 %v7774, 123
      %v8460 = vpop.permute.xlu0 %8459
      %8461 = vrot.lane.b32.xlu0 %v7775, 123
      %v8462 = vpop.permute.xlu0 %8461
      %8463 = vrot.lane.b32.xlu0 %v7776, 123
      %v8464 = vpop.permute.xlu0 %8463
      %8465 = vrot.lane.b32.xlu0 %v7777, 123
      %v8466 = vpop.permute.xlu0 %8465
      %8467 = vrot.lane.b32.xlu0 %v7778, 123
      %v8468 = vpop.permute.xlu0 %8467
      %8469 = vrot.lane.b32.xlu0 %v7779, 123
      %v8470 = vpop.permute.xlu0 %8469
      %8471 = vrot.lane.b32.xlu0 %v7780, 123
      %v8472 = vpop.permute.xlu0 %8471
      %8473 = vrot.lane.b32.xlu0 %v7781, 123
      %v8474 = vpop.permute.xlu0 %8473
      %8475 = vrot.lane.b32.xlu0 %v7782, 123
      %v8476 = vpop.permute.xlu0 %8475
      %8477 = vrot.lane.b32.xlu0 %v7783, 123
      %v8478 = vpop.permute.xlu0 %8477
      %8479 = vrot.lane.b32.xlu0 %v7784, 123
      %v8480 = vpop.permute.xlu0 %8479
      %8481 = vrot.lane.b32.xlu0 %v7785, 123
      %v8482 = vpop.permute.xlu0 %8481
      %8483 = vrot.lane.b32.xlu0 %v7786, 123
      %v8484 = vpop.permute.xlu0 %8483
      %8485 = vrot.lane.b32.xlu0 %v7787, 123
      %v8486 = vpop.permute.xlu0 %8485
      %v8487 = vsel %vm1226, %v8418, %v8420
      %v8488 = vsel %vm1226, %v8420, %v8422
      %v8489 = vsel %vm1226, %v8422, %v8424
      %v8490 = vsel %vm1226, %v8424, %v8426
      %v8491 = vsel %vm1226, %v8426, %v8428
      %v8492 = vsel %vm1226, %v8428, %v8430
      %v8493 = vsel %vm1226, %v8430, %v8432
      %v8494 = vsel %vm1226, %v8432, %v8434
      %v8495 = vsel %vm1226, %v8434, %v8436
      %v8496 = vsel %vm1226, %v8436, %v8438
      %v8497 = vsel %vm1226, %v8438, %v8440
      %v8498 = vsel %vm1226, %v8440, %v8442
      %v8499 = vsel %vm1226, %v8442, %v8444
      %v8500 = vsel %vm1226, %v8444, %v8446
      %v8501 = vsel %vm1226, %v8446, %v8448
      %v8502 = vsel %vm1226, %v8448, %v8450
      %v8503 = vsel %vm1226, %v8450, %v8452
      %v8504 = vsel %vm1226, %v8452, %v8454
      %v8505 = vsel %vm1226, %v8454, %v8456
      %v8506 = vsel %vm1226, %v8456, %v8458
      %v8507 = vsel %vm1226, %v8458, %v8460
      %v8508 = vsel %vm1226, %v8460, %v8462
      %v8509 = vsel %vm1226, %v8462, %v8464
      %v8510 = vsel %vm1226, %v8464, %v8466
      %v8511 = vsel %vm1226, %v8466, %v8468
      %v8512 = vsel %vm1226, %v8468, %v8470
      %v8513 = vsel %vm1226, %v8470, %v8472
      %v8514 = vsel %vm1226, %v8472, %v8474
      %v8515 = vsel %vm1226, %v8474, %v8476
      %v8516 = vsel %vm1226, %v8476, %v8478
      %v8517 = vsel %vm1226, %v8478, %v8480
      %v8518 = vsel %vm1226, %v8480, %v8482
      %v8519 = vsel %vm1226, %v8482, %v8484
      %v8520 = vsel %vm1226, %v8484, %v8486
      %v8521 = vsel %vm1226, %v8486, %v1225
      %8522 = vrot.lane.b32.xlu0 %v7718, 122
      %v8523 = vpop.permute.xlu0 %8522
      %8524 = vrot.lane.b32.xlu0 %v7719, 122
      %v8525 = vpop.permute.xlu0 %8524
      %8526 = vrot.lane.b32.xlu0 %v7720, 122
      %v8527 = vpop.permute.xlu0 %8526
      %8528 = vrot.lane.b32.xlu0 %v7721, 122
      %v8529 = vpop.permute.xlu0 %8528
      %8530 = vrot.lane.b32.xlu0 %v7722, 122
      %v8531 = vpop.permute.xlu0 %8530
      %8532 = vrot.lane.b32.xlu0 %v7723, 122
      %v8533 = vpop.permute.xlu0 %8532
      %8534 = vrot.lane.b32.xlu0 %v7724, 122
      %v8535 = vpop.permute.xlu0 %8534
      %8536 = vrot.lane.b32.xlu0 %v7725, 122
      %v8537 = vpop.permute.xlu0 %8536
      %8538 = vrot.lane.b32.xlu0 %v7726, 122
      %v8539 = vpop.permute.xlu0 %8538
      %8540 = vrot.lane.b32.xlu0 %v7727, 122
      %v8541 = vpop.permute.xlu0 %8540
      %8542 = vrot.lane.b32.xlu0 %v7728, 122
      %v8543 = vpop.permute.xlu0 %8542
      %8544 = vrot.lane.b32.xlu0 %v7729, 122
      %v8545 = vpop.permute.xlu0 %8544
      %8546 = vrot.lane.b32.xlu0 %v7730, 122
      %v8547 = vpop.permute.xlu0 %8546
      %8548 = vrot.lane.b32.xlu0 %v7731, 122
      %v8549 = vpop.permute.xlu0 %8548
      %8550 = vrot.lane.b32.xlu0 %v7732, 122
      %v8551 = vpop.permute.xlu0 %8550
      %8552 = vrot.lane.b32.xlu0 %v7733, 122
      %v8553 = vpop.permute.xlu0 %8552
      %8554 = vrot.lane.b32.xlu0 %v7734, 122
      %v8555 = vpop.permute.xlu0 %8554
      %8556 = vrot.lane.b32.xlu0 %v7735, 122
      %v8557 = vpop.permute.xlu0 %8556
      %8558 = vrot.lane.b32.xlu0 %v7736, 122
      %v8559 = vpop.permute.xlu0 %8558
      %8560 = vrot.lane.b32.xlu0 %v7737, 122
      %v8561 = vpop.permute.xlu0 %8560
      %8562 = vrot.lane.b32.xlu0 %v7738, 122
      %v8563 = vpop.permute.xlu0 %8562
      %8564 = vrot.lane.b32.xlu0 %v7739, 122
      %v8565 = vpop.permute.xlu0 %8564
      %8566 = vrot.lane.b32.xlu0 %v7740, 122
      %v8567 = vpop.permute.xlu0 %8566
      %8568 = vrot.lane.b32.xlu0 %v7741, 122
      %v8569 = vpop.permute.xlu0 %8568
      %8570 = vrot.lane.b32.xlu0 %v7742, 122
      %v8571 = vpop.permute.xlu0 %8570
      %8572 = vrot.lane.b32.xlu0 %v7743, 122
      %v8573 = vpop.permute.xlu0 %8572
      %8574 = vrot.lane.b32.xlu0 %v7744, 122
      %v8575 = vpop.permute.xlu0 %8574
      %8576 = vrot.lane.b32.xlu0 %v7745, 122
      %v8577 = vpop.permute.xlu0 %8576
      %8578 = vrot.lane.b32.xlu0 %v7746, 122
      %v8579 = vpop.permute.xlu0 %8578
      %8580 = vrot.lane.b32.xlu0 %v7747, 122
      %v8581 = vpop.permute.xlu0 %8580
      %8582 = vrot.lane.b32.xlu0 %v7748, 122
      %v8583 = vpop.permute.xlu0 %8582
      %8584 = vrot.lane.b32.xlu0 %v7749, 122
      %v8585 = vpop.permute.xlu0 %8584
      %8586 = vrot.lane.b32.xlu0 %v7750, 122
      %v8587 = vpop.permute.xlu0 %8586
      %8588 = vrot.lane.b32.xlu0 %v7751, 122
      %v8589 = vpop.permute.xlu0 %8588
      %8590 = vrot.lane.b32.xlu0 %v7752, 122
      %v8591 = vpop.permute.xlu0 %8590
      %v8592 = vsel %vm1334, %v8523, %v8525
      %v8593 = vsel %vm1334, %v8525, %v8527
      %v8594 = vsel %vm1334, %v8527, %v8529
      %v8595 = vsel %vm1334, %v8529, %v8531
      %v8596 = vsel %vm1334, %v8531, %v8533
      %v8597 = vsel %vm1334, %v8533, %v8535
      %v8598 = vsel %vm1334, %v8535, %v8537
      %v8599 = vsel %vm1334, %v8537, %v8539
      %v8600 = vsel %vm1334, %v8539, %v8541
      %v8601 = vsel %vm1334, %v8541, %v8543
      %v8602 = vsel %vm1334, %v8543, %v8545
      %v8603 = vsel %vm1334, %v8545, %v8547
      %v8604 = vsel %vm1334, %v8547, %v8549
      %v8605 = vsel %vm1334, %v8549, %v8551
      %v8606 = vsel %vm1334, %v8551, %v8553
      %v8607 = vsel %vm1334, %v8553, %v8555
      %v8608 = vsel %vm1334, %v8555, %v8557
      %v8609 = vsel %vm1334, %v8557, %v8559
      %v8610 = vsel %vm1334, %v8559, %v8561
      %v8611 = vsel %vm1334, %v8561, %v8563
      %v8612 = vsel %vm1334, %v8563, %v8565
      %v8613 = vsel %vm1334, %v8565, %v8567
      %v8614 = vsel %vm1334, %v8567, %v8569
      %v8615 = vsel %vm1334, %v8569, %v8571
      %v8616 = vsel %vm1334, %v8571, %v8573
      %v8617 = vsel %vm1334, %v8573, %v8575
      %v8618 = vsel %vm1334, %v8575, %v8577
      %v8619 = vsel %vm1334, %v8577, %v8579
      %v8620 = vsel %vm1334, %v8579, %v8581
      %v8621 = vsel %vm1334, %v8581, %v8583
      %v8622 = vsel %vm1334, %v8583, %v8585
      %v8623 = vsel %vm1334, %v8585, %v8587
      %v8624 = vsel %vm1334, %v8587, %v8589
      %v8625 = vsel %vm1334, %v8589, %v8591
      %v8626 = vsel %vm1334, %v8591, %v1333
      %v8628 = vsel %vm1370, 0, %v7858
      %v8631 = vsel %vm1370, %v7718, %v7859
      %v8634 = vsel %vm1370, %v7719, %v7860
      %v8637 = vsel %vm1370, %v7720, %v7861
      %v8640 = vsel %vm1370, %v7721, %v7862
      %v8643 = vsel %vm1370, %v7722, %v7863
      %v8646 = vsel %vm1370, %v7723, %v7864
      %v8649 = vsel %vm1370, %v7724, %v7865
      %v8652 = vsel %vm1370, %v7725, %v7866
      %v8655 = vsel %vm1370, %v7726, %v7867
      %v8658 = vsel %vm1370, %v7727, %v7868
      %v8661 = vsel %vm1370, %v7728, %v7869
      %v8664 = vsel %vm1370, %v7729, %v7870
      %v8667 = vsel %vm1370, %v7730, %v7871
      %v8670 = vsel %vm1370, %v7731, %v7872
      %v8673 = vsel %vm1370, %v7732, %v7873
      %v8676 = vsel %vm1370, %v7733, %v7874
      %v8679 = vsel %vm1370, %v7734, %v7875
      %v8682 = vsel %vm1370, %v7735, %v7876
      %v8685 = vsel %vm1370, %v7736, %v7877
      %v8688 = vsel %vm1370, %v7737, %v7878
      %v8691 = vsel %vm1370, %v7738, %v7879
      %v8694 = vsel %vm1370, %v7739, %v7880
      %v8697 = vsel %vm1370, %v7740, %v7881
      %v8700 = vsel %vm1370, %v7741, %v7882
      %v8703 = vsel %vm1370, %v7742, %v7883
      %v8706 = vsel %vm1370, %v7743, %v7884
      %v8709 = vsel %vm1370, %v7744, %v7885
      %v8712 = vsel %vm1370, %v7745, %v7886
      %v8715 = vsel %vm1370, %v7746, %v7887
      %v8718 = vsel %vm1370, %v7747, %v7888
      %v8721 = vsel %vm1370, %v7748, %v7889
      %v8724 = vsel %vm1370, %v7749, %v7890
      %v8727 = vsel %vm1370, %v7750, %v7891
      %v8730 = vsel %vm1370, %v7751, %v7892
      %v8733 = vsel %vm1370, %v7752, %v7857
      %v8736 = vsel %vm1370, %v7963, %v8068
      %v8739 = vsel %vm1370, %v7964, %v8069
      %v8742 = vsel %vm1370, %v7965, %v8070
      %v8745 = vsel %vm1370, %v7966, %v8071
      %v8748 = vsel %vm1370, %v7967, %v8072
      %v8751 = vsel %vm1370, %v7968, %v8073
      %v8754 = vsel %vm1370, %v7969, %v8074
      %v8757 = vsel %vm1370, %v7970, %v8075
      %v8760 = vsel %vm1370, %v7971, %v8076
      %v8763 = vsel %vm1370, %v7972, %v8077
      %v8766 = vsel %vm1370, %v7973, %v8078
      %v8769 = vsel %vm1370, %v7974, %v8079
      %v8772 = vsel %vm1370, %v7975, %v8080
      %v8775 = vsel %vm1370, %v7976, %v8081
      %v8778 = vsel %vm1370, %v7977, %v8082
      %v8781 = vsel %vm1370, %v7978, %v8083
      %v8784 = vsel %vm1370, %v7979, %v8084
      %v8787 = vsel %vm1370, %v7980, %v8085
      %v8790 = vsel %vm1370, %v7981, %v8086
      %v8793 = vsel %vm1370, %v7982, %v8087
      %v8796 = vsel %vm1370, %v7983, %v8088
      %v8799 = vsel %vm1370, %v7984, %v8089
      %v8802 = vsel %vm1370, %v7985, %v8090
      %v8805 = vsel %vm1370, %v7986, %v8091
      %v8808 = vsel %vm1370, %v7987, %v8092
      %v8811 = vsel %vm1370, %v7988, %v8093
      %v8814 = vsel %vm1370, %v7989, %v8094
      %v8817 = vsel %vm1370, %v7990, %v8095
      %v8820 = vsel %vm1370, %v7991, %v8096
      %v8823 = vsel %vm1370, %v7992, %v8097
      %v8826 = vsel %vm1370, %v7993, %v8098
      %v8829 = vsel %vm1370, %v7994, %v8099
      %v8832 = vsel %vm1370, %v7995, %v8100
      %v8835 = vsel %vm1370, %v7996, %v8101
      %v8838 = vsel %vm1370, %v7997, %v8102
      %v8841 = vsel %vm1370, %v7962, %v8067
      %v8844 = vsel %vm1370, %v8104, %v8208
      %v8847 = vsel %vm1370, %v8173, %v8277
      %v8850 = vsel %vm1370, %v8174, %v8278
      %v8853 = vsel %vm1370, %v8175, %v8279
      %v8856 = vsel %vm1370, %v8176, %v8280
      %v8859 = vsel %vm1370, %v8177, %v8281
      %v8862 = vsel %vm1370, %v8178, %v8282
      %v8865 = vsel %vm1370, %v8179, %v8283
      %v8868 = vsel %vm1370, %v8180, %v8284
      %v8871 = vsel %vm1370, %v8181, %v8285
      %v8874 = vsel %vm1370, %v8182, %v8286
      %v8877 = vsel %vm1370, %v8183, %v8287
      %v8880 = vsel %vm1370, %v8184, %v8288
      %v8883 = vsel %vm1370, %v8185, %v8289
      %v8886 = vsel %vm1370, %v8186, %v8290
      %v8889 = vsel %vm1370, %v8187, %v8291
      %v8892 = vsel %vm1370, %v8188, %v8292
      %v8895 = vsel %vm1370, %v8189, %v8293
      %v8898 = vsel %vm1370, %v8190, %v8294
      %v8901 = vsel %vm1370, %v8191, %v8295
      %v8904 = vsel %vm1370, %v8192, %v8296
      %v8907 = vsel %vm1370, %v8193, %v8297
      %v8910 = vsel %vm1370, %v8194, %v8298
      %v8913 = vsel %vm1370, %v8195, %v8299
      %v8916 = vsel %vm1370, %v8196, %v8300
      %v8919 = vsel %vm1370, %v8197, %v8301
      %v8922 = vsel %vm1370, %v8198, %v8302
      %v8925 = vsel %vm1370, %v8199, %v8303
      %v8928 = vsel %vm1370, %v8200, %v8304
      %v8931 = vsel %vm1370, %v8201, %v8305
      %v8934 = vsel %vm1370, %v8202, %v8306
      %v8937 = vsel %vm1370, %v8203, %v8307
      %v8940 = vsel %vm1370, %v8204, %v8308
      %v8943 = vsel %vm1370, %v8205, %v8309
      %v8946 = vsel %vm1370, %v8206, %v8310
      %v8949 = vsel %vm1370, %v8172, %v8311
      %v8952 = vsel %vm1370, %v8382, %v8487
      %v8955 = vsel %vm1370, %v8383, %v8488
      %v8958 = vsel %vm1370, %v8384, %v8489
      %v8961 = vsel %vm1370, %v8385, %v8490
      %v8964 = vsel %vm1370, %v8386, %v8491
      %v8967 = vsel %vm1370, %v8387, %v8492
      %v8970 = vsel %vm1370, %v8388, %v8493
      %v8973 = vsel %vm1370, %v8389, %v8494
      %v8976 = vsel %vm1370, %v8390, %v8495
      %v8979 = vsel %vm1370, %v8391, %v8496
      %v8982 = vsel %vm1370, %v8392, %v8497
      %v8985 = vsel %vm1370, %v8393, %v8498
      %v8988 = vsel %vm1370, %v8394, %v8499
      %v8991 = vsel %vm1370, %v8395, %v8500
      %v8994 = vsel %vm1370, %v8396, %v8501
      %v8997 = vsel %vm1370, %v8397, %v8502
      %v9000 = vsel %vm1370, %v8398, %v8503
      %v9003 = vsel %vm1370, %v8399, %v8504
      %v9006 = vsel %vm1370, %v8400, %v8505
      %v9009 = vsel %vm1370, %v8401, %v8506
      %v9012 = vsel %vm1370, %v8402, %v8507
      %v9015 = vsel %vm1370, %v8403, %v8508
      %v9018 = vsel %vm1370, %v8404, %v8509
      %v9021 = vsel %vm1370, %v8405, %v8510
      %v9024 = vsel %vm1370, %v8406, %v8511
      %v9027 = vsel %vm1370, %v8407, %v8512
      %v9030 = vsel %vm1370, %v8408, %v8513
      %v9033 = vsel %vm1370, %v8409, %v8514
      %v9036 = vsel %vm1370, %v8410, %v8515
      %v9039 = vsel %vm1370, %v8411, %v8516
      %v9042 = vsel %vm1370, %v8412, %v8517
      %v9045 = vsel %vm1370, %v8413, %v8518
      %v9048 = vsel %vm1370, %v8414, %v8519
      %v9051 = vsel %vm1370, %v8415, %v8520
      %v9054 = vsel %vm1370, %v8416, %v8521
      %v9055 = vld [vmem:[%s8] sm:$0x3]
      %v9056 = vld [vmem:[%s9] sm:$0x7]
      %9058 = vset.pattern.permute.xlu0 0
      %9059 = vperm.xlu0 %9058, %v9056
      %v9060 = vpop.permute.xlu0 %9059
      %9205 = vrot.lane.b32.xlu0 %v8628, 67
      %v9206 = vpop.permute.xlu0 %9205
      %9207 = vrot.lane.b32.xlu0 %v8631, 67
      %v9208 = vpop.permute.xlu0 %9207
      %9209 = vrot.lane.b32.xlu0 %v8634, 67
      %v9210 = vpop.permute.xlu0 %9209
      %9211 = vrot.lane.b32.xlu0 %v8637, 67
      %v9212 = vpop.permute.xlu0 %9211
      %9213 = vrot.lane.b32.xlu0 %v8640, 67
      %v9214 = vpop.permute.xlu0 %9213
      %9215 = vrot.lane.b32.xlu0 %v8643, 67
      %v9216 = vpop.permute.xlu0 %9215
      %9217 = vrot.lane.b32.xlu0 %v8646, 67
      %v9218 = vpop.permute.xlu0 %9217
      %9219 = vrot.lane.b32.xlu0 %v8649, 67
      %v9220 = vpop.permute.xlu0 %9219
      %9221 = vrot.lane.b32.xlu0 %v8652, 67
      %v9222 = vpop.permute.xlu0 %9221
      %9223 = vrot.lane.b32.xlu0 %v8655, 67
      %v9224 = vpop.permute.xlu0 %9223
      %9225 = vrot.lane.b32.xlu0 %v8658, 67
      %v9226 = vpop.permute.xlu0 %9225
      %9227 = vrot.lane.b32.xlu0 %v8661, 67
      %v9228 = vpop.permute.xlu0 %9227
      %9229 = vrot.lane.b32.xlu0 %v8664, 67
      %v9230 = vpop.permute.xlu0 %9229
      %9231 = vrot.lane.b32.xlu0 %v8667, 67
      %v9232 = vpop.permute.xlu0 %9231
      %9233 = vrot.lane.b32.xlu0 %v8670, 67
      %v9234 = vpop.permute.xlu0 %9233
      %9235 = vrot.lane.b32.xlu0 %v8673, 67
      %v9236 = vpop.permute.xlu0 %9235
      %9237 = vrot.lane.b32.xlu0 %v8676, 67
      %v9238 = vpop.permute.xlu0 %9237
      %9239 = vrot.lane.b32.xlu0 %v8679, 67
      %v9240 = vpop.permute.xlu0 %9239
      %9241 = vrot.lane.b32.xlu0 %v8682, 67
      %v9242 = vpop.permute.xlu0 %9241
      %9243 = vrot.lane.b32.xlu0 %v8685, 67
      %v9244 = vpop.permute.xlu0 %9243
      %9245 = vrot.lane.b32.xlu0 %v8688, 67
      %v9246 = vpop.permute.xlu0 %9245
      %9247 = vrot.lane.b32.xlu0 %v8691, 67
      %v9248 = vpop.permute.xlu0 %9247
      %9249 = vrot.lane.b32.xlu0 %v8694, 67
      %v9250 = vpop.permute.xlu0 %9249
      %9251 = vrot.lane.b32.xlu0 %v8697, 67
      %v9252 = vpop.permute.xlu0 %9251
      %9253 = vrot.lane.b32.xlu0 %v8700, 67
      %v9254 = vpop.permute.xlu0 %9253
      %9255 = vrot.lane.b32.xlu0 %v8703, 67
      %v9256 = vpop.permute.xlu0 %9255
      %9257 = vrot.lane.b32.xlu0 %v8706, 67
      %v9258 = vpop.permute.xlu0 %9257
      %9259 = vrot.lane.b32.xlu0 %v8709, 67
      %v9260 = vpop.permute.xlu0 %9259
      %9261 = vrot.lane.b32.xlu0 %v8712, 67
      %v9262 = vpop.permute.xlu0 %9261
      %9263 = vrot.lane.b32.xlu0 %v8715, 67
      %v9264 = vpop.permute.xlu0 %9263
      %9265 = vrot.lane.b32.xlu0 %v8718, 67
      %v9266 = vpop.permute.xlu0 %9265
      %9267 = vrot.lane.b32.xlu0 %v8721, 67
      %v9268 = vpop.permute.xlu0 %9267
      %9269 = vrot.lane.b32.xlu0 %v8724, 67
      %v9270 = vpop.permute.xlu0 %9269
      %9271 = vrot.lane.b32.xlu0 %v8727, 67
      %v9272 = vpop.permute.xlu0 %9271
      %9273 = vrot.lane.b32.xlu0 %v8730, 67
      %v9274 = vpop.permute.xlu0 %9273
      %9275 = vrot.lane.b32.xlu0 %v8733, 67
      %v9276 = vpop.permute.xlu0 %9275
      %9277 = vrot.lane.b32.xlu0 %v8736, 67
      %v9278 = vpop.permute.xlu0 %9277
      %9279 = vrot.lane.b32.xlu0 %v8739, 67
      %v9280 = vpop.permute.xlu0 %9279
      %9281 = vrot.lane.b32.xlu0 %v8742, 67
      %v9282 = vpop.permute.xlu0 %9281
      %9283 = vrot.lane.b32.xlu0 %v8745, 67
      %v9284 = vpop.permute.xlu0 %9283
      %9285 = vrot.lane.b32.xlu0 %v8748, 67
      %v9286 = vpop.permute.xlu0 %9285
      %9287 = vrot.lane.b32.xlu0 %v8751, 67
      %v9288 = vpop.permute.xlu0 %9287
      %9289 = vrot.lane.b32.xlu0 %v8754, 67
      %v9290 = vpop.permute.xlu0 %9289
      %9291 = vrot.lane.b32.xlu0 %v8757, 67
      %v9292 = vpop.permute.xlu0 %9291
      %9293 = vrot.lane.b32.xlu0 %v8760, 67
      %v9294 = vpop.permute.xlu0 %9293
      %9295 = vrot.lane.b32.xlu0 %v8763, 67
      %v9296 = vpop.permute.xlu0 %9295
      %9297 = vrot.lane.b32.xlu0 %v8766, 67
      %v9298 = vpop.permute.xlu0 %9297
      %9299 = vrot.lane.b32.xlu0 %v8769, 67
      %v9300 = vpop.permute.xlu0 %9299
      %9301 = vrot.lane.b32.xlu0 %v8772, 67
      %v9302 = vpop.permute.xlu0 %9301
      %9303 = vrot.lane.b32.xlu0 %v8775, 67
      %v9304 = vpop.permute.xlu0 %9303
      %9305 = vrot.lane.b32.xlu0 %v8778, 67
      %v9306 = vpop.permute.xlu0 %9305
      %9307 = vrot.lane.b32.xlu0 %v8781, 67
      %v9308 = vpop.permute.xlu0 %9307
      %9309 = vrot.lane.b32.xlu0 %v8784, 67
      %v9310 = vpop.permute.xlu0 %9309
      %9311 = vrot.lane.b32.xlu0 %v8787, 67
      %v9312 = vpop.permute.xlu0 %9311
      %9313 = vrot.lane.b32.xlu0 %v8790, 67
      %v9314 = vpop.permute.xlu0 %9313
      %9315 = vrot.lane.b32.xlu0 %v8793, 67
      %v9316 = vpop.permute.xlu0 %9315
      %9317 = vrot.lane.b32.xlu0 %v8796, 67
      %v9318 = vpop.permute.xlu0 %9317
      %9319 = vrot.lane.b32.xlu0 %v8799, 67
      %v9320 = vpop.permute.xlu0 %9319
      %9321 = vrot.lane.b32.xlu0 %v8802, 67
      %v9322 = vpop.permute.xlu0 %9321
      %9323 = vrot.lane.b32.xlu0 %v8805, 67
      %v9324 = vpop.permute.xlu0 %9323
      %9325 = vrot.lane.b32.xlu0 %v8808, 67
      %v9326 = vpop.permute.xlu0 %9325
      %9327 = vrot.lane.b32.xlu0 %v8811, 67
      %v9328 = vpop.permute.xlu0 %9327
      %9329 = vrot.lane.b32.xlu0 %v8814, 67
      %v9330 = vpop.permute.xlu0 %9329
      %9331 = vrot.lane.b32.xlu0 %v8817, 67
      %v9332 = vpop.permute.xlu0 %9331
      %9333 = vrot.lane.b32.xlu0 %v8820, 67
      %v9334 = vpop.permute.xlu0 %9333
      %9335 = vrot.lane.b32.xlu0 %v8823, 67
      %v9336 = vpop.permute.xlu0 %9335
      %9337 = vrot.lane.b32.xlu0 %v8826, 67
      %v9338 = vpop.permute.xlu0 %9337
      %9339 = vrot.lane.b32.xlu0 %v8829, 67
      %v9340 = vpop.permute.xlu0 %9339
      %9341 = vrot.lane.b32.xlu0 %v8832, 67
      %v9342 = vpop.permute.xlu0 %9341
      %9343 = vrot.lane.b32.xlu0 %v8835, 67
      %v9344 = vpop.permute.xlu0 %9343
      %9345 = vrot.lane.b32.xlu0 %v8838, 67
      %v9346 = vpop.permute.xlu0 %9345
      %9347 = vrot.lane.b32.xlu0 %v8841, 67
      %v9348 = vpop.permute.xlu0 %9347
      %9349 = vrot.lane.b32.xlu0 %v8844, 67
      %v9350 = vpop.permute.xlu0 %9349
      %9351 = vrot.lane.b32.xlu0 %v8847, 67
      %v9352 = vpop.permute.xlu0 %9351
      %9353 = vrot.lane.b32.xlu0 %v8850, 67
      %v9354 = vpop.permute.xlu0 %9353
      %9355 = vrot.lane.b32.xlu0 %v8853, 67
      %v9356 = vpop.permute.xlu0 %9355
      %9357 = vrot.lane.b32.xlu0 %v8856, 67
      %v9358 = vpop.permute.xlu0 %9357
      %9359 = vrot.lane.b32.xlu0 %v8859, 67
      %v9360 = vpop.permute.xlu0 %9359
      %9361 = vrot.lane.b32.xlu0 %v8862, 67
      %v9362 = vpop.permute.xlu0 %9361
      %9363 = vrot.lane.b32.xlu0 %v8865, 67
      %v9364 = vpop.permute.xlu0 %9363
      %9365 = vrot.lane.b32.xlu0 %v8868, 67
      %v9366 = vpop.permute.xlu0 %9365
      %9367 = vrot.lane.b32.xlu0 %v8871, 67
      %v9368 = vpop.permute.xlu0 %9367
      %9369 = vrot.lane.b32.xlu0 %v8874, 67
      %v9370 = vpop.permute.xlu0 %9369
      %9371 = vrot.lane.b32.xlu0 %v8877, 67
      %v9372 = vpop.permute.xlu0 %9371
      %9373 = vrot.lane.b32.xlu0 %v8880, 67
      %v9374 = vpop.permute.xlu0 %9373
      %9375 = vrot.lane.b32.xlu0 %v8883, 67
      %v9376 = vpop.permute.xlu0 %9375
      %9377 = vrot.lane.b32.xlu0 %v8886, 67
      %v9378 = vpop.permute.xlu0 %9377
      %9379 = vrot.lane.b32.xlu0 %v8889, 67
      %v9380 = vpop.permute.xlu0 %9379
      %9381 = vrot.lane.b32.xlu0 %v8892, 67
      %v9382 = vpop.permute.xlu0 %9381
      %9383 = vrot.lane.b32.xlu0 %v8895, 67
      %v9384 = vpop.permute.xlu0 %9383
      %9385 = vrot.lane.b32.xlu0 %v8898, 67
      %v9386 = vpop.permute.xlu0 %9385
      %9387 = vrot.lane.b32.xlu0 %v8901, 67
      %v9388 = vpop.permute.xlu0 %9387
      %9389 = vrot.lane.b32.xlu0 %v8904, 67
      %v9390 = vpop.permute.xlu0 %9389
      %9391 = vrot.lane.b32.xlu0 %v8907, 67
      %v9392 = vpop.permute.xlu0 %9391
      %9393 = vrot.lane.b32.xlu0 %v8910, 67
      %v9394 = vpop.permute.xlu0 %9393
      %9395 = vrot.lane.b32.xlu0 %v8913, 67
      %v9396 = vpop.permute.xlu0 %9395
      %9397 = vrot.lane.b32.xlu0 %v8916, 67
      %v9398 = vpop.permute.xlu0 %9397
      %9399 = vrot.lane.b32.xlu0 %v8919, 67
      %v9400 = vpop.permute.xlu0 %9399
      %9401 = vrot.lane.b32.xlu0 %v8922, 67
      %v9402 = vpop.permute.xlu0 %9401
      %9403 = vrot.lane.b32.xlu0 %v8925, 67
      %v9404 = vpop.permute.xlu0 %9403
      %9405 = vrot.lane.b32.xlu0 %v8928, 67
      %v9406 = vpop.permute.xlu0 %9405
      %9407 = vrot.lane.b32.xlu0 %v8931, 67
      %v9408 = vpop.permute.xlu0 %9407
      %9409 = vrot.lane.b32.xlu0 %v8934, 67
      %v9410 = vpop.permute.xlu0 %9409
      %9411 = vrot.lane.b32.xlu0 %v8937, 67
      %v9412 = vpop.permute.xlu0 %9411
      %9413 = vrot.lane.b32.xlu0 %v8940, 67
      %v9414 = vpop.permute.xlu0 %9413
      %9415 = vrot.lane.b32.xlu0 %v8943, 67
      %v9416 = vpop.permute.xlu0 %9415
      %9417 = vrot.lane.b32.xlu0 %v8946, 67
      %v9418 = vpop.permute.xlu0 %9417
      %9419 = vrot.lane.b32.xlu0 %v8949, 67
      %v9420 = vpop.permute.xlu0 %9419
      %9421 = vrot.lane.b32.xlu0 %v8952, 67
      %v9422 = vpop.permute.xlu0 %9421
      %9423 = vrot.lane.b32.xlu0 %v8955, 67
      %v9424 = vpop.permute.xlu0 %9423
      %9425 = vrot.lane.b32.xlu0 %v8958, 67
      %v9426 = vpop.permute.xlu0 %9425
      %9427 = vrot.lane.b32.xlu0 %v8961, 67
      %v9428 = vpop.permute.xlu0 %9427
      %9429 = vrot.lane.b32.xlu0 %v8964, 67
      %v9430 = vpop.permute.xlu0 %9429
      %9431 = vrot.lane.b32.xlu0 %v8967, 67
      %v9432 = vpop.permute.xlu0 %9431
      %9433 = vrot.lane.b32.xlu0 %v8970, 67
      %v9434 = vpop.permute.xlu0 %9433
      %9435 = vrot.lane.b32.xlu0 %v8973, 67
      %v9436 = vpop.permute.xlu0 %9435
      %9437 = vrot.lane.b32.xlu0 %v8976, 67
      %v9438 = vpop.permute.xlu0 %9437
      %9439 = vrot.lane.b32.xlu0 %v8979, 67
      %v9440 = vpop.permute.xlu0 %9439
      %9441 = vrot.lane.b32.xlu0 %v8982, 67
      %v9442 = vpop.permute.xlu0 %9441
      %9443 = vrot.lane.b32.xlu0 %v8985, 67
      %v9444 = vpop.permute.xlu0 %9443
      %9445 = vrot.lane.b32.xlu0 %v8988, 67
      %v9446 = vpop.permute.xlu0 %9445
      %9447 = vrot.lane.b32.xlu0 %v8991, 67
      %v9448 = vpop.permute.xlu0 %9447
      %9449 = vrot.lane.b32.xlu0 %v8994, 67
      %v9450 = vpop.permute.xlu0 %9449
      %9451 = vrot.lane.b32.xlu0 %v8997, 67
      %v9452 = vpop.permute.xlu0 %9451
      %9453 = vrot.lane.b32.xlu0 %v9000, 67
      %v9454 = vpop.permute.xlu0 %9453
      %9455 = vrot.lane.b32.xlu0 %v9003, 67
      %v9456 = vpop.permute.xlu0 %9455
      %9457 = vrot.lane.b32.xlu0 %v9006, 67
      %v9458 = vpop.permute.xlu0 %9457
      %9459 = vrot.lane.b32.xlu0 %v9009, 67
      %v9460 = vpop.permute.xlu0 %9459
      %9461 = vrot.lane.b32.xlu0 %v9012, 67
      %v9462 = vpop.permute.xlu0 %9461
      %9463 = vrot.lane.b32.xlu0 %v9015, 67
      %v9464 = vpop.permute.xlu0 %9463
      %9465 = vrot.lane.b32.xlu0 %v9018, 67
      %v9466 = vpop.permute.xlu0 %9465
      %9467 = vrot.lane.b32.xlu0 %v9021, 67
      %v9468 = vpop.permute.xlu0 %9467
      %9469 = vrot.lane.b32.xlu0 %v9024, 67
      %v9470 = vpop.permute.xlu0 %9469
      %9471 = vrot.lane.b32.xlu0 %v9027, 67
      %v9472 = vpop.permute.xlu0 %9471
      %9473 = vrot.lane.b32.xlu0 %v9030, 67
      %v9474 = vpop.permute.xlu0 %9473
      %9475 = vrot.lane.b32.xlu0 %v9033, 67
      %v9476 = vpop.permute.xlu0 %9475
      %9477 = vrot.lane.b32.xlu0 %v9036, 67
      %v9478 = vpop.permute.xlu0 %9477
      %9479 = vrot.lane.b32.xlu0 %v9039, 67
      %v9480 = vpop.permute.xlu0 %9479
      %9481 = vrot.lane.b32.xlu0 %v9042, 67
      %v9482 = vpop.permute.xlu0 %9481
      %9483 = vrot.lane.b32.xlu0 %v9045, 67
      %v9484 = vpop.permute.xlu0 %9483
      %9485 = vrot.lane.b32.xlu0 %v9048, 67
      %v9486 = vpop.permute.xlu0 %9485
      %9487 = vrot.lane.b32.xlu0 %v9051, 67
      %v9488 = vpop.permute.xlu0 %9487
      %9489 = vrot.lane.b32.xlu0 %v9054, 67
      %v9490 = vpop.permute.xlu0 %9489
      %9491 = vrot.lane.b32.xlu0 %v8592, 67
      %v9492 = vpop.permute.xlu0 %9491
      %9493 = vrot.lane.b32.xlu0 %v8593, 67
      %v9494 = vpop.permute.xlu0 %9493
      %9495 = vrot.lane.b32.xlu0 %v8594, 67
      %v9496 = vpop.permute.xlu0 %9495
      %9497 = vrot.lane.b32.xlu0 %v8595, 67
      %v9498 = vpop.permute.xlu0 %9497
      %9499 = vrot.lane.b32.xlu0 %v8596, 67
      %v9500 = vpop.permute.xlu0 %9499
      %9501 = vrot.lane.b32.xlu0 %v8597, 67
      %v9502 = vpop.permute.xlu0 %9501
      %9503 = vrot.lane.b32.xlu0 %v8598, 67
      %v9504 = vpop.permute.xlu0 %9503
      %9505 = vrot.lane.b32.xlu0 %v8599, 67
      %v9506 = vpop.permute.xlu0 %9505
      %9507 = vrot.lane.b32.xlu0 %v8600, 67
      %v9508 = vpop.permute.xlu0 %9507
      %9509 = vrot.lane.b32.xlu0 %v8601, 67
      %v9510 = vpop.permute.xlu0 %9509
      %9511 = vrot.lane.b32.xlu0 %v8602, 67
      %v9512 = vpop.permute.xlu0 %9511
      %9513 = vrot.lane.b32.xlu0 %v8603, 67
      %v9514 = vpop.permute.xlu0 %9513
      %9515 = vrot.lane.b32.xlu0 %v8604, 67
      %v9516 = vpop.permute.xlu0 %9515
      %9517 = vrot.lane.b32.xlu0 %v8605, 67
      %v9518 = vpop.permute.xlu0 %9517
      %9519 = vrot.lane.b32.xlu0 %v8606, 67
      %v9520 = vpop.permute.xlu0 %9519
      %9521 = vrot.lane.b32.xlu0 %v8607, 67
      %v9522 = vpop.permute.xlu0 %9521
      %9523 = vrot.lane.b32.xlu0 %v8608, 67
      %v9524 = vpop.permute.xlu0 %9523
      %9525 = vrot.lane.b32.xlu0 %v8609, 67
      %v9526 = vpop.permute.xlu0 %9525
      %9527 = vrot.lane.b32.xlu0 %v8610, 67
      %v9528 = vpop.permute.xlu0 %9527
      %9529 = vrot.lane.b32.xlu0 %v8611, 67
      %v9530 = vpop.permute.xlu0 %9529
      %9531 = vrot.lane.b32.xlu0 %v8612, 67
      %v9532 = vpop.permute.xlu0 %9531
      %9533 = vrot.lane.b32.xlu0 %v8613, 67
      %v9534 = vpop.permute.xlu0 %9533
      %9535 = vrot.lane.b32.xlu0 %v8614, 67
      %v9536 = vpop.permute.xlu0 %9535
      %9537 = vrot.lane.b32.xlu0 %v8615, 67
      %v9538 = vpop.permute.xlu0 %9537
      %9539 = vrot.lane.b32.xlu0 %v8616, 67
      %v9540 = vpop.permute.xlu0 %9539
      %9541 = vrot.lane.b32.xlu0 %v8617, 67
      %v9542 = vpop.permute.xlu0 %9541
      %9543 = vrot.lane.b32.xlu0 %v8618, 67
      %v9544 = vpop.permute.xlu0 %9543
      %9545 = vrot.lane.b32.xlu0 %v8619, 67
      %v9546 = vpop.permute.xlu0 %9545
      %9547 = vrot.lane.b32.xlu0 %v8620, 67
      %v9548 = vpop.permute.xlu0 %9547
      %9549 = vrot.lane.b32.xlu0 %v8621, 67
      %v9550 = vpop.permute.xlu0 %9549
      %9551 = vrot.lane.b32.xlu0 %v8622, 67
      %v9552 = vpop.permute.xlu0 %9551
      %9553 = vrot.lane.b32.xlu0 %v8623, 67
      %v9554 = vpop.permute.xlu0 %9553
      %9555 = vrot.lane.b32.xlu0 %v8624, 67
      %v9556 = vpop.permute.xlu0 %9555
      %9557 = vrot.lane.b32.xlu0 %v8625, 67
      %v9558 = vpop.permute.xlu0 %9557
      %9559 = vrot.lane.b32.xlu0 %v8626, 67
      %v9560 = vpop.permute.xlu0 %9559
      %v9561 = vsel %vm2314, %v9206, %v9208
      %v9562 = vsel %vm2314, %v9208, %v9210
      %v9563 = vsel %vm2314, %v9210, %v9212
      %v9564 = vsel %vm2314, %v9212, %v9214
      %v9565 = vsel %vm2314, %v9214, %v9216
      %v9566 = vsel %vm2314, %v9216, %v9218
      %v9567 = vsel %vm2314, %v9218, %v9220
      %v9568 = vsel %vm2314, %v9220, %v9222
      %v9569 = vsel %vm2314, %v9222, %v9224
      %v9570 = vsel %vm2314, %v9224, %v9226
      %v9571 = vsel %vm2314, %v9226, %v9228
      %v9572 = vsel %vm2314, %v9228, %v9230
      %v9573 = vsel %vm2314, %v9230, %v9232
      %v9574 = vsel %vm2314, %v9232, %v9234
      %v9575 = vsel %vm2314, %v9234, %v9236
      %v9576 = vsel %vm2314, %v9236, %v9238
      %v9577 = vsel %vm2314, %v9238, %v9240
      %v9578 = vsel %vm2314, %v9240, %v9242
      %v9579 = vsel %vm2314, %v9242, %v9244
      %v9580 = vsel %vm2314, %v9244, %v9246
      %v9581 = vsel %vm2314, %v9246, %v9248
      %v9582 = vsel %vm2314, %v9248, %v9250
      %v9583 = vsel %vm2314, %v9250, %v9252
      %v9584 = vsel %vm2314, %v9252, %v9254
      %v9585 = vsel %vm2314, %v9254, %v9256
      %v9586 = vsel %vm2314, %v9256, %v9258
      %v9587 = vsel %vm2314, %v9258, %v9260
      %v9588 = vsel %vm2314, %v9260, %v9262
      %v9589 = vsel %vm2314, %v9262, %v9264
      %v9590 = vsel %vm2314, %v9264, %v9266
      %v9591 = vsel %vm2314, %v9266, %v9268
      %v9592 = vsel %vm2314, %v9268, %v9270
      %v9593 = vsel %vm2314, %v9270, %v9272
      %v9594 = vsel %vm2314, %v9272, %v9274
      %v9595 = vsel %vm2314, %v9274, %v9276
      %v9596 = vsel %vm2314, %v9278, %v9280
      %v9597 = vsel %vm2314, %v9280, %v9282
      %v9598 = vsel %vm2314, %v9282, %v9284
      %v9599 = vsel %vm2314, %v9284, %v9286
      %v9600 = vsel %vm2314, %v9286, %v9288
      %v9601 = vsel %vm2314, %v9288, %v9290
      %v9602 = vsel %vm2314, %v9290, %v9292
      %v9603 = vsel %vm2314, %v9292, %v9294
      %v9604 = vsel %vm2314, %v9294, %v9296
      %v9605 = vsel %vm2314, %v9296, %v9298
      %v9606 = vsel %vm2314, %v9298, %v9300
      %v9607 = vsel %vm2314, %v9300, %v9302
      %v9608 = vsel %vm2314, %v9302, %v9304
      %v9609 = vsel %vm2314, %v9304, %v9306
      %v9610 = vsel %vm2314, %v9306, %v9308
      %v9611 = vsel %vm2314, %v9308, %v9310
      %v9612 = vsel %vm2314, %v9310, %v9312
      %v9613 = vsel %vm2314, %v9312, %v9314
      %v9614 = vsel %vm2314, %v9314, %v9316
      %v9615 = vsel %vm2314, %v9316, %v9318
      %v9616 = vsel %vm2314, %v9318, %v9320
      %v9617 = vsel %vm2314, %v9320, %v9322
      %v9618 = vsel %vm2314, %v9322, %v9324
      %v9619 = vsel %vm2314, %v9324, %v9326
      %v9620 = vsel %vm2314, %v9326, %v9328
      %v9621 = vsel %vm2314, %v9328, %v9330
      %v9622 = vsel %vm2314, %v9330, %v9332
      %v9623 = vsel %vm2314, %v9332, %v9334
      %v9624 = vsel %vm2314, %v9334, %v9336
      %v9625 = vsel %vm2314, %v9336, %v9338
      %v9626 = vsel %vm2314, %v9338, %v9340
      %v9627 = vsel %vm2314, %v9340, %v9342
      %v9628 = vsel %vm2314, %v9342, %v9344
      %v9629 = vsel %vm2314, %v9344, %v9346
      %v9630 = vsel %vm2314, %v9346, %v9348
      %v9631 = vsel %vm2314, %v9350, %v9352
      %v9632 = vsel %vm2314, %v9352, %v9354
      %v9633 = vsel %vm2314, %v9354, %v9356
      %v9634 = vsel %vm2314, %v9356, %v9358
      %v9635 = vsel %vm2314, %v9358, %v9360
      %v9636 = vsel %vm2314, %v9360, %v9362
      %v9637 = vsel %vm2314, %v9362, %v9364
      %v9638 = vsel %vm2314, %v9364, %v9366
      %v9639 = vsel %vm2314, %v9366, %v9368
      %v9640 = vsel %vm2314, %v9368, %v9370
      %v9641 = vsel %vm2314, %v9370, %v9372
      %v9642 = vsel %vm2314, %v9372, %v9374
      %v9643 = vsel %vm2314, %v9374, %v9376
      %v9644 = vsel %vm2314, %v9376, %v9378
      %v9645 = vsel %vm2314, %v9378, %v9380
      %v9646 = vsel %vm2314, %v9380, %v9382
      %v9647 = vsel %vm2314, %v9382, %v9384
      %v9648 = vsel %vm2314, %v9384, %v9386
      %v9649 = vsel %vm2314, %v9386, %v9388
      %v9650 = vsel %vm2314, %v9388, %v9390
      %v9651 = vsel %vm2314, %v9390, %v9392
      %v9652 = vsel %vm2314, %v9392, %v9394
      %v9653 = vsel %vm2314, %v9394, %v9396
      %v9654 = vsel %vm2314, %v9396, %v9398
      %v9655 = vsel %vm2314, %v9398, %v9400
      %v9656 = vsel %vm2314, %v9400, %v9402
      %v9657 = vsel %vm2314, %v9402, %v9404
      %v9658 = vsel %vm2314, %v9404, %v9406
      %v9659 = vsel %vm2314, %v9406, %v9408
      %v9660 = vsel %vm2314, %v9408, %v9410
      %v9661 = vsel %vm2314, %v9410, %v9412
      %v9662 = vsel %vm2314, %v9412, %v9414
      %v9663 = vsel %vm2314, %v9414, %v9416
      %v9664 = vsel %vm2314, %v9416, %v9418
      %v9665 = vsel %vm2314, %v9418, %v9420
      %v9666 = vsel %vm2314, %v9422, %v9424
      %v9667 = vsel %vm2314, %v9424, %v9426
      %v9668 = vsel %vm2314, %v9426, %v9428
      %v9669 = vsel %vm2314, %v9428, %v9430
      %v9670 = vsel %vm2314, %v9430, %v9432
      %v9671 = vsel %vm2314, %v9432, %v9434
      %v9672 = vsel %vm2314, %v9434, %v9436
      %v9673 = vsel %vm2314, %v9436, %v9438
      %v9674 = vsel %vm2314, %v9438, %v9440
      %v9675 = vsel %vm2314, %v9440, %v9442
      %v9676 = vsel %vm2314, %v9442, %v9444
      %v9677 = vsel %vm2314, %v9444, %v9446
      %v9678 = vsel %vm2314, %v9446, %v9448
      %v9679 = vsel %vm2314, %v9448, %v9450
      %v9680 = vsel %vm2314, %v9450, %v9452
      %v9681 = vsel %vm2314, %v9452, %v9454
      %v9682 = vsel %vm2314, %v9454, %v9456
      %v9683 = vsel %vm2314, %v9456, %v9458
      %v9684 = vsel %vm2314, %v9458, %v9460
      %v9685 = vsel %vm2314, %v9460, %v9462
      %v9686 = vsel %vm2314, %v9462, %v9464
      %v9687 = vsel %vm2314, %v9464, %v9466
      %v9688 = vsel %vm2314, %v9466, %v9468
      %v9689 = vsel %vm2314, %v9468, %v9470
      %v9690 = vsel %vm2314, %v9470, %v9472
      %v9691 = vsel %vm2314, %v9472, %v9474
      %v9692 = vsel %vm2314, %v9474, %v9476
      %v9693 = vsel %vm2314, %v9476, %v9478
      %v9694 = vsel %vm2314, %v9478, %v9480
      %v9695 = vsel %vm2314, %v9480, %v9482
      %v9696 = vsel %vm2314, %v9482, %v9484
      %v9697 = vsel %vm2314, %v9484, %v9486
      %v9698 = vsel %vm2314, %v9486, %v9488
      %v9699 = vsel %vm2314, %v9488, %v9490
      %v9700 = vsel %vm2314, %v9490, %v2241
      %v9701 = vsel %vm2314, %v9492, %v9494
      %v9702 = vsel %vm2314, %v9494, %v9496
      %v9703 = vsel %vm2314, %v9496, %v9498
      %v9704 = vsel %vm2314, %v9498, %v9500
      %v9705 = vsel %vm2314, %v9500, %v9502
      %v9706 = vsel %vm2314, %v9502, %v9504
      %v9707 = vsel %vm2314, %v9504, %v9506
      %v9708 = vsel %vm2314, %v9506, %v9508
      %v9709 = vsel %vm2314, %v9508, %v9510
      %v9710 = vsel %vm2314, %v9510, %v9512
      %v9711 = vsel %vm2314, %v9512, %v9514
      %v9712 = vsel %vm2314, %v9514, %v9516
      %v9713 = vsel %vm2314, %v9516, %v9518
      %v9714 = vsel %vm2314, %v9518, %v9520
      %v9715 = vsel %vm2314, %v9520, %v9522
      %v9716 = vsel %vm2314, %v9522, %v9524
      %v9717 = vsel %vm2314, %v9524, %v9526
      %v9718 = vsel %vm2314, %v9526, %v9528
      %v9719 = vsel %vm2314, %v9528, %v9530
      %v9720 = vsel %vm2314, %v9530, %v9532
      %v9721 = vsel %vm2314, %v9532, %v9534
      %v9722 = vsel %vm2314, %v9534, %v9536
      %v9723 = vsel %vm2314, %v9536, %v9538
      %v9724 = vsel %vm2314, %v9538, %v9540
      %v9725 = vsel %vm2314, %v9540, %v9542
      %v9726 = vsel %vm2314, %v9542, %v9544
      %v9727 = vsel %vm2314, %v9544, %v9546
      %v9728 = vsel %vm2314, %v9546, %v9548
      %v9729 = vsel %vm2314, %v9548, %v9550
      %v9730 = vsel %vm2314, %v9550, %v9552
      %v9731 = vsel %vm2314, %v9552, %v9554
      %v9732 = vsel %vm2314, %v9554, %v9556
      %v9733 = vsel %vm2314, %v9556, %v9558
      %v9734 = vsel %vm2314, %v9558, %v9560
      %v9735 = vsel %vm2314, %v9560, %v2313
      %v9877 = vsel %vm2630, %v9055, 0
      %v9880 = vsel %vm1370, %v9701, 0
      %v9883 = vsel %vm1370, %v9702, 0
      %v9886 = vsel %vm1370, %v9703, 0
      %v9889 = vsel %vm1370, %v9704, 0
      %v9892 = vsel %vm1370, %v9705, 0
      %v9895 = vsel %vm1370, %v9706, 0
      %v9898 = vsel %vm1370, %v9707, 0
      %v9901 = vsel %vm1370, %v9708, 0
      %v9904 = vsel %vm1370, %v9709, 0
      %v9907 = vsel %vm1370, %v9710, 0
      %v9910 = vsel %vm1370, %v9711, 0
      %v9913 = vsel %vm1370, %v9712, 0
      %v9916 = vsel %vm1370, %v9713, 0
      %v9919 = vsel %vm1370, %v9714, 0
      %v9922 = vsel %vm1370, %v9715, 0
      %v9925 = vsel %vm1370, %v9716, 0
      %v9928 = vsel %vm1370, %v9717, 0
      %v9931 = vsel %vm1370, %v9718, 0
      %v9934 = vsel %vm1370, %v9719, 0
      %v9937 = vsel %vm1370, %v9720, 0
      %v9940 = vsel %vm1370, %v9721, 0
      %v9943 = vsel %vm1370, %v9722, 0
      %v9946 = vsel %vm1370, %v9723, 0
      %v9949 = vsel %vm1370, %v9724, 0
      %v9952 = vsel %vm1370, %v9725, 0
      %v9955 = vsel %vm1370, %v9726, 0
      %v9958 = vsel %vm1370, %v9727, 0
      %v9961 = vsel %vm1370, %v9728, 0
      %v9964 = vsel %vm1370, %v9729, 0
      %v9967 = vsel %vm1370, %v9730, 0
      %v9970 = vsel %vm1370, %v9731, 0
      %v9973 = vsel %vm1370, %v9732, 0
      %v9976 = vsel %vm1370, %v9733, 0
      %v9979 = vsel %vm1370, %v9734, 0
      %v9982 = vsel %vm1370, %v9735, 0
      %9984 = vmatpush.bf16.msra.mxu0 0
      %9985 = vmatpush.bf16.msra.mxu0 0
      %9986 = vmatpush.bf16.msra.mxu0 0
      %9987 = vmatpush.bf16.msra.mxu0 %v9880
      %9988 = vmatpush.bf16.msra.mxu0 %v9666
      %9989 = vmatpush.bf16.msra.mxu0 %v9631
      %9990 = vmatpush.bf16.msra.mxu0 %v9596
      %9991 = vmatpush.bf16.msra.mxu0 %v9561
      %9992 = vmatmul.bf16.gmra.mxu0 %v9877
      %v9993 = vpop.f32.mrf.mxu0
      %v9994 = vadd.f32 %v9060, %v9993
      %v9995 = vpop.f32.mrf.mxu0
      %9996 = vdwg.mxu0
      %9997 = vmatpush.bf16.msra.mxu0 0
      %9998 = vmatpush.bf16.msra.mxu0 0
      %9999 = vmatpush.bf16.msra.mxu0 0
      %10000 = vmatpush.bf16.msra.mxu0 %v9883
      %10001 = vmatpush.bf16.msra.mxu0 %v9667
      %10002 = vmatpush.bf16.msra.mxu0 %v9632
      %10003 = vmatpush.bf16.msra.mxu0 %v9597
      %10004 = vmatpush.bf16.msra.mxu0 %v9562
      %10005 = vmatmul.bf16.gmra.mxu0 %v9877
      %v10006 = vpop.f32.mrf.mxu0
      %v10007 = vadd.f32 %v9060, %v10006
      %v10008 = vpop.f32.mrf.mxu0
      %10009 = vdwg.mxu0
      %10010 = vmatpush.bf16.msra.mxu0 0
      %10011 = vmatpush.bf16.msra.mxu0 0
      %10012 = vmatpush.bf16.msra.mxu0 0
      %10013 = vmatpush.bf16.msra.mxu0 %v9886
      %10014 = vmatpush.bf16.msra.mxu0 %v9668
      %10015 = vmatpush.bf16.msra.mxu0 %v9633
      %10016 = vmatpush.bf16.msra.mxu0 %v9598
      %10017 = vmatpush.bf16.msra.mxu0 %v9563
      %10018 = vmatmul.bf16.gmra.mxu0 %v9877
      %v10019 = vpop.f32.mrf.mxu0
      %v10020 = vadd.f32 %v9060, %v10019
      %v10021 = vpop.f32.mrf.mxu0
      %10022 = vdwg.mxu0
      %10023 = vmatpush.bf16.msra.mxu0 0
      %10024 = vmatpush.bf16.msra.mxu0 0
      %10025 = vmatpush.bf16.msra.mxu0 0
      %10026 = vmatpush.bf16.msra.mxu0 %v9889
      %10027 = vmatpush.bf16.msra.mxu0 %v9669
      %10028 = vmatpush.bf16.msra.mxu0 %v9634
      %10029 = vmatpush.bf16.msra.mxu0 %v9599
      %10030 = vmatpush.bf16.msra.mxu0 %v9564
      %10031 = vmatmul.bf16.gmra.mxu0 %v9877
      %v10032 = vpop.f32.mrf.mxu0
      %v10033 = vadd.f32 %v9060, %v10032
      %v10034 = vpop.f32.mrf.mxu0
      %10035 = vdwg.mxu0
      %10036 = vmatpush.bf16.msra.mxu0 0
      %10037 = vmatpush.bf16.msra.mxu0 0
      %10038 = vmatpush.bf16.msra.mxu0 0
      %10039 = vmatpush.bf16.msra.mxu0 %v9892
      %10040 = vmatpush.bf16.msra.mxu0 %v9670
      %10041 = vmatpush.bf16.msra.mxu0 %v9635
      %10042 = vmatpush.bf16.msra.mxu0 %v9600
      %10043 = vmatpush.bf16.msra.mxu0 %v9565
      %10044 = vmatmul.bf16.gmra.mxu0 %v9877
      %v10045 = vpop.f32.mrf.mxu0
      %v10046 = vadd.f32 %v9060, %v10045
      %v10047 = vpop.f32.mrf.mxu0
      %10048 = vdwg.mxu0
      %10049 = vmatpush.bf16.msra.mxu0 0
      %10050 = vmatpush.bf16.msra.mxu0 0
      %10051 = vmatpush.bf16.msra.mxu0 0
      %10052 = vmatpush.bf16.msra.mxu0 %v9895
      %10053 = vmatpush.bf16.msra.mxu0 %v9671
      %10054 = vmatpush.bf16.msra.mxu0 %v9636
      %10055 = vmatpush.bf16.msra.mxu0 %v9601
      %10056 = vmatpush.bf16.msra.mxu0 %v9566
      %10057 = vmatmul.bf16.gmra.mxu0 %v9877
      %v10058 = vpop.f32.mrf.mxu0
      %v10059 = vadd.f32 %v9060, %v10058
      %v10060 = vpop.f32.mrf.mxu0
      %10061 = vdwg.mxu0
      %10062 = vmatpush.bf16.msra.mxu0 0
      %10063 = vmatpush.bf16.msra.mxu0 0
      %10064 = vmatpush.bf16.msra.mxu0 0
      %10065 = vmatpush.bf16.msra.mxu0 %v9898
      %10066 = vmatpush.bf16.msra.mxu0 %v9672
      %10067 = vmatpush.bf16.msra.mxu0 %v9637
      %10068 = vmatpush.bf16.msra.mxu0 %v9602
      %10069 = vmatpush.bf16.msra.mxu0 %v9567
      %10070 = vmatmul.bf16.gmra.mxu0 %v9877
      %v10071 = vpop.f32.mrf.mxu0
      %v10072 = vadd.f32 %v9060, %v10071
      %v10073 = vpop.f32.mrf.mxu0
      %10074 = vdwg.mxu0
      %10075 = vmatpush.bf16.msra.mxu0 0
      %10076 = vmatpush.bf16.msra.mxu0 0
      %10077 = vmatpush.bf16.msra.mxu0 0
      %10078 = vmatpush.bf16.msra.mxu0 %v9901
      %10079 = vmatpush.bf16.msra.mxu0 %v9673
      %10080 = vmatpush.bf16.msra.mxu0 %v9638
      %10081 = vmatpush.bf16.msra.mxu0 %v9603
      %10082 = vmatpush.bf16.msra.mxu0 %v9568
      %10083 = vmatmul.bf16.gmra.mxu0 %v9877
      %v10084 = vpop.f32.mrf.mxu0
      %v10085 = vadd.f32 %v9060, %v10084
      %v10086 = vpop.f32.mrf.mxu0
      %10087 = vdwg.mxu0
      %10088 = vmatpush.bf16.msra.mxu0 0
      %10089 = vmatpush.bf16.msra.mxu0 0
      %10090 = vmatpush.bf16.msra.mxu0 0
      %10091 = vmatpush.bf16.msra.mxu0 %v9904
      %10092 = vmatpush.bf16.msra.mxu0 %v9674
      %10093 = vmatpush.bf16.msra.mxu0 %v9639
      %10094 = vmatpush.bf16.msra.mxu0 %v9604
      %10095 = vmatpush.bf16.msra.mxu0 %v9569
      %10096 = vmatmul.bf16.gmra.mxu0 %v9877
      %v10097 = vpop.f32.mrf.mxu0
      %v10098 = vadd.f32 %v9060, %v10097
      %v10099 = vpop.f32.mrf.mxu0
      %10100 = vdwg.mxu0
      %10101 = vmatpush.bf16.msra.mxu0 0
      %10102 = vmatpush.bf16.msra.mxu0 0
      %10103 = vmatpush.bf16.msra.mxu0 0
      %10104 = vmatpush.bf16.msra.mxu0 %v9907
      %10105 = vmatpush.bf16.msra.mxu0 %v9675
      %10106 = vmatpush.bf16.msra.mxu0 %v9640
      %10107 = vmatpush.bf16.msra.mxu0 %v9605
      %10108 = vmatpush.bf16.msra.mxu0 %v9570
      %10109 = vmatmul.bf16.gmra.mxu0 %v9877
      %v10110 = vpop.f32.mrf.mxu0
      %v10111 = vadd.f32 %v9060, %v10110
      %v10112 = vpop.f32.mrf.mxu0
      %10113 = vdwg.mxu0
      %10114 = vmatpush.bf16.msra.mxu0 0
      %10115 = vmatpush.bf16.msra.mxu0 0
      %10116 = vmatpush.bf16.msra.mxu0 0
      %10117 = vmatpush.bf16.msra.mxu0 %v9910
      %10118 = vmatpush.bf16.msra.mxu0 %v9676
      %10119 = vmatpush.bf16.msra.mxu0 %v9641
      %10120 = vmatpush.bf16.msra.mxu0 %v9606
      %10121 = vmatpush.bf16.msra.mxu0 %v9571
      %10122 = vmatmul.bf16.gmra.mxu0 %v9877
      %v10123 = vpop.f32.mrf.mxu0
      %v10124 = vadd.f32 %v9060, %v10123
      %v10125 = vpop.f32.mrf.mxu0
      %10126 = vdwg.mxu0
      %10127 = vmatpush.bf16.msra.mxu0 0
      %10128 = vmatpush.bf16.msra.mxu0 0
      %10129 = vmatpush.bf16.msra.mxu0 0
      %10130 = vmatpush.bf16.msra.mxu0 %v9913
      %10131 = vmatpush.bf16.msra.mxu0 %v9677
      %10132 = vmatpush.bf16.msra.mxu0 %v9642
      %10133 = vmatpush.bf16.msra.mxu0 %v9607
      %10134 = vmatpush.bf16.msra.mxu0 %v9572
      %10135 = vmatmul.bf16.gmra.mxu0 %v9877
      %v10136 = vpop.f32.mrf.mxu0
      %v10137 = vadd.f32 %v9060, %v10136
      %v10138 = vpop.f32.mrf.mxu0
      %10139 = vdwg.mxu0
      %10140 = vmatpush.bf16.msra.mxu0 0
      %10141 = vmatpush.bf16.msra.mxu0 0
      %10142 = vmatpush.bf16.msra.mxu0 0
      %10143 = vmatpush.bf16.msra.mxu0 %v9916
      %10144 = vmatpush.bf16.msra.mxu0 %v9678
      %10145 = vmatpush.bf16.msra.mxu0 %v9643
      %10146 = vmatpush.bf16.msra.mxu0 %v9608
      %10147 = vmatpush.bf16.msra.mxu0 %v9573
      %10148 = vmatmul.bf16.gmra.mxu0 %v9877
      %v10149 = vpop.f32.mrf.mxu0
      %v10150 = vadd.f32 %v9060, %v10149
      %v10151 = vpop.f32.mrf.mxu0
      %10152 = vdwg.mxu0
      %10153 = vmatpush.bf16.msra.mxu0 0
      %10154 = vmatpush.bf16.msra.mxu0 0
      %10155 = vmatpush.bf16.msra.mxu0 0
      %10156 = vmatpush.bf16.msra.mxu0 %v9919
      %10157 = vmatpush.bf16.msra.mxu0 %v9679
      %10158 = vmatpush.bf16.msra.mxu0 %v9644
      %10159 = vmatpush.bf16.msra.mxu0 %v9609
      %10160 = vmatpush.bf16.msra.mxu0 %v9574
      %10161 = vmatmul.bf16.gmra.mxu0 %v9877
      %v10162 = vpop.f32.mrf.mxu0
      %v10163 = vadd.f32 %v9060, %v10162
      %v10164 = vpop.f32.mrf.mxu0
      %10165 = vdwg.mxu0
      %10166 = vmatpush.bf16.msra.mxu0 0
      %10167 = vmatpush.bf16.msra.mxu0 0
      %10168 = vmatpush.bf16.msra.mxu0 0
      %10169 = vmatpush.bf16.msra.mxu0 %v9922
      %10170 = vmatpush.bf16.msra.mxu0 %v9680
      %10171 = vmatpush.bf16.msra.mxu0 %v9645
      %10172 = vmatpush.bf16.msra.mxu0 %v9610
      %10173 = vmatpush.bf16.msra.mxu0 %v9575
      %10174 = vmatmul.bf16.gmra.mxu0 %v9877
      %v10175 = vpop.f32.mrf.mxu0
      %v10176 = vadd.f32 %v9060, %v10175
      %v10177 = vpop.f32.mrf.mxu0
      %10178 = vdwg.mxu0
      %10179 = vmatpush.bf16.msra.mxu0 0
      %10180 = vmatpush.bf16.msra.mxu0 0
      %10181 = vmatpush.bf16.msra.mxu0 0
      %10182 = vmatpush.bf16.msra.mxu0 %v9925
      %10183 = vmatpush.bf16.msra.mxu0 %v9681
      %10184 = vmatpush.bf16.msra.mxu0 %v9646
      %10185 = vmatpush.bf16.msra.mxu0 %v9611
      %10186 = vmatpush.bf16.msra.mxu0 %v9576
      %10187 = vmatmul.bf16.gmra.mxu0 %v9877
      %v10188 = vpop.f32.mrf.mxu0
      %v10189 = vadd.f32 %v9060, %v10188
      %v10190 = vpop.f32.mrf.mxu0
      %10191 = vdwg.mxu0
      %10192 = vmatpush.bf16.msra.mxu0 0
      %10193 = vmatpush.bf16.msra.mxu0 0
      %10194 = vmatpush.bf16.msra.mxu0 0
      %10195 = vmatpush.bf16.msra.mxu0 %v9928
      %10196 = vmatpush.bf16.msra.mxu0 %v9682
      %10197 = vmatpush.bf16.msra.mxu0 %v9647
      %10198 = vmatpush.bf16.msra.mxu0 %v9612
      %10199 = vmatpush.bf16.msra.mxu0 %v9577
      %10200 = vmatmul.bf16.gmra.mxu0 %v9877
      %v10201 = vpop.f32.mrf.mxu0
      %v10202 = vadd.f32 %v9060, %v10201
      %v10203 = vpop.f32.mrf.mxu0
      %10204 = vdwg.mxu0
      %10205 = vmatpush.bf16.msra.mxu0 0
      %10206 = vmatpush.bf16.msra.mxu0 0
      %10207 = vmatpush.bf16.msra.mxu0 0
      %10208 = vmatpush.bf16.msra.mxu0 %v9931
      %10209 = vmatpush.bf16.msra.mxu0 %v9683
      %10210 = vmatpush.bf16.msra.mxu0 %v9648
      %10211 = vmatpush.bf16.msra.mxu0 %v9613
      %10212 = vmatpush.bf16.msra.mxu0 %v9578
      %10213 = vmatmul.bf16.gmra.mxu0 %v9877
      %v10214 = vpop.f32.mrf.mxu0
      %v10215 = vadd.f32 %v9060, %v10214
      %v10216 = vpop.f32.mrf.mxu0
      %10217 = vdwg.mxu0
      %10218 = vmatpush.bf16.msra.mxu0 0
      %10219 = vmatpush.bf16.msra.mxu0 0
      %10220 = vmatpush.bf16.msra.mxu0 0
      %10221 = vmatpush.bf16.msra.mxu0 %v9934
      %10222 = vmatpush.bf16.msra.mxu0 %v9684
      %10223 = vmatpush.bf16.msra.mxu0 %v9649
      %10224 = vmatpush.bf16.msra.mxu0 %v9614
      %10225 = vmatpush.bf16.msra.mxu0 %v9579
      %10226 = vmatmul.bf16.gmra.mxu0 %v9877
      %v10227 = vpop.f32.mrf.mxu0
      %v10228 = vadd.f32 %v9060, %v10227
      %v10229 = vpop.f32.mrf.mxu0
      %10230 = vdwg.mxu0
      %10231 = vmatpush.bf16.msra.mxu0 0
      %10232 = vmatpush.bf16.msra.mxu0 0
      %10233 = vmatpush.bf16.msra.mxu0 0
      %10234 = vmatpush.bf16.msra.mxu0 %v9937
      %10235 = vmatpush.bf16.msra.mxu0 %v9685
      %10236 = vmatpush.bf16.msra.mxu0 %v9650
      %10237 = vmatpush.bf16.msra.mxu0 %v9615
      %10238 = vmatpush.bf16.msra.mxu0 %v9580
      %10239 = vmatmul.bf16.gmra.mxu0 %v9877
      %v10240 = vpop.f32.mrf.mxu0
      %v10241 = vadd.f32 %v9060, %v10240
      %v10242 = vpop.f32.mrf.mxu0
      %10243 = vdwg.mxu0
      %10244 = vmatpush.bf16.msra.mxu0 0
      %10245 = vmatpush.bf16.msra.mxu0 0
      %10246 = vmatpush.bf16.msra.mxu0 0
      %10247 = vmatpush.bf16.msra.mxu0 %v9940
      %10248 = vmatpush.bf16.msra.mxu0 %v9686
      %10249 = vmatpush.bf16.msra.mxu0 %v9651
      %10250 = vmatpush.bf16.msra.mxu0 %v9616
      %10251 = vmatpush.bf16.msra.mxu0 %v9581
      %10252 = vmatmul.bf16.gmra.mxu0 %v9877
      %v10253 = vpop.f32.mrf.mxu0
      %v10254 = vadd.f32 %v9060, %v10253
      %v10255 = vpop.f32.mrf.mxu0
      %10256 = vdwg.mxu0
      %10257 = vmatpush.bf16.msra.mxu0 0
      %10258 = vmatpush.bf16.msra.mxu0 0
      %10259 = vmatpush.bf16.msra.mxu0 0
      %10260 = vmatpush.bf16.msra.mxu0 %v9943
      %10261 = vmatpush.bf16.msra.mxu0 %v9687
      %10262 = vmatpush.bf16.msra.mxu0 %v9652
      %10263 = vmatpush.bf16.msra.mxu0 %v9617
      %10264 = vmatpush.bf16.msra.mxu0 %v9582
      %10265 = vmatmul.bf16.gmra.mxu0 %v9877
      %v10266 = vpop.f32.mrf.mxu0
      %v10267 = vadd.f32 %v9060, %v10266
      %v10268 = vpop.f32.mrf.mxu0
      %10269 = vdwg.mxu0
      %10270 = vmatpush.bf16.msra.mxu0 0
      %10271 = vmatpush.bf16.msra.mxu0 0
      %10272 = vmatpush.bf16.msra.mxu0 0
      %10273 = vmatpush.bf16.msra.mxu0 %v9946
      %10274 = vmatpush.bf16.msra.mxu0 %v9688
      %10275 = vmatpush.bf16.msra.mxu0 %v9653
      %10276 = vmatpush.bf16.msra.mxu0 %v9618
      %10277 = vmatpush.bf16.msra.mxu0 %v9583
      %10278 = vmatmul.bf16.gmra.mxu0 %v9877
      %v10279 = vpop.f32.mrf.mxu0
      %v10280 = vadd.f32 %v9060, %v10279
      %v10281 = vpop.f32.mrf.mxu0
      %10282 = vdwg.mxu0
      %10283 = vmatpush.bf16.msra.mxu0 0
      %10284 = vmatpush.bf16.msra.mxu0 0
      %10285 = vmatpush.bf16.msra.mxu0 0
      %10286 = vmatpush.bf16.msra.mxu0 %v9949
      %10287 = vmatpush.bf16.msra.mxu0 %v9689
      %10288 = vmatpush.bf16.msra.mxu0 %v9654
      %10289 = vmatpush.bf16.msra.mxu0 %v9619
      %10290 = vmatpush.bf16.msra.mxu0 %v9584
      %10291 = vmatmul.bf16.gmra.mxu0 %v9877
      %v10292 = vpop.f32.mrf.mxu0
      %v10293 = vadd.f32 %v9060, %v10292
      %v10294 = vpop.f32.mrf.mxu0
      %10295 = vdwg.mxu0
      %10296 = vmatpush.bf16.msra.mxu0 0
      %10297 = vmatpush.bf16.msra.mxu0 0
      %10298 = vmatpush.bf16.msra.mxu0 0
      %10299 = vmatpush.bf16.msra.mxu0 %v9952
      %10300 = vmatpush.bf16.msra.mxu0 %v9690
      %10301 = vmatpush.bf16.msra.mxu0 %v9655
      %10302 = vmatpush.bf16.msra.mxu0 %v9620
      %10303 = vmatpush.bf16.msra.mxu0 %v9585
      %10304 = vmatmul.bf16.gmra.mxu0 %v9877
      %v10305 = vpop.f32.mrf.mxu0
      %v10306 = vadd.f32 %v9060, %v10305
      %v10307 = vpop.f32.mrf.mxu0
      %10308 = vdwg.mxu0
      %10309 = vmatpush.bf16.msra.mxu0 0
      %10310 = vmatpush.bf16.msra.mxu0 0
      %10311 = vmatpush.bf16.msra.mxu0 0
      %10312 = vmatpush.bf16.msra.mxu0 %v9955
      %10313 = vmatpush.bf16.msra.mxu0 %v9691
      %10314 = vmatpush.bf16.msra.mxu0 %v9656
      %10315 = vmatpush.bf16.msra.mxu0 %v9621
      %10316 = vmatpush.bf16.msra.mxu0 %v9586
      %10317 = vmatmul.bf16.gmra.mxu0 %v9877
      %v10318 = vpop.f32.mrf.mxu0
      %v10319 = vadd.f32 %v9060, %v10318
      %v10320 = vpop.f32.mrf.mxu0
      %10321 = vdwg.mxu0
      %10322 = vmatpush.bf16.msra.mxu0 0
      %10323 = vmatpush.bf16.msra.mxu0 0
      %10324 = vmatpush.bf16.msra.mxu0 0
      %10325 = vmatpush.bf16.msra.mxu0 %v9958
      %10326 = vmatpush.bf16.msra.mxu0 %v9692
      %10327 = vmatpush.bf16.msra.mxu0 %v9657
      %10328 = vmatpush.bf16.msra.mxu0 %v9622
      %10329 = vmatpush.bf16.msra.mxu0 %v9587
      %10330 = vmatmul.bf16.gmra.mxu0 %v9877
      %v10331 = vpop.f32.mrf.mxu0
      %v10332 = vadd.f32 %v9060, %v10331
      %v10333 = vpop.f32.mrf.mxu0
      %10334 = vdwg.mxu0
      %10335 = vmatpush.bf16.msra.mxu0 0
      %10336 = vmatpush.bf16.msra.mxu0 0
      %10337 = vmatpush.bf16.msra.mxu0 0
      %10338 = vmatpush.bf16.msra.mxu0 %v9961
      %10339 = vmatpush.bf16.msra.mxu0 %v9693
      %10340 = vmatpush.bf16.msra.mxu0 %v9658
      %10341 = vmatpush.bf16.msra.mxu0 %v9623
      %10342 = vmatpush.bf16.msra.mxu0 %v9588
      %10343 = vmatmul.bf16.gmra.mxu0 %v9877
      %v10344 = vpop.f32.mrf.mxu0
      %v10345 = vadd.f32 %v9060, %v10344
      %v10346 = vpop.f32.mrf.mxu0
      %10347 = vdwg.mxu0
      %10348 = vmatpush.bf16.msra.mxu0 0
      %10349 = vmatpush.bf16.msra.mxu0 0
      %10350 = vmatpush.bf16.msra.mxu0 0
      %10351 = vmatpush.bf16.msra.mxu0 %v9964
      %10352 = vmatpush.bf16.msra.mxu0 %v9694
      %10353 = vmatpush.bf16.msra.mxu0 %v9659
      %10354 = vmatpush.bf16.msra.mxu0 %v9624
      %10355 = vmatpush.bf16.msra.mxu0 %v9589
      %10356 = vmatmul.bf16.gmra.mxu0 %v9877
      %v10357 = vpop.f32.mrf.mxu0
      %v10358 = vadd.f32 %v9060, %v10357
      %v10359 = vpop.f32.mrf.mxu0
      %10360 = vdwg.mxu0
      %10361 = vmatpush.bf16.msra.mxu0 0
      %10362 = vmatpush.bf16.msra.mxu0 0
      %10363 = vmatpush.bf16.msra.mxu0 0
      %10364 = vmatpush.bf16.msra.mxu0 %v9967
      %10365 = vmatpush.bf16.msra.mxu0 %v9695
      %10366 = vmatpush.bf16.msra.mxu0 %v9660
      %10367 = vmatpush.bf16.msra.mxu0 %v9625
      %10368 = vmatpush.bf16.msra.mxu0 %v9590
      %10369 = vmatmul.bf16.gmra.mxu0 %v9877
      %v10370 = vpop.f32.mrf.mxu0
      %v10371 = vadd.f32 %v9060, %v10370
      %v10372 = vpop.f32.mrf.mxu0
      %10373 = vdwg.mxu0
      %10374 = vmatpush.bf16.msra.mxu0 0
      %10375 = vmatpush.bf16.msra.mxu0 0
      %10376 = vmatpush.bf16.msra.mxu0 0
      %10377 = vmatpush.bf16.msra.mxu0 %v9970
      %10378 = vmatpush.bf16.msra.mxu0 %v9696
      %10379 = vmatpush.bf16.msra.mxu0 %v9661
      %10380 = vmatpush.bf16.msra.mxu0 %v9626
      %10381 = vmatpush.bf16.msra.mxu0 %v9591
      %10382 = vmatmul.bf16.gmra.mxu0 %v9877
      %v10383 = vpop.f32.mrf.mxu0
      %v10384 = vadd.f32 %v9060, %v10383
      %v10385 = vpop.f32.mrf.mxu0
      %10386 = vdwg.mxu0
      %10387 = vmatpush.bf16.msra.mxu0 0
      %10388 = vmatpush.bf16.msra.mxu0 0
      %10389 = vmatpush.bf16.msra.mxu0 0
      %10390 = vmatpush.bf16.msra.mxu0 %v9973
      %10391 = vmatpush.bf16.msra.mxu0 %v9697
      %10392 = vmatpush.bf16.msra.mxu0 %v9662
      %10393 = vmatpush.bf16.msra.mxu0 %v9627
      %10394 = vmatpush.bf16.msra.mxu0 %v9592
      %10395 = vmatmul.bf16.gmra.mxu0 %v9877
      %v10396 = vpop.f32.mrf.mxu0
      %v10397 = vadd.f32 %v9060, %v10396
      %v10398 = vpop.f32.mrf.mxu0
      %10399 = vdwg.mxu0
      %10400 = vmatpush.bf16.msra.mxu0 0
      %10401 = vmatpush.bf16.msra.mxu0 0
      %10402 = vmatpush.bf16.msra.mxu0 0
      %10403 = vmatpush.bf16.msra.mxu0 %v9976
      %10404 = vmatpush.bf16.msra.mxu0 %v9698
      %10405 = vmatpush.bf16.msra.mxu0 %v9663
      %10406 = vmatpush.bf16.msra.mxu0 %v9628
      %10407 = vmatpush.bf16.msra.mxu0 %v9593
      %10408 = vmatmul.bf16.gmra.mxu0 %v9877
      %v10409 = vpop.f32.mrf.mxu0
      %v10410 = vadd.f32 %v9060, %v10409
      %v10411 = vpop.f32.mrf.mxu0
      %10412 = vdwg.mxu0
      %10413 = vmatpush.bf16.msra.mxu0 0
      %10414 = vmatpush.bf16.msra.mxu0 0
      %10415 = vmatpush.bf16.msra.mxu0 0
      %10416 = vmatpush.bf16.msra.mxu0 %v9979
      %10417 = vmatpush.bf16.msra.mxu0 %v9699
      %10418 = vmatpush.bf16.msra.mxu0 %v9664
      %10419 = vmatpush.bf16.msra.mxu0 %v9629
      %10420 = vmatpush.bf16.msra.mxu0 %v9594
      %10421 = vmatmul.bf16.gmra.mxu0 %v9877
      %v10422 = vpop.f32.mrf.mxu0
      %v10423 = vadd.f32 %v9060, %v10422
      %v10424 = vpop.f32.mrf.mxu0
      %10425 = vdwg.mxu0
      %10426 = vmatpush.bf16.msra.mxu0 0
      %10427 = vmatpush.bf16.msra.mxu0 0
      %10428 = vmatpush.bf16.msra.mxu0 0
      %10429 = vmatpush.bf16.msra.mxu0 %v9982
      %10430 = vmatpush.bf16.msra.mxu0 %v9700
      %10431 = vmatpush.bf16.msra.mxu0 %v9665
      %10432 = vmatpush.bf16.msra.mxu0 %v9630
      %10433 = vmatpush.bf16.msra.mxu0 %v9595
      %10434 = vmatmul.bf16.gmra.mxu0 %v9877
      %v10435 = vpop.f32.mrf.mxu0
      %v10436 = vadd.f32 %v9060, %v10435
      %v10437 = vpop.f32.mrf.mxu0
      %10438 = vdwg.mxu0
      %v10439 = vmul.f32 %v9994, %v3199
      %v10440 = vmul.f32 %v10007, %v3200
      %v10441 = vmul.f32 %v10020, %v3201
      %v10442 = vmul.f32 %v10033, %v3202
      %v10443 = vmul.f32 %v10046, %v3203
      %v10444 = vmul.f32 %v10059, %v3204
      %v10445 = vmul.f32 %v10072, %v3205
      %v10446 = vmul.f32 %v10085, %v3206
      %v10447 = vmul.f32 %v10098, %v3207
      %v10448 = vmul.f32 %v10111, %v3208
      %v10449 = vmul.f32 %v10124, %v3209
      %v10450 = vmul.f32 %v10137, %v3210
      %v10451 = vmul.f32 %v10150, %v3211
      %v10452 = vmul.f32 %v10163, %v3212
      %v10453 = vmul.f32 %v10176, %v3213
      %v10454 = vmul.f32 %v10189, %v3214
      %v10455 = vmul.f32 %v10202, %v3215
      %v10456 = vmul.f32 %v10215, %v3216
      %v10457 = vmul.f32 %v10228, %v3217
      %v10458 = vmul.f32 %v10241, %v3218
      %v10459 = vmul.f32 %v10254, %v3219
      %v10460 = vmul.f32 %v10267, %v3220
      %v10461 = vmul.f32 %v10280, %v3221
      %v10462 = vmul.f32 %v10293, %v3222
      %v10463 = vmul.f32 %v10306, %v3223
      %v10464 = vmul.f32 %v10319, %v3224
      %v10465 = vmul.f32 %v10332, %v3225
      %v10466 = vmul.f32 %v10345, %v3226
      %v10467 = vmul.f32 %v10358, %v3227
      %v10468 = vmul.f32 %v10371, %v3228
      %v10469 = vmul.f32 %v10384, %v3229
      %v10470 = vmul.f32 %v10397, %v3230
      %v10471 = vmul.f32 %v10410, %v3231
      %v10472 = vmul.f32 %v10423, %v3232
      %v10473 = vmul.f32 %v10436, %v3233
      %v10474 = vpack.c.bf16 %v10440, %v10439
      %v10475 = vpack.c.bf16 %v10442, %v10441
      %v10476 = vpack.c.bf16 %v10444, %v10443
      %v10477 = vpack.c.bf16 %v10446, %v10445
      %v10478 = vpack.c.bf16 %v10448, %v10447
      %v10479 = vpack.c.bf16 %v10450, %v10449
      %v10480 = vpack.c.bf16 %v10452, %v10451
      %v10481 = vpack.c.bf16 %v10454, %v10453
      %v10482 = vpack.c.bf16 %v10456, %v10455
      %v10483 = vpack.c.bf16 %v10458, %v10457
      %v10484 = vpack.c.bf16 %v10460, %v10459
      %v10485 = vpack.c.bf16 %v10462, %v10461
      %v10486 = vpack.c.bf16 %v10464, %v10463
      %v10487 = vpack.c.bf16 %v10466, %v10465
      %v10488 = vpack.c.bf16 %v10468, %v10467
      %v10489 = vpack.c.bf16 %v10470, %v10469
      %v10490 = vpack.c.bf16 %v10472, %v10471
      %v10491 = vpack.c.bf16 %v10473, %v10473
      %v10510 = vrot.slane %v10474, 2
      %v10511 = vrot.slane %v10475, 4
      %v10512 = vrot.slane %v10475, 6
      %v10513 = vrot.slane %v10476, 2
      %v10514 = vrot.slane %v10477, 4
      %v10515 = vrot.slane %v10477, 6
      %v10516 = vrot.slane %v10478, 2
      %v10517 = vrot.slane %v10479, 4
      %v10518 = vrot.slane %v10479, 6
      %v10519 = vrot.slane %v10480, 2
      %v10520 = vrot.slane %v10481, 4
      %v10521 = vrot.slane %v10481, 6
      %v10522 = vrot.slane %v10482, 2
      %v10523 = vrot.slane %v10483, 4
      %v10524 = vrot.slane %v10483, 6
      %v10525 = vrot.slane %v10484, 2
      %v10526 = vrot.slane %v10485, 4
      %v10527 = vrot.slane %v10485, 6
      %v10528 = vrot.slane %v10486, 2
      %v10529 = vrot.slane %v10487, 4
      %v10530 = vrot.slane %v10487, 6
      %v10531 = vrot.slane %v10488, 2
      %v10532 = vrot.slane %v10489, 4
      %v10533 = vrot.slane %v10489, 6
      %v10534 = vrot.slane %v10490, 2
      %v10535 = vrot.slane %v10491, 4
      %v10536 = vrot.slane %v10491, 6
      %vm10537 = vcmask 1041408
      %v10540 = vsel %vm10537, %v10474, %v10510
      %vm10541 = vcmask 1045508
      %v10544 = vsel %vm10541, %v10511, %v10512
      %v10545 = vsel %vm1370, %v10540, %v10544
      %v10548 = vsel %vm10537, %v10476, %v10513
      %v10551 = vsel %vm10541, %v10514, %v10515
      %v10552 = vsel %vm1370, %v10548, %v10551
      %v10555 = vsel %vm10537, %v10478, %v10516
      %v10558 = vsel %vm10541, %v10517, %v10518
      %v10559 = vsel %vm1370, %v10555, %v10558
      %v10562 = vsel %vm10537, %v10480, %v10519
      %v10565 = vsel %vm10541, %v10520, %v10521
      %v10566 = vsel %vm1370, %v10562, %v10565
      %v10569 = vsel %vm10537, %v10482, %v10522
      %v10572 = vsel %vm10541, %v10523, %v10524
      %v10573 = vsel %vm1370, %v10569, %v10572
      %v10576 = vsel %vm10537, %v10484, %v10525
      %v10579 = vsel %vm10541, %v10526, %v10527
      %v10580 = vsel %vm1370, %v10576, %v10579
      %v10583 = vsel %vm10537, %v10486, %v10528
      %v10586 = vsel %vm10541, %v10529, %v10530
      %v10587 = vsel %vm1370, %v10583, %v10586
      %v10590 = vsel %vm10537, %v10488, %v10531
      %v10593 = vsel %vm10541, %v10532, %v10533
      %v10594 = vsel %vm1370, %v10590, %v10593
      %v10597 = vsel %vm10537, %v10490, %v10534
      %v10600 = vsel %vm10541, %v10535, %v10536
      %v10601 = vsel %vm1370, %v10597, %v10600
      %vm10611 = vcmask 1041408
      %vm10612 = vsmask.f32 1280
      %vm10613 = vmand %vm10611, %vm10612
      %vm10614 = vcmask 1043458
      %vm10615 = vsmask.f32 3328
      %vm10616 = vmand %vm10614, %vm10615
      %vm10617 = vmor %vm10616, %vm10613
      %vm10618 = vcmask 1045508
      %vm10619 = vsmask.f32 5376
      %vm10620 = vmand %vm10618, %vm10619
      %vm10621 = vmor %vm10620, %vm10617
      %vm10622 = vcmask 1047558
      %vm10623 = vsmask.f32 7424
      %vm10624 = vmand %vm10622, %vm10623
      %vm10625 = vmor %vm10624, %vm10621
      %v10626 = vld [vmem:[%s359] sm:$0xff]
      %v10627 = vsel %vm10625, %v10545, %v10626
      %10628 = vst [vmem:[%s359] sm:$0xff] %v10627
      %v10629 = vld [vmem:[%s359 + $0x8] sm:$0xff]
      %v10630 = vsel %vm10625, %v10552, %v10629
      %10631 = vst [vmem:[%s359 + $0x8] sm:$0xff] %v10630
      %v10632 = vld [vmem:[%s359 + $0x10] sm:$0xff]
      %v10633 = vsel %vm10625, %v10559, %v10632
      %10634 = vst [vmem:[%s359 + $0x10] sm:$0xff] %v10633
      %v10635 = vld [vmem:[%s359 + $0x18] sm:$0xff]
      %v10636 = vsel %vm10625, %v10566, %v10635
      %10637 = vst [vmem:[%s359 + $0x18] sm:$0xff] %v10636
      %v10638 = vld [vmem:[%s359 + $0x20] sm:$0xff]
      %v10639 = vsel %vm10625, %v10573, %v10638
      %10640 = vst [vmem:[%s359 + $0x20] sm:$0xff] %v10639
      %v10641 = vld [vmem:[%s359 + $0x28] sm:$0xff]
      %v10642 = vsel %vm10625, %v10580, %v10641
      %10643 = vst [vmem:[%s359 + $0x28] sm:$0xff] %v10642
      %v10644 = vld [vmem:[%s359 + $0x30] sm:$0xff]
      %v10645 = vsel %vm10625, %v10587, %v10644
      %10646 = vst [vmem:[%s359 + $0x30] sm:$0xff] %v10645
      %v10647 = vld [vmem:[%s359 + $0x38] sm:$0xff]
      %v10648 = vsel %vm10625, %v10594, %v10647
      %10649 = vst [vmem:[%s359 + $0x38] sm:$0xff] %v10648
      %v10650 = vld [vmem:[%s359 + $0x40] sm:$0x3f]
      %v10651 = vsel %vm10621, %v10601, %v10650
      %10652 = vst [vmem:[%s359 + $0x40] sm:$0x3f] %v10651
      %p10653 = scmp.lt.s32.totalorder %s21, 1
      %s10654 = scalar_select %p10653, %s21, 1
      %s10655 = smul.addr %s10654, 35
      %s10656 = smul.addr %s10655, 2
      %s10657 = scalar_lea.vmem %s10, %s10656
      // Predicated region
      $region61: #{pa_up_forward.3} parent=59 // pred_check
        %p10658 = pneg %p254
      $region62: #{pa_up_forward.3} parent=59 // pred_check_branch
        %10660 = sbr.rel (%p10658) target = $region64
      $region63: #{pa_up_forward.3} parent=59 // pred_region
        _
      $region64: #{pa_up_forward.3} parent=59 // pred_fallthru
        _
    $region60: #{pa_up_forward.3} parent=5 // pred_fallthru
      _
    %p10661 = scmp.le.s32.totalorder 2, %s16
    // Predicated region
    $region65: #{pa_up_forward.3} parent=5 // pred_check
      %p10662 = pneg %p10661
    $region66: #{pa_up_forward.3} parent=5 // pred_check_branch
      %10664 = sbr.rel (%p10662) target = $region68
    $region67: #{pa_up_forward.3} parent=5 // pred_region
      %s10665 = ssub.s32 %s16, 2
      // Predicated region
      $region69: #{pa_up_forward.3} parent=67 // pred_check
        %p10666 = pneg %p260
      $region70: #{pa_up_forward.3} parent=67 // pred_check_branch
        %10668 = sbr.rel (%p10666) target = $region72
      $region71: #{pa_up_forward.3} parent=67 // pred_region
        %p10669 = scmp.lt.s32.totalorder %s22, 1
        %s10670 = scalar_select %p10669, %s22, 1
        %s10671 = smul.addr %s10670, 35
        %s10672 = smul.addr %s10671, 2
        %s10673 = scalar_lea.vmem %s10, %s10672
      $region72: #{pa_up_forward.3} parent=67 // pred_fallthru
        _
    $region68: #{pa_up_forward.3} parent=5 // pred_fallthru
      _
  $region6: #{pa_up_forward.3} parent=0 // loop_footer
    %s20 = sadd.s32 1, %s16
  $region7: #{pa_up_forward.3} parent=0 // loop_footer_branch
    %15 = sbr.rel target = $region3
  $region8: #{pa_up_forward.3} parent=0 // loop_exit
    _

</llo_original>
